<compile_context>
chip_gen: v7x
topology: tpu7x:2x2x1
jax: 0.10.0
libtpu: 0.0.40
codegen_flags: <defaults>
</compile_context>

<pallas_src>
import jax
import jax.numpy as jnp
import numpy as np
from jax.experimental import pallas as pl
from jax.experimental.pallas import tpu as pltpu

# ---- model hyper-params (small, consistent with the module's __init__) ----------
HIDDEN = 64          # hidden_size (constructor arg, small for testing)
HEADS = 8            # num_attention_heads (result is head-count independent at S=1)
LAYERS = 4           # num_layers
FFN = 2048           # nn.TransformerEncoderLayer default dim_feedforward
D_IN = 32            # lazily-inferred input feature size
BATCH = 2
LN_EPS = 1e-5        # nn.LayerNorm default


def _layer_norm(y, w, b):
    mu = jnp.mean(y, axis=-1, keepdims=True)
    var = jnp.mean((y - mu) ** 2, axis=-1, keepdims=True)
    return (y - mu) * jax.lax.rsqrt(var + LN_EPS) * w + b


def _bf16(a):
    return a.astype(jnp.bfloat16)


# ---------------------------------- kernel ---------------------------------------
def mmt_kernel(x_ref, wp_ref, bp_ref,
               wvo_ref, w1_ref, b1_ref, w2_ref, bias_ref,
               wr1_ref, br1_ref, wr2_ref, br2_ref,
               out_ref):
    # feature_projection + positional encoding (pos already folded into bp on host).
    x = jnp.dot(_bf16(x_ref[...]), wp_ref[...],
                preferred_element_type=jnp.float32) + bp_ref[...]

    # 4 post-norm TransformerEncoderLayers (batch_first, relu, eval), fully
    # unrolled with static per-layer weight slices; activation stays in vregs.
    for l in range(LAYERS):
        b = bias_ref[l]                       # (6, H) f32: bvo, ln1w, ln1b, b2, ln2w, ln2b
        # seq_len == 1: softmax over one key == 1 => attention == x @ (Wv Wo) + bvo.
        attn = jnp.dot(_bf16(x), wvo_ref[l],
                       preferred_element_type=jnp.float32) + b[0]
        x = _layer_norm(x + attn, b[1], b[2])

        h = jnp.maximum(
            jnp.dot(_bf16(x), w1_ref[l],
                    preferred_element_type=jnp.float32) + b1_ref[l], 0.0)
        ff = jnp.dot(_bf16(h), w2_ref[l],
                     preferred_element_type=jnp.float32) + b[3]
        x = _layer_norm(x + ff, b[4], b[5])

    # pooled output (mean over seq_len==1 is identity) + risk head.
    hh = jnp.maximum(
        jnp.dot(_bf16(x), wr1_ref[...],
                preferred_element_type=jnp.float32) + br1_ref[...], 0.0)
    out_ref[...] = jnp.dot(_bf16(hh), wr2_ref[...],
                           preferred_element_type=jnp.float32) + br2_ref[...]


# --------------------------------- wrapper ---------------------------------------
@jax.jit
def multimodal_transformer(features, kp):
    B = features.shape[0]
    H, L, F, HALF = HIDDEN, LAYERS, FFN, HIDDEN // 2

    args = (features,
            kp["wp_t"], kp["bp_pos"],
            kp["wvo_t"], kp["w1_t"], kp["b1"], kp["w2_t"], kp["bias6"],
            kp["wr1_t"], kp["br1"], kp["wr2_t"], kp["br2"])

    flops = 2 * B * (D_IN * H + L * (H * H + 2 * H * F) + H * HALF + HALF)
    bytes_accessed = sum(int(a.size) * a.dtype.itemsize for a in args) + B * 4

    # Single invocation, no grid: every operand is a fully resident VMEM block
    # (total residency ~2.3 MB -> fits all generations' scoped VMEM defaults).
    return pl.pallas_call(
        mmt_kernel,
        out_shape=jax.ShapeDtypeStruct((B, 1), jnp.float32),
        compiler_params=pltpu.CompilerParams(vmem_limit_bytes=32 << 20),
        cost_estimate=pl.CostEstimate(flops=flops,
                                      transcendentals=2 * L * B,
                                      bytes_accessed=bytes_accessed),
    )(*args)


# --------------------- host-side param prep (fuse / transpose / pack / bf16) ------
def prepare_params(p):
    """One-time host-side re-layout:
       * slice V out of the fused QKV weights (Q/K are dead at seq_len==1),
       * fuse V-proj and out-proj: Wvo = Wv^T @ Wo^T (f32 product, cast once),
         bvo = bv @ Wo^T + bo,
       * fold the positional encoding into the projection bias,
       * pack the 6 remaining per-layer f32 vectors into one (L, 6, H) array,
       * pre-transpose all matmul weights to (in, out) and cast them to bf16."""
    H = HIDDEN

    wv_t = jnp.swapaxes(p["wqkv"][:, 2 * H:3 * H, :], 1, 2)       # (L, H, H) in,out
    wo_t = jnp.swapaxes(p["wo"], 1, 2)                            # (L, H, H) in,out
    wvo_t = jnp.einsum("lij,ljk->lik", wv_t, wo_t)                # f32 product
    bv = p["bqkv"][:, 0, 2 * H:3 * H]                             # (L, H)
    bvo = jnp.einsum("lj,ljk->lk", bv, wo_t) + p["bo"][:, 0, :]   # (L, H)

    bias6 = jnp.stack([bvo,
                       p["ln1w"][:, 0, :], p["ln1b"][:, 0, :],
                       p["b2"][:, 0, :],
                       p["ln2w"][:, 0, :], p["ln2b"][:, 0, :]], axis=1)  # (L, 6, H)

    return {
        "wp_t":   _bf16(p["wp"].T),                               # (D_IN, H)
        "bp_pos": p["bp"] + p["pos"][:, 0, :],                    # (1, H) f32
        "wvo_t":  _bf16(wvo_t),                                   # (L, H, H)
        "w1_t":   _bf16(jnp.swapaxes(p["w1"], 1, 2)),             # (L, H, FFN)
        "b1":     p["b1"],                                        # (L, 1, FFN) f32
        "w2_t":   _bf16(jnp.swapaxes(p["w2"], 1, 2)),             # (L, FFN, H)
        "bias6":  bias6,                                          # (L, 6, H) f32
        "wr1_t":  _bf16(p["wr1"].T),                              # (H, H//2)
        "br1":    p["br1"],                                       # (1, H//2)
        "wr2_t":  _bf16(p["wr2"].T),                              # (H//2, 1)
        "br2":    p["br2"],                                       # (1, 1)
    }


# ---------------------------- deterministic params --------------------------------
def init_params(key):
    ks = jax.random.split(key, 16)
    s = 0.02
    H, L, F = HIDDEN, LAYERS, FFN
    return {
        "wp":   jax.random.normal(ks[0], (H, D_IN), jnp.float32) * s,
        "bp":   jax.random.normal(ks[1], (1, H), jnp.float32) * s,
        # positional_encoding is (1, 1000, H); forward only uses [:, :1, :]
        "pos":  jax.random.normal(ks[2], (1, 1000, H), jnp.float32),
        "wqkv": jax.random.normal(ks[3], (L, 3 * H, H), jnp.float32) * s,
        "bqkv": jax.random.normal(ks[4], (L, 1, 3 * H), jnp.float32) * s,
        "wo":   jax.random.normal(ks[5], (L, H, H), jnp.float32) * s,
        "bo":   jax.random.normal(ks[6], (L, 1, H), jnp.float32) * s,
        "ln1w": jnp.ones((L, 1, H), jnp.float32),
        "ln1b": jnp.zeros((L, 1, H), jnp.float32),
        "w1":   jax.random.normal(ks[7], (L, F, H), jnp.float32) * s,
        "b1":   jax.random.normal(ks[8], (L, 1, F), jnp.float32) * s,
        "w2":   jax.random.normal(ks[9], (L, H, F), jnp.float32) * s,
        "b2":   jax.random.normal(ks[10], (L, 1, H), jnp.float32) * s,
        "ln2w": jnp.ones((L, 1, H), jnp.float32),
        "ln2b": jnp.zeros((L, 1, H), jnp.float32),
        "wr1":  jax.random.normal(ks[11], (H // 2, H), jnp.float32) * s,
        "br1":  jax.random.normal(ks[12], (1, H // 2), jnp.float32) * s,
        "wr2":  jax.random.normal(ks[13], (1, H // 2), jnp.float32) * s,
        "br2":  jax.random.normal(ks[14], (1, 1), jnp.float32) * s,
    }


# ---------------------------- pure-JAX reference -----------------------------------
def reference(features, p):
    """Follows the PyTorch forward (post-norm encoder, relu FFN, mean pool over
    seq_len==1, risk head).  Mirrors the kernel's numerics exactly: bf16 rounding
    of matmul operands (weights and activation LHS) with f32 accumulation, and the
    seq_len==1 V/O-projection fusion (which is exact algebra)."""
    H = HIDDEN

    def rb(a):  # bf16 round-trip: mirrors the kernel's bf16 MXU operands
        return a.astype(jnp.bfloat16).astype(jnp.float32)

    x = rb(features) @ rb(p["wp"].T) + p["bp"][0] + p["pos"][0, 0]
    for l in range(LAYERS):
        wv = p["wqkv"][l, 2 * H:3 * H, :]
        bv = p["bqkv"][l, 0, 2 * H:3 * H]
        wo = p["wo"][l]
        # seq_len == 1 => softmax over a single key == 1 => attn = x @ Wv^T @ Wo^T + ...
        wvo = wv.T @ wo.T                         # f32 product, rounded once (as in kernel)
        bvo = bv @ wo.T + p["bo"][l, 0]
        attn = rb(x) @ rb(wvo) + bvo
        x = _layer_norm(x + attn, p["ln1w"][l, 0], p["ln1b"][l, 0])
        h = jnp.maximum(rb(x) @ rb(p["w1"][l].T) + p["b1"][l, 0], 0.0)
        ff = rb(h) @ rb(p["w2"][l].T) + p["b2"][l, 0]
        x = _layer_norm(x + ff, p["ln2w"][l, 0], p["ln2b"][l, 0])
    hh = jnp.maximum(rb(x) @ rb(p["wr1"].T) + p["br1"][0], 0.0)
    return rb(hh) @ rb(p["wr2"].T) + p["br2"][0]


if __name__ == "__main__":
    key = jax.random.PRNGKey(0)
    k_in, k_par = jax.random.split(key)
    features = jax.random.normal(k_in, (BATCH, D_IN), jnp.float32)
    params = init_params(k_par)
    kernel_params = prepare_params(params)   # one-time host-side re-layout

    risk_score = multimodal_transformer(features, kernel_params)
    risk_score = jax.block_until_ready(risk_score)

    ref = reference(features, params)
    assert risk_score.shape == (BATCH, 1)
    np.testing.assert_allclose(np.asarray(risk_score), np.asarray(ref),
                               rtol=2e-3, atol=1e-4)
    print("KERNEL_OK")
</pallas_src>

<mosaic_0001>
module attributes {stable_mosaic.version = 11 : i64} {
  func.func @mmt_kernel(%arg0: memref<2x32xf32, #tpu.memory_space<vmem>>, %arg1: memref<32x64xbf16, #tpu.memory_space<vmem>>, %arg2: memref<1x64xf32, #tpu.memory_space<vmem>>, %arg3: memref<4x64x64xbf16, #tpu.memory_space<vmem>>, %arg4: memref<4x64x2048xbf16, #tpu.memory_space<vmem>>, %arg5: memref<4x1x2048xf32, #tpu.memory_space<vmem>>, %arg6: memref<4x2048x64xbf16, #tpu.memory_space<vmem>>, %arg7: memref<4x6x64xf32, #tpu.memory_space<vmem>>, %arg8: memref<64x32xbf16, #tpu.memory_space<vmem>>, %arg9: memref<1x32xf32, #tpu.memory_space<vmem>>, %arg10: memref<32x1xbf16, #tpu.memory_space<vmem>>, %arg11: memref<1x1xf32, #tpu.memory_space<vmem>>, %arg12: memref<2x1xf32, #tpu.memory_space<vmem>>) attributes {dimension_semantics = [], scalar_prefetch = 0 : i64, scratch_operands = 0 : i64, tpu.core_type = #tpu.core_type<tc>} {
    %c0 = arith.constant 0 : index
    %c0_0 = arith.constant 0 : index
    %0 = vector.load %arg0[%c0, %c0_0] : memref<2x32xf32, #tpu.memory_space<vmem>>, vector<2x32xf32>
    %1 = arith.truncf %0 : vector<2x32xf32> to vector<2x32xbf16>
    %c0_1 = arith.constant 0 : index
    %c0_2 = arith.constant 0 : index
    %2 = vector.load %arg1[%c0_1, %c0_2] : memref<32x64xbf16, #tpu.memory_space<vmem>>, vector<32x64xbf16>
    %cst = arith.constant dense<0.000000e+00> : vector<2x64xf32>
    %3 = tpu.matmul %1, %2, %cst {dimension_numbers = #tpu.dot_dimension_numbers<[1], [0], [0], [1], [0, 0, 1, 1], [], []>} : vector<2x32xbf16>, vector<32x64xbf16>, vector<2x64xf32> -> vector<2x64xf32>
    %c0_3 = arith.constant 0 : index
    %c0_4 = arith.constant 0 : index
    %4 = vector.load %arg2[%c0_3, %c0_4] : memref<1x64xf32, #tpu.memory_space<vmem>>, vector<1x64xf32>
    %5 = vector.broadcast %4 : vector<1x64xf32> to vector<2x64xf32>
    %6 = arith.addf %3, %5 : vector<2x64xf32>
    %c0_5 = arith.constant 0 : index
    %c0_6 = arith.constant 0 : index
    %c0_7 = arith.constant 0 : index
    %7 = vector.load %arg7[%c0_5, %c0_6, %c0_7] : memref<4x6x64xf32, #tpu.memory_space<vmem>>, vector<1x6x64xf32>
    %8 = vector.shape_cast %7 : vector<1x6x64xf32> to vector<6x64xf32>
    %9 = arith.truncf %6 : vector<2x64xf32> to vector<2x64xbf16>
    %c0_8 = arith.constant 0 : index
    %c0_9 = arith.constant 0 : index
    %c0_10 = arith.constant 0 : index
    %10 = vector.load %arg3[%c0_8, %c0_9, %c0_10] : memref<4x64x64xbf16, #tpu.memory_space<vmem>>, vector<1x64x64xbf16>
    %11 = vector.shape_cast %10 : vector<1x64x64xbf16> to vector<64x64xbf16>
    %cst_11 = arith.constant dense<0.000000e+00> : vector<2x64xf32>
    %12 = tpu.matmul %9, %11, %cst_11 {dimension_numbers = #tpu.dot_dimension_numbers<[1], [0], [0], [1], [0, 0, 1, 1], [], []>} : vector<2x64xbf16>, vector<64x64xbf16>, vector<2x64xf32> -> vector<2x64xf32>
    %13 = vector.extract_strided_slice %8 {offsets = [0, 0], sizes = [1, 64], strides = [1, 1]} : vector<6x64xf32> to vector<1x64xf32>
    %14 = vector.shape_cast %13 : vector<1x64xf32> to vector<64xf32>
    %15 = vector.shape_cast %14 : vector<64xf32> to vector<1x64xf32>
    %16 = vector.broadcast %15 : vector<1x64xf32> to vector<2x64xf32>
    %17 = arith.addf %12, %16 : vector<2x64xf32>
    %18 = arith.addf %6, %17 : vector<2x64xf32>
    %19 = vector.extract_strided_slice %8 {offsets = [1, 0], sizes = [1, 64], strides = [1, 1]} : vector<6x64xf32> to vector<1x64xf32>
    %20 = vector.shape_cast %19 : vector<1x64xf32> to vector<64xf32>
    %21 = vector.extract_strided_slice %8 {offsets = [2, 0], sizes = [1, 64], strides = [1, 1]} : vector<6x64xf32> to vector<1x64xf32>
    %22 = vector.shape_cast %21 : vector<1x64xf32> to vector<64xf32>
    %cst_12 = arith.constant dense<0.000000e+00> : vector<2xf32>
    %23 = vector.multi_reduction <add>, %18, %cst_12 [1] : vector<2x64xf32> to vector<2xf32>
    %24 = vector.shape_cast %23 : vector<2xf32> to vector<2x1xf32>
    %cst_13 = arith.constant 6.400000e+01 : f32
    %25 = vector.broadcast %cst_13 : f32 to vector<2x1xf32>
    %26 = arith.divf %24, %25 : vector<2x1xf32>
    %27 = vector.broadcast %26 : vector<2x1xf32> to vector<2x64xf32>
    %28 = arith.subf %18, %27 : vector<2x64xf32>
    %29 = arith.mulf %28, %28 : vector<2x64xf32>
    %cst_14 = arith.constant dense<0.000000e+00> : vector<2xf32>
    %30 = vector.multi_reduction <add>, %29, %cst_14 [1] : vector<2x64xf32> to vector<2xf32>
    %31 = vector.shape_cast %30 : vector<2xf32> to vector<2x1xf32>
    %cst_15 = arith.constant 6.400000e+01 : f32
    %32 = vector.broadcast %cst_15 : f32 to vector<2x1xf32>
    %33 = arith.divf %31, %32 : vector<2x1xf32>
    %34 = vector.broadcast %26 : vector<2x1xf32> to vector<2x64xf32>
    %35 = arith.subf %18, %34 : vector<2x64xf32>
    %cst_16 = arith.constant 9.99999974E-6 : f32
    %36 = vector.broadcast %cst_16 : f32 to vector<2x1xf32>
    %37 = arith.addf %33, %36 : vector<2x1xf32>
    %38 = math.rsqrt %37 : vector<2x1xf32>
    %39 = vector.broadcast %38 : vector<2x1xf32> to vector<2x64xf32>
    %40 = arith.mulf %35, %39 : vector<2x64xf32>
    %41 = vector.shape_cast %20 : vector<64xf32> to vector<1x64xf32>
    %42 = vector.broadcast %41 : vector<1x64xf32> to vector<2x64xf32>
    %43 = arith.mulf %40, %42 : vector<2x64xf32>
    %44 = vector.shape_cast %22 : vector<64xf32> to vector<1x64xf32>
    %45 = vector.broadcast %44 : vector<1x64xf32> to vector<2x64xf32>
    %46 = arith.addf %43, %45 : vector<2x64xf32>
    %47 = arith.truncf %46 : vector<2x64xf32> to vector<2x64xbf16>
    %c0_17 = arith.constant 0 : index
    %c0_18 = arith.constant 0 : index
    %c0_19 = arith.constant 0 : index
    %48 = vector.load %arg4[%c0_17, %c0_18, %c0_19] : memref<4x64x2048xbf16, #tpu.memory_space<vmem>>, vector<1x64x2048xbf16>
    %49 = vector.shape_cast %48 : vector<1x64x2048xbf16> to vector<64x2048xbf16>
    %cst_20 = arith.constant dense<0.000000e+00> : vector<2x2048xf32>
    %50 = tpu.matmul %47, %49, %cst_20 {dimension_numbers = #tpu.dot_dimension_numbers<[1], [0], [0], [1], [0, 0, 1, 1], [], []>} : vector<2x64xbf16>, vector<64x2048xbf16>, vector<2x2048xf32> -> vector<2x2048xf32>
    %c0_21 = arith.constant 0 : index
    %c0_22 = arith.constant 0 : index
    %c0_23 = arith.constant 0 : index
    %51 = vector.load %arg5[%c0_21, %c0_22, %c0_23] : memref<4x1x2048xf32, #tpu.memory_space<vmem>>, vector<1x1x2048xf32>
    %52 = vector.shape_cast %51 : vector<1x1x2048xf32> to vector<1x2048xf32>
    %53 = vector.broadcast %52 : vector<1x2048xf32> to vector<2x2048xf32>
    %54 = arith.addf %50, %53 : vector<2x2048xf32>
    %cst_24 = arith.constant 0.000000e+00 : f32
    %55 = vector.broadcast %cst_24 : f32 to vector<2x2048xf32>
    %56 = arith.maximumf %54, %55 : vector<2x2048xf32>
    %57 = arith.truncf %56 : vector<2x2048xf32> to vector<2x2048xbf16>
    %c0_25 = arith.constant 0 : index
    %c0_26 = arith.constant 0 : index
    %c0_27 = arith.constant 0 : index
    %58 = vector.load %arg6[%c0_25, %c0_26, %c0_27] : memref<4x2048x64xbf16, #tpu.memory_space<vmem>>, vector<1x2048x64xbf16>
    %59 = vector.shape_cast %58 : vector<1x2048x64xbf16> to vector<2048x64xbf16>
    %cst_28 = arith.constant dense<0.000000e+00> : vector<2x64xf32>
    %60 = tpu.matmul %57, %59, %cst_28 {dimension_numbers = #tpu.dot_dimension_numbers<[1], [0], [0], [1], [0, 0, 1, 1], [], []>} : vector<2x2048xbf16>, vector<2048x64xbf16>, vector<2x64xf32> -> vector<2x64xf32>
    %61 = vector.extract_strided_slice %8 {offsets = [3, 0], sizes = [1, 64], strides = [1, 1]} : vector<6x64xf32> to vector<1x64xf32>
    %62 = vector.shape_cast %61 : vector<1x64xf32> to vector<64xf32>
    %63 = vector.shape_cast %62 : vector<64xf32> to vector<1x64xf32>
    %64 = vector.broadcast %63 : vector<1x64xf32> to vector<2x64xf32>
    %65 = arith.addf %60, %64 : vector<2x64xf32>
    %66 = arith.addf %46, %65 : vector<2x64xf32>
    %67 = vector.extract_strided_slice %8 {offsets = [4, 0], sizes = [1, 64], strides = [1, 1]} : vector<6x64xf32> to vector<1x64xf32>
    %68 = vector.shape_cast %67 : vector<1x64xf32> to vector<64xf32>
    %69 = vector.extract_strided_slice %8 {offsets = [5, 0], sizes = [1, 64], strides = [1, 1]} : vector<6x64xf32> to vector<1x64xf32>
    %70 = vector.shape_cast %69 : vector<1x64xf32> to vector<64xf32>
    %cst_29 = arith.constant dense<0.000000e+00> : vector<2xf32>
    %71 = vector.multi_reduction <add>, %66, %cst_29 [1] : vector<2x64xf32> to vector<2xf32>
    %72 = vector.shape_cast %71 : vector<2xf32> to vector<2x1xf32>
    %cst_30 = arith.constant 6.400000e+01 : f32
    %73 = vector.broadcast %cst_30 : f32 to vector<2x1xf32>
    %74 = arith.divf %72, %73 : vector<2x1xf32>
    %75 = vector.broadcast %74 : vector<2x1xf32> to vector<2x64xf32>
    %76 = arith.subf %66, %75 : vector<2x64xf32>
    %77 = arith.mulf %76, %76 : vector<2x64xf32>
    %cst_31 = arith.constant dense<0.000000e+00> : vector<2xf32>
    %78 = vector.multi_reduction <add>, %77, %cst_31 [1] : vector<2x64xf32> to vector<2xf32>
    %79 = vector.shape_cast %78 : vector<2xf32> to vector<2x1xf32>
    %cst_32 = arith.constant 6.400000e+01 : f32
    %80 = vector.broadcast %cst_32 : f32 to vector<2x1xf32>
    %81 = arith.divf %79, %80 : vector<2x1xf32>
    %82 = vector.broadcast %74 : vector<2x1xf32> to vector<2x64xf32>
    %83 = arith.subf %66, %82 : vector<2x64xf32>
    %cst_33 = arith.constant 9.99999974E-6 : f32
    %84 = vector.broadcast %cst_33 : f32 to vector<2x1xf32>
    %85 = arith.addf %81, %84 : vector<2x1xf32>
    %86 = math.rsqrt %85 : vector<2x1xf32>
    %87 = vector.broadcast %86 : vector<2x1xf32> to vector<2x64xf32>
    %88 = arith.mulf %83, %87 : vector<2x64xf32>
    %89 = vector.shape_cast %68 : vector<64xf32> to vector<1x64xf32>
    %90 = vector.broadcast %89 : vector<1x64xf32> to vector<2x64xf32>
    %91 = arith.mulf %88, %90 : vector<2x64xf32>
    %92 = vector.shape_cast %70 : vector<64xf32> to vector<1x64xf32>
    %93 = vector.broadcast %92 : vector<1x64xf32> to vector<2x64xf32>
    %94 = arith.addf %91, %93 : vector<2x64xf32>
    %c1 = arith.constant 1 : index
    %c0_34 = arith.constant 0 : index
    %c0_35 = arith.constant 0 : index
    %95 = vector.load %arg7[%c1, %c0_34, %c0_35] : memref<4x6x64xf32, #tpu.memory_space<vmem>>, vector<1x6x64xf32>
    %96 = vector.shape_cast %95 : vector<1x6x64xf32> to vector<6x64xf32>
    %97 = arith.truncf %94 : vector<2x64xf32> to vector<2x64xbf16>
    %c1_36 = arith.constant 1 : index
    %c0_37 = arith.constant 0 : index
    %c0_38 = arith.constant 0 : index
    %98 = vector.load %arg3[%c1_36, %c0_37, %c0_38] : memref<4x64x64xbf16, #tpu.memory_space<vmem>>, vector<1x64x64xbf16>
    %99 = vector.shape_cast %98 : vector<1x64x64xbf16> to vector<64x64xbf16>
    %cst_39 = arith.constant dense<0.000000e+00> : vector<2x64xf32>
    %100 = tpu.matmul %97, %99, %cst_39 {dimension_numbers = #tpu.dot_dimension_numbers<[1], [0], [0], [1], [0, 0, 1, 1], [], []>} : vector<2x64xbf16>, vector<64x64xbf16>, vector<2x64xf32> -> vector<2x64xf32>
    %101 = vector.extract_strided_slice %96 {offsets = [0, 0], sizes = [1, 64], strides = [1, 1]} : vector<6x64xf32> to vector<1x64xf32>
    %102 = vector.shape_cast %101 : vector<1x64xf32> to vector<64xf32>
    %103 = vector.shape_cast %102 : vector<64xf32> to vector<1x64xf32>
    %104 = vector.broadcast %103 : vector<1x64xf32> to vector<2x64xf32>
    %105 = arith.addf %100, %104 : vector<2x64xf32>
    %106 = arith.addf %94, %105 : vector<2x64xf32>
    %107 = vector.extract_strided_slice %96 {offsets = [1, 0], sizes = [1, 64], strides = [1, 1]} : vector<6x64xf32> to vector<1x64xf32>
    %108 = vector.shape_cast %107 : vector<1x64xf32> to vector<64xf32>
    %109 = vector.extract_strided_slice %96 {offsets = [2, 0], sizes = [1, 64], strides = [1, 1]} : vector<6x64xf32> to vector<1x64xf32>
    %110 = vector.shape_cast %109 : vector<1x64xf32> to vector<64xf32>
    %cst_40 = arith.constant dense<0.000000e+00> : vector<2xf32>
    %111 = vector.multi_reduction <add>, %106, %cst_40 [1] : vector<2x64xf32> to vector<2xf32>
    %112 = vector.shape_cast %111 : vector<2xf32> to vector<2x1xf32>
    %cst_41 = arith.constant 6.400000e+01 : f32
    %113 = vector.broadcast %cst_41 : f32 to vector<2x1xf32>
    %114 = arith.divf %112, %113 : vector<2x1xf32>
    %115 = vector.broadcast %114 : vector<2x1xf32> to vector<2x64xf32>
    %116 = arith.subf %106, %115 : vector<2x64xf32>
    %117 = arith.mulf %116, %116 : vector<2x64xf32>
    %cst_42 = arith.constant dense<0.000000e+00> : vector<2xf32>
    %118 = vector.multi_reduction <add>, %117, %cst_42 [1] : vector<2x64xf32> to vector<2xf32>
    %119 = vector.shape_cast %118 : vector<2xf32> to vector<2x1xf32>
    %cst_43 = arith.constant 6.400000e+01 : f32
    %120 = vector.broadcast %cst_43 : f32 to vector<2x1xf32>
    %121 = arith.divf %119, %120 : vector<2x1xf32>
    %122 = vector.broadcast %114 : vector<2x1xf32> to vector<2x64xf32>
    %123 = arith.subf %106, %122 : vector<2x64xf32>
    %cst_44 = arith.constant 9.99999974E-6 : f32
    %124 = vector.broadcast %cst_44 : f32 to vector<2x1xf32>
    %125 = arith.addf %121, %124 : vector<2x1xf32>
    %126 = math.rsqrt %125 : vector<2x1xf32>
    %127 = vector.broadcast %126 : vector<2x1xf32> to vector<2x64xf32>
    %128 = arith.mulf %123, %127 : vector<2x64xf32>
    %129 = vector.shape_cast %108 : vector<64xf32> to vector<1x64xf32>
    %130 = vector.broadcast %129 : vector<1x64xf32> to vector<2x64xf32>
    %131 = arith.mulf %128, %130 : vector<2x64xf32>
    %132 = vector.shape_cast %110 : vector<64xf32> to vector<1x64xf32>
    %133 = vector.broadcast %132 : vector<1x64xf32> to vector<2x64xf32>
    %134 = arith.addf %131, %133 : vector<2x64xf32>
    %135 = arith.truncf %134 : vector<2x64xf32> to vector<2x64xbf16>
    %c1_45 = arith.constant 1 : index
    %c0_46 = arith.constant 0 : index
    %c0_47 = arith.constant 0 : index
    %136 = vector.load %arg4[%c1_45, %c0_46, %c0_47] : memref<4x64x2048xbf16, #tpu.memory_space<vmem>>, vector<1x64x2048xbf16>
    %137 = vector.shape_cast %136 : vector<1x64x2048xbf16> to vector<64x2048xbf16>
    %cst_48 = arith.constant dense<0.000000e+00> : vector<2x2048xf32>
    %138 = tpu.matmul %135, %137, %cst_48 {dimension_numbers = #tpu.dot_dimension_numbers<[1], [0], [0], [1], [0, 0, 1, 1], [], []>} : vector<2x64xbf16>, vector<64x2048xbf16>, vector<2x2048xf32> -> vector<2x2048xf32>
    %c1_49 = arith.constant 1 : index
    %c0_50 = arith.constant 0 : index
    %c0_51 = arith.constant 0 : index
    %139 = vector.load %arg5[%c1_49, %c0_50, %c0_51] : memref<4x1x2048xf32, #tpu.memory_space<vmem>>, vector<1x1x2048xf32>
    %140 = vector.shape_cast %139 : vector<1x1x2048xf32> to vector<1x2048xf32>
    %141 = vector.broadcast %140 : vector<1x2048xf32> to vector<2x2048xf32>
    %142 = arith.addf %138, %141 : vector<2x2048xf32>
    %cst_52 = arith.constant 0.000000e+00 : f32
    %143 = vector.broadcast %cst_52 : f32 to vector<2x2048xf32>
    %144 = arith.maximumf %142, %143 : vector<2x2048xf32>
    %145 = arith.truncf %144 : vector<2x2048xf32> to vector<2x2048xbf16>
    %c1_53 = arith.constant 1 : index
    %c0_54 = arith.constant 0 : index
    %c0_55 = arith.constant 0 : index
    %146 = vector.load %arg6[%c1_53, %c0_54, %c0_55] : memref<4x2048x64xbf16, #tpu.memory_space<vmem>>, vector<1x2048x64xbf16>
    %147 = vector.shape_cast %146 : vector<1x2048x64xbf16> to vector<2048x64xbf16>
    %cst_56 = arith.constant dense<0.000000e+00> : vector<2x64xf32>
    %148 = tpu.matmul %145, %147, %cst_56 {dimension_numbers = #tpu.dot_dimension_numbers<[1], [0], [0], [1], [0, 0, 1, 1], [], []>} : vector<2x2048xbf16>, vector<2048x64xbf16>, vector<2x64xf32> -> vector<2x64xf32>
    %149 = vector.extract_strided_slice %96 {offsets = [3, 0], sizes = [1, 64], strides = [1, 1]} : vector<6x64xf32> to vector<1x64xf32>
    %150 = vector.shape_cast %149 : vector<1x64xf32> to vector<64xf32>
    %151 = vector.shape_cast %150 : vector<64xf32> to vector<1x64xf32>
    %152 = vector.broadcast %151 : vector<1x64xf32> to vector<2x64xf32>
    %153 = arith.addf %148, %152 : vector<2x64xf32>
    %154 = arith.addf %134, %153 : vector<2x64xf32>
    %155 = vector.extract_strided_slice %96 {offsets = [4, 0], sizes = [1, 64], strides = [1, 1]} : vector<6x64xf32> to vector<1x64xf32>
    %156 = vector.shape_cast %155 : vector<1x64xf32> to vector<64xf32>
    %157 = vector.extract_strided_slice %96 {offsets = [5, 0], sizes = [1, 64], strides = [1, 1]} : vector<6x64xf32> to vector<1x64xf32>
    %158 = vector.shape_cast %157 : vector<1x64xf32> to vector<64xf32>
    %cst_57 = arith.constant dense<0.000000e+00> : vector<2xf32>
    %159 = vector.multi_reduction <add>, %154, %cst_57 [1] : vector<2x64xf32> to vector<2xf32>
    %160 = vector.shape_cast %159 : vector<2xf32> to vector<2x1xf32>
    %cst_58 = arith.constant 6.400000e+01 : f32
    %161 = vector.broadcast %cst_58 : f32 to vector<2x1xf32>
    %162 = arith.divf %160, %161 : vector<2x1xf32>
    %163 = vector.broadcast %162 : vector<2x1xf32> to vector<2x64xf32>
    %164 = arith.subf %154, %163 : vector<2x64xf32>
    %165 = arith.mulf %164, %164 : vector<2x64xf32>
    %cst_59 = arith.constant dense<0.000000e+00> : vector<2xf32>
    %166 = vector.multi_reduction <add>, %165, %cst_59 [1] : vector<2x64xf32> to vector<2xf32>
    %167 = vector.shape_cast %166 : vector<2xf32> to vector<2x1xf32>
    %cst_60 = arith.constant 6.400000e+01 : f32
    %168 = vector.broadcast %cst_60 : f32 to vector<2x1xf32>
    %169 = arith.divf %167, %168 : vector<2x1xf32>
    %170 = vector.broadcast %162 : vector<2x1xf32> to vector<2x64xf32>
    %171 = arith.subf %154, %170 : vector<2x64xf32>
    %cst_61 = arith.constant 9.99999974E-6 : f32
    %172 = vector.broadcast %cst_61 : f32 to vector<2x1xf32>
    %173 = arith.addf %169, %172 : vector<2x1xf32>
    %174 = math.rsqrt %173 : vector<2x1xf32>
    %175 = vector.broadcast %174 : vector<2x1xf32> to vector<2x64xf32>
    %176 = arith.mulf %171, %175 : vector<2x64xf32>
    %177 = vector.shape_cast %156 : vector<64xf32> to vector<1x64xf32>
    %178 = vector.broadcast %177 : vector<1x64xf32> to vector<2x64xf32>
    %179 = arith.mulf %176, %178 : vector<2x64xf32>
    %180 = vector.shape_cast %158 : vector<64xf32> to vector<1x64xf32>
    %181 = vector.broadcast %180 : vector<1x64xf32> to vector<2x64xf32>
    %182 = arith.addf %179, %181 : vector<2x64xf32>
    %c2 = arith.constant 2 : index
    %c0_62 = arith.constant 0 : index
    %c0_63 = arith.constant 0 : index
    %183 = vector.load %arg7[%c2, %c0_62, %c0_63] : memref<4x6x64xf32, #tpu.memory_space<vmem>>, vector<1x6x64xf32>
    %184 = vector.shape_cast %183 : vector<1x6x64xf32> to vector<6x64xf32>
    %185 = arith.truncf %182 : vector<2x64xf32> to vector<2x64xbf16>
    %c2_64 = arith.constant 2 : index
    %c0_65 = arith.constant 0 : index
    %c0_66 = arith.constant 0 : index
    %186 = vector.load %arg3[%c2_64, %c0_65, %c0_66] : memref<4x64x64xbf16, #tpu.memory_space<vmem>>, vector<1x64x64xbf16>
    %187 = vector.shape_cast %186 : vector<1x64x64xbf16> to vector<64x64xbf16>
    %cst_67 = arith.constant dense<0.000000e+00> : vector<2x64xf32>
    %188 = tpu.matmul %185, %187, %cst_67 {dimension_numbers = #tpu.dot_dimension_numbers<[1], [0], [0], [1], [0, 0, 1, 1], [], []>} : vector<2x64xbf16>, vector<64x64xbf16>, vector<2x64xf32> -> vector<2x64xf32>
    %189 = vector.extract_strided_slice %184 {offsets = [0, 0], sizes = [1, 64], strides = [1, 1]} : vector<6x64xf32> to vector<1x64xf32>
    %190 = vector.shape_cast %189 : vector<1x64xf32> to vector<64xf32>
    %191 = vector.shape_cast %190 : vector<64xf32> to vector<1x64xf32>
    %192 = vector.broadcast %191 : vector<1x64xf32> to vector<2x64xf32>
    %193 = arith.addf %188, %192 : vector<2x64xf32>
    %194 = arith.addf %182, %193 : vector<2x64xf32>
    %195 = vector.extract_strided_slice %184 {offsets = [1, 0], sizes = [1, 64], strides = [1, 1]} : vector<6x64xf32> to vector<1x64xf32>
    %196 = vector.shape_cast %195 : vector<1x64xf32> to vector<64xf32>
    %197 = vector.extract_strided_slice %184 {offsets = [2, 0], sizes = [1, 64], strides = [1, 1]} : vector<6x64xf32> to vector<1x64xf32>
    %198 = vector.shape_cast %197 : vector<1x64xf32> to vector<64xf32>
    %cst_68 = arith.constant dense<0.000000e+00> : vector<2xf32>
    %199 = vector.multi_reduction <add>, %194, %cst_68 [1] : vector<2x64xf32> to vector<2xf32>
    %200 = vector.shape_cast %199 : vector<2xf32> to vector<2x1xf32>
    %cst_69 = arith.constant 6.400000e+01 : f32
    %201 = vector.broadcast %cst_69 : f32 to vector<2x1xf32>
    %202 = arith.divf %200, %201 : vector<2x1xf32>
    %203 = vector.broadcast %202 : vector<2x1xf32> to vector<2x64xf32>
    %204 = arith.subf %194, %203 : vector<2x64xf32>
    %205 = arith.mulf %204, %204 : vector<2x64xf32>
    %cst_70 = arith.constant dense<0.000000e+00> : vector<2xf32>
    %206 = vector.multi_reduction <add>, %205, %cst_70 [1] : vector<2x64xf32> to vector<2xf32>
    %207 = vector.shape_cast %206 : vector<2xf32> to vector<2x1xf32>
    %cst_71 = arith.constant 6.400000e+01 : f32
    %208 = vector.broadcast %cst_71 : f32 to vector<2x1xf32>
    %209 = arith.divf %207, %208 : vector<2x1xf32>
    %210 = vector.broadcast %202 : vector<2x1xf32> to vector<2x64xf32>
    %211 = arith.subf %194, %210 : vector<2x64xf32>
    %cst_72 = arith.constant 9.99999974E-6 : f32
    %212 = vector.broadcast %cst_72 : f32 to vector<2x1xf32>
    %213 = arith.addf %209, %212 : vector<2x1xf32>
    %214 = math.rsqrt %213 : vector<2x1xf32>
    %215 = vector.broadcast %214 : vector<2x1xf32> to vector<2x64xf32>
    %216 = arith.mulf %211, %215 : vector<2x64xf32>
    %217 = vector.shape_cast %196 : vector<64xf32> to vector<1x64xf32>
    %218 = vector.broadcast %217 : vector<1x64xf32> to vector<2x64xf32>
    %219 = arith.mulf %216, %218 : vector<2x64xf32>
    %220 = vector.shape_cast %198 : vector<64xf32> to vector<1x64xf32>
    %221 = vector.broadcast %220 : vector<1x64xf32> to vector<2x64xf32>
    %222 = arith.addf %219, %221 : vector<2x64xf32>
    %223 = arith.truncf %222 : vector<2x64xf32> to vector<2x64xbf16>
    %c2_73 = arith.constant 2 : index
    %c0_74 = arith.constant 0 : index
    %c0_75 = arith.constant 0 : index
    %224 = vector.load %arg4[%c2_73, %c0_74, %c0_75] : memref<4x64x2048xbf16, #tpu.memory_space<vmem>>, vector<1x64x2048xbf16>
    %225 = vector.shape_cast %224 : vector<1x64x2048xbf16> to vector<64x2048xbf16>
    %cst_76 = arith.constant dense<0.000000e+00> : vector<2x2048xf32>
    %226 = tpu.matmul %223, %225, %cst_76 {dimension_numbers = #tpu.dot_dimension_numbers<[1], [0], [0], [1], [0, 0, 1, 1], [], []>} : vector<2x64xbf16>, vector<64x2048xbf16>, vector<2x2048xf32> -> vector<2x2048xf32>
    %c2_77 = arith.constant 2 : index
    %c0_78 = arith.constant 0 : index
    %c0_79 = arith.constant 0 : index
    %227 = vector.load %arg5[%c2_77, %c0_78, %c0_79] : memref<4x1x2048xf32, #tpu.memory_space<vmem>>, vector<1x1x2048xf32>
    %228 = vector.shape_cast %227 : vector<1x1x2048xf32> to vector<1x2048xf32>
    %229 = vector.broadcast %228 : vector<1x2048xf32> to vector<2x2048xf32>
    %230 = arith.addf %226, %229 : vector<2x2048xf32>
    %cst_80 = arith.constant 0.000000e+00 : f32
    %231 = vector.broadcast %cst_80 : f32 to vector<2x2048xf32>
    %232 = arith.maximumf %230, %231 : vector<2x2048xf32>
    %233 = arith.truncf %232 : vector<2x2048xf32> to vector<2x2048xbf16>
    %c2_81 = arith.constant 2 : index
    %c0_82 = arith.constant 0 : index
    %c0_83 = arith.constant 0 : index
    %234 = vector.load %arg6[%c2_81, %c0_82, %c0_83] : memref<4x2048x64xbf16, #tpu.memory_space<vmem>>, vector<1x2048x64xbf16>
    %235 = vector.shape_cast %234 : vector<1x2048x64xbf16> to vector<2048x64xbf16>
    %cst_84 = arith.constant dense<0.000000e+00> : vector<2x64xf32>
    %236 = tpu.matmul %233, %235, %cst_84 {dimension_numbers = #tpu.dot_dimension_numbers<[1], [0], [0], [1], [0, 0, 1, 1], [], []>} : vector<2x2048xbf16>, vector<2048x64xbf16>, vector<2x64xf32> -> vector<2x64xf32>
    %237 = vector.extract_strided_slice %184 {offsets = [3, 0], sizes = [1, 64], strides = [1, 1]} : vector<6x64xf32> to vector<1x64xf32>
    %238 = vector.shape_cast %237 : vector<1x64xf32> to vector<64xf32>
    %239 = vector.shape_cast %238 : vector<64xf32> to vector<1x64xf32>
    %240 = vector.broadcast %239 : vector<1x64xf32> to vector<2x64xf32>
    %241 = arith.addf %236, %240 : vector<2x64xf32>
    %242 = arith.addf %222, %241 : vector<2x64xf32>
    %243 = vector.extract_strided_slice %184 {offsets = [4, 0], sizes = [1, 64], strides = [1, 1]} : vector<6x64xf32> to vector<1x64xf32>
    %244 = vector.shape_cast %243 : vector<1x64xf32> to vector<64xf32>
    %245 = vector.extract_strided_slice %184 {offsets = [5, 0], sizes = [1, 64], strides = [1, 1]} : vector<6x64xf32> to vector<1x64xf32>
    %246 = vector.shape_cast %245 : vector<1x64xf32> to vector<64xf32>
    %cst_85 = arith.constant dense<0.000000e+00> : vector<2xf32>
    %247 = vector.multi_reduction <add>, %242, %cst_85 [1] : vector<2x64xf32> to vector<2xf32>
    %248 = vector.shape_cast %247 : vector<2xf32> to vector<2x1xf32>
    %cst_86 = arith.constant 6.400000e+01 : f32
    %249 = vector.broadcast %cst_86 : f32 to vector<2x1xf32>
    %250 = arith.divf %248, %249 : vector<2x1xf32>
    %251 = vector.broadcast %250 : vector<2x1xf32> to vector<2x64xf32>
    %252 = arith.subf %242, %251 : vector<2x64xf32>
    %253 = arith.mulf %252, %252 : vector<2x64xf32>
    %cst_87 = arith.constant dense<0.000000e+00> : vector<2xf32>
    %254 = vector.multi_reduction <add>, %253, %cst_87 [1] : vector<2x64xf32> to vector<2xf32>
    %255 = vector.shape_cast %254 : vector<2xf32> to vector<2x1xf32>
    %cst_88 = arith.constant 6.400000e+01 : f32
    %256 = vector.broadcast %cst_88 : f32 to vector<2x1xf32>
    %257 = arith.divf %255, %256 : vector<2x1xf32>
    %258 = vector.broadcast %250 : vector<2x1xf32> to vector<2x64xf32>
    %259 = arith.subf %242, %258 : vector<2x64xf32>
    %cst_89 = arith.constant 9.99999974E-6 : f32
    %260 = vector.broadcast %cst_89 : f32 to vector<2x1xf32>
    %261 = arith.addf %257, %260 : vector<2x1xf32>
    %262 = math.rsqrt %261 : vector<2x1xf32>
    %263 = vector.broadcast %262 : vector<2x1xf32> to vector<2x64xf32>
    %264 = arith.mulf %259, %263 : vector<2x64xf32>
    %265 = vector.shape_cast %244 : vector<64xf32> to vector<1x64xf32>
    %266 = vector.broadcast %265 : vector<1x64xf32> to vector<2x64xf32>
    %267 = arith.mulf %264, %266 : vector<2x64xf32>
    %268 = vector.shape_cast %246 : vector<64xf32> to vector<1x64xf32>
    %269 = vector.broadcast %268 : vector<1x64xf32> to vector<2x64xf32>
    %270 = arith.addf %267, %269 : vector<2x64xf32>
    %c3 = arith.constant 3 : index
    %c0_90 = arith.constant 0 : index
    %c0_91 = arith.constant 0 : index
    %271 = vector.load %arg7[%c3, %c0_90, %c0_91] : memref<4x6x64xf32, #tpu.memory_space<vmem>>, vector<1x6x64xf32>
    %272 = vector.shape_cast %271 : vector<1x6x64xf32> to vector<6x64xf32>
    %273 = arith.truncf %270 : vector<2x64xf32> to vector<2x64xbf16>
    %c3_92 = arith.constant 3 : index
    %c0_93 = arith.constant 0 : index
    %c0_94 = arith.constant 0 : index
    %274 = vector.load %arg3[%c3_92, %c0_93, %c0_94] : memref<4x64x64xbf16, #tpu.memory_space<vmem>>, vector<1x64x64xbf16>
    %275 = vector.shape_cast %274 : vector<1x64x64xbf16> to vector<64x64xbf16>
    %cst_95 = arith.constant dense<0.000000e+00> : vector<2x64xf32>
    %276 = tpu.matmul %273, %275, %cst_95 {dimension_numbers = #tpu.dot_dimension_numbers<[1], [0], [0], [1], [0, 0, 1, 1], [], []>} : vector<2x64xbf16>, vector<64x64xbf16>, vector<2x64xf32> -> vector<2x64xf32>
    %277 = vector.extract_strided_slice %272 {offsets = [0, 0], sizes = [1, 64], strides = [1, 1]} : vector<6x64xf32> to vector<1x64xf32>
    %278 = vector.shape_cast %277 : vector<1x64xf32> to vector<64xf32>
    %279 = vector.shape_cast %278 : vector<64xf32> to vector<1x64xf32>
    %280 = vector.broadcast %279 : vector<1x64xf32> to vector<2x64xf32>
    %281 = arith.addf %276, %280 : vector<2x64xf32>
    %282 = arith.addf %270, %281 : vector<2x64xf32>
    %283 = vector.extract_strided_slice %272 {offsets = [1, 0], sizes = [1, 64], strides = [1, 1]} : vector<6x64xf32> to vector<1x64xf32>
    %284 = vector.shape_cast %283 : vector<1x64xf32> to vector<64xf32>
    %285 = vector.extract_strided_slice %272 {offsets = [2, 0], sizes = [1, 64], strides = [1, 1]} : vector<6x64xf32> to vector<1x64xf32>
    %286 = vector.shape_cast %285 : vector<1x64xf32> to vector<64xf32>
    %cst_96 = arith.constant dense<0.000000e+00> : vector<2xf32>
    %287 = vector.multi_reduction <add>, %282, %cst_96 [1] : vector<2x64xf32> to vector<2xf32>
    %288 = vector.shape_cast %287 : vector<2xf32> to vector<2x1xf32>
    %cst_97 = arith.constant 6.400000e+01 : f32
    %289 = vector.broadcast %cst_97 : f32 to vector<2x1xf32>
    %290 = arith.divf %288, %289 : vector<2x1xf32>
    %291 = vector.broadcast %290 : vector<2x1xf32> to vector<2x64xf32>
    %292 = arith.subf %282, %291 : vector<2x64xf32>
    %293 = arith.mulf %292, %292 : vector<2x64xf32>
    %cst_98 = arith.constant dense<0.000000e+00> : vector<2xf32>
    %294 = vector.multi_reduction <add>, %293, %cst_98 [1] : vector<2x64xf32> to vector<2xf32>
    %295 = vector.shape_cast %294 : vector<2xf32> to vector<2x1xf32>
    %cst_99 = arith.constant 6.400000e+01 : f32
    %296 = vector.broadcast %cst_99 : f32 to vector<2x1xf32>
    %297 = arith.divf %295, %296 : vector<2x1xf32>
    %298 = vector.broadcast %290 : vector<2x1xf32> to vector<2x64xf32>
    %299 = arith.subf %282, %298 : vector<2x64xf32>
    %cst_100 = arith.constant 9.99999974E-6 : f32
    %300 = vector.broadcast %cst_100 : f32 to vector<2x1xf32>
    %301 = arith.addf %297, %300 : vector<2x1xf32>
    %302 = math.rsqrt %301 : vector<2x1xf32>
    %303 = vector.broadcast %302 : vector<2x1xf32> to vector<2x64xf32>
    %304 = arith.mulf %299, %303 : vector<2x64xf32>
    %305 = vector.shape_cast %284 : vector<64xf32> to vector<1x64xf32>
    %306 = vector.broadcast %305 : vector<1x64xf32> to vector<2x64xf32>
    %307 = arith.mulf %304, %306 : vector<2x64xf32>
    %308 = vector.shape_cast %286 : vector<64xf32> to vector<1x64xf32>
    %309 = vector.broadcast %308 : vector<1x64xf32> to vector<2x64xf32>
    %310 = arith.addf %307, %309 : vector<2x64xf32>
    %311 = arith.truncf %310 : vector<2x64xf32> to vector<2x64xbf16>
    %c3_101 = arith.constant 3 : index
    %c0_102 = arith.constant 0 : index
    %c0_103 = arith.constant 0 : index
    %312 = vector.load %arg4[%c3_101, %c0_102, %c0_103] : memref<4x64x2048xbf16, #tpu.memory_space<vmem>>, vector<1x64x2048xbf16>
    %313 = vector.shape_cast %312 : vector<1x64x2048xbf16> to vector<64x2048xbf16>
    %cst_104 = arith.constant dense<0.000000e+00> : vector<2x2048xf32>
    %314 = tpu.matmul %311, %313, %cst_104 {dimension_numbers = #tpu.dot_dimension_numbers<[1], [0], [0], [1], [0, 0, 1, 1], [], []>} : vector<2x64xbf16>, vector<64x2048xbf16>, vector<2x2048xf32> -> vector<2x2048xf32>
    %c3_105 = arith.constant 3 : index
    %c0_106 = arith.constant 0 : index
    %c0_107 = arith.constant 0 : index
    %315 = vector.load %arg5[%c3_105, %c0_106, %c0_107] : memref<4x1x2048xf32, #tpu.memory_space<vmem>>, vector<1x1x2048xf32>
    %316 = vector.shape_cast %315 : vector<1x1x2048xf32> to vector<1x2048xf32>
    %317 = vector.broadcast %316 : vector<1x2048xf32> to vector<2x2048xf32>
    %318 = arith.addf %314, %317 : vector<2x2048xf32>
    %cst_108 = arith.constant 0.000000e+00 : f32
    %319 = vector.broadcast %cst_108 : f32 to vector<2x2048xf32>
    %320 = arith.maximumf %318, %319 : vector<2x2048xf32>
    %321 = arith.truncf %320 : vector<2x2048xf32> to vector<2x2048xbf16>
    %c3_109 = arith.constant 3 : index
    %c0_110 = arith.constant 0 : index
    %c0_111 = arith.constant 0 : index
    %322 = vector.load %arg6[%c3_109, %c0_110, %c0_111] : memref<4x2048x64xbf16, #tpu.memory_space<vmem>>, vector<1x2048x64xbf16>
    %323 = vector.shape_cast %322 : vector<1x2048x64xbf16> to vector<2048x64xbf16>
    %cst_112 = arith.constant dense<0.000000e+00> : vector<2x64xf32>
    %324 = tpu.matmul %321, %323, %cst_112 {dimension_numbers = #tpu.dot_dimension_numbers<[1], [0], [0], [1], [0, 0, 1, 1], [], []>} : vector<2x2048xbf16>, vector<2048x64xbf16>, vector<2x64xf32> -> vector<2x64xf32>
    %325 = vector.extract_strided_slice %272 {offsets = [3, 0], sizes = [1, 64], strides = [1, 1]} : vector<6x64xf32> to vector<1x64xf32>
    %326 = vector.shape_cast %325 : vector<1x64xf32> to vector<64xf32>
    %327 = vector.shape_cast %326 : vector<64xf32> to vector<1x64xf32>
    %328 = vector.broadcast %327 : vector<1x64xf32> to vector<2x64xf32>
    %329 = arith.addf %324, %328 : vector<2x64xf32>
    %330 = arith.addf %310, %329 : vector<2x64xf32>
    %331 = vector.extract_strided_slice %272 {offsets = [4, 0], sizes = [1, 64], strides = [1, 1]} : vector<6x64xf32> to vector<1x64xf32>
    %332 = vector.shape_cast %331 : vector<1x64xf32> to vector<64xf32>
    %333 = vector.extract_strided_slice %272 {offsets = [5, 0], sizes = [1, 64], strides = [1, 1]} : vector<6x64xf32> to vector<1x64xf32>
    %334 = vector.shape_cast %333 : vector<1x64xf32> to vector<64xf32>
    %cst_113 = arith.constant dense<0.000000e+00> : vector<2xf32>
    %335 = vector.multi_reduction <add>, %330, %cst_113 [1] : vector<2x64xf32> to vector<2xf32>
    %336 = vector.shape_cast %335 : vector<2xf32> to vector<2x1xf32>
    %cst_114 = arith.constant 6.400000e+01 : f32
    %337 = vector.broadcast %cst_114 : f32 to vector<2x1xf32>
    %338 = arith.divf %336, %337 : vector<2x1xf32>
    %339 = vector.broadcast %338 : vector<2x1xf32> to vector<2x64xf32>
    %340 = arith.subf %330, %339 : vector<2x64xf32>
    %341 = arith.mulf %340, %340 : vector<2x64xf32>
    %cst_115 = arith.constant dense<0.000000e+00> : vector<2xf32>
    %342 = vector.multi_reduction <add>, %341, %cst_115 [1] : vector<2x64xf32> to vector<2xf32>
    %343 = vector.shape_cast %342 : vector<2xf32> to vector<2x1xf32>
    %cst_116 = arith.constant 6.400000e+01 : f32
    %344 = vector.broadcast %cst_116 : f32 to vector<2x1xf32>
    %345 = arith.divf %343, %344 : vector<2x1xf32>
    %346 = vector.broadcast %338 : vector<2x1xf32> to vector<2x64xf32>
    %347 = arith.subf %330, %346 : vector<2x64xf32>
    %cst_117 = arith.constant 9.99999974E-6 : f32
    %348 = vector.broadcast %cst_117 : f32 to vector<2x1xf32>
    %349 = arith.addf %345, %348 : vector<2x1xf32>
    %350 = math.rsqrt %349 : vector<2x1xf32>
    %351 = vector.broadcast %350 : vector<2x1xf32> to vector<2x64xf32>
    %352 = arith.mulf %347, %351 : vector<2x64xf32>
    %353 = vector.shape_cast %332 : vector<64xf32> to vector<1x64xf32>
    %354 = vector.broadcast %353 : vector<1x64xf32> to vector<2x64xf32>
    %355 = arith.mulf %352, %354 : vector<2x64xf32>
    %356 = vector.shape_cast %334 : vector<64xf32> to vector<1x64xf32>
    %357 = vector.broadcast %356 : vector<1x64xf32> to vector<2x64xf32>
    %358 = arith.addf %355, %357 : vector<2x64xf32>
    %359 = arith.truncf %358 : vector<2x64xf32> to vector<2x64xbf16>
    %c0_118 = arith.constant 0 : index
    %c0_119 = arith.constant 0 : index
    %360 = vector.load %arg8[%c0_118, %c0_119] : memref<64x32xbf16, #tpu.memory_space<vmem>>, vector<64x32xbf16>
    %cst_120 = arith.constant dense<0.000000e+00> : vector<2x32xf32>
    %361 = tpu.matmul %359, %360, %cst_120 {dimension_numbers = #tpu.dot_dimension_numbers<[1], [0], [0], [1], [0, 0, 1, 1], [], []>} : vector<2x64xbf16>, vector<64x32xbf16>, vector<2x32xf32> -> vector<2x32xf32>
    %c0_121 = arith.constant 0 : index
    %c0_122 = arith.constant 0 : index
    %362 = vector.load %arg9[%c0_121, %c0_122] : memref<1x32xf32, #tpu.memory_space<vmem>>, vector<1x32xf32>
    %363 = vector.broadcast %362 : vector<1x32xf32> to vector<2x32xf32>
    %364 = arith.addf %361, %363 : vector<2x32xf32>
    %cst_123 = arith.constant 0.000000e+00 : f32
    %365 = vector.broadcast %cst_123 : f32 to vector<2x32xf32>
    %366 = arith.maximumf %364, %365 : vector<2x32xf32>
    %367 = arith.truncf %366 : vector<2x32xf32> to vector<2x32xbf16>
    %c0_124 = arith.constant 0 : index
    %c0_125 = arith.constant 0 : index
    %368 = vector.load %arg10[%c0_124, %c0_125] : memref<32x1xbf16, #tpu.memory_space<vmem>>, vector<32x1xbf16>
    %cst_126 = arith.constant dense<0.000000e+00> : vector<2x1xf32>
    %369 = tpu.matmul %367, %368, %cst_126 {dimension_numbers = #tpu.dot_dimension_numbers<[1], [0], [0], [1], [0, 0, 1, 1], [], []>} : vector<2x32xbf16>, vector<32x1xbf16>, vector<2x1xf32> -> vector<2x1xf32>
    %c0_127 = arith.constant 0 : index
    %c0_128 = arith.constant 0 : index
    %370 = vector.load %arg11[%c0_127, %c0_128] : memref<1x1xf32, #tpu.memory_space<vmem>>, vector<1x1xf32>
    %371 = vector.broadcast %370 : vector<1x1xf32> to vector<2x1xf32>
    %372 = arith.addf %369, %371 : vector<2x1xf32>
    %c0_129 = arith.constant 0 : index
    %c0_130 = arith.constant 0 : index
    %373 = vector.load %arg12[%c0_129, %c0_130] : memref<2x1xf32, #tpu.memory_space<vmem>>, vector<2x1xf32>
    tpu.vector_store %arg12[%c0_129, %c0_130], %372 {strides = array<i32>} : memref<2x1xf32, #tpu.memory_space<vmem>>, vector<2x1xf32>,
    return
  }
}

</mosaic_0001>

<llo_original>
// kernel: multimodal_transformer.1
$region0: #{multimodal_transformer.1}
  #allocation0 [shape = 'u32[]', space=smem, size = 0x4, offset = 0x4, fixed_abs, tag = 'smem constant byte address 0x4 - core index']
  #allocation1 [shape = 'u32[144,128]{1,0:T(1,128)}', space=vmem, size = 0x12000, scoped, tag = 'internal scratch']
  #allocation2 [shape = 'f32[1,1]{1,0:T(1,128)S(1)}', space=vmem, size = 0x200, scoped, tag = 'scoped memory for multimodal_transformer.1']
  %s0 = inlined_call_operand.vmem [shape: f32[2,32], index: 0, kind: input, shape index: {}]
  %s1 = inlined_call_operand.vmem [shape: bf16[32,64], index: 1, kind: input, shape index: {}]
  %s2 = inlined_call_operand.vmem [shape: f32[1,64], index: 2, kind: input, shape index: {}]
  %s3 = inlined_call_operand.vmem [shape: bf16[4,64,64], index: 3, kind: input, shape index: {}]
  %s4 = inlined_call_operand.vmem [shape: bf16[4,64,2048], index: 4, kind: input, shape index: {}]
  %s5 = inlined_call_operand.vmem [shape: f32[4,1,2048], index: 5, kind: input, shape index: {}]
  %s6 = inlined_call_operand.vmem [shape: bf16[4,2048,64], index: 6, kind: input, shape index: {}]
  %s7 = inlined_call_operand.vmem [shape: f32[4,6,64], index: 7, kind: input, shape index: {}]
  %s8 = inlined_call_operand.vmem [shape: bf16[64,32], index: 8, kind: input, shape index: {}]
  %s9 = inlined_call_operand.vmem [shape: f32[1,32], index: 9, kind: input, shape index: {}]
  %s10 = inlined_call_operand.vmem [shape: bf16[32,1], index: 10, kind: input, shape index: {}]
  %s11 = inlined_call_operand.<no memory space> [shape: f32[1,1], index: 11, kind: input, shape index: {}]
  %s12 = inlined_call_operand.vmem [shape: f32[2,1], index: 12, kind: output, shape index: {}]
  %s13 = sld [smem:[#allocation0]]
  $region58: #{multimodal_transformer.1} parent=0
    _
  %s15 = ssub.s32 1, %s13
  %s16 = scalar_select 0, %s15, %s13
  %v17 = vstv %s11
  %18 = vst [vmem:[#allocation2] sm:$0x1] %v17
  // Predicated region
  $region2: #{multimodal_transformer.1} parent=0 // pred_check
    _
  $region3: #{multimodal_transformer.1} parent=0 // pred_check_branch
    %20 = sbr.rel (0) target = $region5
  $region4: #{multimodal_transformer.1} parent=0 // pred_region
    _
  $region5: #{multimodal_transformer.1} parent=0 // pred_fallthru
    _
  // Predicated region
  $region6: #{multimodal_transformer.1} parent=0 // pred_check
    _
  $region7: #{multimodal_transformer.1} parent=0 // pred_check_branch
    %22 = sbr.rel (0) target = $region9
  $region8: #{multimodal_transformer.1} parent=0 // pred_region
    _
  $region9: #{multimodal_transformer.1} parent=0 // pred_fallthru
    _
  // Predicated region
  $region10: #{multimodal_transformer.1} parent=0 // pred_check
    _
  $region11: #{multimodal_transformer.1} parent=0 // pred_check_branch
    %24 = sbr.rel (0) target = $region13
  $region12: #{multimodal_transformer.1} parent=0 // pred_region
    _
  $region13: #{multimodal_transformer.1} parent=0 // pred_fallthru
    _
  // Predicated region
  $region14: #{multimodal_transformer.1} parent=0 // pred_check
    _
  $region15: #{multimodal_transformer.1} parent=0 // pred_check_branch
    %26 = sbr.rel (0) target = $region17
  $region16: #{multimodal_transformer.1} parent=0 // pred_region
    _
  $region17: #{multimodal_transformer.1} parent=0 // pred_fallthru
    _
  // Predicated region
  $region18: #{multimodal_transformer.1} parent=0 // pred_check
    _
  $region19: #{multimodal_transformer.1} parent=0 // pred_check_branch
    %28 = sbr.rel (0) target = $region21
  $region20: #{multimodal_transformer.1} parent=0 // pred_region
    _
  $region21: #{multimodal_transformer.1} parent=0 // pred_fallthru
    _
  // Predicated region
  $region22: #{multimodal_transformer.1} parent=0 // pred_check
    _
  $region23: #{multimodal_transformer.1} parent=0 // pred_check_branch
    %30 = sbr.rel (0) target = $region25
  $region24: #{multimodal_transformer.1} parent=0 // pred_region
    _
  $region25: #{multimodal_transformer.1} parent=0 // pred_fallthru
    _
  // Predicated region
  $region26: #{multimodal_transformer.1} parent=0 // pred_check
    _
  $region27: #{multimodal_transformer.1} parent=0 // pred_check_branch
    %32 = sbr.rel (0) target = $region29
  $region28: #{multimodal_transformer.1} parent=0 // pred_region
    _
  $region29: #{multimodal_transformer.1} parent=0 // pred_fallthru
    _
  // Predicated region
  $region30: #{multimodal_transformer.1} parent=0 // pred_check
    _
  $region31: #{multimodal_transformer.1} parent=0 // pred_check_branch
    %34 = sbr.rel (0) target = $region33
  $region32: #{multimodal_transformer.1} parent=0 // pred_region
    _
  $region33: #{multimodal_transformer.1} parent=0 // pred_fallthru
    _
  // Predicated region
  $region34: #{multimodal_transformer.1} parent=0 // pred_check
    _
  $region35: #{multimodal_transformer.1} parent=0 // pred_check_branch
    %36 = sbr.rel (0) target = $region37
  $region36: #{multimodal_transformer.1} parent=0 // pred_region
    _
  $region37: #{multimodal_transformer.1} parent=0 // pred_fallthru
    _
  // Predicated region
  $region38: #{multimodal_transformer.1} parent=0 // pred_check
    _
  $region39: #{multimodal_transformer.1} parent=0 // pred_check_branch
    %38 = sbr.rel (0) target = $region41
  $region40: #{multimodal_transformer.1} parent=0 // pred_region
    _
  $region41: #{multimodal_transformer.1} parent=0 // pred_fallthru
    _
  // Predicated region
  $region42: #{multimodal_transformer.1} parent=0 // pred_check
    _
  $region43: #{multimodal_transformer.1} parent=0 // pred_check_branch
    %40 = sbr.rel (0) target = $region45
  $region44: #{multimodal_transformer.1} parent=0 // pred_region
    _
  $region45: #{multimodal_transformer.1} parent=0 // pred_fallthru
    _
  // Predicated region
  $region46: #{multimodal_transformer.1} parent=0 // pred_check
    _
  $region47: #{multimodal_transformer.1} parent=0 // pred_check_branch
    %42 = sbr.rel (0) target = $region49
  $region48: #{multimodal_transformer.1} parent=0 // pred_region
    _
  $region49: #{multimodal_transformer.1} parent=0 // pred_fallthru
    _
  %v44 = vld [vmem:[%s0] sm:$0x3]
  %v45 = vpack.c.bf16 %v44, %v44
  %v46 = vld [vmem:[%s1] sm:$0xf]
  %v47 = vld [vmem:[%s1 + $0x4] sm:$0xf]
  %v48 = vld [vmem:[%s1 + $0x8] sm:$0xf]
  %v49 = vld [vmem:[%s1 + $0xc] sm:$0xf]
  %v50 = vld [vmem:[%s2] sm:$0x1]
  %v52 = vlaneseq
  %v53 = vshrl.u32 %v52, 7
  %v54 = vsub.s32 0, %v53
  %v55 = vrot.slane %v50, %v54
  %v61 = vunpack.c.l.b16 %v46
  %v62 = vunpack.c.l.b16 %v47
  %v63 = vunpack.c.l.b16 %v48
  %v64 = vunpack.c.l.b16 %v49
  %v65 = vpack.c.b16 %v62, %v61
  %v66 = vpack.c.b16 %v64, %v63
  %vm69 = vcmask 261120
  %v71 = vsel %vm69, %v45, 0
  %73 = vmatprep.subr.bf16.mxu0 0
  %74 = vmatpush1.bf16.msra.mxu0 %v65
  %75 = vmatprep.subr.bf16.mxu0 0
  %76 = vmatpush1.bf16.msra.mxu0 %v66
  %77 = vmatprep.subr.bf16.mxu0 0
  %78 = vmatpush1.bf16.msra.mxu0 0
  %79 = vmatprep.subr.bf16.mxu0 0
  %80 = vmatpush1.bf16.msra.mxu0 0
  %81 = vmatprep.subr.bf16.mxu0 0
  %82 = vmatpush1.bf16.msra.mxu0 0
  %83 = vmatprep.subr.bf16.mxu0 0
  %84 = vmatpush1.bf16.msra.mxu0 0
  %85 = vmatprep.subr.bf16.mxu0 0
  %86 = vmatpush1.bf16.msra.mxu0 0
  %87 = vmatprep.subr.bf16.mxu0 0
  %88 = vmatpush1.bf16.msra.mxu0 0
  %89 = vmatprep.subr.bf16.mxu0 0
  %90 = vmatpush1.bf16.msra.mxu0 0
  %91 = vmatprep.subr.bf16.mxu0 0
  %92 = vmatpush1.bf16.msra.mxu0 0
  %93 = vmatprep.subr.bf16.mxu0 0
  %94 = vmatpush1.bf16.msra.mxu0 0
  %95 = vmatprep.subr.bf16.mxu0 0
  %96 = vmatpush1.bf16.msra.mxu0 0
  %97 = vmatprep.subr.bf16.mxu0 0
  %98 = vmatpush1.bf16.msra.mxu0 0
  %99 = vmatprep.subr.bf16.mxu0 0
  %100 = vmatpush1.bf16.msra.mxu0 0
  %101 = vmatprep.subr.bf16.mxu0 0
  %102 = vmatpush1.bf16.msra.mxu0 0
  %103 = vmatprep.subr.bf16.mxu0 0
  %104 = vmatpush1.bf16.msra.mxu0 0
  %105 = vmatprep.mubr.bf16.mxu0 0
  %106 = vmatmul.mubr.bf16.gmra.mrb[0].mxu0 %v71
  %v107 = vpop.f32.mrb[0].mxu0
  %v108 = vadd.f32 %v55, %v107
  %v109 = vpop.f32.mrb[0].mxu0
  %v110 = vpop.f32.mrb[0].mxu0
  %v111 = vpop.f32.mrb[0].mxu0
  %112 = vdwg.mxu0
  %v113 = vld [vmem:[%s7] sm:$0x3f]
  %v114 = vpack.c.bf16 %v108, %v108
  %v115 = vld [vmem:[%s3] sm:$0xf]
  %v116 = vld [vmem:[%s3 + $0x4] sm:$0xf]
  %v117 = vld [vmem:[%s3 + $0x8] sm:$0xf]
  %v118 = vld [vmem:[%s3 + $0xc] sm:$0xf]
  %v119 = vld [vmem:[%s3 + $0x10] sm:$0xf]
  %v120 = vld [vmem:[%s3 + $0x14] sm:$0xf]
  %v121 = vld [vmem:[%s3 + $0x18] sm:$0xf]
  %v122 = vld [vmem:[%s3 + $0x1c] sm:$0xf]
  %v123 = vlaneseq
  %v124 = vshrl.u32 %v123, 7
  %v125 = vsub.s32 0, %v124
  %v126 = vrot.slane %v113, %v125
  %v135 = vunpack.c.l.b16 %v115
  %v136 = vunpack.c.l.b16 %v116
  %v137 = vunpack.c.l.b16 %v117
  %v138 = vunpack.c.l.b16 %v118
  %v139 = vunpack.c.l.b16 %v119
  %v140 = vunpack.c.l.b16 %v120
  %v141 = vunpack.c.l.b16 %v121
  %v142 = vunpack.c.l.b16 %v122
  %v143 = vpack.c.b16 %v136, %v135
  %v144 = vpack.c.b16 %v138, %v137
  %v145 = vpack.c.b16 %v140, %v139
  %v146 = vpack.c.b16 %v142, %v141
  %vm151 = vcmask 523264
  %v153 = vsel %vm151, %v114, 0
  %155 = vmatprep.subr.bf16.mxu0 0
  %156 = vmatpush1.bf16.msra.mxu0 %v143
  %157 = vmatprep.subr.bf16.mxu0 0
  %158 = vmatpush1.bf16.msra.mxu0 %v144
  %159 = vmatprep.subr.bf16.mxu0 0
  %160 = vmatpush1.bf16.msra.mxu0 %v145
  %161 = vmatprep.subr.bf16.mxu0 0
  %162 = vmatpush1.bf16.msra.mxu0 %v146
  %163 = vmatprep.subr.bf16.mxu0 0
  %164 = vmatpush1.bf16.msra.mxu0 0
  %165 = vmatprep.subr.bf16.mxu0 0
  %166 = vmatpush1.bf16.msra.mxu0 0
  %167 = vmatprep.subr.bf16.mxu0 0
  %168 = vmatpush1.bf16.msra.mxu0 0
  %169 = vmatprep.subr.bf16.mxu0 0
  %170 = vmatpush1.bf16.msra.mxu0 0
  %171 = vmatprep.subr.bf16.mxu0 0
  %172 = vmatpush1.bf16.msra.mxu0 0
  %173 = vmatprep.subr.bf16.mxu0 0
  %174 = vmatpush1.bf16.msra.mxu0 0
  %175 = vmatprep.subr.bf16.mxu0 0
  %176 = vmatpush1.bf16.msra.mxu0 0
  %177 = vmatprep.subr.bf16.mxu0 0
  %178 = vmatpush1.bf16.msra.mxu0 0
  %179 = vmatprep.subr.bf16.mxu0 0
  %180 = vmatpush1.bf16.msra.mxu0 0
  %181 = vmatprep.subr.bf16.mxu0 0
  %182 = vmatpush1.bf16.msra.mxu0 0
  %183 = vmatprep.subr.bf16.mxu0 0
  %184 = vmatpush1.bf16.msra.mxu0 0
  %185 = vmatprep.subr.bf16.mxu0 0
  %186 = vmatpush1.bf16.msra.mxu0 0
  %187 = vmatprep.mubr.bf16.mxu0 0
  %188 = vmatmul.mubr.bf16.gmra.mrb[0].mxu0 %v153
  %v189 = vpop.f32.mrb[0].mxu0
  %v190 = vadd.f32 %v126, %v189
  %v191 = vpop.f32.mrb[0].mxu0
  %v192 = vpop.f32.mrb[0].mxu0
  %v193 = vpop.f32.mrb[0].mxu0
  %194 = vdwg.mxu0
  %v195 = vadd.f32 %v108, %v190
  %vm196 = vcmask 517120
  %v197 = vsel %vm196, %v195, 0.0
  %198 = vadd.xlane.f32.xlu0 %v197
  %v199 = vpop.xlane.xlu0 %198
  %v200 = vrcp.pop 64.0
  %v201 = vmul.f32 %v199, %v200
  %v202 = vsub.f32 %v195, %v201
  %v203 = vmul.f32 %v202, %v202
  %v204 = vsel %vm196, %v203, 0.0
  %205 = vadd.xlane.f32.xlu0 %v204
  %v206 = vpop.xlane.xlu0 %205
  %v207 = vmul.f32 %v206, %v200
  %v208 = vadd.f32 %v207, 1e-05
  %v209 = vrsqrt.pop %v208
  %v210 = vmul.f32 %v202, %v209
  %v211 = vlaneseq
  %v212 = vshrl.u32 %v211, 7
  %v213 = vsub.s32 1, %v212
  %v214 = vrot.slane %v113, %v213
  %v215 = vmul.f32 %v210, %v214
  %v216 = vlaneseq
  %v217 = vshrl.u32 %v216, 7
  %v218 = vsub.s32 2, %v217
  %v219 = vrot.slane %v113, %v218
  %v220 = vadd.f32 %v215, %v219
  %v221 = vpack.c.bf16 %v220, %v220
  %v222 = vld [vmem:[%s4] sm:$0xff]
  %v223 = vld [vmem:[%s4 + $0x8] sm:$0xff]
  %v224 = vld [vmem:[%s4 + $0x10] sm:$0xff]
  %v225 = vld [vmem:[%s4 + $0x18] sm:$0xff]
  %v226 = vld [vmem:[%s4 + $0x20] sm:$0xff]
  %v227 = vld [vmem:[%s4 + $0x28] sm:$0xff]
  %v228 = vld [vmem:[%s4 + $0x30] sm:$0xff]
  %v229 = vld [vmem:[%s4 + $0x38] sm:$0xff]
  %v230 = vld [vmem:[%s4 + $0x40] sm:$0xff]
  %v231 = vld [vmem:[%s4 + $0x48] sm:$0xff]
  %v232 = vld [vmem:[%s4 + $0x50] sm:$0xff]
  %v233 = vld [vmem:[%s4 + $0x58] sm:$0xff]
  %v234 = vld [vmem:[%s4 + $0x60] sm:$0xff]
  %v235 = vld [vmem:[%s4 + $0x68] sm:$0xff]
  %v236 = vld [vmem:[%s4 + $0x70] sm:$0xff]
  %v237 = vld [vmem:[%s4 + $0x78] sm:$0xff]
  %v238 = vld [vmem:[%s4 + $0x80] sm:$0xff]
  %v239 = vld [vmem:[%s4 + $0x88] sm:$0xff]
  %v240 = vld [vmem:[%s4 + $0x90] sm:$0xff]
  %v241 = vld [vmem:[%s4 + $0x98] sm:$0xff]
  %v242 = vld [vmem:[%s4 + $0xa0] sm:$0xff]
  %v243 = vld [vmem:[%s4 + $0xa8] sm:$0xff]
  %v244 = vld [vmem:[%s4 + $0xb0] sm:$0xff]
  %v245 = vld [vmem:[%s4 + $0xb8] sm:$0xff]
  %v246 = vld [vmem:[%s4 + $0xc0] sm:$0xff]
  %v247 = vld [vmem:[%s4 + $0xc8] sm:$0xff]
  %v248 = vld [vmem:[%s4 + $0xd0] sm:$0xff]
  %v249 = vld [vmem:[%s4 + $0xd8] sm:$0xff]
  %v250 = vld [vmem:[%s4 + $0xe0] sm:$0xff]
  %v251 = vld [vmem:[%s4 + $0xe8] sm:$0xff]
  %v252 = vld [vmem:[%s4 + $0xf0] sm:$0xff]
  %v253 = vld [vmem:[%s4 + $0xf8] sm:$0xff]
  %v254 = vld [vmem:[%s4 + $0x100] sm:$0xff]
  %v255 = vld [vmem:[%s4 + $0x108] sm:$0xff]
  %v256 = vld [vmem:[%s4 + $0x110] sm:$0xff]
  %v257 = vld [vmem:[%s4 + $0x118] sm:$0xff]
  %v258 = vld [vmem:[%s4 + $0x120] sm:$0xff]
  %v259 = vld [vmem:[%s4 + $0x128] sm:$0xff]
  %v260 = vld [vmem:[%s4 + $0x130] sm:$0xff]
  %v261 = vld [vmem:[%s4 + $0x138] sm:$0xff]
  %v262 = vld [vmem:[%s4 + $0x140] sm:$0xff]
  %v263 = vld [vmem:[%s4 + $0x148] sm:$0xff]
  %v264 = vld [vmem:[%s4 + $0x150] sm:$0xff]
  %v265 = vld [vmem:[%s4 + $0x158] sm:$0xff]
  %v266 = vld [vmem:[%s4 + $0x160] sm:$0xff]
  %v267 = vld [vmem:[%s4 + $0x168] sm:$0xff]
  %v268 = vld [vmem:[%s4 + $0x170] sm:$0xff]
  %v269 = vld [vmem:[%s4 + $0x178] sm:$0xff]
  %v270 = vld [vmem:[%s4 + $0x180] sm:$0xff]
  %v271 = vld [vmem:[%s4 + $0x188] sm:$0xff]
  %v272 = vld [vmem:[%s4 + $0x190] sm:$0xff]
  %v273 = vld [vmem:[%s4 + $0x198] sm:$0xff]
  %v274 = vld [vmem:[%s4 + $0x1a0] sm:$0xff]
  %v275 = vld [vmem:[%s4 + $0x1a8] sm:$0xff]
  %v276 = vld [vmem:[%s4 + $0x1b0] sm:$0xff]
  %v277 = vld [vmem:[%s4 + $0x1b8] sm:$0xff]
  %v278 = vld [vmem:[%s4 + $0x1c0] sm:$0xff]
  %v279 = vld [vmem:[%s4 + $0x1c8] sm:$0xff]
  %v280 = vld [vmem:[%s4 + $0x1d0] sm:$0xff]
  %v281 = vld [vmem:[%s4 + $0x1d8] sm:$0xff]
  %v282 = vld [vmem:[%s4 + $0x1e0] sm:$0xff]
  %v283 = vld [vmem:[%s4 + $0x1e8] sm:$0xff]
  %v284 = vld [vmem:[%s4 + $0x1f0] sm:$0xff]
  %v285 = vld [vmem:[%s4 + $0x1f8] sm:$0xff]
  %v286 = vld [vmem:[%s5] sm:$0xff]
  %v287 = vld [vmem:[%s5 + $0x8] sm:$0xff]
  %v290 = vlaneseq
  %v291 = vshrl.u32 %v290, 7
  %v292 = vsub.s32 0, %v291
  %v293 = vrot.slane %v286, %v292
  %v294 = vlaneseq
  %v295 = vshrl.u32 %v294, 7
  %v296 = vsub.s32 1, %v295
  %v297 = vrot.slane %v286, %v296
  %v298 = vlaneseq
  %v299 = vshrl.u32 %v298, 7
  %v300 = vsub.s32 2, %v299
  %v301 = vrot.slane %v286, %v300
  %v302 = vlaneseq
  %v303 = vshrl.u32 %v302, 7
  %v304 = vsub.s32 3, %v303
  %v305 = vrot.slane %v286, %v304
  %v306 = vlaneseq
  %v307 = vshrl.u32 %v306, 7
  %v308 = vsub.s32 4, %v307
  %v309 = vrot.slane %v286, %v308
  %v310 = vlaneseq
  %v311 = vshrl.u32 %v310, 7
  %v312 = vsub.s32 5, %v311
  %v313 = vrot.slane %v286, %v312
  %v314 = vlaneseq
  %v315 = vshrl.u32 %v314, 7
  %v316 = vsub.s32 6, %v315
  %v317 = vrot.slane %v286, %v316
  %v318 = vlaneseq
  %v319 = vshrl.u32 %v318, 7
  %v320 = vsub.s32 7, %v319
  %v321 = vrot.slane %v286, %v320
  %v322 = vlaneseq
  %v323 = vshrl.u32 %v322, 7
  %v324 = vsub.s32 0, %v323
  %v325 = vrot.slane %v287, %v324
  %v326 = vlaneseq
  %v327 = vshrl.u32 %v326, 7
  %v328 = vsub.s32 1, %v327
  %v329 = vrot.slane %v287, %v328
  %v330 = vlaneseq
  %v331 = vshrl.u32 %v330, 7
  %v332 = vsub.s32 2, %v331
  %v333 = vrot.slane %v287, %v332
  %v334 = vlaneseq
  %v335 = vshrl.u32 %v334, 7
  %v336 = vsub.s32 3, %v335
  %v337 = vrot.slane %v287, %v336
  %v338 = vlaneseq
  %v339 = vshrl.u32 %v338, 7
  %v340 = vsub.s32 4, %v339
  %v341 = vrot.slane %v287, %v340
  %v342 = vlaneseq
  %v343 = vshrl.u32 %v342, 7
  %v344 = vsub.s32 5, %v343
  %v345 = vrot.slane %v287, %v344
  %v346 = vlaneseq
  %v347 = vshrl.u32 %v346, 7
  %v348 = vsub.s32 6, %v347
  %v349 = vrot.slane %v287, %v348
  %v350 = vlaneseq
  %v351 = vshrl.u32 %v350, 7
  %v352 = vsub.s32 7, %v351
  %v353 = vrot.slane %v287, %v352
  %v434 = vunpack.c.l.b16 %v222
  %v435 = vunpack.c.h.b16 %v222
  %v436 = vunpack.c.l.b16 %v223
  %v437 = vunpack.c.h.b16 %v223
  %v438 = vunpack.c.l.b16 %v224
  %v439 = vunpack.c.h.b16 %v224
  %v440 = vunpack.c.l.b16 %v225
  %v441 = vunpack.c.h.b16 %v225
  %v442 = vunpack.c.l.b16 %v226
  %v443 = vunpack.c.h.b16 %v226
  %v444 = vunpack.c.l.b16 %v227
  %v445 = vunpack.c.h.b16 %v227
  %v446 = vunpack.c.l.b16 %v228
  %v447 = vunpack.c.h.b16 %v228
  %v448 = vunpack.c.l.b16 %v229
  %v449 = vunpack.c.h.b16 %v229
  %v450 = vunpack.c.l.b16 %v230
  %v451 = vunpack.c.h.b16 %v230
  %v452 = vunpack.c.l.b16 %v231
  %v453 = vunpack.c.h.b16 %v231
  %v454 = vunpack.c.l.b16 %v232
  %v455 = vunpack.c.h.b16 %v232
  %v456 = vunpack.c.l.b16 %v233
  %v457 = vunpack.c.h.b16 %v233
  %v458 = vunpack.c.l.b16 %v234
  %v459 = vunpack.c.h.b16 %v234
  %v460 = vunpack.c.l.b16 %v235
  %v461 = vunpack.c.h.b16 %v235
  %v462 = vunpack.c.l.b16 %v236
  %v463 = vunpack.c.h.b16 %v236
  %v464 = vunpack.c.l.b16 %v237
  %v465 = vunpack.c.h.b16 %v237
  %v466 = vunpack.c.l.b16 %v238
  %v467 = vunpack.c.h.b16 %v238
  %v468 = vunpack.c.l.b16 %v239
  %v469 = vunpack.c.h.b16 %v239
  %v470 = vunpack.c.l.b16 %v240
  %v471 = vunpack.c.h.b16 %v240
  %v472 = vunpack.c.l.b16 %v241
  %v473 = vunpack.c.h.b16 %v241
  %v474 = vunpack.c.l.b16 %v242
  %v475 = vunpack.c.h.b16 %v242
  %v476 = vunpack.c.l.b16 %v243
  %v477 = vunpack.c.h.b16 %v243
  %v478 = vunpack.c.l.b16 %v244
  %v479 = vunpack.c.h.b16 %v244
  %v480 = vunpack.c.l.b16 %v245
  %v481 = vunpack.c.h.b16 %v245
  %v482 = vunpack.c.l.b16 %v246
  %v483 = vunpack.c.h.b16 %v246
  %v484 = vunpack.c.l.b16 %v247
  %v485 = vunpack.c.h.b16 %v247
  %v486 = vunpack.c.l.b16 %v248
  %v487 = vunpack.c.h.b16 %v248
  %v488 = vunpack.c.l.b16 %v249
  %v489 = vunpack.c.h.b16 %v249
  %v490 = vunpack.c.l.b16 %v250
  %v491 = vunpack.c.h.b16 %v250
  %v492 = vunpack.c.l.b16 %v251
  %v493 = vunpack.c.h.b16 %v251
  %v494 = vunpack.c.l.b16 %v252
  %v495 = vunpack.c.h.b16 %v252
  %v496 = vunpack.c.l.b16 %v253
  %v497 = vunpack.c.h.b16 %v253
  %v498 = vunpack.c.l.b16 %v254
  %v499 = vunpack.c.h.b16 %v254
  %v500 = vunpack.c.l.b16 %v255
  %v501 = vunpack.c.h.b16 %v255
  %v502 = vunpack.c.l.b16 %v256
  %v503 = vunpack.c.h.b16 %v256
  %v504 = vunpack.c.l.b16 %v257
  %v505 = vunpack.c.h.b16 %v257
  %v506 = vunpack.c.l.b16 %v258
  %v507 = vunpack.c.h.b16 %v258
  %v508 = vunpack.c.l.b16 %v259
  %v509 = vunpack.c.h.b16 %v259
  %v510 = vunpack.c.l.b16 %v260
  %v511 = vunpack.c.h.b16 %v260
  %v512 = vunpack.c.l.b16 %v261
  %v513 = vunpack.c.h.b16 %v261
  %v514 = vunpack.c.l.b16 %v262
  %v515 = vunpack.c.h.b16 %v262
  %v516 = vunpack.c.l.b16 %v263
  %v517 = vunpack.c.h.b16 %v263
  %v518 = vunpack.c.l.b16 %v264
  %v519 = vunpack.c.h.b16 %v264
  %v520 = vunpack.c.l.b16 %v265
  %v521 = vunpack.c.h.b16 %v265
  %v522 = vunpack.c.l.b16 %v266
  %v523 = vunpack.c.h.b16 %v266
  %v524 = vunpack.c.l.b16 %v267
  %v525 = vunpack.c.h.b16 %v267
  %v526 = vunpack.c.l.b16 %v268
  %v527 = vunpack.c.h.b16 %v268
  %v528 = vunpack.c.l.b16 %v269
  %v529 = vunpack.c.h.b16 %v269
  %v530 = vunpack.c.l.b16 %v270
  %v531 = vunpack.c.h.b16 %v270
  %v532 = vunpack.c.l.b16 %v271
  %v533 = vunpack.c.h.b16 %v271
  %v534 = vunpack.c.l.b16 %v272
  %v535 = vunpack.c.h.b16 %v272
  %v536 = vunpack.c.l.b16 %v273
  %v537 = vunpack.c.h.b16 %v273
  %v538 = vunpack.c.l.b16 %v274
  %v539 = vunpack.c.h.b16 %v274
  %v540 = vunpack.c.l.b16 %v275
  %v541 = vunpack.c.h.b16 %v275
  %v542 = vunpack.c.l.b16 %v276
  %v543 = vunpack.c.h.b16 %v276
  %v544 = vunpack.c.l.b16 %v277
  %v545 = vunpack.c.h.b16 %v277
  %v546 = vunpack.c.l.b16 %v278
  %v547 = vunpack.c.h.b16 %v278
  %v548 = vunpack.c.l.b16 %v279
  %v549 = vunpack.c.h.b16 %v279
  %v550 = vunpack.c.l.b16 %v280
  %v551 = vunpack.c.h.b16 %v280
  %v552 = vunpack.c.l.b16 %v281
  %v553 = vunpack.c.h.b16 %v281
  %v554 = vunpack.c.l.b16 %v282
  %v555 = vunpack.c.h.b16 %v282
  %v556 = vunpack.c.l.b16 %v283
  %v557 = vunpack.c.h.b16 %v283
  %v558 = vunpack.c.l.b16 %v284
  %v559 = vunpack.c.h.b16 %v284
  %v560 = vunpack.c.l.b16 %v285
  %v561 = vunpack.c.h.b16 %v285
  %v562 = vpack.c.b16 %v450, %v434
  %v563 = vpack.c.b16 %v451, %v435
  %v564 = vpack.c.b16 %v452, %v436
  %v565 = vpack.c.b16 %v453, %v437
  %v566 = vpack.c.b16 %v454, %v438
  %v567 = vpack.c.b16 %v455, %v439
  %v568 = vpack.c.b16 %v456, %v440
  %v569 = vpack.c.b16 %v457, %v441
  %v570 = vpack.c.b16 %v458, %v442
  %v571 = vpack.c.b16 %v459, %v443
  %v572 = vpack.c.b16 %v460, %v444
  %v573 = vpack.c.b16 %v461, %v445
  %v574 = vpack.c.b16 %v462, %v446
  %v575 = vpack.c.b16 %v463, %v447
  %v576 = vpack.c.b16 %v464, %v448
  %v577 = vpack.c.b16 %v465, %v449
  %v578 = vpack.c.b16 %v482, %v466
  %v579 = vpack.c.b16 %v483, %v467
  %v580 = vpack.c.b16 %v484, %v468
  %v581 = vpack.c.b16 %v485, %v469
  %v582 = vpack.c.b16 %v486, %v470
  %v583 = vpack.c.b16 %v487, %v471
  %v584 = vpack.c.b16 %v488, %v472
  %v585 = vpack.c.b16 %v489, %v473
  %v586 = vpack.c.b16 %v490, %v474
  %v587 = vpack.c.b16 %v491, %v475
  %v588 = vpack.c.b16 %v492, %v476
  %v589 = vpack.c.b16 %v493, %v477
  %v590 = vpack.c.b16 %v494, %v478
  %v591 = vpack.c.b16 %v495, %v479
  %v592 = vpack.c.b16 %v496, %v480
  %v593 = vpack.c.b16 %v497, %v481
  %v594 = vpack.c.b16 %v514, %v498
  %v595 = vpack.c.b16 %v515, %v499
  %v596 = vpack.c.b16 %v516, %v500
  %v597 = vpack.c.b16 %v517, %v501
  %v598 = vpack.c.b16 %v518, %v502
  %v599 = vpack.c.b16 %v519, %v503
  %v600 = vpack.c.b16 %v520, %v504
  %v601 = vpack.c.b16 %v521, %v505
  %v602 = vpack.c.b16 %v522, %v506
  %v603 = vpack.c.b16 %v523, %v507
  %v604 = vpack.c.b16 %v524, %v508
  %v605 = vpack.c.b16 %v525, %v509
  %v606 = vpack.c.b16 %v526, %v510
  %v607 = vpack.c.b16 %v527, %v511
  %v608 = vpack.c.b16 %v528, %v512
  %v609 = vpack.c.b16 %v529, %v513
  %v610 = vpack.c.b16 %v546, %v530
  %v611 = vpack.c.b16 %v547, %v531
  %v612 = vpack.c.b16 %v548, %v532
  %v613 = vpack.c.b16 %v549, %v533
  %v614 = vpack.c.b16 %v550, %v534
  %v615 = vpack.c.b16 %v551, %v535
  %v616 = vpack.c.b16 %v552, %v536
  %v617 = vpack.c.b16 %v553, %v537
  %v618 = vpack.c.b16 %v554, %v538
  %v619 = vpack.c.b16 %v555, %v539
  %v620 = vpack.c.b16 %v556, %v540
  %v621 = vpack.c.b16 %v557, %v541
  %v622 = vpack.c.b16 %v558, %v542
  %v623 = vpack.c.b16 %v559, %v543
  %v624 = vpack.c.b16 %v560, %v544
  %v625 = vpack.c.b16 %v561, %v545
  %v691 = vsel %vm151, %v221, 0
  %693 = vmatprep.subr.bf16.mxu0 %v563
  %694 = vmatpush1.bf16.msra.mxu0 %v562
  %695 = vmatprep.subr.bf16.mxu0 %v579
  %696 = vmatpush1.bf16.msra.mxu0 %v578
  %697 = vmatprep.subr.bf16.mxu0 %v595
  %698 = vmatpush1.bf16.msra.mxu0 %v594
  %699 = vmatprep.subr.bf16.mxu0 %v611
  %700 = vmatpush1.bf16.msra.mxu0 %v610
  %701 = vmatprep.subr.bf16.mxu0 0
  %702 = vmatpush1.bf16.msra.mxu0 0
  %703 = vmatprep.subr.bf16.mxu0 0
  %704 = vmatpush1.bf16.msra.mxu0 0
  %705 = vmatprep.subr.bf16.mxu0 0
  %706 = vmatpush1.bf16.msra.mxu0 0
  %707 = vmatprep.subr.bf16.mxu0 0
  %708 = vmatpush1.bf16.msra.mxu0 0
  %709 = vmatprep.subr.bf16.mxu0 0
  %710 = vmatpush1.bf16.msra.mxu0 0
  %711 = vmatprep.subr.bf16.mxu0 0
  %712 = vmatpush1.bf16.msra.mxu0 0
  %713 = vmatprep.subr.bf16.mxu0 0
  %714 = vmatpush1.bf16.msra.mxu0 0
  %715 = vmatprep.subr.bf16.mxu0 0
  %716 = vmatpush1.bf16.msra.mxu0 0
  %717 = vmatprep.subr.bf16.mxu0 0
  %718 = vmatpush1.bf16.msra.mxu0 0
  %719 = vmatprep.subr.bf16.mxu0 0
  %720 = vmatpush1.bf16.msra.mxu0 0
  %721 = vmatprep.subr.bf16.mxu0 0
  %722 = vmatpush1.bf16.msra.mxu0 0
  %723 = vmatprep.subr.bf16.mxu0 0
  %724 = vmatpush1.bf16.msra.mxu0 0
  %725 = vmatprep.mubr.bf16.mxu0 0
  %726 = vmatmul.mubr.bf16.gmra.mrb[0].mxu0 %v691
  %v727 = vpop.f32.mrb[0].mxu0
  %v728 = vadd.f32 %v293, %v727
  %v729 = vpop.f32.mrb[0].mxu0
  %v730 = vadd.f32 %v297, %v729
  %v731 = vpop.f32.mrb[0].mxu0
  %v732 = vpop.f32.mrb[0].mxu0
  %733 = vdwg.mxu0
  %734 = vmatprep.subr.bf16.mxu0 %v565
  %735 = vmatpush1.bf16.msra.mxu0 %v564
  %736 = vmatprep.subr.bf16.mxu0 %v581
  %737 = vmatpush1.bf16.msra.mxu0 %v580
  %738 = vmatprep.subr.bf16.mxu0 %v597
  %739 = vmatpush1.bf16.msra.mxu0 %v596
  %740 = vmatprep.subr.bf16.mxu0 %v613
  %741 = vmatpush1.bf16.msra.mxu0 %v612
  %742 = vmatprep.subr.bf16.mxu0 0
  %743 = vmatpush1.bf16.msra.mxu0 0
  %744 = vmatprep.subr.bf16.mxu0 0
  %745 = vmatpush1.bf16.msra.mxu0 0
  %746 = vmatprep.subr.bf16.mxu0 0
  %747 = vmatpush1.bf16.msra.mxu0 0
  %748 = vmatprep.subr.bf16.mxu0 0
  %749 = vmatpush1.bf16.msra.mxu0 0
  %750 = vmatprep.subr.bf16.mxu0 0
  %751 = vmatpush1.bf16.msra.mxu0 0
  %752 = vmatprep.subr.bf16.mxu0 0
  %753 = vmatpush1.bf16.msra.mxu0 0
  %754 = vmatprep.subr.bf16.mxu0 0
  %755 = vmatpush1.bf16.msra.mxu0 0
  %756 = vmatprep.subr.bf16.mxu0 0
  %757 = vmatpush1.bf16.msra.mxu0 0
  %758 = vmatprep.subr.bf16.mxu0 0
  %759 = vmatpush1.bf16.msra.mxu0 0
  %760 = vmatprep.subr.bf16.mxu0 0
  %761 = vmatpush1.bf16.msra.mxu0 0
  %762 = vmatprep.subr.bf16.mxu0 0
  %763 = vmatpush1.bf16.msra.mxu0 0
  %764 = vmatprep.subr.bf16.mxu0 0
  %765 = vmatpush1.bf16.msra.mxu0 0
  %766 = vmatprep.mubr.bf16.mxu0 0
  %767 = vmatmul.mubr.bf16.gmra.mrb[0].mxu0 %v691
  %v768 = vpop.f32.mrb[0].mxu0
  %v769 = vadd.f32 %v301, %v768
  %v770 = vpop.f32.mrb[0].mxu0
  %v771 = vadd.f32 %v305, %v770
  %v772 = vpop.f32.mrb[0].mxu0
  %v773 = vpop.f32.mrb[0].mxu0
  %774 = vdwg.mxu0
  %775 = vmatprep.subr.bf16.mxu0 %v567
  %776 = vmatpush1.bf16.msra.mxu0 %v566
  %777 = vmatprep.subr.bf16.mxu0 %v583
  %778 = vmatpush1.bf16.msra.mxu0 %v582
  %779 = vmatprep.subr.bf16.mxu0 %v599
  %780 = vmatpush1.bf16.msra.mxu0 %v598
  %781 = vmatprep.subr.bf16.mxu0 %v615
  %782 = vmatpush1.bf16.msra.mxu0 %v614
  %783 = vmatprep.subr.bf16.mxu0 0
  %784 = vmatpush1.bf16.msra.mxu0 0
  %785 = vmatprep.subr.bf16.mxu0 0
  %786 = vmatpush1.bf16.msra.mxu0 0
  %787 = vmatprep.subr.bf16.mxu0 0
  %788 = vmatpush1.bf16.msra.mxu0 0
  %789 = vmatprep.subr.bf16.mxu0 0
  %790 = vmatpush1.bf16.msra.mxu0 0
  %791 = vmatprep.subr.bf16.mxu0 0
  %792 = vmatpush1.bf16.msra.mxu0 0
  %793 = vmatprep.subr.bf16.mxu0 0
  %794 = vmatpush1.bf16.msra.mxu0 0
  %795 = vmatprep.subr.bf16.mxu0 0
  %796 = vmatpush1.bf16.msra.mxu0 0
  %797 = vmatprep.subr.bf16.mxu0 0
  %798 = vmatpush1.bf16.msra.mxu0 0
  %799 = vmatprep.subr.bf16.mxu0 0
  %800 = vmatpush1.bf16.msra.mxu0 0
  %801 = vmatprep.subr.bf16.mxu0 0
  %802 = vmatpush1.bf16.msra.mxu0 0
  %803 = vmatprep.subr.bf16.mxu0 0
  %804 = vmatpush1.bf16.msra.mxu0 0
  %805 = vmatprep.subr.bf16.mxu0 0
  %806 = vmatpush1.bf16.msra.mxu0 0
  %807 = vmatprep.mubr.bf16.mxu0 0
  %808 = vmatmul.mubr.bf16.gmra.mrb[0].mxu0 %v691
  %v809 = vpop.f32.mrb[0].mxu0
  %v810 = vadd.f32 %v309, %v809
  %v811 = vpop.f32.mrb[0].mxu0
  %v812 = vadd.f32 %v313, %v811
  %v813 = vpop.f32.mrb[0].mxu0
  %v814 = vpop.f32.mrb[0].mxu0
  %815 = vdwg.mxu0
  %816 = vmatprep.subr.bf16.mxu0 %v569
  %817 = vmatpush1.bf16.msra.mxu0 %v568
  %818 = vmatprep.subr.bf16.mxu0 %v585
  %819 = vmatpush1.bf16.msra.mxu0 %v584
  %820 = vmatprep.subr.bf16.mxu0 %v601
  %821 = vmatpush1.bf16.msra.mxu0 %v600
  %822 = vmatprep.subr.bf16.mxu0 %v617
  %823 = vmatpush1.bf16.msra.mxu0 %v616
  %824 = vmatprep.subr.bf16.mxu0 0
  %825 = vmatpush1.bf16.msra.mxu0 0
  %826 = vmatprep.subr.bf16.mxu0 0
  %827 = vmatpush1.bf16.msra.mxu0 0
  %828 = vmatprep.subr.bf16.mxu0 0
  %829 = vmatpush1.bf16.msra.mxu0 0
  %830 = vmatprep.subr.bf16.mxu0 0
  %831 = vmatpush1.bf16.msra.mxu0 0
  %832 = vmatprep.subr.bf16.mxu0 0
  %833 = vmatpush1.bf16.msra.mxu0 0
  %834 = vmatprep.subr.bf16.mxu0 0
  %835 = vmatpush1.bf16.msra.mxu0 0
  %836 = vmatprep.subr.bf16.mxu0 0
  %837 = vmatpush1.bf16.msra.mxu0 0
  %838 = vmatprep.subr.bf16.mxu0 0
  %839 = vmatpush1.bf16.msra.mxu0 0
  %840 = vmatprep.subr.bf16.mxu0 0
  %841 = vmatpush1.bf16.msra.mxu0 0
  %842 = vmatprep.subr.bf16.mxu0 0
  %843 = vmatpush1.bf16.msra.mxu0 0
  %844 = vmatprep.subr.bf16.mxu0 0
  %845 = vmatpush1.bf16.msra.mxu0 0
  %846 = vmatprep.subr.bf16.mxu0 0
  %847 = vmatpush1.bf16.msra.mxu0 0
  %848 = vmatprep.mubr.bf16.mxu0 0
  %849 = vmatmul.mubr.bf16.gmra.mrb[0].mxu0 %v691
  %v850 = vpop.f32.mrb[0].mxu0
  %v851 = vadd.f32 %v317, %v850
  %v852 = vpop.f32.mrb[0].mxu0
  %v853 = vadd.f32 %v321, %v852
  %v854 = vpop.f32.mrb[0].mxu0
  %v855 = vpop.f32.mrb[0].mxu0
  %856 = vdwg.mxu0
  %857 = vmatprep.subr.bf16.mxu0 %v571
  %858 = vmatpush1.bf16.msra.mxu0 %v570
  %859 = vmatprep.subr.bf16.mxu0 %v587
  %860 = vmatpush1.bf16.msra.mxu0 %v586
  %861 = vmatprep.subr.bf16.mxu0 %v603
  %862 = vmatpush1.bf16.msra.mxu0 %v602
  %863 = vmatprep.subr.bf16.mxu0 %v619
  %864 = vmatpush1.bf16.msra.mxu0 %v618
  %865 = vmatprep.subr.bf16.mxu0 0
  %866 = vmatpush1.bf16.msra.mxu0 0
  %867 = vmatprep.subr.bf16.mxu0 0
  %868 = vmatpush1.bf16.msra.mxu0 0
  %869 = vmatprep.subr.bf16.mxu0 0
  %870 = vmatpush1.bf16.msra.mxu0 0
  %871 = vmatprep.subr.bf16.mxu0 0
  %872 = vmatpush1.bf16.msra.mxu0 0
  %873 = vmatprep.subr.bf16.mxu0 0
  %874 = vmatpush1.bf16.msra.mxu0 0
  %875 = vmatprep.subr.bf16.mxu0 0
  %876 = vmatpush1.bf16.msra.mxu0 0
  %877 = vmatprep.subr.bf16.mxu0 0
  %878 = vmatpush1.bf16.msra.mxu0 0
  %879 = vmatprep.subr.bf16.mxu0 0
  %880 = vmatpush1.bf16.msra.mxu0 0
  %881 = vmatprep.subr.bf16.mxu0 0
  %882 = vmatpush1.bf16.msra.mxu0 0
  %883 = vmatprep.subr.bf16.mxu0 0
  %884 = vmatpush1.bf16.msra.mxu0 0
  %885 = vmatprep.subr.bf16.mxu0 0
  %886 = vmatpush1.bf16.msra.mxu0 0
  %887 = vmatprep.subr.bf16.mxu0 0
  %888 = vmatpush1.bf16.msra.mxu0 0
  %889 = vmatprep.mubr.bf16.mxu0 0
  %890 = vmatmul.mubr.bf16.gmra.mrb[0].mxu0 %v691
  %v891 = vpop.f32.mrb[0].mxu0
  %v892 = vadd.f32 %v325, %v891
  %v893 = vpop.f32.mrb[0].mxu0
  %v894 = vadd.f32 %v329, %v893
  %v895 = vpop.f32.mrb[0].mxu0
  %v896 = vpop.f32.mrb[0].mxu0
  %897 = vdwg.mxu0
  %898 = vmatprep.subr.bf16.mxu0 %v573
  %899 = vmatpush1.bf16.msra.mxu0 %v572
  %900 = vmatprep.subr.bf16.mxu0 %v589
  %901 = vmatpush1.bf16.msra.mxu0 %v588
  %902 = vmatprep.subr.bf16.mxu0 %v605
  %903 = vmatpush1.bf16.msra.mxu0 %v604
  %904 = vmatprep.subr.bf16.mxu0 %v621
  %905 = vmatpush1.bf16.msra.mxu0 %v620
  %906 = vmatprep.subr.bf16.mxu0 0
  %907 = vmatpush1.bf16.msra.mxu0 0
  %908 = vmatprep.subr.bf16.mxu0 0
  %909 = vmatpush1.bf16.msra.mxu0 0
  %910 = vmatprep.subr.bf16.mxu0 0
  %911 = vmatpush1.bf16.msra.mxu0 0
  %912 = vmatprep.subr.bf16.mxu0 0
  %913 = vmatpush1.bf16.msra.mxu0 0
  %914 = vmatprep.subr.bf16.mxu0 0
  %915 = vmatpush1.bf16.msra.mxu0 0
  %916 = vmatprep.subr.bf16.mxu0 0
  %917 = vmatpush1.bf16.msra.mxu0 0
  %918 = vmatprep.subr.bf16.mxu0 0
  %919 = vmatpush1.bf16.msra.mxu0 0
  %920 = vmatprep.subr.bf16.mxu0 0
  %921 = vmatpush1.bf16.msra.mxu0 0
  %922 = vmatprep.subr.bf16.mxu0 0
  %923 = vmatpush1.bf16.msra.mxu0 0
  %924 = vmatprep.subr.bf16.mxu0 0
  %925 = vmatpush1.bf16.msra.mxu0 0
  %926 = vmatprep.subr.bf16.mxu0 0
  %927 = vmatpush1.bf16.msra.mxu0 0
  %928 = vmatprep.subr.bf16.mxu0 0
  %929 = vmatpush1.bf16.msra.mxu0 0
  %930 = vmatprep.mubr.bf16.mxu0 0
  %931 = vmatmul.mubr.bf16.gmra.mrb[0].mxu0 %v691
  %v932 = vpop.f32.mrb[0].mxu0
  %v933 = vadd.f32 %v333, %v932
  %v934 = vpop.f32.mrb[0].mxu0
  %v935 = vadd.f32 %v337, %v934
  %v936 = vpop.f32.mrb[0].mxu0
  %v937 = vpop.f32.mrb[0].mxu0
  %938 = vdwg.mxu0
  %939 = vmatprep.subr.bf16.mxu0 %v575
  %940 = vmatpush1.bf16.msra.mxu0 %v574
  %941 = vmatprep.subr.bf16.mxu0 %v591
  %942 = vmatpush1.bf16.msra.mxu0 %v590
  %943 = vmatprep.subr.bf16.mxu0 %v607
  %944 = vmatpush1.bf16.msra.mxu0 %v606
  %945 = vmatprep.subr.bf16.mxu0 %v623
  %946 = vmatpush1.bf16.msra.mxu0 %v622
  %947 = vmatprep.subr.bf16.mxu0 0
  %948 = vmatpush1.bf16.msra.mxu0 0
  %949 = vmatprep.subr.bf16.mxu0 0
  %950 = vmatpush1.bf16.msra.mxu0 0
  %951 = vmatprep.subr.bf16.mxu0 0
  %952 = vmatpush1.bf16.msra.mxu0 0
  %953 = vmatprep.subr.bf16.mxu0 0
  %954 = vmatpush1.bf16.msra.mxu0 0
  %955 = vmatprep.subr.bf16.mxu0 0
  %956 = vmatpush1.bf16.msra.mxu0 0
  %957 = vmatprep.subr.bf16.mxu0 0
  %958 = vmatpush1.bf16.msra.mxu0 0
  %959 = vmatprep.subr.bf16.mxu0 0
  %960 = vmatpush1.bf16.msra.mxu0 0
  %961 = vmatprep.subr.bf16.mxu0 0
  %962 = vmatpush1.bf16.msra.mxu0 0
  %963 = vmatprep.subr.bf16.mxu0 0
  %964 = vmatpush1.bf16.msra.mxu0 0
  %965 = vmatprep.subr.bf16.mxu0 0
  %966 = vmatpush1.bf16.msra.mxu0 0
  %967 = vmatprep.subr.bf16.mxu0 0
  %968 = vmatpush1.bf16.msra.mxu0 0
  %969 = vmatprep.subr.bf16.mxu0 0
  %970 = vmatpush1.bf16.msra.mxu0 0
  %971 = vmatprep.mubr.bf16.mxu0 0
  %972 = vmatmul.mubr.bf16.gmra.mrb[0].mxu0 %v691
  %v973 = vpop.f32.mrb[0].mxu0
  %v974 = vadd.f32 %v341, %v973
  %v975 = vpop.f32.mrb[0].mxu0
  %v976 = vadd.f32 %v345, %v975
  %v977 = vpop.f32.mrb[0].mxu0
  %v978 = vpop.f32.mrb[0].mxu0
  %979 = vdwg.mxu0
  %980 = vmatprep.subr.bf16.mxu0 %v577
  %981 = vmatpush1.bf16.msra.mxu0 %v576
  %982 = vmatprep.subr.bf16.mxu0 %v593
  %983 = vmatpush1.bf16.msra.mxu0 %v592
  %984 = vmatprep.subr.bf16.mxu0 %v609
  %985 = vmatpush1.bf16.msra.mxu0 %v608
  %986 = vmatprep.subr.bf16.mxu0 %v625
  %987 = vmatpush1.bf16.msra.mxu0 %v624
  %988 = vmatprep.subr.bf16.mxu0 0
  %989 = vmatpush1.bf16.msra.mxu0 0
  %990 = vmatprep.subr.bf16.mxu0 0
  %991 = vmatpush1.bf16.msra.mxu0 0
  %992 = vmatprep.subr.bf16.mxu0 0
  %993 = vmatpush1.bf16.msra.mxu0 0
  %994 = vmatprep.subr.bf16.mxu0 0
  %995 = vmatpush1.bf16.msra.mxu0 0
  %996 = vmatprep.subr.bf16.mxu0 0
  %997 = vmatpush1.bf16.msra.mxu0 0
  %998 = vmatprep.subr.bf16.mxu0 0
  %999 = vmatpush1.bf16.msra.mxu0 0
  %1000 = vmatprep.subr.bf16.mxu0 0
  %1001 = vmatpush1.bf16.msra.mxu0 0
  %1002 = vmatprep.subr.bf16.mxu0 0
  %1003 = vmatpush1.bf16.msra.mxu0 0
  %1004 = vmatprep.subr.bf16.mxu0 0
  %1005 = vmatpush1.bf16.msra.mxu0 0
  %1006 = vmatprep.subr.bf16.mxu0 0
  %1007 = vmatpush1.bf16.msra.mxu0 0
  %1008 = vmatprep.subr.bf16.mxu0 0
  %1009 = vmatpush1.bf16.msra.mxu0 0
  %1010 = vmatprep.subr.bf16.mxu0 0
  %1011 = vmatpush1.bf16.msra.mxu0 0
  %1012 = vmatprep.mubr.bf16.mxu0 0
  %1013 = vmatmul.mubr.bf16.gmra.mrb[0].mxu0 %v691
  %v1014 = vpop.f32.mrb[0].mxu0
  %v1015 = vadd.f32 %v349, %v1014
  %v1016 = vpop.f32.mrb[0].mxu0
  %v1017 = vadd.f32 %v353, %v1016
  %v1018 = vpop.f32.mrb[0].mxu0
  %v1019 = vpop.f32.mrb[0].mxu0
  %1020 = vdwg.mxu0
  %v1021 = vmax.f32 %v728, 0.0
  %v1022 = vmax.f32 %v730, 0.0
  %v1023 = vmax.f32 %v769, 0.0
  %v1024 = vmax.f32 %v771, 0.0
  %v1025 = vmax.f32 %v810, 0.0
  %v1026 = vmax.f32 %v812, 0.0
  %v1027 = vmax.f32 %v851, 0.0
  %v1028 = vmax.f32 %v853, 0.0
  %v1029 = vmax.f32 %v892, 0.0
  %v1030 = vmax.f32 %v894, 0.0
  %v1031 = vmax.f32 %v933, 0.0
  %v1032 = vmax.f32 %v935, 0.0
  %v1033 = vmax.f32 %v974, 0.0
  %v1034 = vmax.f32 %v976, 0.0
  %v1035 = vmax.f32 %v1015, 0.0
  %v1036 = vmax.f32 %v1017, 0.0
  %v1037 = vpack.c.bf16 %v1021, %v1021
  %v1038 = vpack.c.bf16 %v1022, %v1022
  %v1039 = vpack.c.bf16 %v1023, %v1023
  %v1040 = vpack.c.bf16 %v1024, %v1024
  %v1041 = vpack.c.bf16 %v1025, %v1025
  %v1042 = vpack.c.bf16 %v1026, %v1026
  %v1043 = vpack.c.bf16 %v1027, %v1027
  %v1044 = vpack.c.bf16 %v1028, %v1028
  %v1045 = vpack.c.bf16 %v1029, %v1029
  %v1046 = vpack.c.bf16 %v1030, %v1030
  %v1047 = vpack.c.bf16 %v1031, %v1031
  %v1048 = vpack.c.bf16 %v1032, %v1032
  %v1049 = vpack.c.bf16 %v1033, %v1033
  %v1050 = vpack.c.bf16 %v1034, %v1034
  %v1051 = vpack.c.bf16 %v1035, %v1035
  %v1052 = vpack.c.bf16 %v1036, %v1036
  %v1053 = vld [vmem:[%s6] sm:$0xf]
  %v1054 = vld [vmem:[%s6 + $0x4] sm:$0xf]
  %v1055 = vld [vmem:[%s6 + $0x8] sm:$0xf]
  %v1056 = vld [vmem:[%s6 + $0xc] sm:$0xf]
  %v1057 = vld [vmem:[%s6 + $0x10] sm:$0xf]
  %v1058 = vld [vmem:[%s6 + $0x14] sm:$0xf]
  %v1059 = vld [vmem:[%s6 + $0x18] sm:$0xf]
  %v1060 = vld [vmem:[%s6 + $0x1c] sm:$0xf]
  %v1061 = vld [vmem:[%s6 + $0x20] sm:$0xf]
  %v1062 = vld [vmem:[%s6 + $0x24] sm:$0xf]
  %v1063 = vld [vmem:[%s6 + $0x28] sm:$0xf]
  %v1064 = vld [vmem:[%s6 + $0x2c] sm:$0xf]
  %v1065 = vld [vmem:[%s6 + $0x30] sm:$0xf]
  %v1066 = vld [vmem:[%s6 + $0x34] sm:$0xf]
  %v1067 = vld [vmem:[%s6 + $0x38] sm:$0xf]
  %v1068 = vld [vmem:[%s6 + $0x3c] sm:$0xf]
  %v1069 = vld [vmem:[%s6 + $0x40] sm:$0xf]
  %v1070 = vld [vmem:[%s6 + $0x44] sm:$0xf]
  %v1071 = vld [vmem:[%s6 + $0x48] sm:$0xf]
  %v1072 = vld [vmem:[%s6 + $0x4c] sm:$0xf]
  %v1073 = vld [vmem:[%s6 + $0x50] sm:$0xf]
  %v1074 = vld [vmem:[%s6 + $0x54] sm:$0xf]
  %v1075 = vld [vmem:[%s6 + $0x58] sm:$0xf]
  %v1076 = vld [vmem:[%s6 + $0x5c] sm:$0xf]
  %v1077 = vld [vmem:[%s6 + $0x60] sm:$0xf]
  %v1078 = vld [vmem:[%s6 + $0x64] sm:$0xf]
  %v1079 = vld [vmem:[%s6 + $0x68] sm:$0xf]
  %v1080 = vld [vmem:[%s6 + $0x6c] sm:$0xf]
  %v1081 = vld [vmem:[%s6 + $0x70] sm:$0xf]
  %v1082 = vld [vmem:[%s6 + $0x74] sm:$0xf]
  %v1083 = vld [vmem:[%s6 + $0x78] sm:$0xf]
  %v1084 = vld [vmem:[%s6 + $0x7c] sm:$0xf]
  %v1085 = vld [vmem:[%s6 + $0x80] sm:$0xf]
  %v1086 = vld [vmem:[%s6 + $0x84] sm:$0xf]
  %v1087 = vld [vmem:[%s6 + $0x88] sm:$0xf]
  %v1088 = vld [vmem:[%s6 + $0x8c] sm:$0xf]
  %v1089 = vld [vmem:[%s6 + $0x90] sm:$0xf]
  %v1090 = vld [vmem:[%s6 + $0x94] sm:$0xf]
  %v1091 = vld [vmem:[%s6 + $0x98] sm:$0xf]
  %v1092 = vld [vmem:[%s6 + $0x9c] sm:$0xf]
  %v1093 = vld [vmem:[%s6 + $0xa0] sm:$0xf]
  %v1094 = vld [vmem:[%s6 + $0xa4] sm:$0xf]
  %v1095 = vld [vmem:[%s6 + $0xa8] sm:$0xf]
  %v1096 = vld [vmem:[%s6 + $0xac] sm:$0xf]
  %v1097 = vld [vmem:[%s6 + $0xb0] sm:$0xf]
  %v1098 = vld [vmem:[%s6 + $0xb4] sm:$0xf]
  %v1099 = vld [vmem:[%s6 + $0xb8] sm:$0xf]
  %v1100 = vld [vmem:[%s6 + $0xbc] sm:$0xf]
  %v1101 = vld [vmem:[%s6 + $0xc0] sm:$0xf]
  %v1102 = vld [vmem:[%s6 + $0xc4] sm:$0xf]
  %v1103 = vld [vmem:[%s6 + $0xc8] sm:$0xf]
  %v1104 = vld [vmem:[%s6 + $0xcc] sm:$0xf]
  %v1105 = vld [vmem:[%s6 + $0xd0] sm:$0xf]
  %v1106 = vld [vmem:[%s6 + $0xd4] sm:$0xf]
  %v1107 = vld [vmem:[%s6 + $0xd8] sm:$0xf]
  %v1108 = vld [vmem:[%s6 + $0xdc] sm:$0xf]
  %v1109 = vld [vmem:[%s6 + $0xe0] sm:$0xf]
  %v1110 = vld [vmem:[%s6 + $0xe4] sm:$0xf]
  %v1111 = vld [vmem:[%s6 + $0xe8] sm:$0xf]
  %v1112 = vld [vmem:[%s6 + $0xec] sm:$0xf]
  %v1113 = vld [vmem:[%s6 + $0xf0] sm:$0xf]
  %v1114 = vld [vmem:[%s6 + $0xf4] sm:$0xf]
  %v1115 = vld [vmem:[%s6 + $0xf8] sm:$0xf]
  %v1116 = vld [vmem:[%s6 + $0xfc] sm:$0xf]
  %v1117 = vld [vmem:[%s6 + $0x100] sm:$0xf]
  %v1118 = vld [vmem:[%s6 + $0x104] sm:$0xf]
  %v1119 = vld [vmem:[%s6 + $0x108] sm:$0xf]
  %v1120 = vld [vmem:[%s6 + $0x10c] sm:$0xf]
  %v1121 = vld [vmem:[%s6 + $0x110] sm:$0xf]
  %v1122 = vld [vmem:[%s6 + $0x114] sm:$0xf]
  %v1123 = vld [vmem:[%s6 + $0x118] sm:$0xf]
  %v1124 = vld [vmem:[%s6 + $0x11c] sm:$0xf]
  %v1125 = vld [vmem:[%s6 + $0x120] sm:$0xf]
  %v1126 = vld [vmem:[%s6 + $0x124] sm:$0xf]
  %v1127 = vld [vmem:[%s6 + $0x128] sm:$0xf]
  %v1128 = vld [vmem:[%s6 + $0x12c] sm:$0xf]
  %v1129 = vld [vmem:[%s6 + $0x130] sm:$0xf]
  %v1130 = vld [vmem:[%s6 + $0x134] sm:$0xf]
  %v1131 = vld [vmem:[%s6 + $0x138] sm:$0xf]
  %v1132 = vld [vmem:[%s6 + $0x13c] sm:$0xf]
  %v1133 = vld [vmem:[%s6 + $0x140] sm:$0xf]
  %v1134 = vld [vmem:[%s6 + $0x144] sm:$0xf]
  %v1135 = vld [vmem:[%s6 + $0x148] sm:$0xf]
  %v1136 = vld [vmem:[%s6 + $0x14c] sm:$0xf]
  %v1137 = vld [vmem:[%s6 + $0x150] sm:$0xf]
  %v1138 = vld [vmem:[%s6 + $0x154] sm:$0xf]
  %v1139 = vld [vmem:[%s6 + $0x158] sm:$0xf]
  %v1140 = vld [vmem:[%s6 + $0x15c] sm:$0xf]
  %v1141 = vld [vmem:[%s6 + $0x160] sm:$0xf]
  %v1142 = vld [vmem:[%s6 + $0x164] sm:$0xf]
  %v1143 = vld [vmem:[%s6 + $0x168] sm:$0xf]
  %v1144 = vld [vmem:[%s6 + $0x16c] sm:$0xf]
  %v1145 = vld [vmem:[%s6 + $0x170] sm:$0xf]
  %v1146 = vld [vmem:[%s6 + $0x174] sm:$0xf]
  %v1147 = vld [vmem:[%s6 + $0x178] sm:$0xf]
  %v1148 = vld [vmem:[%s6 + $0x17c] sm:$0xf]
  %v1149 = vld [vmem:[%s6 + $0x180] sm:$0xf]
  %v1150 = vld [vmem:[%s6 + $0x184] sm:$0xf]
  %v1151 = vld [vmem:[%s6 + $0x188] sm:$0xf]
  %v1152 = vld [vmem:[%s6 + $0x18c] sm:$0xf]
  %v1153 = vld [vmem:[%s6 + $0x190] sm:$0xf]
  %v1154 = vld [vmem:[%s6 + $0x194] sm:$0xf]
  %v1155 = vld [vmem:[%s6 + $0x198] sm:$0xf]
  %v1156 = vld [vmem:[%s6 + $0x19c] sm:$0xf]
  %v1157 = vld [vmem:[%s6 + $0x1a0] sm:$0xf]
  %v1158 = vld [vmem:[%s6 + $0x1a4] sm:$0xf]
  %v1159 = vld [vmem:[%s6 + $0x1a8] sm:$0xf]
  %v1160 = vld [vmem:[%s6 + $0x1ac] sm:$0xf]
  %v1161 = vld [vmem:[%s6 + $0x1b0] sm:$0xf]
  %v1162 = vld [vmem:[%s6 + $0x1b4] sm:$0xf]
  %v1163 = vld [vmem:[%s6 + $0x1b8] sm:$0xf]
  %v1164 = vld [vmem:[%s6 + $0x1bc] sm:$0xf]
  %v1165 = vld [vmem:[%s6 + $0x1c0] sm:$0xf]
  %v1166 = vld [vmem:[%s6 + $0x1c4] sm:$0xf]
  %v1167 = vld [vmem:[%s6 + $0x1c8] sm:$0xf]
  %v1168 = vld [vmem:[%s6 + $0x1cc] sm:$0xf]
  %v1169 = vld [vmem:[%s6 + $0x1d0] sm:$0xf]
  %v1170 = vld [vmem:[%s6 + $0x1d4] sm:$0xf]
  %v1171 = vld [vmem:[%s6 + $0x1d8] sm:$0xf]
  %v1172 = vld [vmem:[%s6 + $0x1dc] sm:$0xf]
  %v1173 = vld [vmem:[%s6 + $0x1e0] sm:$0xf]
  %v1174 = vld [vmem:[%s6 + $0x1e4] sm:$0xf]
  %v1175 = vld [vmem:[%s6 + $0x1e8] sm:$0xf]
  %v1176 = vld [vmem:[%s6 + $0x1ec] sm:$0xf]
  %v1177 = vld [vmem:[%s6 + $0x1f0] sm:$0xf]
  %v1178 = vld [vmem:[%s6 + $0x1f4] sm:$0xf]
  %v1179 = vld [vmem:[%s6 + $0x1f8] sm:$0xf]
  %v1180 = vld [vmem:[%s6 + $0x1fc] sm:$0xf]
  %v1181 = vld [vmem:[%s6 + $0x200] sm:$0xf]
  %v1182 = vld [vmem:[%s6 + $0x204] sm:$0xf]
  %v1183 = vld [vmem:[%s6 + $0x208] sm:$0xf]
  %v1184 = vld [vmem:[%s6 + $0x20c] sm:$0xf]
  %v1185 = vld [vmem:[%s6 + $0x210] sm:$0xf]
  %v1186 = vld [vmem:[%s6 + $0x214] sm:$0xf]
  %v1187 = vld [vmem:[%s6 + $0x218] sm:$0xf]
  %v1188 = vld [vmem:[%s6 + $0x21c] sm:$0xf]
  %v1189 = vld [vmem:[%s6 + $0x220] sm:$0xf]
  %v1190 = vld [vmem:[%s6 + $0x224] sm:$0xf]
  %v1191 = vld [vmem:[%s6 + $0x228] sm:$0xf]
  %v1192 = vld [vmem:[%s6 + $0x22c] sm:$0xf]
  %v1193 = vld [vmem:[%s6 + $0x230] sm:$0xf]
  %v1194 = vld [vmem:[%s6 + $0x234] sm:$0xf]
  %v1195 = vld [vmem:[%s6 + $0x238] sm:$0xf]
  %v1196 = vld [vmem:[%s6 + $0x23c] sm:$0xf]
  %v1197 = vld [vmem:[%s6 + $0x240] sm:$0xf]
  %v1198 = vld [vmem:[%s6 + $0x244] sm:$0xf]
  %v1199 = vld [vmem:[%s6 + $0x248] sm:$0xf]
  %v1200 = vld [vmem:[%s6 + $0x24c] sm:$0xf]
  %v1201 = vld [vmem:[%s6 + $0x250] sm:$0xf]
  %v1202 = vld [vmem:[%s6 + $0x254] sm:$0xf]
  %v1203 = vld [vmem:[%s6 + $0x258] sm:$0xf]
  %v1204 = vld [vmem:[%s6 + $0x25c] sm:$0xf]
  %v1205 = vld [vmem:[%s6 + $0x260] sm:$0xf]
  %v1206 = vld [vmem:[%s6 + $0x264] sm:$0xf]
  %v1207 = vld [vmem:[%s6 + $0x268] sm:$0xf]
  %v1208 = vld [vmem:[%s6 + $0x26c] sm:$0xf]
  %v1209 = vld [vmem:[%s6 + $0x270] sm:$0xf]
  %v1210 = vld [vmem:[%s6 + $0x274] sm:$0xf]
  %v1211 = vld [vmem:[%s6 + $0x278] sm:$0xf]
  %v1212 = vld [vmem:[%s6 + $0x27c] sm:$0xf]
  %v1213 = vld [vmem:[%s6 + $0x280] sm:$0xf]
  %v1214 = vld [vmem:[%s6 + $0x284] sm:$0xf]
  %v1215 = vld [vmem:[%s6 + $0x288] sm:$0xf]
  %v1216 = vld [vmem:[%s6 + $0x28c] sm:$0xf]
  %v1217 = vld [vmem:[%s6 + $0x290] sm:$0xf]
  %v1218 = vld [vmem:[%s6 + $0x294] sm:$0xf]
  %v1219 = vld [vmem:[%s6 + $0x298] sm:$0xf]
  %v1220 = vld [vmem:[%s6 + $0x29c] sm:$0xf]
  %v1221 = vld [vmem:[%s6 + $0x2a0] sm:$0xf]
  %v1222 = vld [vmem:[%s6 + $0x2a4] sm:$0xf]
  %v1223 = vld [vmem:[%s6 + $0x2a8] sm:$0xf]
  %v1224 = vld [vmem:[%s6 + $0x2ac] sm:$0xf]
  %v1225 = vld [vmem:[%s6 + $0x2b0] sm:$0xf]
  %v1226 = vld [vmem:[%s6 + $0x2b4] sm:$0xf]
  %v1227 = vld [vmem:[%s6 + $0x2b8] sm:$0xf]
  %v1228 = vld [vmem:[%s6 + $0x2bc] sm:$0xf]
  %v1229 = vld [vmem:[%s6 + $0x2c0] sm:$0xf]
  %v1230 = vld [vmem:[%s6 + $0x2c4] sm:$0xf]
  %v1231 = vld [vmem:[%s6 + $0x2c8] sm:$0xf]
  %v1232 = vld [vmem:[%s6 + $0x2cc] sm:$0xf]
  %v1233 = vld [vmem:[%s6 + $0x2d0] sm:$0xf]
  %v1234 = vld [vmem:[%s6 + $0x2d4] sm:$0xf]
  %v1235 = vld [vmem:[%s6 + $0x2d8] sm:$0xf]
  %v1236 = vld [vmem:[%s6 + $0x2dc] sm:$0xf]
  %v1237 = vld [vmem:[%s6 + $0x2e0] sm:$0xf]
  %v1238 = vld [vmem:[%s6 + $0x2e4] sm:$0xf]
  %v1239 = vld [vmem:[%s6 + $0x2e8] sm:$0xf]
  %v1240 = vld [vmem:[%s6 + $0x2ec] sm:$0xf]
  %v1241 = vld [vmem:[%s6 + $0x2f0] sm:$0xf]
  %v1242 = vld [vmem:[%s6 + $0x2f4] sm:$0xf]
  %v1243 = vld [vmem:[%s6 + $0x2f8] sm:$0xf]
  %v1244 = vld [vmem:[%s6 + $0x2fc] sm:$0xf]
  %v1245 = vld [vmem:[%s6 + $0x300] sm:$0xf]
  %v1246 = vld [vmem:[%s6 + $0x304] sm:$0xf]
  %v1247 = vld [vmem:[%s6 + $0x308] sm:$0xf]
  %v1248 = vld [vmem:[%s6 + $0x30c] sm:$0xf]
  %v1249 = vld [vmem:[%s6 + $0x310] sm:$0xf]
  %v1250 = vld [vmem:[%s6 + $0x314] sm:$0xf]
  %v1251 = vld [vmem:[%s6 + $0x318] sm:$0xf]
  %v1252 = vld [vmem:[%s6 + $0x31c] sm:$0xf]
  %v1253 = vld [vmem:[%s6 + $0x320] sm:$0xf]
  %v1254 = vld [vmem:[%s6 + $0x324] sm:$0xf]
  %v1255 = vld [vmem:[%s6 + $0x328] sm:$0xf]
  %v1256 = vld [vmem:[%s6 + $0x32c] sm:$0xf]
  %v1257 = vld [vmem:[%s6 + $0x330] sm:$0xf]
  %v1258 = vld [vmem:[%s6 + $0x334] sm:$0xf]
  %v1259 = vld [vmem:[%s6 + $0x338] sm:$0xf]
  %v1260 = vld [vmem:[%s6 + $0x33c] sm:$0xf]
  %v1261 = vld [vmem:[%s6 + $0x340] sm:$0xf]
  %v1262 = vld [vmem:[%s6 + $0x344] sm:$0xf]
  %v1263 = vld [vmem:[%s6 + $0x348] sm:$0xf]
  %v1264 = vld [vmem:[%s6 + $0x34c] sm:$0xf]
  %v1265 = vld [vmem:[%s6 + $0x350] sm:$0xf]
  %v1266 = vld [vmem:[%s6 + $0x354] sm:$0xf]
  %v1267 = vld [vmem:[%s6 + $0x358] sm:$0xf]
  %v1268 = vld [vmem:[%s6 + $0x35c] sm:$0xf]
  %v1269 = vld [vmem:[%s6 + $0x360] sm:$0xf]
  %v1270 = vld [vmem:[%s6 + $0x364] sm:$0xf]
  %v1271 = vld [vmem:[%s6 + $0x368] sm:$0xf]
  %v1272 = vld [vmem:[%s6 + $0x36c] sm:$0xf]
  %v1273 = vld [vmem:[%s6 + $0x370] sm:$0xf]
  %v1274 = vld [vmem:[%s6 + $0x374] sm:$0xf]
  %v1275 = vld [vmem:[%s6 + $0x378] sm:$0xf]
  %v1276 = vld [vmem:[%s6 + $0x37c] sm:$0xf]
  %v1277 = vld [vmem:[%s6 + $0x380] sm:$0xf]
  %v1278 = vld [vmem:[%s6 + $0x384] sm:$0xf]
  %v1279 = vld [vmem:[%s6 + $0x388] sm:$0xf]
  %v1280 = vld [vmem:[%s6 + $0x38c] sm:$0xf]
  %v1281 = vld [vmem:[%s6 + $0x390] sm:$0xf]
  %v1282 = vld [vmem:[%s6 + $0x394] sm:$0xf]
  %v1283 = vld [vmem:[%s6 + $0x398] sm:$0xf]
  %v1284 = vld [vmem:[%s6 + $0x39c] sm:$0xf]
  %v1285 = vld [vmem:[%s6 + $0x3a0] sm:$0xf]
  %v1286 = vld [vmem:[%s6 + $0x3a4] sm:$0xf]
  %v1287 = vld [vmem:[%s6 + $0x3a8] sm:$0xf]
  %v1288 = vld [vmem:[%s6 + $0x3ac] sm:$0xf]
  %v1289 = vld [vmem:[%s6 + $0x3b0] sm:$0xf]
  %v1290 = vld [vmem:[%s6 + $0x3b4] sm:$0xf]
  %v1291 = vld [vmem:[%s6 + $0x3b8] sm:$0xf]
  %v1292 = vld [vmem:[%s6 + $0x3bc] sm:$0xf]
  %v1293 = vld [vmem:[%s6 + $0x3c0] sm:$0xf]
  %v1294 = vld [vmem:[%s6 + $0x3c4] sm:$0xf]
  %v1295 = vld [vmem:[%s6 + $0x3c8] sm:$0xf]
  %v1296 = vld [vmem:[%s6 + $0x3cc] sm:$0xf]
  %v1297 = vld [vmem:[%s6 + $0x3d0] sm:$0xf]
  %v1298 = vld [vmem:[%s6 + $0x3d4] sm:$0xf]
  %v1299 = vld [vmem:[%s6 + $0x3d8] sm:$0xf]
  %v1300 = vld [vmem:[%s6 + $0x3dc] sm:$0xf]
  %v1301 = vld [vmem:[%s6 + $0x3e0] sm:$0xf]
  %v1302 = vld [vmem:[%s6 + $0x3e4] sm:$0xf]
  %v1303 = vld [vmem:[%s6 + $0x3e8] sm:$0xf]
  %v1304 = vld [vmem:[%s6 + $0x3ec] sm:$0xf]
  %v1305 = vld [vmem:[%s6 + $0x3f0] sm:$0xf]
  %v1306 = vld [vmem:[%s6 + $0x3f4] sm:$0xf]
  %v1307 = vld [vmem:[%s6 + $0x3f8] sm:$0xf]
  %v1308 = vld [vmem:[%s6 + $0x3fc] sm:$0xf]
  %v1309 = vlaneseq
  %v1310 = vshrl.u32 %v1309, 7
  %v1311 = vsub.s32 3, %v1310
  %v1312 = vrot.slane %v113, %v1311
  %v1569 = vunpack.c.l.b16 %v1053
  %v1570 = vunpack.c.l.b16 %v1054
  %v1571 = vunpack.c.l.b16 %v1055
  %v1572 = vunpack.c.l.b16 %v1056
  %v1573 = vunpack.c.l.b16 %v1057
  %v1574 = vunpack.c.l.b16 %v1058
  %v1575 = vunpack.c.l.b16 %v1059
  %v1576 = vunpack.c.l.b16 %v1060
  %v1577 = vunpack.c.l.b16 %v1061
  %v1578 = vunpack.c.l.b16 %v1062
  %v1579 = vunpack.c.l.b16 %v1063
  %v1580 = vunpack.c.l.b16 %v1064
  %v1581 = vunpack.c.l.b16 %v1065
  %v1582 = vunpack.c.l.b16 %v1066
  %v1583 = vunpack.c.l.b16 %v1067
  %v1584 = vunpack.c.l.b16 %v1068
  %v1585 = vunpack.c.l.b16 %v1069
  %v1586 = vunpack.c.l.b16 %v1070
  %v1587 = vunpack.c.l.b16 %v1071
  %v1588 = vunpack.c.l.b16 %v1072
  %v1589 = vunpack.c.l.b16 %v1073
  %v1590 = vunpack.c.l.b16 %v1074
  %v1591 = vunpack.c.l.b16 %v1075
  %v1592 = vunpack.c.l.b16 %v1076
  %v1593 = vunpack.c.l.b16 %v1077
  %v1594 = vunpack.c.l.b16 %v1078
  %v1595 = vunpack.c.l.b16 %v1079
  %v1596 = vunpack.c.l.b16 %v1080
  %v1597 = vunpack.c.l.b16 %v1081
  %v1598 = vunpack.c.l.b16 %v1082
  %v1599 = vunpack.c.l.b16 %v1083
  %v1600 = vunpack.c.l.b16 %v1084
  %v1601 = vunpack.c.l.b16 %v1085
  %v1602 = vunpack.c.l.b16 %v1086
  %v1603 = vunpack.c.l.b16 %v1087
  %v1604 = vunpack.c.l.b16 %v1088
  %v1605 = vunpack.c.l.b16 %v1089
  %v1606 = vunpack.c.l.b16 %v1090
  %v1607 = vunpack.c.l.b16 %v1091
  %v1608 = vunpack.c.l.b16 %v1092
  %v1609 = vunpack.c.l.b16 %v1093
  %v1610 = vunpack.c.l.b16 %v1094
  %v1611 = vunpack.c.l.b16 %v1095
  %v1612 = vunpack.c.l.b16 %v1096
  %v1613 = vunpack.c.l.b16 %v1097
  %v1614 = vunpack.c.l.b16 %v1098
  %v1615 = vunpack.c.l.b16 %v1099
  %v1616 = vunpack.c.l.b16 %v1100
  %v1617 = vunpack.c.l.b16 %v1101
  %v1618 = vunpack.c.l.b16 %v1102
  %v1619 = vunpack.c.l.b16 %v1103
  %v1620 = vunpack.c.l.b16 %v1104
  %v1621 = vunpack.c.l.b16 %v1105
  %v1622 = vunpack.c.l.b16 %v1106
  %v1623 = vunpack.c.l.b16 %v1107
  %v1624 = vunpack.c.l.b16 %v1108
  %v1625 = vunpack.c.l.b16 %v1109
  %v1626 = vunpack.c.l.b16 %v1110
  %v1627 = vunpack.c.l.b16 %v1111
  %v1628 = vunpack.c.l.b16 %v1112
  %v1629 = vunpack.c.l.b16 %v1113
  %v1630 = vunpack.c.l.b16 %v1114
  %v1631 = vunpack.c.l.b16 %v1115
  %v1632 = vunpack.c.l.b16 %v1116
  %v1633 = vunpack.c.l.b16 %v1117
  %v1634 = vunpack.c.l.b16 %v1118
  %v1635 = vunpack.c.l.b16 %v1119
  %v1636 = vunpack.c.l.b16 %v1120
  %v1637 = vunpack.c.l.b16 %v1121
  %v1638 = vunpack.c.l.b16 %v1122
  %v1639 = vunpack.c.l.b16 %v1123
  %v1640 = vunpack.c.l.b16 %v1124
  %v1641 = vunpack.c.l.b16 %v1125
  %v1642 = vunpack.c.l.b16 %v1126
  %v1643 = vunpack.c.l.b16 %v1127
  %v1644 = vunpack.c.l.b16 %v1128
  %v1645 = vunpack.c.l.b16 %v1129
  %v1646 = vunpack.c.l.b16 %v1130
  %v1647 = vunpack.c.l.b16 %v1131
  %v1648 = vunpack.c.l.b16 %v1132
  %v1649 = vunpack.c.l.b16 %v1133
  %v1650 = vunpack.c.l.b16 %v1134
  %v1651 = vunpack.c.l.b16 %v1135
  %v1652 = vunpack.c.l.b16 %v1136
  %v1653 = vunpack.c.l.b16 %v1137
  %v1654 = vunpack.c.l.b16 %v1138
  %v1655 = vunpack.c.l.b16 %v1139
  %v1656 = vunpack.c.l.b16 %v1140
  %v1657 = vunpack.c.l.b16 %v1141
  %v1658 = vunpack.c.l.b16 %v1142
  %v1659 = vunpack.c.l.b16 %v1143
  %v1660 = vunpack.c.l.b16 %v1144
  %v1661 = vunpack.c.l.b16 %v1145
  %v1662 = vunpack.c.l.b16 %v1146
  %v1663 = vunpack.c.l.b16 %v1147
  %v1664 = vunpack.c.l.b16 %v1148
  %v1665 = vunpack.c.l.b16 %v1149
  %v1666 = vunpack.c.l.b16 %v1150
  %v1667 = vunpack.c.l.b16 %v1151
  %v1668 = vunpack.c.l.b16 %v1152
  %v1669 = vunpack.c.l.b16 %v1153
  %v1670 = vunpack.c.l.b16 %v1154
  %v1671 = vunpack.c.l.b16 %v1155
  %v1672 = vunpack.c.l.b16 %v1156
  %v1673 = vunpack.c.l.b16 %v1157
  %v1674 = vunpack.c.l.b16 %v1158
  %v1675 = vunpack.c.l.b16 %v1159
  %v1676 = vunpack.c.l.b16 %v1160
  %v1677 = vunpack.c.l.b16 %v1161
  %v1678 = vunpack.c.l.b16 %v1162
  %v1679 = vunpack.c.l.b16 %v1163
  %v1680 = vunpack.c.l.b16 %v1164
  %v1681 = vunpack.c.l.b16 %v1165
  %v1682 = vunpack.c.l.b16 %v1166
  %v1683 = vunpack.c.l.b16 %v1167
  %v1684 = vunpack.c.l.b16 %v1168
  %v1685 = vunpack.c.l.b16 %v1169
  %v1686 = vunpack.c.l.b16 %v1170
  %v1687 = vunpack.c.l.b16 %v1171
  %v1688 = vunpack.c.l.b16 %v1172
  %v1689 = vunpack.c.l.b16 %v1173
  %v1690 = vunpack.c.l.b16 %v1174
  %v1691 = vunpack.c.l.b16 %v1175
  %v1692 = vunpack.c.l.b16 %v1176
  %v1693 = vunpack.c.l.b16 %v1177
  %v1694 = vunpack.c.l.b16 %v1178
  %v1695 = vunpack.c.l.b16 %v1179
  %v1696 = vunpack.c.l.b16 %v1180
  %v1697 = vunpack.c.l.b16 %v1181
  %v1698 = vunpack.c.l.b16 %v1182
  %v1699 = vunpack.c.l.b16 %v1183
  %v1700 = vunpack.c.l.b16 %v1184
  %v1701 = vunpack.c.l.b16 %v1185
  %v1702 = vunpack.c.l.b16 %v1186
  %v1703 = vunpack.c.l.b16 %v1187
  %v1704 = vunpack.c.l.b16 %v1188
  %v1705 = vunpack.c.l.b16 %v1189
  %v1706 = vunpack.c.l.b16 %v1190
  %v1707 = vunpack.c.l.b16 %v1191
  %v1708 = vunpack.c.l.b16 %v1192
  %v1709 = vunpack.c.l.b16 %v1193
  %v1710 = vunpack.c.l.b16 %v1194
  %v1711 = vunpack.c.l.b16 %v1195
  %v1712 = vunpack.c.l.b16 %v1196
  %v1713 = vunpack.c.l.b16 %v1197
  %v1714 = vunpack.c.l.b16 %v1198
  %v1715 = vunpack.c.l.b16 %v1199
  %v1716 = vunpack.c.l.b16 %v1200
  %v1717 = vunpack.c.l.b16 %v1201
  %v1718 = vunpack.c.l.b16 %v1202
  %v1719 = vunpack.c.l.b16 %v1203
  %v1720 = vunpack.c.l.b16 %v1204
  %v1721 = vunpack.c.l.b16 %v1205
  %v1722 = vunpack.c.l.b16 %v1206
  %v1723 = vunpack.c.l.b16 %v1207
  %v1724 = vunpack.c.l.b16 %v1208
  %v1725 = vunpack.c.l.b16 %v1209
  %v1726 = vunpack.c.l.b16 %v1210
  %v1727 = vunpack.c.l.b16 %v1211
  %v1728 = vunpack.c.l.b16 %v1212
  %v1729 = vunpack.c.l.b16 %v1213
  %v1730 = vunpack.c.l.b16 %v1214
  %v1731 = vunpack.c.l.b16 %v1215
  %v1732 = vunpack.c.l.b16 %v1216
  %v1733 = vunpack.c.l.b16 %v1217
  %v1734 = vunpack.c.l.b16 %v1218
  %v1735 = vunpack.c.l.b16 %v1219
  %v1736 = vunpack.c.l.b16 %v1220
  %v1737 = vunpack.c.l.b16 %v1221
  %v1738 = vunpack.c.l.b16 %v1222
  %v1739 = vunpack.c.l.b16 %v1223
  %v1740 = vunpack.c.l.b16 %v1224
  %v1741 = vunpack.c.l.b16 %v1225
  %v1742 = vunpack.c.l.b16 %v1226
  %v1743 = vunpack.c.l.b16 %v1227
  %v1744 = vunpack.c.l.b16 %v1228
  %v1745 = vunpack.c.l.b16 %v1229
  %v1746 = vunpack.c.l.b16 %v1230
  %v1747 = vunpack.c.l.b16 %v1231
  %v1748 = vunpack.c.l.b16 %v1232
  %v1749 = vunpack.c.l.b16 %v1233
  %v1750 = vunpack.c.l.b16 %v1234
  %v1751 = vunpack.c.l.b16 %v1235
  %v1752 = vunpack.c.l.b16 %v1236
  %v1753 = vunpack.c.l.b16 %v1237
  %v1754 = vunpack.c.l.b16 %v1238
  %v1755 = vunpack.c.l.b16 %v1239
  %v1756 = vunpack.c.l.b16 %v1240
  %v1757 = vunpack.c.l.b16 %v1241
  %v1758 = vunpack.c.l.b16 %v1242
  %v1759 = vunpack.c.l.b16 %v1243
  %v1760 = vunpack.c.l.b16 %v1244
  %v1761 = vunpack.c.l.b16 %v1245
  %v1762 = vunpack.c.l.b16 %v1246
  %v1763 = vunpack.c.l.b16 %v1247
  %v1764 = vunpack.c.l.b16 %v1248
  %v1765 = vunpack.c.l.b16 %v1249
  %v1766 = vunpack.c.l.b16 %v1250
  %v1767 = vunpack.c.l.b16 %v1251
  %v1768 = vunpack.c.l.b16 %v1252
  %v1769 = vunpack.c.l.b16 %v1253
  %v1770 = vunpack.c.l.b16 %v1254
  %v1771 = vunpack.c.l.b16 %v1255
  %v1772 = vunpack.c.l.b16 %v1256
  %v1773 = vunpack.c.l.b16 %v1257
  %v1774 = vunpack.c.l.b16 %v1258
  %v1775 = vunpack.c.l.b16 %v1259
  %v1776 = vunpack.c.l.b16 %v1260
  %v1777 = vunpack.c.l.b16 %v1261
  %v1778 = vunpack.c.l.b16 %v1262
  %v1779 = vunpack.c.l.b16 %v1263
  %v1780 = vunpack.c.l.b16 %v1264
  %v1781 = vunpack.c.l.b16 %v1265
  %v1782 = vunpack.c.l.b16 %v1266
  %v1783 = vunpack.c.l.b16 %v1267
  %v1784 = vunpack.c.l.b16 %v1268
  %v1785 = vunpack.c.l.b16 %v1269
  %v1786 = vunpack.c.l.b16 %v1270
  %v1787 = vunpack.c.l.b16 %v1271
  %v1788 = vunpack.c.l.b16 %v1272
  %v1789 = vunpack.c.l.b16 %v1273
  %v1790 = vunpack.c.l.b16 %v1274
  %v1791 = vunpack.c.l.b16 %v1275
  %v1792 = vunpack.c.l.b16 %v1276
  %v1793 = vunpack.c.l.b16 %v1277
  %v1794 = vunpack.c.l.b16 %v1278
  %v1795 = vunpack.c.l.b16 %v1279
  %v1796 = vunpack.c.l.b16 %v1280
  %v1797 = vunpack.c.l.b16 %v1281
  %v1798 = vunpack.c.l.b16 %v1282
  %v1799 = vunpack.c.l.b16 %v1283
  %v1800 = vunpack.c.l.b16 %v1284
  %v1801 = vunpack.c.l.b16 %v1285
  %v1802 = vunpack.c.l.b16 %v1286
  %v1803 = vunpack.c.l.b16 %v1287
  %v1804 = vunpack.c.l.b16 %v1288
  %v1805 = vunpack.c.l.b16 %v1289
  %v1806 = vunpack.c.l.b16 %v1290
  %v1807 = vunpack.c.l.b16 %v1291
  %v1808 = vunpack.c.l.b16 %v1292
  %v1809 = vunpack.c.l.b16 %v1293
  %v1810 = vunpack.c.l.b16 %v1294
  %v1811 = vunpack.c.l.b16 %v1295
  %v1812 = vunpack.c.l.b16 %v1296
  %v1813 = vunpack.c.l.b16 %v1297
  %v1814 = vunpack.c.l.b16 %v1298
  %v1815 = vunpack.c.l.b16 %v1299
  %v1816 = vunpack.c.l.b16 %v1300
  %v1817 = vunpack.c.l.b16 %v1301
  %v1818 = vunpack.c.l.b16 %v1302
  %v1819 = vunpack.c.l.b16 %v1303
  %v1820 = vunpack.c.l.b16 %v1304
  %v1821 = vunpack.c.l.b16 %v1305
  %v1822 = vunpack.c.l.b16 %v1306
  %v1823 = vunpack.c.l.b16 %v1307
  %v1824 = vunpack.c.l.b16 %v1308
  %v1825 = vpack.c.b16 %v1570, %v1569
  %v1826 = vpack.c.b16 %v1572, %v1571
  %v1827 = vpack.c.b16 %v1574, %v1573
  %v1828 = vpack.c.b16 %v1576, %v1575
  %v1829 = vpack.c.b16 %v1578, %v1577
  %v1830 = vpack.c.b16 %v1580, %v1579
  %v1831 = vpack.c.b16 %v1582, %v1581
  %v1832 = vpack.c.b16 %v1584, %v1583
  %v1833 = vpack.c.b16 %v1586, %v1585
  %v1834 = vpack.c.b16 %v1588, %v1587
  %v1835 = vpack.c.b16 %v1590, %v1589
  %v1836 = vpack.c.b16 %v1592, %v1591
  %v1837 = vpack.c.b16 %v1594, %v1593
  %v1838 = vpack.c.b16 %v1596, %v1595
  %v1839 = vpack.c.b16 %v1598, %v1597
  %v1840 = vpack.c.b16 %v1600, %v1599
  %v1841 = vpack.c.b16 %v1602, %v1601
  %v1842 = vpack.c.b16 %v1604, %v1603
  %v1843 = vpack.c.b16 %v1606, %v1605
  %v1844 = vpack.c.b16 %v1608, %v1607
  %v1845 = vpack.c.b16 %v1610, %v1609
  %v1846 = vpack.c.b16 %v1612, %v1611
  %v1847 = vpack.c.b16 %v1614, %v1613
  %v1848 = vpack.c.b16 %v1616, %v1615
  %v1849 = vpack.c.b16 %v1618, %v1617
  %v1850 = vpack.c.b16 %v1620, %v1619
  %v1851 = vpack.c.b16 %v1622, %v1621
  %v1852 = vpack.c.b16 %v1624, %v1623
  %v1853 = vpack.c.b16 %v1626, %v1625
  %v1854 = vpack.c.b16 %v1628, %v1627
  %v1855 = vpack.c.b16 %v1630, %v1629
  %v1856 = vpack.c.b16 %v1632, %v1631
  %v1857 = vpack.c.b16 %v1634, %v1633
  %v1858 = vpack.c.b16 %v1636, %v1635
  %v1859 = vpack.c.b16 %v1638, %v1637
  %v1860 = vpack.c.b16 %v1640, %v1639
  %v1861 = vpack.c.b16 %v1642, %v1641
  %v1862 = vpack.c.b16 %v1644, %v1643
  %v1863 = vpack.c.b16 %v1646, %v1645
  %v1864 = vpack.c.b16 %v1648, %v1647
  %v1865 = vpack.c.b16 %v1650, %v1649
  %v1866 = vpack.c.b16 %v1652, %v1651
  %v1867 = vpack.c.b16 %v1654, %v1653
  %v1868 = vpack.c.b16 %v1656, %v1655
  %v1869 = vpack.c.b16 %v1658, %v1657
  %v1870 = vpack.c.b16 %v1660, %v1659
  %v1871 = vpack.c.b16 %v1662, %v1661
  %v1872 = vpack.c.b16 %v1664, %v1663
  %v1873 = vpack.c.b16 %v1666, %v1665
  %v1874 = vpack.c.b16 %v1668, %v1667
  %v1875 = vpack.c.b16 %v1670, %v1669
  %v1876 = vpack.c.b16 %v1672, %v1671
  %v1877 = vpack.c.b16 %v1674, %v1673
  %v1878 = vpack.c.b16 %v1676, %v1675
  %v1879 = vpack.c.b16 %v1678, %v1677
  %v1880 = vpack.c.b16 %v1680, %v1679
  %v1881 = vpack.c.b16 %v1682, %v1681
  %v1882 = vpack.c.b16 %v1684, %v1683
  %v1883 = vpack.c.b16 %v1686, %v1685
  %v1884 = vpack.c.b16 %v1688, %v1687
  %v1885 = vpack.c.b16 %v1690, %v1689
  %v1886 = vpack.c.b16 %v1692, %v1691
  %v1887 = vpack.c.b16 %v1694, %v1693
  %v1888 = vpack.c.b16 %v1696, %v1695
  %v1889 = vpack.c.b16 %v1698, %v1697
  %v1890 = vpack.c.b16 %v1700, %v1699
  %v1891 = vpack.c.b16 %v1702, %v1701
  %v1892 = vpack.c.b16 %v1704, %v1703
  %v1893 = vpack.c.b16 %v1706, %v1705
  %v1894 = vpack.c.b16 %v1708, %v1707
  %v1895 = vpack.c.b16 %v1710, %v1709
  %v1896 = vpack.c.b16 %v1712, %v1711
  %v1897 = vpack.c.b16 %v1714, %v1713
  %v1898 = vpack.c.b16 %v1716, %v1715
  %v1899 = vpack.c.b16 %v1718, %v1717
  %v1900 = vpack.c.b16 %v1720, %v1719
  %v1901 = vpack.c.b16 %v1722, %v1721
  %v1902 = vpack.c.b16 %v1724, %v1723
  %v1903 = vpack.c.b16 %v1726, %v1725
  %v1904 = vpack.c.b16 %v1728, %v1727
  %v1905 = vpack.c.b16 %v1730, %v1729
  %v1906 = vpack.c.b16 %v1732, %v1731
  %v1907 = vpack.c.b16 %v1734, %v1733
  %v1908 = vpack.c.b16 %v1736, %v1735
  %v1909 = vpack.c.b16 %v1738, %v1737
  %v1910 = vpack.c.b16 %v1740, %v1739
  %v1911 = vpack.c.b16 %v1742, %v1741
  %v1912 = vpack.c.b16 %v1744, %v1743
  %v1913 = vpack.c.b16 %v1746, %v1745
  %v1914 = vpack.c.b16 %v1748, %v1747
  %v1915 = vpack.c.b16 %v1750, %v1749
  %v1916 = vpack.c.b16 %v1752, %v1751
  %v1917 = vpack.c.b16 %v1754, %v1753
  %v1918 = vpack.c.b16 %v1756, %v1755
  %v1919 = vpack.c.b16 %v1758, %v1757
  %v1920 = vpack.c.b16 %v1760, %v1759
  %v1921 = vpack.c.b16 %v1762, %v1761
  %v1922 = vpack.c.b16 %v1764, %v1763
  %v1923 = vpack.c.b16 %v1766, %v1765
  %v1924 = vpack.c.b16 %v1768, %v1767
  %v1925 = vpack.c.b16 %v1770, %v1769
  %v1926 = vpack.c.b16 %v1772, %v1771
  %v1927 = vpack.c.b16 %v1774, %v1773
  %v1928 = vpack.c.b16 %v1776, %v1775
  %v1929 = vpack.c.b16 %v1778, %v1777
  %v1930 = vpack.c.b16 %v1780, %v1779
  %v1931 = vpack.c.b16 %v1782, %v1781
  %v1932 = vpack.c.b16 %v1784, %v1783
  %v1933 = vpack.c.b16 %v1786, %v1785
  %v1934 = vpack.c.b16 %v1788, %v1787
  %v1935 = vpack.c.b16 %v1790, %v1789
  %v1936 = vpack.c.b16 %v1792, %v1791
  %v1937 = vpack.c.b16 %v1794, %v1793
  %v1938 = vpack.c.b16 %v1796, %v1795
  %v1939 = vpack.c.b16 %v1798, %v1797
  %v1940 = vpack.c.b16 %v1800, %v1799
  %v1941 = vpack.c.b16 %v1802, %v1801
  %v1942 = vpack.c.b16 %v1804, %v1803
  %v1943 = vpack.c.b16 %v1806, %v1805
  %v1944 = vpack.c.b16 %v1808, %v1807
  %v1945 = vpack.c.b16 %v1810, %v1809
  %v1946 = vpack.c.b16 %v1812, %v1811
  %v1947 = vpack.c.b16 %v1814, %v1813
  %v1948 = vpack.c.b16 %v1816, %v1815
  %v1949 = vpack.c.b16 %v1818, %v1817
  %v1950 = vpack.c.b16 %v1820, %v1819
  %v1951 = vpack.c.b16 %v1822, %v1821
  %v1952 = vpack.c.b16 %v1824, %v1823
  %2081 = vmatprep.subr.bf16.mxu0 0
  %2082 = vmatpush1.bf16.msra.mxu0 %v1825
  %2083 = vmatprep.subr.bf16.mxu0 0
  %2084 = vmatpush1.bf16.msra.mxu0 %v1826
  %2085 = vmatprep.subr.bf16.mxu0 0
  %2086 = vmatpush1.bf16.msra.mxu0 %v1827
  %2087 = vmatprep.subr.bf16.mxu0 0
  %2088 = vmatpush1.bf16.msra.mxu0 %v1828
  %2089 = vmatprep.subr.bf16.mxu0 0
  %2090 = vmatpush1.bf16.msra.mxu0 %v1829
  %2091 = vmatprep.subr.bf16.mxu0 0
  %2092 = vmatpush1.bf16.msra.mxu0 %v1830
  %2093 = vmatprep.subr.bf16.mxu0 0
  %2094 = vmatpush1.bf16.msra.mxu0 %v1831
  %2095 = vmatprep.subr.bf16.mxu0 0
  %2096 = vmatpush1.bf16.msra.mxu0 %v1832
  %2097 = vmatprep.subr.bf16.mxu0 0
  %2098 = vmatpush1.bf16.msra.mxu0 %v1833
  %2099 = vmatprep.subr.bf16.mxu0 0
  %2100 = vmatpush1.bf16.msra.mxu0 %v1834
  %2101 = vmatprep.subr.bf16.mxu0 0
  %2102 = vmatpush1.bf16.msra.mxu0 %v1835
  %2103 = vmatprep.subr.bf16.mxu0 0
  %2104 = vmatpush1.bf16.msra.mxu0 %v1836
  %2105 = vmatprep.subr.bf16.mxu0 0
  %2106 = vmatpush1.bf16.msra.mxu0 %v1837
  %2107 = vmatprep.subr.bf16.mxu0 0
  %2108 = vmatpush1.bf16.msra.mxu0 %v1838
  %2109 = vmatprep.subr.bf16.mxu0 0
  %2110 = vmatpush1.bf16.msra.mxu0 %v1839
  %2111 = vmatprep.subr.bf16.mxu0 0
  %2112 = vmatpush1.bf16.msra.mxu0 %v1840
  %2113 = vmatprep.mubr.bf16.mxu0 %v1038
  %2114 = vmatmul.mubr.bf16.gmra.mrb[0].mxu0 %v1037
  %v2115 = vpop.f32.mrb[0].mxu0
  %v2116 = vadd.f32 %v1312, %v2115
  %v2117 = vpop.f32.mrb[0].mxu0
  %v2118 = vpop.f32.mrb[0].mxu0
  %v2119 = vpop.f32.mrb[0].mxu0
  %2120 = vdwg.mxu0
  %2121 = vmatprep.subr.bf16.mxu0 0
  %2122 = vmatpush1.bf16.msra.mxu0 %v1841
  %2123 = vmatprep.subr.bf16.mxu0 0
  %2124 = vmatpush1.bf16.msra.mxu0 %v1842
  %2125 = vmatprep.subr.bf16.mxu0 0
  %2126 = vmatpush1.bf16.msra.mxu0 %v1843
  %2127 = vmatprep.subr.bf16.mxu0 0
  %2128 = vmatpush1.bf16.msra.mxu0 %v1844
  %2129 = vmatprep.subr.bf16.mxu0 0
  %2130 = vmatpush1.bf16.msra.mxu0 %v1845
  %2131 = vmatprep.subr.bf16.mxu0 0
  %2132 = vmatpush1.bf16.msra.mxu0 %v1846
  %2133 = vmatprep.subr.bf16.mxu0 0
  %2134 = vmatpush1.bf16.msra.mxu0 %v1847
  %2135 = vmatprep.subr.bf16.mxu0 0
  %2136 = vmatpush1.bf16.msra.mxu0 %v1848
  %2137 = vmatprep.subr.bf16.mxu0 0
  %2138 = vmatpush1.bf16.msra.mxu0 %v1849
  %2139 = vmatprep.subr.bf16.mxu0 0
  %2140 = vmatpush1.bf16.msra.mxu0 %v1850
  %2141 = vmatprep.subr.bf16.mxu0 0
  %2142 = vmatpush1.bf16.msra.mxu0 %v1851
  %2143 = vmatprep.subr.bf16.mxu0 0
  %2144 = vmatpush1.bf16.msra.mxu0 %v1852
  %2145 = vmatprep.subr.bf16.mxu0 0
  %2146 = vmatpush1.bf16.msra.mxu0 %v1853
  %2147 = vmatprep.subr.bf16.mxu0 0
  %2148 = vmatpush1.bf16.msra.mxu0 %v1854
  %2149 = vmatprep.subr.bf16.mxu0 0
  %2150 = vmatpush1.bf16.msra.mxu0 %v1855
  %2151 = vmatprep.subr.bf16.mxu0 0
  %2152 = vmatpush1.bf16.msra.mxu0 %v1856
  %2153 = vmatprep.mubr.bf16.mxu0 %v1040
  %2154 = vmatmul.mubr.bf16.gmra.mrb[0].mxu0 %v1039
  %v2155 = vpop.f32.mrb[0].mxu0
  %v2156 = vadd.f32 %v2116, %v2155
  %v2157 = vpop.f32.mrb[0].mxu0
  %v2158 = vpop.f32.mrb[0].mxu0
  %v2159 = vpop.f32.mrb[0].mxu0
  %2160 = vdwg.mxu0
  %2161 = vmatprep.subr.bf16.mxu0 0
  %2162 = vmatpush1.bf16.msra.mxu0 %v1857
  %2163 = vmatprep.subr.bf16.mxu0 0
  %2164 = vmatpush1.bf16.msra.mxu0 %v1858
  %2165 = vmatprep.subr.bf16.mxu0 0
  %2166 = vmatpush1.bf16.msra.mxu0 %v1859
  %2167 = vmatprep.subr.bf16.mxu0 0
  %2168 = vmatpush1.bf16.msra.mxu0 %v1860
  %2169 = vmatprep.subr.bf16.mxu0 0
  %2170 = vmatpush1.bf16.msra.mxu0 %v1861
  %2171 = vmatprep.subr.bf16.mxu0 0
  %2172 = vmatpush1.bf16.msra.mxu0 %v1862
  %2173 = vmatprep.subr.bf16.mxu0 0
  %2174 = vmatpush1.bf16.msra.mxu0 %v1863
  %2175 = vmatprep.subr.bf16.mxu0 0
  %2176 = vmatpush1.bf16.msra.mxu0 %v1864
  %2177 = vmatprep.subr.bf16.mxu0 0
  %2178 = vmatpush1.bf16.msra.mxu0 %v1865
  %2179 = vmatprep.subr.bf16.mxu0 0
  %2180 = vmatpush1.bf16.msra.mxu0 %v1866
  %2181 = vmatprep.subr.bf16.mxu0 0
  %2182 = vmatpush1.bf16.msra.mxu0 %v1867
  %2183 = vmatprep.subr.bf16.mxu0 0
  %2184 = vmatpush1.bf16.msra.mxu0 %v1868
  %2185 = vmatprep.subr.bf16.mxu0 0
  %2186 = vmatpush1.bf16.msra.mxu0 %v1869
  %2187 = vmatprep.subr.bf16.mxu0 0
  %2188 = vmatpush1.bf16.msra.mxu0 %v1870
  %2189 = vmatprep.subr.bf16.mxu0 0
  %2190 = vmatpush1.bf16.msra.mxu0 %v1871
  %2191 = vmatprep.subr.bf16.mxu0 0
  %2192 = vmatpush1.bf16.msra.mxu0 %v1872
  %2193 = vmatprep.mubr.bf16.mxu0 %v1042
  %2194 = vmatmul.mubr.bf16.gmra.mrb[0].mxu0 %v1041
  %v2195 = vpop.f32.mrb[0].mxu0
  %v2196 = vadd.f32 %v2156, %v2195
  %v2197 = vpop.f32.mrb[0].mxu0
  %v2198 = vpop.f32.mrb[0].mxu0
  %v2199 = vpop.f32.mrb[0].mxu0
  %2200 = vdwg.mxu0
  %2201 = vmatprep.subr.bf16.mxu0 0
  %2202 = vmatpush1.bf16.msra.mxu0 %v1873
  %2203 = vmatprep.subr.bf16.mxu0 0
  %2204 = vmatpush1.bf16.msra.mxu0 %v1874
  %2205 = vmatprep.subr.bf16.mxu0 0
  %2206 = vmatpush1.bf16.msra.mxu0 %v1875
  %2207 = vmatprep.subr.bf16.mxu0 0
  %2208 = vmatpush1.bf16.msra.mxu0 %v1876
  %2209 = vmatprep.subr.bf16.mxu0 0
  %2210 = vmatpush1.bf16.msra.mxu0 %v1877
  %2211 = vmatprep.subr.bf16.mxu0 0
  %2212 = vmatpush1.bf16.msra.mxu0 %v1878
  %2213 = vmatprep.subr.bf16.mxu0 0
  %2214 = vmatpush1.bf16.msra.mxu0 %v1879
  %2215 = vmatprep.subr.bf16.mxu0 0
  %2216 = vmatpush1.bf16.msra.mxu0 %v1880
  %2217 = vmatprep.subr.bf16.mxu0 0
  %2218 = vmatpush1.bf16.msra.mxu0 %v1881
  %2219 = vmatprep.subr.bf16.mxu0 0
  %2220 = vmatpush1.bf16.msra.mxu0 %v1882
  %2221 = vmatprep.subr.bf16.mxu0 0
  %2222 = vmatpush1.bf16.msra.mxu0 %v1883
  %2223 = vmatprep.subr.bf16.mxu0 0
  %2224 = vmatpush1.bf16.msra.mxu0 %v1884
  %2225 = vmatprep.subr.bf16.mxu0 0
  %2226 = vmatpush1.bf16.msra.mxu0 %v1885
  %2227 = vmatprep.subr.bf16.mxu0 0
  %2228 = vmatpush1.bf16.msra.mxu0 %v1886
  %2229 = vmatprep.subr.bf16.mxu0 0
  %2230 = vmatpush1.bf16.msra.mxu0 %v1887
  %2231 = vmatprep.subr.bf16.mxu0 0
  %2232 = vmatpush1.bf16.msra.mxu0 %v1888
  %2233 = vmatprep.mubr.bf16.mxu0 %v1044
  %2234 = vmatmul.mubr.bf16.gmra.mrb[0].mxu0 %v1043
  %v2235 = vpop.f32.mrb[0].mxu0
  %v2236 = vadd.f32 %v2196, %v2235
  %v2237 = vpop.f32.mrb[0].mxu0
  %v2238 = vpop.f32.mrb[0].mxu0
  %v2239 = vpop.f32.mrb[0].mxu0
  %2240 = vdwg.mxu0
  %2241 = vmatprep.subr.bf16.mxu0 0
  %2242 = vmatpush1.bf16.msra.mxu0 %v1889
  %2243 = vmatprep.subr.bf16.mxu0 0
  %2244 = vmatpush1.bf16.msra.mxu0 %v1890
  %2245 = vmatprep.subr.bf16.mxu0 0
  %2246 = vmatpush1.bf16.msra.mxu0 %v1891
  %2247 = vmatprep.subr.bf16.mxu0 0
  %2248 = vmatpush1.bf16.msra.mxu0 %v1892
  %2249 = vmatprep.subr.bf16.mxu0 0
  %2250 = vmatpush1.bf16.msra.mxu0 %v1893
  %2251 = vmatprep.subr.bf16.mxu0 0
  %2252 = vmatpush1.bf16.msra.mxu0 %v1894
  %2253 = vmatprep.subr.bf16.mxu0 0
  %2254 = vmatpush1.bf16.msra.mxu0 %v1895
  %2255 = vmatprep.subr.bf16.mxu0 0
  %2256 = vmatpush1.bf16.msra.mxu0 %v1896
  %2257 = vmatprep.subr.bf16.mxu0 0
  %2258 = vmatpush1.bf16.msra.mxu0 %v1897
  %2259 = vmatprep.subr.bf16.mxu0 0
  %2260 = vmatpush1.bf16.msra.mxu0 %v1898
  %2261 = vmatprep.subr.bf16.mxu0 0
  %2262 = vmatpush1.bf16.msra.mxu0 %v1899
  %2263 = vmatprep.subr.bf16.mxu0 0
  %2264 = vmatpush1.bf16.msra.mxu0 %v1900
  %2265 = vmatprep.subr.bf16.mxu0 0
  %2266 = vmatpush1.bf16.msra.mxu0 %v1901
  %2267 = vmatprep.subr.bf16.mxu0 0
  %2268 = vmatpush1.bf16.msra.mxu0 %v1902
  %2269 = vmatprep.subr.bf16.mxu0 0
  %2270 = vmatpush1.bf16.msra.mxu0 %v1903
  %2271 = vmatprep.subr.bf16.mxu0 0
  %2272 = vmatpush1.bf16.msra.mxu0 %v1904
  %2273 = vmatprep.mubr.bf16.mxu0 %v1046
  %2274 = vmatmul.mubr.bf16.gmra.mrb[0].mxu0 %v1045
  %v2275 = vpop.f32.mrb[0].mxu0
  %v2276 = vadd.f32 %v2236, %v2275
  %v2277 = vpop.f32.mrb[0].mxu0
  %v2278 = vpop.f32.mrb[0].mxu0
  %v2279 = vpop.f32.mrb[0].mxu0
  %2280 = vdwg.mxu0
  %2281 = vmatprep.subr.bf16.mxu0 0
  %2282 = vmatpush1.bf16.msra.mxu0 %v1905
  %2283 = vmatprep.subr.bf16.mxu0 0
  %2284 = vmatpush1.bf16.msra.mxu0 %v1906
  %2285 = vmatprep.subr.bf16.mxu0 0
  %2286 = vmatpush1.bf16.msra.mxu0 %v1907
  %2287 = vmatprep.subr.bf16.mxu0 0
  %2288 = vmatpush1.bf16.msra.mxu0 %v1908
  %2289 = vmatprep.subr.bf16.mxu0 0
  %2290 = vmatpush1.bf16.msra.mxu0 %v1909
  %2291 = vmatprep.subr.bf16.mxu0 0
  %2292 = vmatpush1.bf16.msra.mxu0 %v1910
  %2293 = vmatprep.subr.bf16.mxu0 0
  %2294 = vmatpush1.bf16.msra.mxu0 %v1911
  %2295 = vmatprep.subr.bf16.mxu0 0
  %2296 = vmatpush1.bf16.msra.mxu0 %v1912
  %2297 = vmatprep.subr.bf16.mxu0 0
  %2298 = vmatpush1.bf16.msra.mxu0 %v1913
  %2299 = vmatprep.subr.bf16.mxu0 0
  %2300 = vmatpush1.bf16.msra.mxu0 %v1914
  %2301 = vmatprep.subr.bf16.mxu0 0
  %2302 = vmatpush1.bf16.msra.mxu0 %v1915
  %2303 = vmatprep.subr.bf16.mxu0 0
  %2304 = vmatpush1.bf16.msra.mxu0 %v1916
  %2305 = vmatprep.subr.bf16.mxu0 0
  %2306 = vmatpush1.bf16.msra.mxu0 %v1917
  %2307 = vmatprep.subr.bf16.mxu0 0
  %2308 = vmatpush1.bf16.msra.mxu0 %v1918
  %2309 = vmatprep.subr.bf16.mxu0 0
  %2310 = vmatpush1.bf16.msra.mxu0 %v1919
  %2311 = vmatprep.subr.bf16.mxu0 0
  %2312 = vmatpush1.bf16.msra.mxu0 %v1920
  %2313 = vmatprep.mubr.bf16.mxu0 %v1048
  %2314 = vmatmul.mubr.bf16.gmra.mrb[0].mxu0 %v1047
  %v2315 = vpop.f32.mrb[0].mxu0
  %v2316 = vadd.f32 %v2276, %v2315
  %v2317 = vpop.f32.mrb[0].mxu0
  %v2318 = vpop.f32.mrb[0].mxu0
  %v2319 = vpop.f32.mrb[0].mxu0
  %2320 = vdwg.mxu0
  %2321 = vmatprep.subr.bf16.mxu0 0
  %2322 = vmatpush1.bf16.msra.mxu0 %v1921
  %2323 = vmatprep.subr.bf16.mxu0 0
  %2324 = vmatpush1.bf16.msra.mxu0 %v1922
  %2325 = vmatprep.subr.bf16.mxu0 0
  %2326 = vmatpush1.bf16.msra.mxu0 %v1923
  %2327 = vmatprep.subr.bf16.mxu0 0
  %2328 = vmatpush1.bf16.msra.mxu0 %v1924
  %2329 = vmatprep.subr.bf16.mxu0 0
  %2330 = vmatpush1.bf16.msra.mxu0 %v1925
  %2331 = vmatprep.subr.bf16.mxu0 0
  %2332 = vmatpush1.bf16.msra.mxu0 %v1926
  %2333 = vmatprep.subr.bf16.mxu0 0
  %2334 = vmatpush1.bf16.msra.mxu0 %v1927
  %2335 = vmatprep.subr.bf16.mxu0 0
  %2336 = vmatpush1.bf16.msra.mxu0 %v1928
  %2337 = vmatprep.subr.bf16.mxu0 0
  %2338 = vmatpush1.bf16.msra.mxu0 %v1929
  %2339 = vmatprep.subr.bf16.mxu0 0
  %2340 = vmatpush1.bf16.msra.mxu0 %v1930
  %2341 = vmatprep.subr.bf16.mxu0 0
  %2342 = vmatpush1.bf16.msra.mxu0 %v1931
  %2343 = vmatprep.subr.bf16.mxu0 0
  %2344 = vmatpush1.bf16.msra.mxu0 %v1932
  %2345 = vmatprep.subr.bf16.mxu0 0
  %2346 = vmatpush1.bf16.msra.mxu0 %v1933
  %2347 = vmatprep.subr.bf16.mxu0 0
  %2348 = vmatpush1.bf16.msra.mxu0 %v1934
  %2349 = vmatprep.subr.bf16.mxu0 0
  %2350 = vmatpush1.bf16.msra.mxu0 %v1935
  %2351 = vmatprep.subr.bf16.mxu0 0
  %2352 = vmatpush1.bf16.msra.mxu0 %v1936
  %2353 = vmatprep.mubr.bf16.mxu0 %v1050
  %2354 = vmatmul.mubr.bf16.gmra.mrb[0].mxu0 %v1049
  %v2355 = vpop.f32.mrb[0].mxu0
  %v2356 = vadd.f32 %v2316, %v2355
  %v2357 = vpop.f32.mrb[0].mxu0
  %v2358 = vpop.f32.mrb[0].mxu0
  %v2359 = vpop.f32.mrb[0].mxu0
  %2360 = vdwg.mxu0
  %2361 = vmatprep.subr.bf16.mxu0 0
  %2362 = vmatpush1.bf16.msra.mxu0 %v1937
  %2363 = vmatprep.subr.bf16.mxu0 0
  %2364 = vmatpush1.bf16.msra.mxu0 %v1938
  %2365 = vmatprep.subr.bf16.mxu0 0
  %2366 = vmatpush1.bf16.msra.mxu0 %v1939
  %2367 = vmatprep.subr.bf16.mxu0 0
  %2368 = vmatpush1.bf16.msra.mxu0 %v1940
  %2369 = vmatprep.subr.bf16.mxu0 0
  %2370 = vmatpush1.bf16.msra.mxu0 %v1941
  %2371 = vmatprep.subr.bf16.mxu0 0
  %2372 = vmatpush1.bf16.msra.mxu0 %v1942
  %2373 = vmatprep.subr.bf16.mxu0 0
  %2374 = vmatpush1.bf16.msra.mxu0 %v1943
  %2375 = vmatprep.subr.bf16.mxu0 0
  %2376 = vmatpush1.bf16.msra.mxu0 %v1944
  %2377 = vmatprep.subr.bf16.mxu0 0
  %2378 = vmatpush1.bf16.msra.mxu0 %v1945
  %2379 = vmatprep.subr.bf16.mxu0 0
  %2380 = vmatpush1.bf16.msra.mxu0 %v1946
  %2381 = vmatprep.subr.bf16.mxu0 0
  %2382 = vmatpush1.bf16.msra.mxu0 %v1947
  %2383 = vmatprep.subr.bf16.mxu0 0
  %2384 = vmatpush1.bf16.msra.mxu0 %v1948
  %2385 = vmatprep.subr.bf16.mxu0 0
  %2386 = vmatpush1.bf16.msra.mxu0 %v1949
  %2387 = vmatprep.subr.bf16.mxu0 0
  %2388 = vmatpush1.bf16.msra.mxu0 %v1950
  %2389 = vmatprep.subr.bf16.mxu0 0
  %2390 = vmatpush1.bf16.msra.mxu0 %v1951
  %2391 = vmatprep.subr.bf16.mxu0 0
  %2392 = vmatpush1.bf16.msra.mxu0 %v1952
  %2393 = vmatprep.mubr.bf16.mxu0 %v1052
  %2394 = vmatmul.mubr.bf16.gmra.mrb[0].mxu0 %v1051
  %v2395 = vpop.f32.mrb[0].mxu0
  %v2396 = vadd.f32 %v2356, %v2395
  %v2397 = vpop.f32.mrb[0].mxu0
  %v2398 = vpop.f32.mrb[0].mxu0
  %v2399 = vpop.f32.mrb[0].mxu0
  %2400 = vdwg.mxu0
  %v2401 = vadd.f32 %v220, %v2396
  %v2402 = vsel %vm196, %v2401, 0.0
  %2403 = vadd.xlane.f32.xlu0 %v2402
  %v2404 = vpop.xlane.xlu0 %2403
  %v2405 = vmul.f32 %v2404, %v200
  %v2406 = vsub.f32 %v2401, %v2405
  %v2407 = vmul.f32 %v2406, %v2406
  %v2408 = vsel %vm196, %v2407, 0.0
  %2409 = vadd.xlane.f32.xlu0 %v2408
  %v2410 = vpop.xlane.xlu0 %2409
  %v2411 = vmul.f32 %v2410, %v200
  %v2412 = vadd.f32 %v2411, 1e-05
  %v2413 = vrsqrt.pop %v2412
  %v2414 = vmul.f32 %v2406, %v2413
  %v2415 = vlaneseq
  %v2416 = vshrl.u32 %v2415, 7
  %v2417 = vsub.s32 4, %v2416
  %v2418 = vrot.slane %v113, %v2417
  %v2419 = vmul.f32 %v2414, %v2418
  %v2420 = vlaneseq
  %v2421 = vshrl.u32 %v2420, 7
  %v2422 = vsub.s32 5, %v2421
  %v2423 = vrot.slane %v113, %v2422
  %v2424 = vadd.f32 %v2419, %v2423
  %s2425 = scalar_lea.vmem %s7, 8
  %v2426 = vld [vmem:[%s2425] sm:$0x3f]
  %v2427 = vpack.c.bf16 %v2424, %v2424
  %s2428 = scalar_lea.vmem %s3, 32
  %v2429 = vld [vmem:[%s2428] sm:$0xf]
  %v2430 = vld [vmem:[%s2428 + $0x4] sm:$0xf]
  %v2431 = vld [vmem:[%s2428 + $0x8] sm:$0xf]
  %v2432 = vld [vmem:[%s2428 + $0xc] sm:$0xf]
  %v2433 = vld [vmem:[%s2428 + $0x10] sm:$0xf]
  %v2434 = vld [vmem:[%s2428 + $0x14] sm:$0xf]
  %v2435 = vld [vmem:[%s2428 + $0x18] sm:$0xf]
  %v2436 = vld [vmem:[%s2428 + $0x1c] sm:$0xf]
  %v2437 = vlaneseq
  %v2438 = vshrl.u32 %v2437, 7
  %v2439 = vsub.s32 0, %v2438
  %v2440 = vrot.slane %v2426, %v2439
  %v2449 = vunpack.c.l.b16 %v2429
  %v2450 = vunpack.c.l.b16 %v2430
  %v2451 = vunpack.c.l.b16 %v2431
  %v2452 = vunpack.c.l.b16 %v2432
  %v2453 = vunpack.c.l.b16 %v2433
  %v2454 = vunpack.c.l.b16 %v2434
  %v2455 = vunpack.c.l.b16 %v2435
  %v2456 = vunpack.c.l.b16 %v2436
  %v2457 = vpack.c.b16 %v2450, %v2449
  %v2458 = vpack.c.b16 %v2452, %v2451
  %v2459 = vpack.c.b16 %v2454, %v2453
  %v2460 = vpack.c.b16 %v2456, %v2455
  %v2466 = vsel %vm151, %v2427, 0
  %2468 = vmatprep.subr.bf16.mxu0 0
  %2469 = vmatpush1.bf16.msra.mxu0 %v2457
  %2470 = vmatprep.subr.bf16.mxu0 0
  %2471 = vmatpush1.bf16.msra.mxu0 %v2458
  %2472 = vmatprep.subr.bf16.mxu0 0
  %2473 = vmatpush1.bf16.msra.mxu0 %v2459
  %2474 = vmatprep.subr.bf16.mxu0 0
  %2475 = vmatpush1.bf16.msra.mxu0 %v2460
  %2476 = vmatprep.subr.bf16.mxu0 0
  %2477 = vmatpush1.bf16.msra.mxu0 0
  %2478 = vmatprep.subr.bf16.mxu0 0
  %2479 = vmatpush1.bf16.msra.mxu0 0
  %2480 = vmatprep.subr.bf16.mxu0 0
  %2481 = vmatpush1.bf16.msra.mxu0 0
  %2482 = vmatprep.subr.bf16.mxu0 0
  %2483 = vmatpush1.bf16.msra.mxu0 0
  %2484 = vmatprep.subr.bf16.mxu0 0
  %2485 = vmatpush1.bf16.msra.mxu0 0
  %2486 = vmatprep.subr.bf16.mxu0 0
  %2487 = vmatpush1.bf16.msra.mxu0 0
  %2488 = vmatprep.subr.bf16.mxu0 0
  %2489 = vmatpush1.bf16.msra.mxu0 0
  %2490 = vmatprep.subr.bf16.mxu0 0
  %2491 = vmatpush1.bf16.msra.mxu0 0
  %2492 = vmatprep.subr.bf16.mxu0 0
  %2493 = vmatpush1.bf16.msra.mxu0 0
  %2494 = vmatprep.subr.bf16.mxu0 0
  %2495 = vmatpush1.bf16.msra.mxu0 0
  %2496 = vmatprep.subr.bf16.mxu0 0
  %2497 = vmatpush1.bf16.msra.mxu0 0
  %2498 = vmatprep.subr.bf16.mxu0 0
  %2499 = vmatpush1.bf16.msra.mxu0 0
  %2500 = vmatprep.mubr.bf16.mxu0 0
  %2501 = vmatmul.mubr.bf16.gmra.mrb[0].mxu0 %v2466
  %v2502 = vpop.f32.mrb[0].mxu0
  %v2503 = vadd.f32 %v2440, %v2502
  %v2504 = vpop.f32.mrb[0].mxu0
  %v2505 = vpop.f32.mrb[0].mxu0
  %v2506 = vpop.f32.mrb[0].mxu0
  %2507 = vdwg.mxu0
  %v2508 = vadd.f32 %v2424, %v2503
  %v2509 = vsel %vm196, %v2508, 0.0
  %2510 = vadd.xlane.f32.xlu0 %v2509
  %v2511 = vpop.xlane.xlu0 %2510
  %v2512 = vmul.f32 %v2511, %v200
  %v2513 = vsub.f32 %v2508, %v2512
  %v2514 = vmul.f32 %v2513, %v2513
  %v2515 = vsel %vm196, %v2514, 0.0
  %2516 = vadd.xlane.f32.xlu0 %v2515
  %v2517 = vpop.xlane.xlu0 %2516
  %v2518 = vmul.f32 %v2517, %v200
  %v2519 = vadd.f32 %v2518, 1e-05
  %v2520 = vrsqrt.pop %v2519
  %v2521 = vmul.f32 %v2513, %v2520
  %v2522 = vlaneseq
  %v2523 = vshrl.u32 %v2522, 7
  %v2524 = vsub.s32 1, %v2523
  %v2525 = vrot.slane %v2426, %v2524
  %v2526 = vmul.f32 %v2521, %v2525
  %v2527 = vlaneseq
  %v2528 = vshrl.u32 %v2527, 7
  %v2529 = vsub.s32 2, %v2528
  %v2530 = vrot.slane %v2426, %v2529
  %v2531 = vadd.f32 %v2526, %v2530
  %v2532 = vpack.c.bf16 %v2531, %v2531
  %s2533 = scalar_lea.vmem %s4, 512
  %v2534 = vld [vmem:[%s2533] sm:$0xff]
  %v2535 = vld [vmem:[%s2533 + $0x8] sm:$0xff]
  %v2536 = vld [vmem:[%s2533 + $0x10] sm:$0xff]
  %v2537 = vld [vmem:[%s2533 + $0x18] sm:$0xff]
  %v2538 = vld [vmem:[%s2533 + $0x20] sm:$0xff]
  %v2539 = vld [vmem:[%s2533 + $0x28] sm:$0xff]
  %v2540 = vld [vmem:[%s2533 + $0x30] sm:$0xff]
  %v2541 = vld [vmem:[%s2533 + $0x38] sm:$0xff]
  %v2542 = vld [vmem:[%s2533 + $0x40] sm:$0xff]
  %v2543 = vld [vmem:[%s2533 + $0x48] sm:$0xff]
  %v2544 = vld [vmem:[%s2533 + $0x50] sm:$0xff]
  %v2545 = vld [vmem:[%s2533 + $0x58] sm:$0xff]
  %v2546 = vld [vmem:[%s2533 + $0x60] sm:$0xff]
  %v2547 = vld [vmem:[%s2533 + $0x68] sm:$0xff]
  %v2548 = vld [vmem:[%s2533 + $0x70] sm:$0xff]
  %v2549 = vld [vmem:[%s2533 + $0x78] sm:$0xff]
  %v2550 = vld [vmem:[%s2533 + $0x80] sm:$0xff]
  %v2551 = vld [vmem:[%s2533 + $0x88] sm:$0xff]
  %v2552 = vld [vmem:[%s2533 + $0x90] sm:$0xff]
  %v2553 = vld [vmem:[%s2533 + $0x98] sm:$0xff]
  %v2554 = vld [vmem:[%s2533 + $0xa0] sm:$0xff]
  %v2555 = vld [vmem:[%s2533 + $0xa8] sm:$0xff]
  %v2556 = vld [vmem:[%s2533 + $0xb0] sm:$0xff]
  %v2557 = vld [vmem:[%s2533 + $0xb8] sm:$0xff]
  %v2558 = vld [vmem:[%s2533 + $0xc0] sm:$0xff]
  %v2559 = vld [vmem:[%s2533 + $0xc8] sm:$0xff]
  %v2560 = vld [vmem:[%s2533 + $0xd0] sm:$0xff]
  %v2561 = vld [vmem:[%s2533 + $0xd8] sm:$0xff]
  %v2562 = vld [vmem:[%s2533 + $0xe0] sm:$0xff]
  %v2563 = vld [vmem:[%s2533 + $0xe8] sm:$0xff]
  %v2564 = vld [vmem:[%s2533 + $0xf0] sm:$0xff]
  %v2565 = vld [vmem:[%s2533 + $0xf8] sm:$0xff]
  %v2566 = vld [vmem:[%s2533 + $0x100] sm:$0xff]
  %v2567 = vld [vmem:[%s2533 + $0x108] sm:$0xff]
  %v2568 = vld [vmem:[%s2533 + $0x110] sm:$0xff]
  %v2569 = vld [vmem:[%s2533 + $0x118] sm:$0xff]
  %v2570 = vld [vmem:[%s2533 + $0x120] sm:$0xff]
  %v2571 = vld [vmem:[%s2533 + $0x128] sm:$0xff]
  %v2572 = vld [vmem:[%s2533 + $0x130] sm:$0xff]
  %v2573 = vld [vmem:[%s2533 + $0x138] sm:$0xff]
  %v2574 = vld [vmem:[%s2533 + $0x140] sm:$0xff]
  %v2575 = vld [vmem:[%s2533 + $0x148] sm:$0xff]
  %v2576 = vld [vmem:[%s2533 + $0x150] sm:$0xff]
  %v2577 = vld [vmem:[%s2533 + $0x158] sm:$0xff]
  %v2578 = vld [vmem:[%s2533 + $0x160] sm:$0xff]
  %v2579 = vld [vmem:[%s2533 + $0x168] sm:$0xff]
  %v2580 = vld [vmem:[%s2533 + $0x170] sm:$0xff]
  %v2581 = vld [vmem:[%s2533 + $0x178] sm:$0xff]
  %v2582 = vld [vmem:[%s2533 + $0x180] sm:$0xff]
  %v2583 = vld [vmem:[%s2533 + $0x188] sm:$0xff]
  %v2584 = vld [vmem:[%s2533 + $0x190] sm:$0xff]
  %v2585 = vld [vmem:[%s2533 + $0x198] sm:$0xff]
  %v2586 = vld [vmem:[%s2533 + $0x1a0] sm:$0xff]
  %v2587 = vld [vmem:[%s2533 + $0x1a8] sm:$0xff]
  %v2588 = vld [vmem:[%s2533 + $0x1b0] sm:$0xff]
  %v2589 = vld [vmem:[%s2533 + $0x1b8] sm:$0xff]
  %v2590 = vld [vmem:[%s2533 + $0x1c0] sm:$0xff]
  %v2591 = vld [vmem:[%s2533 + $0x1c8] sm:$0xff]
  %v2592 = vld [vmem:[%s2533 + $0x1d0] sm:$0xff]
  %v2593 = vld [vmem:[%s2533 + $0x1d8] sm:$0xff]
  %v2594 = vld [vmem:[%s2533 + $0x1e0] sm:$0xff]
  %v2595 = vld [vmem:[%s2533 + $0x1e8] sm:$0xff]
  %v2596 = vld [vmem:[%s2533 + $0x1f0] sm:$0xff]
  %v2597 = vld [vmem:[%s2533 + $0x1f8] sm:$0xff]
  %s2598 = scalar_lea.vmem %s5, 16
  %v2599 = vld [vmem:[%s2598] sm:$0xff]
  %v2600 = vld [vmem:[%s2598 + $0x8] sm:$0xff]
  %v2603 = vlaneseq
  %v2604 = vshrl.u32 %v2603, 7
  %v2605 = vsub.s32 0, %v2604
  %v2606 = vrot.slane %v2599, %v2605
  %v2607 = vlaneseq
  %v2608 = vshrl.u32 %v2607, 7
  %v2609 = vsub.s32 1, %v2608
  %v2610 = vrot.slane %v2599, %v2609
  %v2611 = vlaneseq
  %v2612 = vshrl.u32 %v2611, 7
  %v2613 = vsub.s32 2, %v2612
  %v2614 = vrot.slane %v2599, %v2613
  %v2615 = vlaneseq
  %v2616 = vshrl.u32 %v2615, 7
  %v2617 = vsub.s32 3, %v2616
  %v2618 = vrot.slane %v2599, %v2617
  %v2619 = vlaneseq
  %v2620 = vshrl.u32 %v2619, 7
  %v2621 = vsub.s32 4, %v2620
  %v2622 = vrot.slane %v2599, %v2621
  %v2623 = vlaneseq
  %v2624 = vshrl.u32 %v2623, 7
  %v2625 = vsub.s32 5, %v2624
  %v2626 = vrot.slane %v2599, %v2625
  %v2627 = vlaneseq
  %v2628 = vshrl.u32 %v2627, 7
  %v2629 = vsub.s32 6, %v2628
  %v2630 = vrot.slane %v2599, %v2629
  %v2631 = vlaneseq
  %v2632 = vshrl.u32 %v2631, 7
  %v2633 = vsub.s32 7, %v2632
  %v2634 = vrot.slane %v2599, %v2633
  %v2635 = vlaneseq
  %v2636 = vshrl.u32 %v2635, 7
  %v2637 = vsub.s32 0, %v2636
  %v2638 = vrot.slane %v2600, %v2637
  %v2639 = vlaneseq
  %v2640 = vshrl.u32 %v2639, 7
  %v2641 = vsub.s32 1, %v2640
  %v2642 = vrot.slane %v2600, %v2641
  %v2643 = vlaneseq
  %v2644 = vshrl.u32 %v2643, 7
  %v2645 = vsub.s32 2, %v2644
  %v2646 = vrot.slane %v2600, %v2645
  %v2647 = vlaneseq
  %v2648 = vshrl.u32 %v2647, 7
  %v2649 = vsub.s32 3, %v2648
  %v2650 = vrot.slane %v2600, %v2649
  %v2651 = vlaneseq
  %v2652 = vshrl.u32 %v2651, 7
  %v2653 = vsub.s32 4, %v2652
  %v2654 = vrot.slane %v2600, %v2653
  %v2655 = vlaneseq
  %v2656 = vshrl.u32 %v2655, 7
  %v2657 = vsub.s32 5, %v2656
  %v2658 = vrot.slane %v2600, %v2657
  %v2659 = vlaneseq
  %v2660 = vshrl.u32 %v2659, 7
  %v2661 = vsub.s32 6, %v2660
  %v2662 = vrot.slane %v2600, %v2661
  %v2663 = vlaneseq
  %v2664 = vshrl.u32 %v2663, 7
  %v2665 = vsub.s32 7, %v2664
  %v2666 = vrot.slane %v2600, %v2665
  %v2747 = vunpack.c.l.b16 %v2534
  %v2748 = vunpack.c.h.b16 %v2534
  %v2749 = vunpack.c.l.b16 %v2535
  %v2750 = vunpack.c.h.b16 %v2535
  %v2751 = vunpack.c.l.b16 %v2536
  %v2752 = vunpack.c.h.b16 %v2536
  %v2753 = vunpack.c.l.b16 %v2537
  %v2754 = vunpack.c.h.b16 %v2537
  %v2755 = vunpack.c.l.b16 %v2538
  %v2756 = vunpack.c.h.b16 %v2538
  %v2757 = vunpack.c.l.b16 %v2539
  %v2758 = vunpack.c.h.b16 %v2539
  %v2759 = vunpack.c.l.b16 %v2540
  %v2760 = vunpack.c.h.b16 %v2540
  %v2761 = vunpack.c.l.b16 %v2541
  %v2762 = vunpack.c.h.b16 %v2541
  %v2763 = vunpack.c.l.b16 %v2542
  %v2764 = vunpack.c.h.b16 %v2542
  %v2765 = vunpack.c.l.b16 %v2543
  %v2766 = vunpack.c.h.b16 %v2543
  %v2767 = vunpack.c.l.b16 %v2544
  %v2768 = vunpack.c.h.b16 %v2544
  %v2769 = vunpack.c.l.b16 %v2545
  %v2770 = vunpack.c.h.b16 %v2545
  %v2771 = vunpack.c.l.b16 %v2546
  %v2772 = vunpack.c.h.b16 %v2546
  %v2773 = vunpack.c.l.b16 %v2547
  %v2774 = vunpack.c.h.b16 %v2547
  %v2775 = vunpack.c.l.b16 %v2548
  %v2776 = vunpack.c.h.b16 %v2548
  %v2777 = vunpack.c.l.b16 %v2549
  %v2778 = vunpack.c.h.b16 %v2549
  %v2779 = vunpack.c.l.b16 %v2550
  %v2780 = vunpack.c.h.b16 %v2550
  %v2781 = vunpack.c.l.b16 %v2551
  %v2782 = vunpack.c.h.b16 %v2551
  %v2783 = vunpack.c.l.b16 %v2552
  %v2784 = vunpack.c.h.b16 %v2552
  %v2785 = vunpack.c.l.b16 %v2553
  %v2786 = vunpack.c.h.b16 %v2553
  %v2787 = vunpack.c.l.b16 %v2554
  %v2788 = vunpack.c.h.b16 %v2554
  %v2789 = vunpack.c.l.b16 %v2555
  %v2790 = vunpack.c.h.b16 %v2555
  %v2791 = vunpack.c.l.b16 %v2556
  %v2792 = vunpack.c.h.b16 %v2556
  %v2793 = vunpack.c.l.b16 %v2557
  %v2794 = vunpack.c.h.b16 %v2557
  %v2795 = vunpack.c.l.b16 %v2558
  %v2796 = vunpack.c.h.b16 %v2558
  %v2797 = vunpack.c.l.b16 %v2559
  %v2798 = vunpack.c.h.b16 %v2559
  %v2799 = vunpack.c.l.b16 %v2560
  %v2800 = vunpack.c.h.b16 %v2560
  %v2801 = vunpack.c.l.b16 %v2561
  %v2802 = vunpack.c.h.b16 %v2561
  %v2803 = vunpack.c.l.b16 %v2562
  %v2804 = vunpack.c.h.b16 %v2562
  %v2805 = vunpack.c.l.b16 %v2563
  %v2806 = vunpack.c.h.b16 %v2563
  %v2807 = vunpack.c.l.b16 %v2564
  %v2808 = vunpack.c.h.b16 %v2564
  %v2809 = vunpack.c.l.b16 %v2565
  %v2810 = vunpack.c.h.b16 %v2565
  %v2811 = vunpack.c.l.b16 %v2566
  %v2812 = vunpack.c.h.b16 %v2566
  %v2813 = vunpack.c.l.b16 %v2567
  %v2814 = vunpack.c.h.b16 %v2567
  %v2815 = vunpack.c.l.b16 %v2568
  %v2816 = vunpack.c.h.b16 %v2568
  %v2817 = vunpack.c.l.b16 %v2569
  %v2818 = vunpack.c.h.b16 %v2569
  %v2819 = vunpack.c.l.b16 %v2570
  %v2820 = vunpack.c.h.b16 %v2570
  %v2821 = vunpack.c.l.b16 %v2571
  %v2822 = vunpack.c.h.b16 %v2571
  %v2823 = vunpack.c.l.b16 %v2572
  %v2824 = vunpack.c.h.b16 %v2572
  %v2825 = vunpack.c.l.b16 %v2573
  %v2826 = vunpack.c.h.b16 %v2573
  %v2827 = vunpack.c.l.b16 %v2574
  %v2828 = vunpack.c.h.b16 %v2574
  %v2829 = vunpack.c.l.b16 %v2575
  %v2830 = vunpack.c.h.b16 %v2575
  %v2831 = vunpack.c.l.b16 %v2576
  %v2832 = vunpack.c.h.b16 %v2576
  %v2833 = vunpack.c.l.b16 %v2577
  %v2834 = vunpack.c.h.b16 %v2577
  %v2835 = vunpack.c.l.b16 %v2578
  %v2836 = vunpack.c.h.b16 %v2578
  %v2837 = vunpack.c.l.b16 %v2579
  %v2838 = vunpack.c.h.b16 %v2579
  %v2839 = vunpack.c.l.b16 %v2580
  %v2840 = vunpack.c.h.b16 %v2580
  %v2841 = vunpack.c.l.b16 %v2581
  %v2842 = vunpack.c.h.b16 %v2581
  %v2843 = vunpack.c.l.b16 %v2582
  %v2844 = vunpack.c.h.b16 %v2582
  %v2845 = vunpack.c.l.b16 %v2583
  %v2846 = vunpack.c.h.b16 %v2583
  %v2847 = vunpack.c.l.b16 %v2584
  %v2848 = vunpack.c.h.b16 %v2584
  %v2849 = vunpack.c.l.b16 %v2585
  %v2850 = vunpack.c.h.b16 %v2585
  %v2851 = vunpack.c.l.b16 %v2586
  %v2852 = vunpack.c.h.b16 %v2586
  %v2853 = vunpack.c.l.b16 %v2587
  %v2854 = vunpack.c.h.b16 %v2587
  %v2855 = vunpack.c.l.b16 %v2588
  %v2856 = vunpack.c.h.b16 %v2588
  %v2857 = vunpack.c.l.b16 %v2589
  %v2858 = vunpack.c.h.b16 %v2589
  %v2859 = vunpack.c.l.b16 %v2590
  %v2860 = vunpack.c.h.b16 %v2590
  %v2861 = vunpack.c.l.b16 %v2591
  %v2862 = vunpack.c.h.b16 %v2591
  %v2863 = vunpack.c.l.b16 %v2592
  %v2864 = vunpack.c.h.b16 %v2592
  %v2865 = vunpack.c.l.b16 %v2593
  %v2866 = vunpack.c.h.b16 %v2593
  %v2867 = vunpack.c.l.b16 %v2594
  %v2868 = vunpack.c.h.b16 %v2594
  %v2869 = vunpack.c.l.b16 %v2595
  %v2870 = vunpack.c.h.b16 %v2595
  %v2871 = vunpack.c.l.b16 %v2596
  %v2872 = vunpack.c.h.b16 %v2596
  %v2873 = vunpack.c.l.b16 %v2597
  %v2874 = vunpack.c.h.b16 %v2597
  %v2875 = vpack.c.b16 %v2763, %v2747
  %v2876 = vpack.c.b16 %v2764, %v2748
  %v2877 = vpack.c.b16 %v2765, %v2749
  %v2878 = vpack.c.b16 %v2766, %v2750
  %v2879 = vpack.c.b16 %v2767, %v2751
  %v2880 = vpack.c.b16 %v2768, %v2752
  %v2881 = vpack.c.b16 %v2769, %v2753
  %v2882 = vpack.c.b16 %v2770, %v2754
  %v2883 = vpack.c.b16 %v2771, %v2755
  %v2884 = vpack.c.b16 %v2772, %v2756
  %v2885 = vpack.c.b16 %v2773, %v2757
  %v2886 = vpack.c.b16 %v2774, %v2758
  %v2887 = vpack.c.b16 %v2775, %v2759
  %v2888 = vpack.c.b16 %v2776, %v2760
  %v2889 = vpack.c.b16 %v2777, %v2761
  %v2890 = vpack.c.b16 %v2778, %v2762
  %v2891 = vpack.c.b16 %v2795, %v2779
  %v2892 = vpack.c.b16 %v2796, %v2780
  %v2893 = vpack.c.b16 %v2797, %v2781
  %v2894 = vpack.c.b16 %v2798, %v2782
  %v2895 = vpack.c.b16 %v2799, %v2783
  %v2896 = vpack.c.b16 %v2800, %v2784
  %v2897 = vpack.c.b16 %v2801, %v2785
  %v2898 = vpack.c.b16 %v2802, %v2786
  %v2899 = vpack.c.b16 %v2803, %v2787
  %v2900 = vpack.c.b16 %v2804, %v2788
  %v2901 = vpack.c.b16 %v2805, %v2789
  %v2902 = vpack.c.b16 %v2806, %v2790
  %v2903 = vpack.c.b16 %v2807, %v2791
  %v2904 = vpack.c.b16 %v2808, %v2792
  %v2905 = vpack.c.b16 %v2809, %v2793
  %v2906 = vpack.c.b16 %v2810, %v2794
  %v2907 = vpack.c.b16 %v2827, %v2811
  %v2908 = vpack.c.b16 %v2828, %v2812
  %v2909 = vpack.c.b16 %v2829, %v2813
  %v2910 = vpack.c.b16 %v2830, %v2814
  %v2911 = vpack.c.b16 %v2831, %v2815
  %v2912 = vpack.c.b16 %v2832, %v2816
  %v2913 = vpack.c.b16 %v2833, %v2817
  %v2914 = vpack.c.b16 %v2834, %v2818
  %v2915 = vpack.c.b16 %v2835, %v2819
  %v2916 = vpack.c.b16 %v2836, %v2820
  %v2917 = vpack.c.b16 %v2837, %v2821
  %v2918 = vpack.c.b16 %v2838, %v2822
  %v2919 = vpack.c.b16 %v2839, %v2823
  %v2920 = vpack.c.b16 %v2840, %v2824
  %v2921 = vpack.c.b16 %v2841, %v2825
  %v2922 = vpack.c.b16 %v2842, %v2826
  %v2923 = vpack.c.b16 %v2859, %v2843
  %v2924 = vpack.c.b16 %v2860, %v2844
  %v2925 = vpack.c.b16 %v2861, %v2845
  %v2926 = vpack.c.b16 %v2862, %v2846
  %v2927 = vpack.c.b16 %v2863, %v2847
  %v2928 = vpack.c.b16 %v2864, %v2848
  %v2929 = vpack.c.b16 %v2865, %v2849
  %v2930 = vpack.c.b16 %v2866, %v2850
  %v2931 = vpack.c.b16 %v2867, %v2851
  %v2932 = vpack.c.b16 %v2868, %v2852
  %v2933 = vpack.c.b16 %v2869, %v2853
  %v2934 = vpack.c.b16 %v2870, %v2854
  %v2935 = vpack.c.b16 %v2871, %v2855
  %v2936 = vpack.c.b16 %v2872, %v2856
  %v2937 = vpack.c.b16 %v2873, %v2857
  %v2938 = vpack.c.b16 %v2874, %v2858
  %v3004 = vsel %vm151, %v2532, 0
  %3006 = vmatprep.subr.bf16.mxu0 %v2876
  %3007 = vmatpush1.bf16.msra.mxu0 %v2875
  %3008 = vmatprep.subr.bf16.mxu0 %v2892
  %3009 = vmatpush1.bf16.msra.mxu0 %v2891
  %3010 = vmatprep.subr.bf16.mxu0 %v2908
  %3011 = vmatpush1.bf16.msra.mxu0 %v2907
  %3012 = vmatprep.subr.bf16.mxu0 %v2924
  %3013 = vmatpush1.bf16.msra.mxu0 %v2923
  %3014 = vmatprep.subr.bf16.mxu0 0
  %3015 = vmatpush1.bf16.msra.mxu0 0
  %3016 = vmatprep.subr.bf16.mxu0 0
  %3017 = vmatpush1.bf16.msra.mxu0 0
  %3018 = vmatprep.subr.bf16.mxu0 0
  %3019 = vmatpush1.bf16.msra.mxu0 0
  %3020 = vmatprep.subr.bf16.mxu0 0
  %3021 = vmatpush1.bf16.msra.mxu0 0
  %3022 = vmatprep.subr.bf16.mxu0 0
  %3023 = vmatpush1.bf16.msra.mxu0 0
  %3024 = vmatprep.subr.bf16.mxu0 0
  %3025 = vmatpush1.bf16.msra.mxu0 0
  %3026 = vmatprep.subr.bf16.mxu0 0
  %3027 = vmatpush1.bf16.msra.mxu0 0
  %3028 = vmatprep.subr.bf16.mxu0 0
  %3029 = vmatpush1.bf16.msra.mxu0 0
  %3030 = vmatprep.subr.bf16.mxu0 0
  %3031 = vmatpush1.bf16.msra.mxu0 0
  %3032 = vmatprep.subr.bf16.mxu0 0
  %3033 = vmatpush1.bf16.msra.mxu0 0
  %3034 = vmatprep.subr.bf16.mxu0 0
  %3035 = vmatpush1.bf16.msra.mxu0 0
  %3036 = vmatprep.subr.bf16.mxu0 0
  %3037 = vmatpush1.bf16.msra.mxu0 0
  %3038 = vmatprep.mubr.bf16.mxu0 0
  %3039 = vmatmul.mubr.bf16.gmra.mrb[0].mxu0 %v3004
  %v3040 = vpop.f32.mrb[0].mxu0
  %v3041 = vadd.f32 %v2606, %v3040
  %v3042 = vpop.f32.mrb[0].mxu0
  %v3043 = vadd.f32 %v2610, %v3042
  %v3044 = vpop.f32.mrb[0].mxu0
  %v3045 = vpop.f32.mrb[0].mxu0
  %3046 = vdwg.mxu0
  %3047 = vmatprep.subr.bf16.mxu0 %v2878
  %3048 = vmatpush1.bf16.msra.mxu0 %v2877
  %3049 = vmatprep.subr.bf16.mxu0 %v2894
  %3050 = vmatpush1.bf16.msra.mxu0 %v2893
  %3051 = vmatprep.subr.bf16.mxu0 %v2910
  %3052 = vmatpush1.bf16.msra.mxu0 %v2909
  %3053 = vmatprep.subr.bf16.mxu0 %v2926
  %3054 = vmatpush1.bf16.msra.mxu0 %v2925
  %3055 = vmatprep.subr.bf16.mxu0 0
  %3056 = vmatpush1.bf16.msra.mxu0 0
  %3057 = vmatprep.subr.bf16.mxu0 0
  %3058 = vmatpush1.bf16.msra.mxu0 0
  %3059 = vmatprep.subr.bf16.mxu0 0
  %3060 = vmatpush1.bf16.msra.mxu0 0
  %3061 = vmatprep.subr.bf16.mxu0 0
  %3062 = vmatpush1.bf16.msra.mxu0 0
  %3063 = vmatprep.subr.bf16.mxu0 0
  %3064 = vmatpush1.bf16.msra.mxu0 0
  %3065 = vmatprep.subr.bf16.mxu0 0
  %3066 = vmatpush1.bf16.msra.mxu0 0
  %3067 = vmatprep.subr.bf16.mxu0 0
  %3068 = vmatpush1.bf16.msra.mxu0 0
  %3069 = vmatprep.subr.bf16.mxu0 0
  %3070 = vmatpush1.bf16.msra.mxu0 0
  %3071 = vmatprep.subr.bf16.mxu0 0
  %3072 = vmatpush1.bf16.msra.mxu0 0
  %3073 = vmatprep.subr.bf16.mxu0 0
  %3074 = vmatpush1.bf16.msra.mxu0 0
  %3075 = vmatprep.subr.bf16.mxu0 0
  %3076 = vmatpush1.bf16.msra.mxu0 0
  %3077 = vmatprep.subr.bf16.mxu0 0
  %3078 = vmatpush1.bf16.msra.mxu0 0
  %3079 = vmatprep.mubr.bf16.mxu0 0
  %3080 = vmatmul.mubr.bf16.gmra.mrb[0].mxu0 %v3004
  %v3081 = vpop.f32.mrb[0].mxu0
  %v3082 = vadd.f32 %v2614, %v3081
  %v3083 = vpop.f32.mrb[0].mxu0
  %v3084 = vadd.f32 %v2618, %v3083
  %v3085 = vpop.f32.mrb[0].mxu0
  %v3086 = vpop.f32.mrb[0].mxu0
  %3087 = vdwg.mxu0
  %3088 = vmatprep.subr.bf16.mxu0 %v2880
  %3089 = vmatpush1.bf16.msra.mxu0 %v2879
  %3090 = vmatprep.subr.bf16.mxu0 %v2896
  %3091 = vmatpush1.bf16.msra.mxu0 %v2895
  %3092 = vmatprep.subr.bf16.mxu0 %v2912
  %3093 = vmatpush1.bf16.msra.mxu0 %v2911
  %3094 = vmatprep.subr.bf16.mxu0 %v2928
  %3095 = vmatpush1.bf16.msra.mxu0 %v2927
  %3096 = vmatprep.subr.bf16.mxu0 0
  %3097 = vmatpush1.bf16.msra.mxu0 0
  %3098 = vmatprep.subr.bf16.mxu0 0
  %3099 = vmatpush1.bf16.msra.mxu0 0
  %3100 = vmatprep.subr.bf16.mxu0 0
  %3101 = vmatpush1.bf16.msra.mxu0 0
  %3102 = vmatprep.subr.bf16.mxu0 0
  %3103 = vmatpush1.bf16.msra.mxu0 0
  %3104 = vmatprep.subr.bf16.mxu0 0
  %3105 = vmatpush1.bf16.msra.mxu0 0
  %3106 = vmatprep.subr.bf16.mxu0 0
  %3107 = vmatpush1.bf16.msra.mxu0 0
  %3108 = vmatprep.subr.bf16.mxu0 0
  %3109 = vmatpush1.bf16.msra.mxu0 0
  %3110 = vmatprep.subr.bf16.mxu0 0
  %3111 = vmatpush1.bf16.msra.mxu0 0
  %3112 = vmatprep.subr.bf16.mxu0 0
  %3113 = vmatpush1.bf16.msra.mxu0 0
  %3114 = vmatprep.subr.bf16.mxu0 0
  %3115 = vmatpush1.bf16.msra.mxu0 0
  %3116 = vmatprep.subr.bf16.mxu0 0
  %3117 = vmatpush1.bf16.msra.mxu0 0
  %3118 = vmatprep.subr.bf16.mxu0 0
  %3119 = vmatpush1.bf16.msra.mxu0 0
  %3120 = vmatprep.mubr.bf16.mxu0 0
  %3121 = vmatmul.mubr.bf16.gmra.mrb[0].mxu0 %v3004
  %v3122 = vpop.f32.mrb[0].mxu0
  %v3123 = vadd.f32 %v2622, %v3122
  %v3124 = vpop.f32.mrb[0].mxu0
  %v3125 = vadd.f32 %v2626, %v3124
  %v3126 = vpop.f32.mrb[0].mxu0
  %v3127 = vpop.f32.mrb[0].mxu0
  %3128 = vdwg.mxu0
  %3129 = vmatprep.subr.bf16.mxu0 %v2882
  %3130 = vmatpush1.bf16.msra.mxu0 %v2881
  %3131 = vmatprep.subr.bf16.mxu0 %v2898
  %3132 = vmatpush1.bf16.msra.mxu0 %v2897
  %3133 = vmatprep.subr.bf16.mxu0 %v2914
  %3134 = vmatpush1.bf16.msra.mxu0 %v2913
  %3135 = vmatprep.subr.bf16.mxu0 %v2930
  %3136 = vmatpush1.bf16.msra.mxu0 %v2929
  %3137 = vmatprep.subr.bf16.mxu0 0
  %3138 = vmatpush1.bf16.msra.mxu0 0
  %3139 = vmatprep.subr.bf16.mxu0 0
  %3140 = vmatpush1.bf16.msra.mxu0 0
  %3141 = vmatprep.subr.bf16.mxu0 0
  %3142 = vmatpush1.bf16.msra.mxu0 0
  %3143 = vmatprep.subr.bf16.mxu0 0
  %3144 = vmatpush1.bf16.msra.mxu0 0
  %3145 = vmatprep.subr.bf16.mxu0 0
  %3146 = vmatpush1.bf16.msra.mxu0 0
  %3147 = vmatprep.subr.bf16.mxu0 0
  %3148 = vmatpush1.bf16.msra.mxu0 0
  %3149 = vmatprep.subr.bf16.mxu0 0
  %3150 = vmatpush1.bf16.msra.mxu0 0
  %3151 = vmatprep.subr.bf16.mxu0 0
  %3152 = vmatpush1.bf16.msra.mxu0 0
  %3153 = vmatprep.subr.bf16.mxu0 0
  %3154 = vmatpush1.bf16.msra.mxu0 0
  %3155 = vmatprep.subr.bf16.mxu0 0
  %3156 = vmatpush1.bf16.msra.mxu0 0
  %3157 = vmatprep.subr.bf16.mxu0 0
  %3158 = vmatpush1.bf16.msra.mxu0 0
  %3159 = vmatprep.subr.bf16.mxu0 0
  %3160 = vmatpush1.bf16.msra.mxu0 0
  %3161 = vmatprep.mubr.bf16.mxu0 0
  %3162 = vmatmul.mubr.bf16.gmra.mrb[0].mxu0 %v3004
  %v3163 = vpop.f32.mrb[0].mxu0
  %v3164 = vadd.f32 %v2630, %v3163
  %v3165 = vpop.f32.mrb[0].mxu0
  %v3166 = vadd.f32 %v2634, %v3165
  %v3167 = vpop.f32.mrb[0].mxu0
  %v3168 = vpop.f32.mrb[0].mxu0
  %3169 = vdwg.mxu0
  %3170 = vmatprep.subr.bf16.mxu0 %v2884
  %3171 = vmatpush1.bf16.msra.mxu0 %v2883
  %3172 = vmatprep.subr.bf16.mxu0 %v2900
  %3173 = vmatpush1.bf16.msra.mxu0 %v2899
  %3174 = vmatprep.subr.bf16.mxu0 %v2916
  %3175 = vmatpush1.bf16.msra.mxu0 %v2915
  %3176 = vmatprep.subr.bf16.mxu0 %v2932
  %3177 = vmatpush1.bf16.msra.mxu0 %v2931
  %3178 = vmatprep.subr.bf16.mxu0 0
  %3179 = vmatpush1.bf16.msra.mxu0 0
  %3180 = vmatprep.subr.bf16.mxu0 0
  %3181 = vmatpush1.bf16.msra.mxu0 0
  %3182 = vmatprep.subr.bf16.mxu0 0
  %3183 = vmatpush1.bf16.msra.mxu0 0
  %3184 = vmatprep.subr.bf16.mxu0 0
  %3185 = vmatpush1.bf16.msra.mxu0 0
  %3186 = vmatprep.subr.bf16.mxu0 0
  %3187 = vmatpush1.bf16.msra.mxu0 0
  %3188 = vmatprep.subr.bf16.mxu0 0
  %3189 = vmatpush1.bf16.msra.mxu0 0
  %3190 = vmatprep.subr.bf16.mxu0 0
  %3191 = vmatpush1.bf16.msra.mxu0 0
  %3192 = vmatprep.subr.bf16.mxu0 0
  %3193 = vmatpush1.bf16.msra.mxu0 0
  %3194 = vmatprep.subr.bf16.mxu0 0
  %3195 = vmatpush1.bf16.msra.mxu0 0
  %3196 = vmatprep.subr.bf16.mxu0 0
  %3197 = vmatpush1.bf16.msra.mxu0 0
  %3198 = vmatprep.subr.bf16.mxu0 0
  %3199 = vmatpush1.bf16.msra.mxu0 0
  %3200 = vmatprep.subr.bf16.mxu0 0
  %3201 = vmatpush1.bf16.msra.mxu0 0
  %3202 = vmatprep.mubr.bf16.mxu0 0
  %3203 = vmatmul.mubr.bf16.gmra.mrb[0].mxu0 %v3004
  %v3204 = vpop.f32.mrb[0].mxu0
  %v3205 = vadd.f32 %v2638, %v3204
  %v3206 = vpop.f32.mrb[0].mxu0
  %v3207 = vadd.f32 %v2642, %v3206
  %v3208 = vpop.f32.mrb[0].mxu0
  %v3209 = vpop.f32.mrb[0].mxu0
  %3210 = vdwg.mxu0
  %3211 = vmatprep.subr.bf16.mxu0 %v2886
  %3212 = vmatpush1.bf16.msra.mxu0 %v2885
  %3213 = vmatprep.subr.bf16.mxu0 %v2902
  %3214 = vmatpush1.bf16.msra.mxu0 %v2901
  %3215 = vmatprep.subr.bf16.mxu0 %v2918
  %3216 = vmatpush1.bf16.msra.mxu0 %v2917
  %3217 = vmatprep.subr.bf16.mxu0 %v2934
  %3218 = vmatpush1.bf16.msra.mxu0 %v2933
  %3219 = vmatprep.subr.bf16.mxu0 0
  %3220 = vmatpush1.bf16.msra.mxu0 0
  %3221 = vmatprep.subr.bf16.mxu0 0
  %3222 = vmatpush1.bf16.msra.mxu0 0
  %3223 = vmatprep.subr.bf16.mxu0 0
  %3224 = vmatpush1.bf16.msra.mxu0 0
  %3225 = vmatprep.subr.bf16.mxu0 0
  %3226 = vmatpush1.bf16.msra.mxu0 0
  %3227 = vmatprep.subr.bf16.mxu0 0
  %3228 = vmatpush1.bf16.msra.mxu0 0
  %3229 = vmatprep.subr.bf16.mxu0 0
  %3230 = vmatpush1.bf16.msra.mxu0 0
  %3231 = vmatprep.subr.bf16.mxu0 0
  %3232 = vmatpush1.bf16.msra.mxu0 0
  %3233 = vmatprep.subr.bf16.mxu0 0
  %3234 = vmatpush1.bf16.msra.mxu0 0
  %3235 = vmatprep.subr.bf16.mxu0 0
  %3236 = vmatpush1.bf16.msra.mxu0 0
  %3237 = vmatprep.subr.bf16.mxu0 0
  %3238 = vmatpush1.bf16.msra.mxu0 0
  %3239 = vmatprep.subr.bf16.mxu0 0
  %3240 = vmatpush1.bf16.msra.mxu0 0
  %3241 = vmatprep.subr.bf16.mxu0 0
  %3242 = vmatpush1.bf16.msra.mxu0 0
  %3243 = vmatprep.mubr.bf16.mxu0 0
  %3244 = vmatmul.mubr.bf16.gmra.mrb[0].mxu0 %v3004
  %v3245 = vpop.f32.mrb[0].mxu0
  %v3246 = vadd.f32 %v2646, %v3245
  %v3247 = vpop.f32.mrb[0].mxu0
  %v3248 = vadd.f32 %v2650, %v3247
  %v3249 = vpop.f32.mrb[0].mxu0
  %v3250 = vpop.f32.mrb[0].mxu0
  %3251 = vdwg.mxu0
  %3252 = vmatprep.subr.bf16.mxu0 %v2888
  %3253 = vmatpush1.bf16.msra.mxu0 %v2887
  %3254 = vmatprep.subr.bf16.mxu0 %v2904
  %3255 = vmatpush1.bf16.msra.mxu0 %v2903
  %3256 = vmatprep.subr.bf16.mxu0 %v2920
  %3257 = vmatpush1.bf16.msra.mxu0 %v2919
  %3258 = vmatprep.subr.bf16.mxu0 %v2936
  %3259 = vmatpush1.bf16.msra.mxu0 %v2935
  %3260 = vmatprep.subr.bf16.mxu0 0
  %3261 = vmatpush1.bf16.msra.mxu0 0
  %3262 = vmatprep.subr.bf16.mxu0 0
  %3263 = vmatpush1.bf16.msra.mxu0 0
  %3264 = vmatprep.subr.bf16.mxu0 0
  %3265 = vmatpush1.bf16.msra.mxu0 0
  %3266 = vmatprep.subr.bf16.mxu0 0
  %3267 = vmatpush1.bf16.msra.mxu0 0
  %3268 = vmatprep.subr.bf16.mxu0 0
  %3269 = vmatpush1.bf16.msra.mxu0 0
  %3270 = vmatprep.subr.bf16.mxu0 0
  %3271 = vmatpush1.bf16.msra.mxu0 0
  %3272 = vmatprep.subr.bf16.mxu0 0
  %3273 = vmatpush1.bf16.msra.mxu0 0
  %3274 = vmatprep.subr.bf16.mxu0 0
  %3275 = vmatpush1.bf16.msra.mxu0 0
  %3276 = vmatprep.subr.bf16.mxu0 0
  %3277 = vmatpush1.bf16.msra.mxu0 0
  %3278 = vmatprep.subr.bf16.mxu0 0
  %3279 = vmatpush1.bf16.msra.mxu0 0
  %3280 = vmatprep.subr.bf16.mxu0 0
  %3281 = vmatpush1.bf16.msra.mxu0 0
  %3282 = vmatprep.subr.bf16.mxu0 0
  %3283 = vmatpush1.bf16.msra.mxu0 0
  %3284 = vmatprep.mubr.bf16.mxu0 0
  %3285 = vmatmul.mubr.bf16.gmra.mrb[0].mxu0 %v3004
  %v3286 = vpop.f32.mrb[0].mxu0
  %v3287 = vadd.f32 %v2654, %v3286
  %v3288 = vpop.f32.mrb[0].mxu0
  %v3289 = vadd.f32 %v2658, %v3288
  %v3290 = vpop.f32.mrb[0].mxu0
  %v3291 = vpop.f32.mrb[0].mxu0
  %3292 = vdwg.mxu0
  %3293 = vmatprep.subr.bf16.mxu0 %v2890
  %3294 = vmatpush1.bf16.msra.mxu0 %v2889
  %3295 = vmatprep.subr.bf16.mxu0 %v2906
  %3296 = vmatpush1.bf16.msra.mxu0 %v2905
  %3297 = vmatprep.subr.bf16.mxu0 %v2922
  %3298 = vmatpush1.bf16.msra.mxu0 %v2921
  %3299 = vmatprep.subr.bf16.mxu0 %v2938
  %3300 = vmatpush1.bf16.msra.mxu0 %v2937
  %3301 = vmatprep.subr.bf16.mxu0 0
  %3302 = vmatpush1.bf16.msra.mxu0 0
  %3303 = vmatprep.subr.bf16.mxu0 0
  %3304 = vmatpush1.bf16.msra.mxu0 0
  %3305 = vmatprep.subr.bf16.mxu0 0
  %3306 = vmatpush1.bf16.msra.mxu0 0
  %3307 = vmatprep.subr.bf16.mxu0 0
  %3308 = vmatpush1.bf16.msra.mxu0 0
  %3309 = vmatprep.subr.bf16.mxu0 0
  %3310 = vmatpush1.bf16.msra.mxu0 0
  %3311 = vmatprep.subr.bf16.mxu0 0
  %3312 = vmatpush1.bf16.msra.mxu0 0
  %3313 = vmatprep.subr.bf16.mxu0 0
  %3314 = vmatpush1.bf16.msra.mxu0 0
  %3315 = vmatprep.subr.bf16.mxu0 0
  %3316 = vmatpush1.bf16.msra.mxu0 0
  %3317 = vmatprep.subr.bf16.mxu0 0
  %3318 = vmatpush1.bf16.msra.mxu0 0
  %3319 = vmatprep.subr.bf16.mxu0 0
  %3320 = vmatpush1.bf16.msra.mxu0 0
  %3321 = vmatprep.subr.bf16.mxu0 0
  %3322 = vmatpush1.bf16.msra.mxu0 0
  %3323 = vmatprep.subr.bf16.mxu0 0
  %3324 = vmatpush1.bf16.msra.mxu0 0
  %3325 = vmatprep.mubr.bf16.mxu0 0
  %3326 = vmatmul.mubr.bf16.gmra.mrb[0].mxu0 %v3004
  %v3327 = vpop.f32.mrb[0].mxu0
  %v3328 = vadd.f32 %v2662, %v3327
  %v3329 = vpop.f32.mrb[0].mxu0
  %v3330 = vadd.f32 %v2666, %v3329
  %v3331 = vpop.f32.mrb[0].mxu0
  %v3332 = vpop.f32.mrb[0].mxu0
  %3333 = vdwg.mxu0
  %v3334 = vmax.f32 %v3041, 0.0
  %v3335 = vmax.f32 %v3043, 0.0
  %v3336 = vmax.f32 %v3082, 0.0
  %v3337 = vmax.f32 %v3084, 0.0
  %v3338 = vmax.f32 %v3123, 0.0
  %v3339 = vmax.f32 %v3125, 0.0
  %v3340 = vmax.f32 %v3164, 0.0
  %v3341 = vmax.f32 %v3166, 0.0
  %v3342 = vmax.f32 %v3205, 0.0
  %v3343 = vmax.f32 %v3207, 0.0
  %v3344 = vmax.f32 %v3246, 0.0
  %v3345 = vmax.f32 %v3248, 0.0
  %v3346 = vmax.f32 %v3287, 0.0
  %v3347 = vmax.f32 %v3289, 0.0
  %v3348 = vmax.f32 %v3328, 0.0
  %v3349 = vmax.f32 %v3330, 0.0
  %v3350 = vpack.c.bf16 %v3334, %v3334
  %v3351 = vpack.c.bf16 %v3335, %v3335
  %v3352 = vpack.c.bf16 %v3336, %v3336
  %v3353 = vpack.c.bf16 %v3337, %v3337
  %v3354 = vpack.c.bf16 %v3338, %v3338
  %v3355 = vpack.c.bf16 %v3339, %v3339
  %v3356 = vpack.c.bf16 %v3340, %v3340
  %v3357 = vpack.c.bf16 %v3341, %v3341
  %v3358 = vpack.c.bf16 %v3342, %v3342
  %v3359 = vpack.c.bf16 %v3343, %v3343
  %v3360 = vpack.c.bf16 %v3344, %v3344
  %v3361 = vpack.c.bf16 %v3345, %v3345
  %v3362 = vpack.c.bf16 %v3346, %v3346
  %v3363 = vpack.c.bf16 %v3347, %v3347
  %v3364 = vpack.c.bf16 %v3348, %v3348
  %v3365 = vpack.c.bf16 %v3349, %v3349
  %s3366 = scalar_lea.vmem %s6, 1024
  %v3367 = vld [vmem:[%s3366] sm:$0xf]
  %v3368 = vld [vmem:[%s3366 + $0x4] sm:$0xf]
  %v3369 = vld [vmem:[%s3366 + $0x8] sm:$0xf]
  %v3370 = vld [vmem:[%s3366 + $0xc] sm:$0xf]
  %v3371 = vld [vmem:[%s3366 + $0x10] sm:$0xf]
  %v3372 = vld [vmem:[%s3366 + $0x14] sm:$0xf]
  %v3373 = vld [vmem:[%s3366 + $0x18] sm:$0xf]
  %v3374 = vld [vmem:[%s3366 + $0x1c] sm:$0xf]
  %v3375 = vld [vmem:[%s3366 + $0x20] sm:$0xf]
  %v3376 = vld [vmem:[%s3366 + $0x24] sm:$0xf]
  %v3377 = vld [vmem:[%s3366 + $0x28] sm:$0xf]
  %v3378 = vld [vmem:[%s3366 + $0x2c] sm:$0xf]
  %v3379 = vld [vmem:[%s3366 + $0x30] sm:$0xf]
  %v3380 = vld [vmem:[%s3366 + $0x34] sm:$0xf]
  %v3381 = vld [vmem:[%s3366 + $0x38] sm:$0xf]
  %v3382 = vld [vmem:[%s3366 + $0x3c] sm:$0xf]
  %v3383 = vld [vmem:[%s3366 + $0x40] sm:$0xf]
  %v3384 = vld [vmem:[%s3366 + $0x44] sm:$0xf]
  %v3385 = vld [vmem:[%s3366 + $0x48] sm:$0xf]
  %v3386 = vld [vmem:[%s3366 + $0x4c] sm:$0xf]
  %v3387 = vld [vmem:[%s3366 + $0x50] sm:$0xf]
  %v3388 = vld [vmem:[%s3366 + $0x54] sm:$0xf]
  %v3389 = vld [vmem:[%s3366 + $0x58] sm:$0xf]
  %v3390 = vld [vmem:[%s3366 + $0x5c] sm:$0xf]
  %v3391 = vld [vmem:[%s3366 + $0x60] sm:$0xf]
  %v3392 = vld [vmem:[%s3366 + $0x64] sm:$0xf]
  %v3393 = vld [vmem:[%s3366 + $0x68] sm:$0xf]
  %v3394 = vld [vmem:[%s3366 + $0x6c] sm:$0xf]
  %v3395 = vld [vmem:[%s3366 + $0x70] sm:$0xf]
  %v3396 = vld [vmem:[%s3366 + $0x74] sm:$0xf]
  %v3397 = vld [vmem:[%s3366 + $0x78] sm:$0xf]
  %v3398 = vld [vmem:[%s3366 + $0x7c] sm:$0xf]
  %v3399 = vld [vmem:[%s3366 + $0x80] sm:$0xf]
  %v3400 = vld [vmem:[%s3366 + $0x84] sm:$0xf]
  %v3401 = vld [vmem:[%s3366 + $0x88] sm:$0xf]
  %v3402 = vld [vmem:[%s3366 + $0x8c] sm:$0xf]
  %v3403 = vld [vmem:[%s3366 + $0x90] sm:$0xf]
  %v3404 = vld [vmem:[%s3366 + $0x94] sm:$0xf]
  %v3405 = vld [vmem:[%s3366 + $0x98] sm:$0xf]
  %v3406 = vld [vmem:[%s3366 + $0x9c] sm:$0xf]
  %v3407 = vld [vmem:[%s3366 + $0xa0] sm:$0xf]
  %v3408 = vld [vmem:[%s3366 + $0xa4] sm:$0xf]
  %v3409 = vld [vmem:[%s3366 + $0xa8] sm:$0xf]
  %v3410 = vld [vmem:[%s3366 + $0xac] sm:$0xf]
  %v3411 = vld [vmem:[%s3366 + $0xb0] sm:$0xf]
  %v3412 = vld [vmem:[%s3366 + $0xb4] sm:$0xf]
  %v3413 = vld [vmem:[%s3366 + $0xb8] sm:$0xf]
  %v3414 = vld [vmem:[%s3366 + $0xbc] sm:$0xf]
  %v3415 = vld [vmem:[%s3366 + $0xc0] sm:$0xf]
  %v3416 = vld [vmem:[%s3366 + $0xc4] sm:$0xf]
  %v3417 = vld [vmem:[%s3366 + $0xc8] sm:$0xf]
  %v3418 = vld [vmem:[%s3366 + $0xcc] sm:$0xf]
  %v3419 = vld [vmem:[%s3366 + $0xd0] sm:$0xf]
  %v3420 = vld [vmem:[%s3366 + $0xd4] sm:$0xf]
  %v3421 = vld [vmem:[%s3366 + $0xd8] sm:$0xf]
  %v3422 = vld [vmem:[%s3366 + $0xdc] sm:$0xf]
  %v3423 = vld [vmem:[%s3366 + $0xe0] sm:$0xf]
  %v3424 = vld [vmem:[%s3366 + $0xe4] sm:$0xf]
  %v3425 = vld [vmem:[%s3366 + $0xe8] sm:$0xf]
  %v3426 = vld [vmem:[%s3366 + $0xec] sm:$0xf]
  %v3427 = vld [vmem:[%s3366 + $0xf0] sm:$0xf]
  %v3428 = vld [vmem:[%s3366 + $0xf4] sm:$0xf]
  %v3429 = vld [vmem:[%s3366 + $0xf8] sm:$0xf]
  %v3430 = vld [vmem:[%s3366 + $0xfc] sm:$0xf]
  %v3431 = vld [vmem:[%s3366 + $0x100] sm:$0xf]
  %v3432 = vld [vmem:[%s3366 + $0x104] sm:$0xf]
  %v3433 = vld [vmem:[%s3366 + $0x108] sm:$0xf]
  %v3434 = vld [vmem:[%s3366 + $0x10c] sm:$0xf]
  %v3435 = vld [vmem:[%s3366 + $0x110] sm:$0xf]
  %v3436 = vld [vmem:[%s3366 + $0x114] sm:$0xf]
  %v3437 = vld [vmem:[%s3366 + $0x118] sm:$0xf]
  %v3438 = vld [vmem:[%s3366 + $0x11c] sm:$0xf]
  %v3439 = vld [vmem:[%s3366 + $0x120] sm:$0xf]
  %v3440 = vld [vmem:[%s3366 + $0x124] sm:$0xf]
  %v3441 = vld [vmem:[%s3366 + $0x128] sm:$0xf]
  %v3442 = vld [vmem:[%s3366 + $0x12c] sm:$0xf]
  %v3443 = vld [vmem:[%s3366 + $0x130] sm:$0xf]
  %v3444 = vld [vmem:[%s3366 + $0x134] sm:$0xf]
  %v3445 = vld [vmem:[%s3366 + $0x138] sm:$0xf]
  %v3446 = vld [vmem:[%s3366 + $0x13c] sm:$0xf]
  %v3447 = vld [vmem:[%s3366 + $0x140] sm:$0xf]
  %v3448 = vld [vmem:[%s3366 + $0x144] sm:$0xf]
  %v3449 = vld [vmem:[%s3366 + $0x148] sm:$0xf]
  %v3450 = vld [vmem:[%s3366 + $0x14c] sm:$0xf]
  %v3451 = vld [vmem:[%s3366 + $0x150] sm:$0xf]
  %v3452 = vld [vmem:[%s3366 + $0x154] sm:$0xf]
  %v3453 = vld [vmem:[%s3366 + $0x158] sm:$0xf]
  %v3454 = vld [vmem:[%s3366 + $0x15c] sm:$0xf]
  %v3455 = vld [vmem:[%s3366 + $0x160] sm:$0xf]
  %v3456 = vld [vmem:[%s3366 + $0x164] sm:$0xf]
  %v3457 = vld [vmem:[%s3366 + $0x168] sm:$0xf]
  %v3458 = vld [vmem:[%s3366 + $0x16c] sm:$0xf]
  %v3459 = vld [vmem:[%s3366 + $0x170] sm:$0xf]
  %v3460 = vld [vmem:[%s3366 + $0x174] sm:$0xf]
  %v3461 = vld [vmem:[%s3366 + $0x178] sm:$0xf]
  %v3462 = vld [vmem:[%s3366 + $0x17c] sm:$0xf]
  %v3463 = vld [vmem:[%s3366 + $0x180] sm:$0xf]
  %v3464 = vld [vmem:[%s3366 + $0x184] sm:$0xf]
  %v3465 = vld [vmem:[%s3366 + $0x188] sm:$0xf]
  %v3466 = vld [vmem:[%s3366 + $0x18c] sm:$0xf]
  %v3467 = vld [vmem:[%s3366 + $0x190] sm:$0xf]
  %v3468 = vld [vmem:[%s3366 + $0x194] sm:$0xf]
  %v3469 = vld [vmem:[%s3366 + $0x198] sm:$0xf]
  %v3470 = vld [vmem:[%s3366 + $0x19c] sm:$0xf]
  %v3471 = vld [vmem:[%s3366 + $0x1a0] sm:$0xf]
  %v3472 = vld [vmem:[%s3366 + $0x1a4] sm:$0xf]
  %v3473 = vld [vmem:[%s3366 + $0x1a8] sm:$0xf]
  %v3474 = vld [vmem:[%s3366 + $0x1ac] sm:$0xf]
  %v3475 = vld [vmem:[%s3366 + $0x1b0] sm:$0xf]
  %v3476 = vld [vmem:[%s3366 + $0x1b4] sm:$0xf]
  %v3477 = vld [vmem:[%s3366 + $0x1b8] sm:$0xf]
  %v3478 = vld [vmem:[%s3366 + $0x1bc] sm:$0xf]
  %v3479 = vld [vmem:[%s3366 + $0x1c0] sm:$0xf]
  %v3480 = vld [vmem:[%s3366 + $0x1c4] sm:$0xf]
  %v3481 = vld [vmem:[%s3366 + $0x1c8] sm:$0xf]
  %v3482 = vld [vmem:[%s3366 + $0x1cc] sm:$0xf]
  %v3483 = vld [vmem:[%s3366 + $0x1d0] sm:$0xf]
  %v3484 = vld [vmem:[%s3366 + $0x1d4] sm:$0xf]
  %v3485 = vld [vmem:[%s3366 + $0x1d8] sm:$0xf]
  %v3486 = vld [vmem:[%s3366 + $0x1dc] sm:$0xf]
  %v3487 = vld [vmem:[%s3366 + $0x1e0] sm:$0xf]
  %v3488 = vld [vmem:[%s3366 + $0x1e4] sm:$0xf]
  %v3489 = vld [vmem:[%s3366 + $0x1e8] sm:$0xf]
  %v3490 = vld [vmem:[%s3366 + $0x1ec] sm:$0xf]
  %v3491 = vld [vmem:[%s3366 + $0x1f0] sm:$0xf]
  %v3492 = vld [vmem:[%s3366 + $0x1f4] sm:$0xf]
  %v3493 = vld [vmem:[%s3366 + $0x1f8] sm:$0xf]
  %v3494 = vld [vmem:[%s3366 + $0x1fc] sm:$0xf]
  %v3495 = vld [vmem:[%s3366 + $0x200] sm:$0xf]
  %v3496 = vld [vmem:[%s3366 + $0x204] sm:$0xf]
  %v3497 = vld [vmem:[%s3366 + $0x208] sm:$0xf]
  %v3498 = vld [vmem:[%s3366 + $0x20c] sm:$0xf]
  %v3499 = vld [vmem:[%s3366 + $0x210] sm:$0xf]
  %v3500 = vld [vmem:[%s3366 + $0x214] sm:$0xf]
  %v3501 = vld [vmem:[%s3366 + $0x218] sm:$0xf]
  %v3502 = vld [vmem:[%s3366 + $0x21c] sm:$0xf]
  %v3503 = vld [vmem:[%s3366 + $0x220] sm:$0xf]
  %v3504 = vld [vmem:[%s3366 + $0x224] sm:$0xf]
  %v3505 = vld [vmem:[%s3366 + $0x228] sm:$0xf]
  %v3506 = vld [vmem:[%s3366 + $0x22c] sm:$0xf]
  %v3507 = vld [vmem:[%s3366 + $0x230] sm:$0xf]
  %v3508 = vld [vmem:[%s3366 + $0x234] sm:$0xf]
  %v3509 = vld [vmem:[%s3366 + $0x238] sm:$0xf]
  %v3510 = vld [vmem:[%s3366 + $0x23c] sm:$0xf]
  %v3511 = vld [vmem:[%s3366 + $0x240] sm:$0xf]
  %v3512 = vld [vmem:[%s3366 + $0x244] sm:$0xf]
  %v3513 = vld [vmem:[%s3366 + $0x248] sm:$0xf]
  %v3514 = vld [vmem:[%s3366 + $0x24c] sm:$0xf]
  %v3515 = vld [vmem:[%s3366 + $0x250] sm:$0xf]
  %v3516 = vld [vmem:[%s3366 + $0x254] sm:$0xf]
  %v3517 = vld [vmem:[%s3366 + $0x258] sm:$0xf]
  %v3518 = vld [vmem:[%s3366 + $0x25c] sm:$0xf]
  %v3519 = vld [vmem:[%s3366 + $0x260] sm:$0xf]
  %v3520 = vld [vmem:[%s3366 + $0x264] sm:$0xf]
  %v3521 = vld [vmem:[%s3366 + $0x268] sm:$0xf]
  %v3522 = vld [vmem:[%s3366 + $0x26c] sm:$0xf]
  %v3523 = vld [vmem:[%s3366 + $0x270] sm:$0xf]
  %v3524 = vld [vmem:[%s3366 + $0x274] sm:$0xf]
  %v3525 = vld [vmem:[%s3366 + $0x278] sm:$0xf]
  %v3526 = vld [vmem:[%s3366 + $0x27c] sm:$0xf]
  %v3527 = vld [vmem:[%s3366 + $0x280] sm:$0xf]
  %v3528 = vld [vmem:[%s3366 + $0x284] sm:$0xf]
  %v3529 = vld [vmem:[%s3366 + $0x288] sm:$0xf]
  %v3530 = vld [vmem:[%s3366 + $0x28c] sm:$0xf]
  %v3531 = vld [vmem:[%s3366 + $0x290] sm:$0xf]
  %v3532 = vld [vmem:[%s3366 + $0x294] sm:$0xf]
  %v3533 = vld [vmem:[%s3366 + $0x298] sm:$0xf]
  %v3534 = vld [vmem:[%s3366 + $0x29c] sm:$0xf]
  %v3535 = vld [vmem:[%s3366 + $0x2a0] sm:$0xf]
  %v3536 = vld [vmem:[%s3366 + $0x2a4] sm:$0xf]
  %v3537 = vld [vmem:[%s3366 + $0x2a8] sm:$0xf]
  %v3538 = vld [vmem:[%s3366 + $0x2ac] sm:$0xf]
  %v3539 = vld [vmem:[%s3366 + $0x2b0] sm:$0xf]
  %v3540 = vld [vmem:[%s3366 + $0x2b4] sm:$0xf]
  %v3541 = vld [vmem:[%s3366 + $0x2b8] sm:$0xf]
  %v3542 = vld [vmem:[%s3366 + $0x2bc] sm:$0xf]
  %v3543 = vld [vmem:[%s3366 + $0x2c0] sm:$0xf]
  %v3544 = vld [vmem:[%s3366 + $0x2c4] sm:$0xf]
  %v3545 = vld [vmem:[%s3366 + $0x2c8] sm:$0xf]
  %v3546 = vld [vmem:[%s3366 + $0x2cc] sm:$0xf]
  %v3547 = vld [vmem:[%s3366 + $0x2d0] sm:$0xf]
  %v3548 = vld [vmem:[%s3366 + $0x2d4] sm:$0xf]
  %v3549 = vld [vmem:[%s3366 + $0x2d8] sm:$0xf]
  %v3550 = vld [vmem:[%s3366 + $0x2dc] sm:$0xf]
  %v3551 = vld [vmem:[%s3366 + $0x2e0] sm:$0xf]
  %v3552 = vld [vmem:[%s3366 + $0x2e4] sm:$0xf]
  %v3553 = vld [vmem:[%s3366 + $0x2e8] sm:$0xf]
  %v3554 = vld [vmem:[%s3366 + $0x2ec] sm:$0xf]
  %v3555 = vld [vmem:[%s3366 + $0x2f0] sm:$0xf]
  %v3556 = vld [vmem:[%s3366 + $0x2f4] sm:$0xf]
  %v3557 = vld [vmem:[%s3366 + $0x2f8] sm:$0xf]
  %v3558 = vld [vmem:[%s3366 + $0x2fc] sm:$0xf]
  %v3559 = vld [vmem:[%s3366 + $0x300] sm:$0xf]
  %v3560 = vld [vmem:[%s3366 + $0x304] sm:$0xf]
  %v3561 = vld [vmem:[%s3366 + $0x308] sm:$0xf]
  %v3562 = vld [vmem:[%s3366 + $0x30c] sm:$0xf]
  %v3563 = vld [vmem:[%s3366 + $0x310] sm:$0xf]
  %v3564 = vld [vmem:[%s3366 + $0x314] sm:$0xf]
  %v3565 = vld [vmem:[%s3366 + $0x318] sm:$0xf]
  %v3566 = vld [vmem:[%s3366 + $0x31c] sm:$0xf]
  %v3567 = vld [vmem:[%s3366 + $0x320] sm:$0xf]
  %v3568 = vld [vmem:[%s3366 + $0x324] sm:$0xf]
  %v3569 = vld [vmem:[%s3366 + $0x328] sm:$0xf]
  %v3570 = vld [vmem:[%s3366 + $0x32c] sm:$0xf]
  %v3571 = vld [vmem:[%s3366 + $0x330] sm:$0xf]
  %v3572 = vld [vmem:[%s3366 + $0x334] sm:$0xf]
  %v3573 = vld [vmem:[%s3366 + $0x338] sm:$0xf]
  %v3574 = vld [vmem:[%s3366 + $0x33c] sm:$0xf]
  %v3575 = vld [vmem:[%s3366 + $0x340] sm:$0xf]
  %v3576 = vld [vmem:[%s3366 + $0x344] sm:$0xf]
  %v3577 = vld [vmem:[%s3366 + $0x348] sm:$0xf]
  %v3578 = vld [vmem:[%s3366 + $0x34c] sm:$0xf]
  %v3579 = vld [vmem:[%s3366 + $0x350] sm:$0xf]
  %v3580 = vld [vmem:[%s3366 + $0x354] sm:$0xf]
  %v3581 = vld [vmem:[%s3366 + $0x358] sm:$0xf]
  %v3582 = vld [vmem:[%s3366 + $0x35c] sm:$0xf]
  %v3583 = vld [vmem:[%s3366 + $0x360] sm:$0xf]
  %v3584 = vld [vmem:[%s3366 + $0x364] sm:$0xf]
  %v3585 = vld [vmem:[%s3366 + $0x368] sm:$0xf]
  %v3586 = vld [vmem:[%s3366 + $0x36c] sm:$0xf]
  %v3587 = vld [vmem:[%s3366 + $0x370] sm:$0xf]
  %v3588 = vld [vmem:[%s3366 + $0x374] sm:$0xf]
  %v3589 = vld [vmem:[%s3366 + $0x378] sm:$0xf]
  %v3590 = vld [vmem:[%s3366 + $0x37c] sm:$0xf]
  %v3591 = vld [vmem:[%s3366 + $0x380] sm:$0xf]
  %v3592 = vld [vmem:[%s3366 + $0x384] sm:$0xf]
  %v3593 = vld [vmem:[%s3366 + $0x388] sm:$0xf]
  %v3594 = vld [vmem:[%s3366 + $0x38c] sm:$0xf]
  %v3595 = vld [vmem:[%s3366 + $0x390] sm:$0xf]
  %v3596 = vld [vmem:[%s3366 + $0x394] sm:$0xf]
  %v3597 = vld [vmem:[%s3366 + $0x398] sm:$0xf]
  %v3598 = vld [vmem:[%s3366 + $0x39c] sm:$0xf]
  %v3599 = vld [vmem:[%s3366 + $0x3a0] sm:$0xf]
  %v3600 = vld [vmem:[%s3366 + $0x3a4] sm:$0xf]
  %v3601 = vld [vmem:[%s3366 + $0x3a8] sm:$0xf]
  %v3602 = vld [vmem:[%s3366 + $0x3ac] sm:$0xf]
  %v3603 = vld [vmem:[%s3366 + $0x3b0] sm:$0xf]
  %v3604 = vld [vmem:[%s3366 + $0x3b4] sm:$0xf]
  %v3605 = vld [vmem:[%s3366 + $0x3b8] sm:$0xf]
  %v3606 = vld [vmem:[%s3366 + $0x3bc] sm:$0xf]
  %v3607 = vld [vmem:[%s3366 + $0x3c0] sm:$0xf]
  %v3608 = vld [vmem:[%s3366 + $0x3c4] sm:$0xf]
  %v3609 = vld [vmem:[%s3366 + $0x3c8] sm:$0xf]
  %v3610 = vld [vmem:[%s3366 + $0x3cc] sm:$0xf]
  %v3611 = vld [vmem:[%s3366 + $0x3d0] sm:$0xf]
  %v3612 = vld [vmem:[%s3366 + $0x3d4] sm:$0xf]
  %v3613 = vld [vmem:[%s3366 + $0x3d8] sm:$0xf]
  %v3614 = vld [vmem:[%s3366 + $0x3dc] sm:$0xf]
  %v3615 = vld [vmem:[%s3366 + $0x3e0] sm:$0xf]
  %v3616 = vld [vmem:[%s3366 + $0x3e4] sm:$0xf]
  %v3617 = vld [vmem:[%s3366 + $0x3e8] sm:$0xf]
  %v3618 = vld [vmem:[%s3366 + $0x3ec] sm:$0xf]
  %v3619 = vld [vmem:[%s3366 + $0x3f0] sm:$0xf]
  %v3620 = vld [vmem:[%s3366 + $0x3f4] sm:$0xf]
  %v3621 = vld [vmem:[%s3366 + $0x3f8] sm:$0xf]
  %v3622 = vld [vmem:[%s3366 + $0x3fc] sm:$0xf]
  %v3623 = vlaneseq
  %v3624 = vshrl.u32 %v3623, 7
  %v3625 = vsub.s32 3, %v3624
  %v3626 = vrot.slane %v2426, %v3625
  %v3883 = vunpack.c.l.b16 %v3367
  %v3884 = vunpack.c.l.b16 %v3368
  %v3885 = vunpack.c.l.b16 %v3369
  %v3886 = vunpack.c.l.b16 %v3370
  %v3887 = vunpack.c.l.b16 %v3371
  %v3888 = vunpack.c.l.b16 %v3372
  %v3889 = vunpack.c.l.b16 %v3373
  %v3890 = vunpack.c.l.b16 %v3374
  %v3891 = vunpack.c.l.b16 %v3375
  %v3892 = vunpack.c.l.b16 %v3376
  %v3893 = vunpack.c.l.b16 %v3377
  %v3894 = vunpack.c.l.b16 %v3378
  %v3895 = vunpack.c.l.b16 %v3379
  %v3896 = vunpack.c.l.b16 %v3380
  %v3897 = vunpack.c.l.b16 %v3381
  %v3898 = vunpack.c.l.b16 %v3382
  %v3899 = vunpack.c.l.b16 %v3383
  %v3900 = vunpack.c.l.b16 %v3384
  %v3901 = vunpack.c.l.b16 %v3385
  %v3902 = vunpack.c.l.b16 %v3386
  %v3903 = vunpack.c.l.b16 %v3387
  %v3904 = vunpack.c.l.b16 %v3388
  %v3905 = vunpack.c.l.b16 %v3389
  %v3906 = vunpack.c.l.b16 %v3390
  %v3907 = vunpack.c.l.b16 %v3391
  %v3908 = vunpack.c.l.b16 %v3392
  %v3909 = vunpack.c.l.b16 %v3393
  %v3910 = vunpack.c.l.b16 %v3394
  %v3911 = vunpack.c.l.b16 %v3395
  %v3912 = vunpack.c.l.b16 %v3396
  %v3913 = vunpack.c.l.b16 %v3397
  %v3914 = vunpack.c.l.b16 %v3398
  %v3915 = vunpack.c.l.b16 %v3399
  %v3916 = vunpack.c.l.b16 %v3400
  %v3917 = vunpack.c.l.b16 %v3401
  %v3918 = vunpack.c.l.b16 %v3402
  %v3919 = vunpack.c.l.b16 %v3403
  %v3920 = vunpack.c.l.b16 %v3404
  %v3921 = vunpack.c.l.b16 %v3405
  %v3922 = vunpack.c.l.b16 %v3406
  %v3923 = vunpack.c.l.b16 %v3407
  %v3924 = vunpack.c.l.b16 %v3408
  %v3925 = vunpack.c.l.b16 %v3409
  %v3926 = vunpack.c.l.b16 %v3410
  %v3927 = vunpack.c.l.b16 %v3411
  %v3928 = vunpack.c.l.b16 %v3412
  %v3929 = vunpack.c.l.b16 %v3413
  %v3930 = vunpack.c.l.b16 %v3414
  %v3931 = vunpack.c.l.b16 %v3415
  %v3932 = vunpack.c.l.b16 %v3416
  %v3933 = vunpack.c.l.b16 %v3417
  %v3934 = vunpack.c.l.b16 %v3418
  %v3935 = vunpack.c.l.b16 %v3419
  %v3936 = vunpack.c.l.b16 %v3420
  %v3937 = vunpack.c.l.b16 %v3421
  %v3938 = vunpack.c.l.b16 %v3422
  %v3939 = vunpack.c.l.b16 %v3423
  %v3940 = vunpack.c.l.b16 %v3424
  %v3941 = vunpack.c.l.b16 %v3425
  %v3942 = vunpack.c.l.b16 %v3426
  %v3943 = vunpack.c.l.b16 %v3427
  %v3944 = vunpack.c.l.b16 %v3428
  %v3945 = vunpack.c.l.b16 %v3429
  %v3946 = vunpack.c.l.b16 %v3430
  %v3947 = vunpack.c.l.b16 %v3431
  %v3948 = vunpack.c.l.b16 %v3432
  %v3949 = vunpack.c.l.b16 %v3433
  %v3950 = vunpack.c.l.b16 %v3434
  %v3951 = vunpack.c.l.b16 %v3435
  %v3952 = vunpack.c.l.b16 %v3436
  %v3953 = vunpack.c.l.b16 %v3437
  %v3954 = vunpack.c.l.b16 %v3438
  %v3955 = vunpack.c.l.b16 %v3439
  %v3956 = vunpack.c.l.b16 %v3440
  %v3957 = vunpack.c.l.b16 %v3441
  %v3958 = vunpack.c.l.b16 %v3442
  %v3959 = vunpack.c.l.b16 %v3443
  %v3960 = vunpack.c.l.b16 %v3444
  %v3961 = vunpack.c.l.b16 %v3445
  %v3962 = vunpack.c.l.b16 %v3446
  %v3963 = vunpack.c.l.b16 %v3447
  %v3964 = vunpack.c.l.b16 %v3448
  %v3965 = vunpack.c.l.b16 %v3449
  %v3966 = vunpack.c.l.b16 %v3450
  %v3967 = vunpack.c.l.b16 %v3451
  %v3968 = vunpack.c.l.b16 %v3452
  %v3969 = vunpack.c.l.b16 %v3453
  %v3970 = vunpack.c.l.b16 %v3454
  %v3971 = vunpack.c.l.b16 %v3455
  %v3972 = vunpack.c.l.b16 %v3456
  %v3973 = vunpack.c.l.b16 %v3457
  %v3974 = vunpack.c.l.b16 %v3458
  %v3975 = vunpack.c.l.b16 %v3459
  %v3976 = vunpack.c.l.b16 %v3460
  %v3977 = vunpack.c.l.b16 %v3461
  %v3978 = vunpack.c.l.b16 %v3462
  %v3979 = vunpack.c.l.b16 %v3463
  %v3980 = vunpack.c.l.b16 %v3464
  %v3981 = vunpack.c.l.b16 %v3465
  %v3982 = vunpack.c.l.b16 %v3466
  %v3983 = vunpack.c.l.b16 %v3467
  %v3984 = vunpack.c.l.b16 %v3468
  %v3985 = vunpack.c.l.b16 %v3469
  %v3986 = vunpack.c.l.b16 %v3470
  %v3987 = vunpack.c.l.b16 %v3471
  %v3988 = vunpack.c.l.b16 %v3472
  %v3989 = vunpack.c.l.b16 %v3473
  %v3990 = vunpack.c.l.b16 %v3474
  %v3991 = vunpack.c.l.b16 %v3475
  %v3992 = vunpack.c.l.b16 %v3476
  %v3993 = vunpack.c.l.b16 %v3477
  %v3994 = vunpack.c.l.b16 %v3478
  %v3995 = vunpack.c.l.b16 %v3479
  %v3996 = vunpack.c.l.b16 %v3480
  %v3997 = vunpack.c.l.b16 %v3481
  %v3998 = vunpack.c.l.b16 %v3482
  %v3999 = vunpack.c.l.b16 %v3483
  %v4000 = vunpack.c.l.b16 %v3484
  %v4001 = vunpack.c.l.b16 %v3485
  %v4002 = vunpack.c.l.b16 %v3486
  %v4003 = vunpack.c.l.b16 %v3487
  %v4004 = vunpack.c.l.b16 %v3488
  %v4005 = vunpack.c.l.b16 %v3489
  %v4006 = vunpack.c.l.b16 %v3490
  %v4007 = vunpack.c.l.b16 %v3491
  %v4008 = vunpack.c.l.b16 %v3492
  %v4009 = vunpack.c.l.b16 %v3493
  %v4010 = vunpack.c.l.b16 %v3494
  %v4011 = vunpack.c.l.b16 %v3495
  %v4012 = vunpack.c.l.b16 %v3496
  %v4013 = vunpack.c.l.b16 %v3497
  %v4014 = vunpack.c.l.b16 %v3498
  %v4015 = vunpack.c.l.b16 %v3499
  %v4016 = vunpack.c.l.b16 %v3500
  %v4017 = vunpack.c.l.b16 %v3501
  %v4018 = vunpack.c.l.b16 %v3502
  %v4019 = vunpack.c.l.b16 %v3503
  %v4020 = vunpack.c.l.b16 %v3504
  %v4021 = vunpack.c.l.b16 %v3505
  %v4022 = vunpack.c.l.b16 %v3506
  %v4023 = vunpack.c.l.b16 %v3507
  %v4024 = vunpack.c.l.b16 %v3508
  %v4025 = vunpack.c.l.b16 %v3509
  %v4026 = vunpack.c.l.b16 %v3510
  %v4027 = vunpack.c.l.b16 %v3511
  %v4028 = vunpack.c.l.b16 %v3512
  %v4029 = vunpack.c.l.b16 %v3513
  %v4030 = vunpack.c.l.b16 %v3514
  %v4031 = vunpack.c.l.b16 %v3515
  %v4032 = vunpack.c.l.b16 %v3516
  %v4033 = vunpack.c.l.b16 %v3517
  %v4034 = vunpack.c.l.b16 %v3518
  %v4035 = vunpack.c.l.b16 %v3519
  %v4036 = vunpack.c.l.b16 %v3520
  %v4037 = vunpack.c.l.b16 %v3521
  %v4038 = vunpack.c.l.b16 %v3522
  %v4039 = vunpack.c.l.b16 %v3523
  %v4040 = vunpack.c.l.b16 %v3524
  %v4041 = vunpack.c.l.b16 %v3525
  %v4042 = vunpack.c.l.b16 %v3526
  %v4043 = vunpack.c.l.b16 %v3527
  %v4044 = vunpack.c.l.b16 %v3528
  %v4045 = vunpack.c.l.b16 %v3529
  %v4046 = vunpack.c.l.b16 %v3530
  %v4047 = vunpack.c.l.b16 %v3531
  %v4048 = vunpack.c.l.b16 %v3532
  %v4049 = vunpack.c.l.b16 %v3533
  %v4050 = vunpack.c.l.b16 %v3534
  %v4051 = vunpack.c.l.b16 %v3535
  %v4052 = vunpack.c.l.b16 %v3536
  %v4053 = vunpack.c.l.b16 %v3537
  %v4054 = vunpack.c.l.b16 %v3538
  %v4055 = vunpack.c.l.b16 %v3539
  %v4056 = vunpack.c.l.b16 %v3540
  %v4057 = vunpack.c.l.b16 %v3541
  %v4058 = vunpack.c.l.b16 %v3542
  %v4059 = vunpack.c.l.b16 %v3543
  %v4060 = vunpack.c.l.b16 %v3544
  %v4061 = vunpack.c.l.b16 %v3545
  %v4062 = vunpack.c.l.b16 %v3546
  %v4063 = vunpack.c.l.b16 %v3547
  %v4064 = vunpack.c.l.b16 %v3548
  %v4065 = vunpack.c.l.b16 %v3549
  %v4066 = vunpack.c.l.b16 %v3550
  %v4067 = vunpack.c.l.b16 %v3551
  %v4068 = vunpack.c.l.b16 %v3552
  %v4069 = vunpack.c.l.b16 %v3553
  %v4070 = vunpack.c.l.b16 %v3554
  %v4071 = vunpack.c.l.b16 %v3555
  %v4072 = vunpack.c.l.b16 %v3556
  %v4073 = vunpack.c.l.b16 %v3557
  %v4074 = vunpack.c.l.b16 %v3558
  %v4075 = vunpack.c.l.b16 %v3559
  %v4076 = vunpack.c.l.b16 %v3560
  %v4077 = vunpack.c.l.b16 %v3561
  %v4078 = vunpack.c.l.b16 %v3562
  %v4079 = vunpack.c.l.b16 %v3563
  %v4080 = vunpack.c.l.b16 %v3564
  %v4081 = vunpack.c.l.b16 %v3565
  %v4082 = vunpack.c.l.b16 %v3566
  %v4083 = vunpack.c.l.b16 %v3567
  %v4084 = vunpack.c.l.b16 %v3568
  %v4085 = vunpack.c.l.b16 %v3569
  %v4086 = vunpack.c.l.b16 %v3570
  %v4087 = vunpack.c.l.b16 %v3571
  %v4088 = vunpack.c.l.b16 %v3572
  %v4089 = vunpack.c.l.b16 %v3573
  %v4090 = vunpack.c.l.b16 %v3574
  %v4091 = vunpack.c.l.b16 %v3575
  %v4092 = vunpack.c.l.b16 %v3576
  %v4093 = vunpack.c.l.b16 %v3577
  %v4094 = vunpack.c.l.b16 %v3578
  %v4095 = vunpack.c.l.b16 %v3579
  %v4096 = vunpack.c.l.b16 %v3580
  %v4097 = vunpack.c.l.b16 %v3581
  %v4098 = vunpack.c.l.b16 %v3582
  %v4099 = vunpack.c.l.b16 %v3583
  %v4100 = vunpack.c.l.b16 %v3584
  %v4101 = vunpack.c.l.b16 %v3585
  %v4102 = vunpack.c.l.b16 %v3586
  %v4103 = vunpack.c.l.b16 %v3587
  %v4104 = vunpack.c.l.b16 %v3588
  %v4105 = vunpack.c.l.b16 %v3589
  %v4106 = vunpack.c.l.b16 %v3590
  %v4107 = vunpack.c.l.b16 %v3591
  %v4108 = vunpack.c.l.b16 %v3592
  %v4109 = vunpack.c.l.b16 %v3593
  %v4110 = vunpack.c.l.b16 %v3594
  %v4111 = vunpack.c.l.b16 %v3595
  %v4112 = vunpack.c.l.b16 %v3596
  %v4113 = vunpack.c.l.b16 %v3597
  %v4114 = vunpack.c.l.b16 %v3598
  %v4115 = vunpack.c.l.b16 %v3599
  %v4116 = vunpack.c.l.b16 %v3600
  %v4117 = vunpack.c.l.b16 %v3601
  %v4118 = vunpack.c.l.b16 %v3602
  %v4119 = vunpack.c.l.b16 %v3603
  %v4120 = vunpack.c.l.b16 %v3604
  %v4121 = vunpack.c.l.b16 %v3605
  %v4122 = vunpack.c.l.b16 %v3606
  %v4123 = vunpack.c.l.b16 %v3607
  %v4124 = vunpack.c.l.b16 %v3608
  %v4125 = vunpack.c.l.b16 %v3609
  %v4126 = vunpack.c.l.b16 %v3610
  %v4127 = vunpack.c.l.b16 %v3611
  %v4128 = vunpack.c.l.b16 %v3612
  %v4129 = vunpack.c.l.b16 %v3613
  %v4130 = vunpack.c.l.b16 %v3614
  %v4131 = vunpack.c.l.b16 %v3615
  %v4132 = vunpack.c.l.b16 %v3616
  %v4133 = vunpack.c.l.b16 %v3617
  %v4134 = vunpack.c.l.b16 %v3618
  %v4135 = vunpack.c.l.b16 %v3619
  %v4136 = vunpack.c.l.b16 %v3620
  %v4137 = vunpack.c.l.b16 %v3621
  %v4138 = vunpack.c.l.b16 %v3622
  %v4139 = vpack.c.b16 %v3884, %v3883
  %v4140 = vpack.c.b16 %v3886, %v3885
  %v4141 = vpack.c.b16 %v3888, %v3887
  %v4142 = vpack.c.b16 %v3890, %v3889
  %v4143 = vpack.c.b16 %v3892, %v3891
  %v4144 = vpack.c.b16 %v3894, %v3893
  %v4145 = vpack.c.b16 %v3896, %v3895
  %v4146 = vpack.c.b16 %v3898, %v3897
  %v4147 = vpack.c.b16 %v3900, %v3899
  %v4148 = vpack.c.b16 %v3902, %v3901
  %v4149 = vpack.c.b16 %v3904, %v3903
  %v4150 = vpack.c.b16 %v3906, %v3905
  %v4151 = vpack.c.b16 %v3908, %v3907
  %v4152 = vpack.c.b16 %v3910, %v3909
  %v4153 = vpack.c.b16 %v3912, %v3911
  %v4154 = vpack.c.b16 %v3914, %v3913
  %v4155 = vpack.c.b16 %v3916, %v3915
  %v4156 = vpack.c.b16 %v3918, %v3917
  %v4157 = vpack.c.b16 %v3920, %v3919
  %v4158 = vpack.c.b16 %v3922, %v3921
  %v4159 = vpack.c.b16 %v3924, %v3923
  %v4160 = vpack.c.b16 %v3926, %v3925
  %v4161 = vpack.c.b16 %v3928, %v3927
  %v4162 = vpack.c.b16 %v3930, %v3929
  %v4163 = vpack.c.b16 %v3932, %v3931
  %v4164 = vpack.c.b16 %v3934, %v3933
  %v4165 = vpack.c.b16 %v3936, %v3935
  %v4166 = vpack.c.b16 %v3938, %v3937
  %v4167 = vpack.c.b16 %v3940, %v3939
  %v4168 = vpack.c.b16 %v3942, %v3941
  %v4169 = vpack.c.b16 %v3944, %v3943
  %v4170 = vpack.c.b16 %v3946, %v3945
  %v4171 = vpack.c.b16 %v3948, %v3947
  %v4172 = vpack.c.b16 %v3950, %v3949
  %v4173 = vpack.c.b16 %v3952, %v3951
  %v4174 = vpack.c.b16 %v3954, %v3953
  %v4175 = vpack.c.b16 %v3956, %v3955
  %v4176 = vpack.c.b16 %v3958, %v3957
  %v4177 = vpack.c.b16 %v3960, %v3959
  %v4178 = vpack.c.b16 %v3962, %v3961
  %v4179 = vpack.c.b16 %v3964, %v3963
  %v4180 = vpack.c.b16 %v3966, %v3965
  %v4181 = vpack.c.b16 %v3968, %v3967
  %v4182 = vpack.c.b16 %v3970, %v3969
  %v4183 = vpack.c.b16 %v3972, %v3971
  %v4184 = vpack.c.b16 %v3974, %v3973
  %v4185 = vpack.c.b16 %v3976, %v3975
  %v4186 = vpack.c.b16 %v3978, %v3977
  %v4187 = vpack.c.b16 %v3980, %v3979
  %v4188 = vpack.c.b16 %v3982, %v3981
  %v4189 = vpack.c.b16 %v3984, %v3983
  %v4190 = vpack.c.b16 %v3986, %v3985
  %v4191 = vpack.c.b16 %v3988, %v3987
  %v4192 = vpack.c.b16 %v3990, %v3989
  %v4193 = vpack.c.b16 %v3992, %v3991
  %v4194 = vpack.c.b16 %v3994, %v3993
  %v4195 = vpack.c.b16 %v3996, %v3995
  %v4196 = vpack.c.b16 %v3998, %v3997
  %v4197 = vpack.c.b16 %v4000, %v3999
  %v4198 = vpack.c.b16 %v4002, %v4001
  %v4199 = vpack.c.b16 %v4004, %v4003
  %v4200 = vpack.c.b16 %v4006, %v4005
  %v4201 = vpack.c.b16 %v4008, %v4007
  %v4202 = vpack.c.b16 %v4010, %v4009
  %v4203 = vpack.c.b16 %v4012, %v4011
  %v4204 = vpack.c.b16 %v4014, %v4013
  %v4205 = vpack.c.b16 %v4016, %v4015
  %v4206 = vpack.c.b16 %v4018, %v4017
  %v4207 = vpack.c.b16 %v4020, %v4019
  %v4208 = vpack.c.b16 %v4022, %v4021
  %v4209 = vpack.c.b16 %v4024, %v4023
  %v4210 = vpack.c.b16 %v4026, %v4025
  %v4211 = vpack.c.b16 %v4028, %v4027
  %v4212 = vpack.c.b16 %v4030, %v4029
  %v4213 = vpack.c.b16 %v4032, %v4031
  %v4214 = vpack.c.b16 %v4034, %v4033
  %v4215 = vpack.c.b16 %v4036, %v4035
  %v4216 = vpack.c.b16 %v4038, %v4037
  %v4217 = vpack.c.b16 %v4040, %v4039
  %v4218 = vpack.c.b16 %v4042, %v4041
  %v4219 = vpack.c.b16 %v4044, %v4043
  %v4220 = vpack.c.b16 %v4046, %v4045
  %v4221 = vpack.c.b16 %v4048, %v4047
  %v4222 = vpack.c.b16 %v4050, %v4049
  %v4223 = vpack.c.b16 %v4052, %v4051
  %v4224 = vpack.c.b16 %v4054, %v4053
  %v4225 = vpack.c.b16 %v4056, %v4055
  %v4226 = vpack.c.b16 %v4058, %v4057
  %v4227 = vpack.c.b16 %v4060, %v4059
  %v4228 = vpack.c.b16 %v4062, %v4061
  %v4229 = vpack.c.b16 %v4064, %v4063
  %v4230 = vpack.c.b16 %v4066, %v4065
  %v4231 = vpack.c.b16 %v4068, %v4067
  %v4232 = vpack.c.b16 %v4070, %v4069
  %v4233 = vpack.c.b16 %v4072, %v4071
  %v4234 = vpack.c.b16 %v4074, %v4073
  %v4235 = vpack.c.b16 %v4076, %v4075
  %v4236 = vpack.c.b16 %v4078, %v4077
  %v4237 = vpack.c.b16 %v4080, %v4079
  %v4238 = vpack.c.b16 %v4082, %v4081
  %v4239 = vpack.c.b16 %v4084, %v4083
  %v4240 = vpack.c.b16 %v4086, %v4085
  %v4241 = vpack.c.b16 %v4088, %v4087
  %v4242 = vpack.c.b16 %v4090, %v4089
  %v4243 = vpack.c.b16 %v4092, %v4091
  %v4244 = vpack.c.b16 %v4094, %v4093
  %v4245 = vpack.c.b16 %v4096, %v4095
  %v4246 = vpack.c.b16 %v4098, %v4097
  %v4247 = vpack.c.b16 %v4100, %v4099
  %v4248 = vpack.c.b16 %v4102, %v4101
  %v4249 = vpack.c.b16 %v4104, %v4103
  %v4250 = vpack.c.b16 %v4106, %v4105
  %v4251 = vpack.c.b16 %v4108, %v4107
  %v4252 = vpack.c.b16 %v4110, %v4109
  %v4253 = vpack.c.b16 %v4112, %v4111
  %v4254 = vpack.c.b16 %v4114, %v4113
  %v4255 = vpack.c.b16 %v4116, %v4115
  %v4256 = vpack.c.b16 %v4118, %v4117
  %v4257 = vpack.c.b16 %v4120, %v4119
  %v4258 = vpack.c.b16 %v4122, %v4121
  %v4259 = vpack.c.b16 %v4124, %v4123
  %v4260 = vpack.c.b16 %v4126, %v4125
  %v4261 = vpack.c.b16 %v4128, %v4127
  %v4262 = vpack.c.b16 %v4130, %v4129
  %v4263 = vpack.c.b16 %v4132, %v4131
  %v4264 = vpack.c.b16 %v4134, %v4133
  %v4265 = vpack.c.b16 %v4136, %v4135
  %v4266 = vpack.c.b16 %v4138, %v4137
  %4395 = vmatprep.subr.bf16.mxu0 0
  %4396 = vmatpush1.bf16.msra.mxu0 %v4139
  %4397 = vmatprep.subr.bf16.mxu0 0
  %4398 = vmatpush1.bf16.msra.mxu0 %v4140
  %4399 = vmatprep.subr.bf16.mxu0 0
  %4400 = vmatpush1.bf16.msra.mxu0 %v4141
  %4401 = vmatprep.subr.bf16.mxu0 0
  %4402 = vmatpush1.bf16.msra.mxu0 %v4142
  %4403 = vmatprep.subr.bf16.mxu0 0
  %4404 = vmatpush1.bf16.msra.mxu0 %v4143
  %4405 = vmatprep.subr.bf16.mxu0 0
  %4406 = vmatpush1.bf16.msra.mxu0 %v4144
  %4407 = vmatprep.subr.bf16.mxu0 0
  %4408 = vmatpush1.bf16.msra.mxu0 %v4145
  %4409 = vmatprep.subr.bf16.mxu0 0
  %4410 = vmatpush1.bf16.msra.mxu0 %v4146
  %4411 = vmatprep.subr.bf16.mxu0 0
  %4412 = vmatpush1.bf16.msra.mxu0 %v4147
  %4413 = vmatprep.subr.bf16.mxu0 0
  %4414 = vmatpush1.bf16.msra.mxu0 %v4148
  %4415 = vmatprep.subr.bf16.mxu0 0
  %4416 = vmatpush1.bf16.msra.mxu0 %v4149
  %4417 = vmatprep.subr.bf16.mxu0 0
  %4418 = vmatpush1.bf16.msra.mxu0 %v4150
  %4419 = vmatprep.subr.bf16.mxu0 0
  %4420 = vmatpush1.bf16.msra.mxu0 %v4151
  %4421 = vmatprep.subr.bf16.mxu0 0
  %4422 = vmatpush1.bf16.msra.mxu0 %v4152
  %4423 = vmatprep.subr.bf16.mxu0 0
  %4424 = vmatpush1.bf16.msra.mxu0 %v4153
  %4425 = vmatprep.subr.bf16.mxu0 0
  %4426 = vmatpush1.bf16.msra.mxu0 %v4154
  %4427 = vmatprep.mubr.bf16.mxu0 %v3351
  %4428 = vmatmul.mubr.bf16.gmra.mrb[0].mxu0 %v3350
  %v4429 = vpop.f32.mrb[0].mxu0
  %v4430 = vadd.f32 %v3626, %v4429
  %v4431 = vpop.f32.mrb[0].mxu0
  %v4432 = vpop.f32.mrb[0].mxu0
  %v4433 = vpop.f32.mrb[0].mxu0
  %4434 = vdwg.mxu0
  %4435 = vmatprep.subr.bf16.mxu0 0
  %4436 = vmatpush1.bf16.msra.mxu0 %v4155
  %4437 = vmatprep.subr.bf16.mxu0 0
  %4438 = vmatpush1.bf16.msra.mxu0 %v4156
  %4439 = vmatprep.subr.bf16.mxu0 0
  %4440 = vmatpush1.bf16.msra.mxu0 %v4157
  %4441 = vmatprep.subr.bf16.mxu0 0
  %4442 = vmatpush1.bf16.msra.mxu0 %v4158
  %4443 = vmatprep.subr.bf16.mxu0 0
  %4444 = vmatpush1.bf16.msra.mxu0 %v4159
  %4445 = vmatprep.subr.bf16.mxu0 0
  %4446 = vmatpush1.bf16.msra.mxu0 %v4160
  %4447 = vmatprep.subr.bf16.mxu0 0
  %4448 = vmatpush1.bf16.msra.mxu0 %v4161
  %4449 = vmatprep.subr.bf16.mxu0 0
  %4450 = vmatpush1.bf16.msra.mxu0 %v4162
  %4451 = vmatprep.subr.bf16.mxu0 0
  %4452 = vmatpush1.bf16.msra.mxu0 %v4163
  %4453 = vmatprep.subr.bf16.mxu0 0
  %4454 = vmatpush1.bf16.msra.mxu0 %v4164
  %4455 = vmatprep.subr.bf16.mxu0 0
  %4456 = vmatpush1.bf16.msra.mxu0 %v4165
  %4457 = vmatprep.subr.bf16.mxu0 0
  %4458 = vmatpush1.bf16.msra.mxu0 %v4166
  %4459 = vmatprep.subr.bf16.mxu0 0
  %4460 = vmatpush1.bf16.msra.mxu0 %v4167
  %4461 = vmatprep.subr.bf16.mxu0 0
  %4462 = vmatpush1.bf16.msra.mxu0 %v4168
  %4463 = vmatprep.subr.bf16.mxu0 0
  %4464 = vmatpush1.bf16.msra.mxu0 %v4169
  %4465 = vmatprep.subr.bf16.mxu0 0
  %4466 = vmatpush1.bf16.msra.mxu0 %v4170
  %4467 = vmatprep.mubr.bf16.mxu0 %v3353
  %4468 = vmatmul.mubr.bf16.gmra.mrb[0].mxu0 %v3352
  %v4469 = vpop.f32.mrb[0].mxu0
  %v4470 = vadd.f32 %v4430, %v4469
  %v4471 = vpop.f32.mrb[0].mxu0
  %v4472 = vpop.f32.mrb[0].mxu0
  %v4473 = vpop.f32.mrb[0].mxu0
  %4474 = vdwg.mxu0
  %4475 = vmatprep.subr.bf16.mxu0 0
  %4476 = vmatpush1.bf16.msra.mxu0 %v4171
  %4477 = vmatprep.subr.bf16.mxu0 0
  %4478 = vmatpush1.bf16.msra.mxu0 %v4172
  %4479 = vmatprep.subr.bf16.mxu0 0
  %4480 = vmatpush1.bf16.msra.mxu0 %v4173
  %4481 = vmatprep.subr.bf16.mxu0 0
  %4482 = vmatpush1.bf16.msra.mxu0 %v4174
  %4483 = vmatprep.subr.bf16.mxu0 0
  %4484 = vmatpush1.bf16.msra.mxu0 %v4175
  %4485 = vmatprep.subr.bf16.mxu0 0
  %4486 = vmatpush1.bf16.msra.mxu0 %v4176
  %4487 = vmatprep.subr.bf16.mxu0 0
  %4488 = vmatpush1.bf16.msra.mxu0 %v4177
  %4489 = vmatprep.subr.bf16.mxu0 0
  %4490 = vmatpush1.bf16.msra.mxu0 %v4178
  %4491 = vmatprep.subr.bf16.mxu0 0
  %4492 = vmatpush1.bf16.msra.mxu0 %v4179
  %4493 = vmatprep.subr.bf16.mxu0 0
  %4494 = vmatpush1.bf16.msra.mxu0 %v4180
  %4495 = vmatprep.subr.bf16.mxu0 0
  %4496 = vmatpush1.bf16.msra.mxu0 %v4181
  %4497 = vmatprep.subr.bf16.mxu0 0
  %4498 = vmatpush1.bf16.msra.mxu0 %v4182
  %4499 = vmatprep.subr.bf16.mxu0 0
  %4500 = vmatpush1.bf16.msra.mxu0 %v4183
  %4501 = vmatprep.subr.bf16.mxu0 0
  %4502 = vmatpush1.bf16.msra.mxu0 %v4184
  %4503 = vmatprep.subr.bf16.mxu0 0
  %4504 = vmatpush1.bf16.msra.mxu0 %v4185
  %4505 = vmatprep.subr.bf16.mxu0 0
  %4506 = vmatpush1.bf16.msra.mxu0 %v4186
  %4507 = vmatprep.mubr.bf16.mxu0 %v3355
  %4508 = vmatmul.mubr.bf16.gmra.mrb[0].mxu0 %v3354
  %v4509 = vpop.f32.mrb[0].mxu0
  %v4510 = vadd.f32 %v4470, %v4509
  %v4511 = vpop.f32.mrb[0].mxu0
  %v4512 = vpop.f32.mrb[0].mxu0
  %v4513 = vpop.f32.mrb[0].mxu0
  %4514 = vdwg.mxu0
  %4515 = vmatprep.subr.bf16.mxu0 0
  %4516 = vmatpush1.bf16.msra.mxu0 %v4187
  %4517 = vmatprep.subr.bf16.mxu0 0
  %4518 = vmatpush1.bf16.msra.mxu0 %v4188
  %4519 = vmatprep.subr.bf16.mxu0 0
  %4520 = vmatpush1.bf16.msra.mxu0 %v4189
  %4521 = vmatprep.subr.bf16.mxu0 0
  %4522 = vmatpush1.bf16.msra.mxu0 %v4190
  %4523 = vmatprep.subr.bf16.mxu0 0
  %4524 = vmatpush1.bf16.msra.mxu0 %v4191
  %4525 = vmatprep.subr.bf16.mxu0 0
  %4526 = vmatpush1.bf16.msra.mxu0 %v4192
  %4527 = vmatprep.subr.bf16.mxu0 0
  %4528 = vmatpush1.bf16.msra.mxu0 %v4193
  %4529 = vmatprep.subr.bf16.mxu0 0
  %4530 = vmatpush1.bf16.msra.mxu0 %v4194
  %4531 = vmatprep.subr.bf16.mxu0 0
  %4532 = vmatpush1.bf16.msra.mxu0 %v4195
  %4533 = vmatprep.subr.bf16.mxu0 0
  %4534 = vmatpush1.bf16.msra.mxu0 %v4196
  %4535 = vmatprep.subr.bf16.mxu0 0
  %4536 = vmatpush1.bf16.msra.mxu0 %v4197
  %4537 = vmatprep.subr.bf16.mxu0 0
  %4538 = vmatpush1.bf16.msra.mxu0 %v4198
  %4539 = vmatprep.subr.bf16.mxu0 0
  %4540 = vmatpush1.bf16.msra.mxu0 %v4199
  %4541 = vmatprep.subr.bf16.mxu0 0
  %4542 = vmatpush1.bf16.msra.mxu0 %v4200
  %4543 = vmatprep.subr.bf16.mxu0 0
  %4544 = vmatpush1.bf16.msra.mxu0 %v4201
  %4545 = vmatprep.subr.bf16.mxu0 0
  %4546 = vmatpush1.bf16.msra.mxu0 %v4202
  %4547 = vmatprep.mubr.bf16.mxu0 %v3357
  %4548 = vmatmul.mubr.bf16.gmra.mrb[0].mxu0 %v3356
  %v4549 = vpop.f32.mrb[0].mxu0
  %v4550 = vadd.f32 %v4510, %v4549
  %v4551 = vpop.f32.mrb[0].mxu0
  %v4552 = vpop.f32.mrb[0].mxu0
  %v4553 = vpop.f32.mrb[0].mxu0
  %4554 = vdwg.mxu0
  %4555 = vmatprep.subr.bf16.mxu0 0
  %4556 = vmatpush1.bf16.msra.mxu0 %v4203
  %4557 = vmatprep.subr.bf16.mxu0 0
  %4558 = vmatpush1.bf16.msra.mxu0 %v4204
  %4559 = vmatprep.subr.bf16.mxu0 0
  %4560 = vmatpush1.bf16.msra.mxu0 %v4205
  %4561 = vmatprep.subr.bf16.mxu0 0
  %4562 = vmatpush1.bf16.msra.mxu0 %v4206
  %4563 = vmatprep.subr.bf16.mxu0 0
  %4564 = vmatpush1.bf16.msra.mxu0 %v4207
  %4565 = vmatprep.subr.bf16.mxu0 0
  %4566 = vmatpush1.bf16.msra.mxu0 %v4208
  %4567 = vmatprep.subr.bf16.mxu0 0
  %4568 = vmatpush1.bf16.msra.mxu0 %v4209
  %4569 = vmatprep.subr.bf16.mxu0 0
  %4570 = vmatpush1.bf16.msra.mxu0 %v4210
  %4571 = vmatprep.subr.bf16.mxu0 0
  %4572 = vmatpush1.bf16.msra.mxu0 %v4211
  %4573 = vmatprep.subr.bf16.mxu0 0
  %4574 = vmatpush1.bf16.msra.mxu0 %v4212
  %4575 = vmatprep.subr.bf16.mxu0 0
  %4576 = vmatpush1.bf16.msra.mxu0 %v4213
  %4577 = vmatprep.subr.bf16.mxu0 0
  %4578 = vmatpush1.bf16.msra.mxu0 %v4214
  %4579 = vmatprep.subr.bf16.mxu0 0
  %4580 = vmatpush1.bf16.msra.mxu0 %v4215
  %4581 = vmatprep.subr.bf16.mxu0 0
  %4582 = vmatpush1.bf16.msra.mxu0 %v4216
  %4583 = vmatprep.subr.bf16.mxu0 0
  %4584 = vmatpush1.bf16.msra.mxu0 %v4217
  %4585 = vmatprep.subr.bf16.mxu0 0
  %4586 = vmatpush1.bf16.msra.mxu0 %v4218
  %4587 = vmatprep.mubr.bf16.mxu0 %v3359
  %4588 = vmatmul.mubr.bf16.gmra.mrb[0].mxu0 %v3358
  %v4589 = vpop.f32.mrb[0].mxu0
  %v4590 = vadd.f32 %v4550, %v4589
  %v4591 = vpop.f32.mrb[0].mxu0
  %v4592 = vpop.f32.mrb[0].mxu0
  %v4593 = vpop.f32.mrb[0].mxu0
  %4594 = vdwg.mxu0
  %4595 = vmatprep.subr.bf16.mxu0 0
  %4596 = vmatpush1.bf16.msra.mxu0 %v4219
  %4597 = vmatprep.subr.bf16.mxu0 0
  %4598 = vmatpush1.bf16.msra.mxu0 %v4220
  %4599 = vmatprep.subr.bf16.mxu0 0
  %4600 = vmatpush1.bf16.msra.mxu0 %v4221
  %4601 = vmatprep.subr.bf16.mxu0 0
  %4602 = vmatpush1.bf16.msra.mxu0 %v4222
  %4603 = vmatprep.subr.bf16.mxu0 0
  %4604 = vmatpush1.bf16.msra.mxu0 %v4223
  %4605 = vmatprep.subr.bf16.mxu0 0
  %4606 = vmatpush1.bf16.msra.mxu0 %v4224
  %4607 = vmatprep.subr.bf16.mxu0 0
  %4608 = vmatpush1.bf16.msra.mxu0 %v4225
  %4609 = vmatprep.subr.bf16.mxu0 0
  %4610 = vmatpush1.bf16.msra.mxu0 %v4226
  %4611 = vmatprep.subr.bf16.mxu0 0
  %4612 = vmatpush1.bf16.msra.mxu0 %v4227
  %4613 = vmatprep.subr.bf16.mxu0 0
  %4614 = vmatpush1.bf16.msra.mxu0 %v4228
  %4615 = vmatprep.subr.bf16.mxu0 0
  %4616 = vmatpush1.bf16.msra.mxu0 %v4229
  %4617 = vmatprep.subr.bf16.mxu0 0
  %4618 = vmatpush1.bf16.msra.mxu0 %v4230
  %4619 = vmatprep.subr.bf16.mxu0 0
  %4620 = vmatpush1.bf16.msra.mxu0 %v4231
  %4621 = vmatprep.subr.bf16.mxu0 0
  %4622 = vmatpush1.bf16.msra.mxu0 %v4232
  %4623 = vmatprep.subr.bf16.mxu0 0
  %4624 = vmatpush1.bf16.msra.mxu0 %v4233
  %4625 = vmatprep.subr.bf16.mxu0 0
  %4626 = vmatpush1.bf16.msra.mxu0 %v4234
  %4627 = vmatprep.mubr.bf16.mxu0 %v3361
  %4628 = vmatmul.mubr.bf16.gmra.mrb[0].mxu0 %v3360
  %v4629 = vpop.f32.mrb[0].mxu0
  %v4630 = vadd.f32 %v4590, %v4629
  %v4631 = vpop.f32.mrb[0].mxu0
  %v4632 = vpop.f32.mrb[0].mxu0
  %v4633 = vpop.f32.mrb[0].mxu0
  %4634 = vdwg.mxu0
  %4635 = vmatprep.subr.bf16.mxu0 0
  %4636 = vmatpush1.bf16.msra.mxu0 %v4235
  %4637 = vmatprep.subr.bf16.mxu0 0
  %4638 = vmatpush1.bf16.msra.mxu0 %v4236
  %4639 = vmatprep.subr.bf16.mxu0 0
  %4640 = vmatpush1.bf16.msra.mxu0 %v4237
  %4641 = vmatprep.subr.bf16.mxu0 0
  %4642 = vmatpush1.bf16.msra.mxu0 %v4238
  %4643 = vmatprep.subr.bf16.mxu0 0
  %4644 = vmatpush1.bf16.msra.mxu0 %v4239
  %4645 = vmatprep.subr.bf16.mxu0 0
  %4646 = vmatpush1.bf16.msra.mxu0 %v4240
  %4647 = vmatprep.subr.bf16.mxu0 0
  %4648 = vmatpush1.bf16.msra.mxu0 %v4241
  %4649 = vmatprep.subr.bf16.mxu0 0
  %4650 = vmatpush1.bf16.msra.mxu0 %v4242
  %4651 = vmatprep.subr.bf16.mxu0 0
  %4652 = vmatpush1.bf16.msra.mxu0 %v4243
  %4653 = vmatprep.subr.bf16.mxu0 0
  %4654 = vmatpush1.bf16.msra.mxu0 %v4244
  %4655 = vmatprep.subr.bf16.mxu0 0
  %4656 = vmatpush1.bf16.msra.mxu0 %v4245
  %4657 = vmatprep.subr.bf16.mxu0 0
  %4658 = vmatpush1.bf16.msra.mxu0 %v4246
  %4659 = vmatprep.subr.bf16.mxu0 0
  %4660 = vmatpush1.bf16.msra.mxu0 %v4247
  %4661 = vmatprep.subr.bf16.mxu0 0
  %4662 = vmatpush1.bf16.msra.mxu0 %v4248
  %4663 = vmatprep.subr.bf16.mxu0 0
  %4664 = vmatpush1.bf16.msra.mxu0 %v4249
  %4665 = vmatprep.subr.bf16.mxu0 0
  %4666 = vmatpush1.bf16.msra.mxu0 %v4250
  %4667 = vmatprep.mubr.bf16.mxu0 %v3363
  %4668 = vmatmul.mubr.bf16.gmra.mrb[0].mxu0 %v3362
  %v4669 = vpop.f32.mrb[0].mxu0
  %v4670 = vadd.f32 %v4630, %v4669
  %v4671 = vpop.f32.mrb[0].mxu0
  %v4672 = vpop.f32.mrb[0].mxu0
  %v4673 = vpop.f32.mrb[0].mxu0
  %4674 = vdwg.mxu0
  %4675 = vmatprep.subr.bf16.mxu0 0
  %4676 = vmatpush1.bf16.msra.mxu0 %v4251
  %4677 = vmatprep.subr.bf16.mxu0 0
  %4678 = vmatpush1.bf16.msra.mxu0 %v4252
  %4679 = vmatprep.subr.bf16.mxu0 0
  %4680 = vmatpush1.bf16.msra.mxu0 %v4253
  %4681 = vmatprep.subr.bf16.mxu0 0
  %4682 = vmatpush1.bf16.msra.mxu0 %v4254
  %4683 = vmatprep.subr.bf16.mxu0 0
  %4684 = vmatpush1.bf16.msra.mxu0 %v4255
  %4685 = vmatprep.subr.bf16.mxu0 0
  %4686 = vmatpush1.bf16.msra.mxu0 %v4256
  %4687 = vmatprep.subr.bf16.mxu0 0
  %4688 = vmatpush1.bf16.msra.mxu0 %v4257
  %4689 = vmatprep.subr.bf16.mxu0 0
  %4690 = vmatpush1.bf16.msra.mxu0 %v4258
  %4691 = vmatprep.subr.bf16.mxu0 0
  %4692 = vmatpush1.bf16.msra.mxu0 %v4259
  %4693 = vmatprep.subr.bf16.mxu0 0
  %4694 = vmatpush1.bf16.msra.mxu0 %v4260
  %4695 = vmatprep.subr.bf16.mxu0 0
  %4696 = vmatpush1.bf16.msra.mxu0 %v4261
  %4697 = vmatprep.subr.bf16.mxu0 0
  %4698 = vmatpush1.bf16.msra.mxu0 %v4262
  %4699 = vmatprep.subr.bf16.mxu0 0
  %4700 = vmatpush1.bf16.msra.mxu0 %v4263
  %4701 = vmatprep.subr.bf16.mxu0 0
  %4702 = vmatpush1.bf16.msra.mxu0 %v4264
  %4703 = vmatprep.subr.bf16.mxu0 0
  %4704 = vmatpush1.bf16.msra.mxu0 %v4265
  %4705 = vmatprep.subr.bf16.mxu0 0
  %4706 = vmatpush1.bf16.msra.mxu0 %v4266
  %4707 = vmatprep.mubr.bf16.mxu0 %v3365
  %4708 = vmatmul.mubr.bf16.gmra.mrb[0].mxu0 %v3364
  %v4709 = vpop.f32.mrb[0].mxu0
  %v4710 = vadd.f32 %v4670, %v4709
  %v4711 = vpop.f32.mrb[0].mxu0
  %v4712 = vpop.f32.mrb[0].mxu0
  %v4713 = vpop.f32.mrb[0].mxu0
  %4714 = vdwg.mxu0
  %v4715 = vadd.f32 %v2531, %v4710
  %v4716 = vsel %vm196, %v4715, 0.0
  %4717 = vadd.xlane.f32.xlu0 %v4716
  %v4718 = vpop.xlane.xlu0 %4717
  %v4719 = vmul.f32 %v4718, %v200
  %v4720 = vsub.f32 %v4715, %v4719
  %v4721 = vmul.f32 %v4720, %v4720
  %v4722 = vsel %vm196, %v4721, 0.0
  %4723 = vadd.xlane.f32.xlu0 %v4722
  %v4724 = vpop.xlane.xlu0 %4723
  %v4725 = vmul.f32 %v4724, %v200
  %v4726 = vadd.f32 %v4725, 1e-05
  %v4727 = vrsqrt.pop %v4726
  %v4728 = vmul.f32 %v4720, %v4727
  %v4729 = vlaneseq
  %v4730 = vshrl.u32 %v4729, 7
  %v4731 = vsub.s32 4, %v4730
  %v4732 = vrot.slane %v2426, %v4731
  %v4733 = vmul.f32 %v4728, %v4732
  %v4734 = vlaneseq
  %v4735 = vshrl.u32 %v4734, 7
  %v4736 = vsub.s32 5, %v4735
  %v4737 = vrot.slane %v2426, %v4736
  %v4738 = vadd.f32 %v4733, %v4737
  %s4739 = scalar_lea.vmem %s7, 16
  %v4740 = vld [vmem:[%s4739] sm:$0x3f]
  %v4741 = vpack.c.bf16 %v4738, %v4738
  %s4742 = scalar_lea.vmem %s3, 64
  %v4743 = vld [vmem:[%s4742] sm:$0xf]
  %v4744 = vld [vmem:[%s4742 + $0x4] sm:$0xf]
  %v4745 = vld [vmem:[%s4742 + $0x8] sm:$0xf]
  %v4746 = vld [vmem:[%s4742 + $0xc] sm:$0xf]
  %v4747 = vld [vmem:[%s4742 + $0x10] sm:$0xf]
  %v4748 = vld [vmem:[%s4742 + $0x14] sm:$0xf]
  %v4749 = vld [vmem:[%s4742 + $0x18] sm:$0xf]
  %v4750 = vld [vmem:[%s4742 + $0x1c] sm:$0xf]
  %v4751 = vlaneseq
  %v4752 = vshrl.u32 %v4751, 7
  %v4753 = vsub.s32 0, %v4752
  %v4754 = vrot.slane %v4740, %v4753
  %v4763 = vunpack.c.l.b16 %v4743
  %v4764 = vunpack.c.l.b16 %v4744
  %v4765 = vunpack.c.l.b16 %v4745
  %v4766 = vunpack.c.l.b16 %v4746
  %v4767 = vunpack.c.l.b16 %v4747
  %v4768 = vunpack.c.l.b16 %v4748
  %v4769 = vunpack.c.l.b16 %v4749
  %v4770 = vunpack.c.l.b16 %v4750
  %v4771 = vpack.c.b16 %v4764, %v4763
  %v4772 = vpack.c.b16 %v4766, %v4765
  %v4773 = vpack.c.b16 %v4768, %v4767
  %v4774 = vpack.c.b16 %v4770, %v4769
  %v4780 = vsel %vm151, %v4741, 0
  %4782 = vmatprep.subr.bf16.mxu0 0
  %4783 = vmatpush1.bf16.msra.mxu0 %v4771
  %4784 = vmatprep.subr.bf16.mxu0 0
  %4785 = vmatpush1.bf16.msra.mxu0 %v4772
  %4786 = vmatprep.subr.bf16.mxu0 0
  %4787 = vmatpush1.bf16.msra.mxu0 %v4773
  %4788 = vmatprep.subr.bf16.mxu0 0
  %4789 = vmatpush1.bf16.msra.mxu0 %v4774
  %4790 = vmatprep.subr.bf16.mxu0 0
  %4791 = vmatpush1.bf16.msra.mxu0 0
  %4792 = vmatprep.subr.bf16.mxu0 0
  %4793 = vmatpush1.bf16.msra.mxu0 0
  %4794 = vmatprep.subr.bf16.mxu0 0
  %4795 = vmatpush1.bf16.msra.mxu0 0
  %4796 = vmatprep.subr.bf16.mxu0 0
  %4797 = vmatpush1.bf16.msra.mxu0 0
  %4798 = vmatprep.subr.bf16.mxu0 0
  %4799 = vmatpush1.bf16.msra.mxu0 0
  %4800 = vmatprep.subr.bf16.mxu0 0
  %4801 = vmatpush1.bf16.msra.mxu0 0
  %4802 = vmatprep.subr.bf16.mxu0 0
  %4803 = vmatpush1.bf16.msra.mxu0 0
  %4804 = vmatprep.subr.bf16.mxu0 0
  %4805 = vmatpush1.bf16.msra.mxu0 0
  %4806 = vmatprep.subr.bf16.mxu0 0
  %4807 = vmatpush1.bf16.msra.mxu0 0
  %4808 = vmatprep.subr.bf16.mxu0 0
  %4809 = vmatpush1.bf16.msra.mxu0 0
  %4810 = vmatprep.subr.bf16.mxu0 0
  %4811 = vmatpush1.bf16.msra.mxu0 0
  %4812 = vmatprep.subr.bf16.mxu0 0
  %4813 = vmatpush1.bf16.msra.mxu0 0
  %4814 = vmatprep.mubr.bf16.mxu0 0
  %4815 = vmatmul.mubr.bf16.gmra.mrb[0].mxu0 %v4780
  %v4816 = vpop.f32.mrb[0].mxu0
  %v4817 = vadd.f32 %v4754, %v4816
  %v4818 = vpop.f32.mrb[0].mxu0
  %v4819 = vpop.f32.mrb[0].mxu0
  %v4820 = vpop.f32.mrb[0].mxu0
  %4821 = vdwg.mxu0
  %v4822 = vadd.f32 %v4738, %v4817
  %v4823 = vsel %vm196, %v4822, 0.0
  %4824 = vadd.xlane.f32.xlu0 %v4823
  %v4825 = vpop.xlane.xlu0 %4824
  %v4826 = vmul.f32 %v4825, %v200
  %v4827 = vsub.f32 %v4822, %v4826
  %v4828 = vmul.f32 %v4827, %v4827
  %v4829 = vsel %vm196, %v4828, 0.0
  %4830 = vadd.xlane.f32.xlu0 %v4829
  %v4831 = vpop.xlane.xlu0 %4830
  %v4832 = vmul.f32 %v4831, %v200
  %v4833 = vadd.f32 %v4832, 1e-05
  %v4834 = vrsqrt.pop %v4833
  %v4835 = vmul.f32 %v4827, %v4834
  %v4836 = vlaneseq
  %v4837 = vshrl.u32 %v4836, 7
  %v4838 = vsub.s32 1, %v4837
  %v4839 = vrot.slane %v4740, %v4838
  %v4840 = vmul.f32 %v4835, %v4839
  %v4841 = vlaneseq
  %v4842 = vshrl.u32 %v4841, 7
  %v4843 = vsub.s32 2, %v4842
  %v4844 = vrot.slane %v4740, %v4843
  %v4845 = vadd.f32 %v4840, %v4844
  %v4846 = vpack.c.bf16 %v4845, %v4845
  %s4847 = scalar_lea.vmem %s4, 1024
  %v4848 = vld [vmem:[%s4847] sm:$0xff]
  %v4849 = vld [vmem:[%s4847 + $0x8] sm:$0xff]
  %v4850 = vld [vmem:[%s4847 + $0x10] sm:$0xff]
  %v4851 = vld [vmem:[%s4847 + $0x18] sm:$0xff]
  %v4852 = vld [vmem:[%s4847 + $0x20] sm:$0xff]
  %v4853 = vld [vmem:[%s4847 + $0x28] sm:$0xff]
  %v4854 = vld [vmem:[%s4847 + $0x30] sm:$0xff]
  %v4855 = vld [vmem:[%s4847 + $0x38] sm:$0xff]
  %v4856 = vld [vmem:[%s4847 + $0x40] sm:$0xff]
  %v4857 = vld [vmem:[%s4847 + $0x48] sm:$0xff]
  %v4858 = vld [vmem:[%s4847 + $0x50] sm:$0xff]
  %v4859 = vld [vmem:[%s4847 + $0x58] sm:$0xff]
  %v4860 = vld [vmem:[%s4847 + $0x60] sm:$0xff]
  %v4861 = vld [vmem:[%s4847 + $0x68] sm:$0xff]
  %v4862 = vld [vmem:[%s4847 + $0x70] sm:$0xff]
  %v4863 = vld [vmem:[%s4847 + $0x78] sm:$0xff]
  %v4864 = vld [vmem:[%s4847 + $0x80] sm:$0xff]
  %v4865 = vld [vmem:[%s4847 + $0x88] sm:$0xff]
  %v4866 = vld [vmem:[%s4847 + $0x90] sm:$0xff]
  %v4867 = vld [vmem:[%s4847 + $0x98] sm:$0xff]
  %v4868 = vld [vmem:[%s4847 + $0xa0] sm:$0xff]
  %v4869 = vld [vmem:[%s4847 + $0xa8] sm:$0xff]
  %v4870 = vld [vmem:[%s4847 + $0xb0] sm:$0xff]
  %v4871 = vld [vmem:[%s4847 + $0xb8] sm:$0xff]
  %v4872 = vld [vmem:[%s4847 + $0xc0] sm:$0xff]
  %v4873 = vld [vmem:[%s4847 + $0xc8] sm:$0xff]
  %v4874 = vld [vmem:[%s4847 + $0xd0] sm:$0xff]
  %v4875 = vld [vmem:[%s4847 + $0xd8] sm:$0xff]
  %v4876 = vld [vmem:[%s4847 + $0xe0] sm:$0xff]
  %v4877 = vld [vmem:[%s4847 + $0xe8] sm:$0xff]
  %v4878 = vld [vmem:[%s4847 + $0xf0] sm:$0xff]
  %v4879 = vld [vmem:[%s4847 + $0xf8] sm:$0xff]
  %v4880 = vld [vmem:[%s4847 + $0x100] sm:$0xff]
  %v4881 = vld [vmem:[%s4847 + $0x108] sm:$0xff]
  %v4882 = vld [vmem:[%s4847 + $0x110] sm:$0xff]
  %v4883 = vld [vmem:[%s4847 + $0x118] sm:$0xff]
  %v4884 = vld [vmem:[%s4847 + $0x120] sm:$0xff]
  %v4885 = vld [vmem:[%s4847 + $0x128] sm:$0xff]
  %v4886 = vld [vmem:[%s4847 + $0x130] sm:$0xff]
  %v4887 = vld [vmem:[%s4847 + $0x138] sm:$0xff]
  %v4888 = vld [vmem:[%s4847 + $0x140] sm:$0xff]
  %v4889 = vld [vmem:[%s4847 + $0x148] sm:$0xff]
  %v4890 = vld [vmem:[%s4847 + $0x150] sm:$0xff]
  %v4891 = vld [vmem:[%s4847 + $0x158] sm:$0xff]
  %v4892 = vld [vmem:[%s4847 + $0x160] sm:$0xff]
  %v4893 = vld [vmem:[%s4847 + $0x168] sm:$0xff]
  %v4894 = vld [vmem:[%s4847 + $0x170] sm:$0xff]
  %v4895 = vld [vmem:[%s4847 + $0x178] sm:$0xff]
  %v4896 = vld [vmem:[%s4847 + $0x180] sm:$0xff]
  %v4897 = vld [vmem:[%s4847 + $0x188] sm:$0xff]
  %v4898 = vld [vmem:[%s4847 + $0x190] sm:$0xff]
  %v4899 = vld [vmem:[%s4847 + $0x198] sm:$0xff]
  %v4900 = vld [vmem:[%s4847 + $0x1a0] sm:$0xff]
  %v4901 = vld [vmem:[%s4847 + $0x1a8] sm:$0xff]
  %v4902 = vld [vmem:[%s4847 + $0x1b0] sm:$0xff]
  %v4903 = vld [vmem:[%s4847 + $0x1b8] sm:$0xff]
  %v4904 = vld [vmem:[%s4847 + $0x1c0] sm:$0xff]
  %v4905 = vld [vmem:[%s4847 + $0x1c8] sm:$0xff]
  %v4906 = vld [vmem:[%s4847 + $0x1d0] sm:$0xff]
  %v4907 = vld [vmem:[%s4847 + $0x1d8] sm:$0xff]
  %v4908 = vld [vmem:[%s4847 + $0x1e0] sm:$0xff]
  %v4909 = vld [vmem:[%s4847 + $0x1e8] sm:$0xff]
  %v4910 = vld [vmem:[%s4847 + $0x1f0] sm:$0xff]
  %v4911 = vld [vmem:[%s4847 + $0x1f8] sm:$0xff]
  %s4912 = scalar_lea.vmem %s5, 32
  %v4913 = vld [vmem:[%s4912] sm:$0xff]
  %v4914 = vld [vmem:[%s4912 + $0x8] sm:$0xff]
  %v4917 = vlaneseq
  %v4918 = vshrl.u32 %v4917, 7
  %v4919 = vsub.s32 0, %v4918
  %v4920 = vrot.slane %v4913, %v4919
  %v4921 = vlaneseq
  %v4922 = vshrl.u32 %v4921, 7
  %v4923 = vsub.s32 1, %v4922
  %v4924 = vrot.slane %v4913, %v4923
  %v4925 = vlaneseq
  %v4926 = vshrl.u32 %v4925, 7
  %v4927 = vsub.s32 2, %v4926
  %v4928 = vrot.slane %v4913, %v4927
  %v4929 = vlaneseq
  %v4930 = vshrl.u32 %v4929, 7
  %v4931 = vsub.s32 3, %v4930
  %v4932 = vrot.slane %v4913, %v4931
  %v4933 = vlaneseq
  %v4934 = vshrl.u32 %v4933, 7
  %v4935 = vsub.s32 4, %v4934
  %v4936 = vrot.slane %v4913, %v4935
  %v4937 = vlaneseq
  %v4938 = vshrl.u32 %v4937, 7
  %v4939 = vsub.s32 5, %v4938
  %v4940 = vrot.slane %v4913, %v4939
  %v4941 = vlaneseq
  %v4942 = vshrl.u32 %v4941, 7
  %v4943 = vsub.s32 6, %v4942
  %v4944 = vrot.slane %v4913, %v4943
  %v4945 = vlaneseq
  %v4946 = vshrl.u32 %v4945, 7
  %v4947 = vsub.s32 7, %v4946
  %v4948 = vrot.slane %v4913, %v4947
  %v4949 = vlaneseq
  %v4950 = vshrl.u32 %v4949, 7
  %v4951 = vsub.s32 0, %v4950
  %v4952 = vrot.slane %v4914, %v4951
  %v4953 = vlaneseq
  %v4954 = vshrl.u32 %v4953, 7
  %v4955 = vsub.s32 1, %v4954
  %v4956 = vrot.slane %v4914, %v4955
  %v4957 = vlaneseq
  %v4958 = vshrl.u32 %v4957, 7
  %v4959 = vsub.s32 2, %v4958
  %v4960 = vrot.slane %v4914, %v4959
  %v4961 = vlaneseq
  %v4962 = vshrl.u32 %v4961, 7
  %v4963 = vsub.s32 3, %v4962
  %v4964 = vrot.slane %v4914, %v4963
  %v4965 = vlaneseq
  %v4966 = vshrl.u32 %v4965, 7
  %v4967 = vsub.s32 4, %v4966
  %v4968 = vrot.slane %v4914, %v4967
  %v4969 = vlaneseq
  %v4970 = vshrl.u32 %v4969, 7
  %v4971 = vsub.s32 5, %v4970
  %v4972 = vrot.slane %v4914, %v4971
  %v4973 = vlaneseq
  %v4974 = vshrl.u32 %v4973, 7
  %v4975 = vsub.s32 6, %v4974
  %v4976 = vrot.slane %v4914, %v4975
  %v4977 = vlaneseq
  %v4978 = vshrl.u32 %v4977, 7
  %v4979 = vsub.s32 7, %v4978
  %v4980 = vrot.slane %v4914, %v4979
  %v5061 = vunpack.c.l.b16 %v4848
  %v5062 = vunpack.c.h.b16 %v4848
  %v5063 = vunpack.c.l.b16 %v4849
  %v5064 = vunpack.c.h.b16 %v4849
  %v5065 = vunpack.c.l.b16 %v4850
  %v5066 = vunpack.c.h.b16 %v4850
  %v5067 = vunpack.c.l.b16 %v4851
  %v5068 = vunpack.c.h.b16 %v4851
  %v5069 = vunpack.c.l.b16 %v4852
  %v5070 = vunpack.c.h.b16 %v4852
  %v5071 = vunpack.c.l.b16 %v4853
  %v5072 = vunpack.c.h.b16 %v4853
  %v5073 = vunpack.c.l.b16 %v4854
  %v5074 = vunpack.c.h.b16 %v4854
  %v5075 = vunpack.c.l.b16 %v4855
  %v5076 = vunpack.c.h.b16 %v4855
  %v5077 = vunpack.c.l.b16 %v4856
  %v5078 = vunpack.c.h.b16 %v4856
  %v5079 = vunpack.c.l.b16 %v4857
  %v5080 = vunpack.c.h.b16 %v4857
  %v5081 = vunpack.c.l.b16 %v4858
  %v5082 = vunpack.c.h.b16 %v4858
  %v5083 = vunpack.c.l.b16 %v4859
  %v5084 = vunpack.c.h.b16 %v4859
  %v5085 = vunpack.c.l.b16 %v4860
  %v5086 = vunpack.c.h.b16 %v4860
  %v5087 = vunpack.c.l.b16 %v4861
  %v5088 = vunpack.c.h.b16 %v4861
  %v5089 = vunpack.c.l.b16 %v4862
  %v5090 = vunpack.c.h.b16 %v4862
  %v5091 = vunpack.c.l.b16 %v4863
  %v5092 = vunpack.c.h.b16 %v4863
  %v5093 = vunpack.c.l.b16 %v4864
  %v5094 = vunpack.c.h.b16 %v4864
  %v5095 = vunpack.c.l.b16 %v4865
  %v5096 = vunpack.c.h.b16 %v4865
  %v5097 = vunpack.c.l.b16 %v4866
  %v5098 = vunpack.c.h.b16 %v4866
  %v5099 = vunpack.c.l.b16 %v4867
  %v5100 = vunpack.c.h.b16 %v4867
  %v5101 = vunpack.c.l.b16 %v4868
  %v5102 = vunpack.c.h.b16 %v4868
  %v5103 = vunpack.c.l.b16 %v4869
  %v5104 = vunpack.c.h.b16 %v4869
  %v5105 = vunpack.c.l.b16 %v4870
  %v5106 = vunpack.c.h.b16 %v4870
  %v5107 = vunpack.c.l.b16 %v4871
  %v5108 = vunpack.c.h.b16 %v4871
  %v5109 = vunpack.c.l.b16 %v4872
  %v5110 = vunpack.c.h.b16 %v4872
  %v5111 = vunpack.c.l.b16 %v4873
  %v5112 = vunpack.c.h.b16 %v4873
  %v5113 = vunpack.c.l.b16 %v4874
  %v5114 = vunpack.c.h.b16 %v4874
  %v5115 = vunpack.c.l.b16 %v4875
  %v5116 = vunpack.c.h.b16 %v4875
  %v5117 = vunpack.c.l.b16 %v4876
  %v5118 = vunpack.c.h.b16 %v4876
  %v5119 = vunpack.c.l.b16 %v4877
  %v5120 = vunpack.c.h.b16 %v4877
  %v5121 = vunpack.c.l.b16 %v4878
  %v5122 = vunpack.c.h.b16 %v4878
  %v5123 = vunpack.c.l.b16 %v4879
  %v5124 = vunpack.c.h.b16 %v4879
  %v5125 = vunpack.c.l.b16 %v4880
  %v5126 = vunpack.c.h.b16 %v4880
  %v5127 = vunpack.c.l.b16 %v4881
  %v5128 = vunpack.c.h.b16 %v4881
  %v5129 = vunpack.c.l.b16 %v4882
  %v5130 = vunpack.c.h.b16 %v4882
  %v5131 = vunpack.c.l.b16 %v4883
  %v5132 = vunpack.c.h.b16 %v4883
  %v5133 = vunpack.c.l.b16 %v4884
  %v5134 = vunpack.c.h.b16 %v4884
  %v5135 = vunpack.c.l.b16 %v4885
  %v5136 = vunpack.c.h.b16 %v4885
  %v5137 = vunpack.c.l.b16 %v4886
  %v5138 = vunpack.c.h.b16 %v4886
  %v5139 = vunpack.c.l.b16 %v4887
  %v5140 = vunpack.c.h.b16 %v4887
  %v5141 = vunpack.c.l.b16 %v4888
  %v5142 = vunpack.c.h.b16 %v4888
  %v5143 = vunpack.c.l.b16 %v4889
  %v5144 = vunpack.c.h.b16 %v4889
  %v5145 = vunpack.c.l.b16 %v4890
  %v5146 = vunpack.c.h.b16 %v4890
  %v5147 = vunpack.c.l.b16 %v4891
  %v5148 = vunpack.c.h.b16 %v4891
  %v5149 = vunpack.c.l.b16 %v4892
  %v5150 = vunpack.c.h.b16 %v4892
  %v5151 = vunpack.c.l.b16 %v4893
  %v5152 = vunpack.c.h.b16 %v4893
  %v5153 = vunpack.c.l.b16 %v4894
  %v5154 = vunpack.c.h.b16 %v4894
  %v5155 = vunpack.c.l.b16 %v4895
  %v5156 = vunpack.c.h.b16 %v4895
  %v5157 = vunpack.c.l.b16 %v4896
  %v5158 = vunpack.c.h.b16 %v4896
  %v5159 = vunpack.c.l.b16 %v4897
  %v5160 = vunpack.c.h.b16 %v4897
  %v5161 = vunpack.c.l.b16 %v4898
  %v5162 = vunpack.c.h.b16 %v4898
  %v5163 = vunpack.c.l.b16 %v4899
  %v5164 = vunpack.c.h.b16 %v4899
  %v5165 = vunpack.c.l.b16 %v4900
  %v5166 = vunpack.c.h.b16 %v4900
  %v5167 = vunpack.c.l.b16 %v4901
  %v5168 = vunpack.c.h.b16 %v4901
  %v5169 = vunpack.c.l.b16 %v4902
  %v5170 = vunpack.c.h.b16 %v4902
  %v5171 = vunpack.c.l.b16 %v4903
  %v5172 = vunpack.c.h.b16 %v4903
  %v5173 = vunpack.c.l.b16 %v4904
  %v5174 = vunpack.c.h.b16 %v4904
  %v5175 = vunpack.c.l.b16 %v4905
  %v5176 = vunpack.c.h.b16 %v4905
  %v5177 = vunpack.c.l.b16 %v4906
  %v5178 = vunpack.c.h.b16 %v4906
  %v5179 = vunpack.c.l.b16 %v4907
  %v5180 = vunpack.c.h.b16 %v4907
  %v5181 = vunpack.c.l.b16 %v4908
  %v5182 = vunpack.c.h.b16 %v4908
  %v5183 = vunpack.c.l.b16 %v4909
  %v5184 = vunpack.c.h.b16 %v4909
  %v5185 = vunpack.c.l.b16 %v4910
  %v5186 = vunpack.c.h.b16 %v4910
  %v5187 = vunpack.c.l.b16 %v4911
  %v5188 = vunpack.c.h.b16 %v4911
  %v5189 = vpack.c.b16 %v5077, %v5061
  %v5190 = vpack.c.b16 %v5078, %v5062
  %v5191 = vpack.c.b16 %v5079, %v5063
  %v5192 = vpack.c.b16 %v5080, %v5064
  %v5193 = vpack.c.b16 %v5081, %v5065
  %v5194 = vpack.c.b16 %v5082, %v5066
  %v5195 = vpack.c.b16 %v5083, %v5067
  %v5196 = vpack.c.b16 %v5084, %v5068
  %v5197 = vpack.c.b16 %v5085, %v5069
  %v5198 = vpack.c.b16 %v5086, %v5070
  %v5199 = vpack.c.b16 %v5087, %v5071
  %v5200 = vpack.c.b16 %v5088, %v5072
  %v5201 = vpack.c.b16 %v5089, %v5073
  %v5202 = vpack.c.b16 %v5090, %v5074
  %v5203 = vpack.c.b16 %v5091, %v5075
  %v5204 = vpack.c.b16 %v5092, %v5076
  %v5205 = vpack.c.b16 %v5109, %v5093
  %v5206 = vpack.c.b16 %v5110, %v5094
  %v5207 = vpack.c.b16 %v5111, %v5095
  %v5208 = vpack.c.b16 %v5112, %v5096
  %v5209 = vpack.c.b16 %v5113, %v5097
  %v5210 = vpack.c.b16 %v5114, %v5098
  %v5211 = vpack.c.b16 %v5115, %v5099
  %v5212 = vpack.c.b16 %v5116, %v5100
  %v5213 = vpack.c.b16 %v5117, %v5101
  %v5214 = vpack.c.b16 %v5118, %v5102
  %v5215 = vpack.c.b16 %v5119, %v5103
  %v5216 = vpack.c.b16 %v5120, %v5104
  %v5217 = vpack.c.b16 %v5121, %v5105
  %v5218 = vpack.c.b16 %v5122, %v5106
  %v5219 = vpack.c.b16 %v5123, %v5107
  %v5220 = vpack.c.b16 %v5124, %v5108
  %v5221 = vpack.c.b16 %v5141, %v5125
  %v5222 = vpack.c.b16 %v5142, %v5126
  %v5223 = vpack.c.b16 %v5143, %v5127
  %v5224 = vpack.c.b16 %v5144, %v5128
  %v5225 = vpack.c.b16 %v5145, %v5129
  %v5226 = vpack.c.b16 %v5146, %v5130
  %v5227 = vpack.c.b16 %v5147, %v5131
  %v5228 = vpack.c.b16 %v5148, %v5132
  %v5229 = vpack.c.b16 %v5149, %v5133
  %v5230 = vpack.c.b16 %v5150, %v5134
  %v5231 = vpack.c.b16 %v5151, %v5135
  %v5232 = vpack.c.b16 %v5152, %v5136
  %v5233 = vpack.c.b16 %v5153, %v5137
  %v5234 = vpack.c.b16 %v5154, %v5138
  %v5235 = vpack.c.b16 %v5155, %v5139
  %v5236 = vpack.c.b16 %v5156, %v5140
  %v5237 = vpack.c.b16 %v5173, %v5157
  %v5238 = vpack.c.b16 %v5174, %v5158
  %v5239 = vpack.c.b16 %v5175, %v5159
  %v5240 = vpack.c.b16 %v5176, %v5160
  %v5241 = vpack.c.b16 %v5177, %v5161
  %v5242 = vpack.c.b16 %v5178, %v5162
  %v5243 = vpack.c.b16 %v5179, %v5163
  %v5244 = vpack.c.b16 %v5180, %v5164
  %v5245 = vpack.c.b16 %v5181, %v5165
  %v5246 = vpack.c.b16 %v5182, %v5166
  %v5247 = vpack.c.b16 %v5183, %v5167
  %v5248 = vpack.c.b16 %v5184, %v5168
  %v5249 = vpack.c.b16 %v5185, %v5169
  %v5250 = vpack.c.b16 %v5186, %v5170
  %v5251 = vpack.c.b16 %v5187, %v5171
  %v5252 = vpack.c.b16 %v5188, %v5172
  %v5318 = vsel %vm151, %v4846, 0
  %5320 = vmatprep.subr.bf16.mxu0 %v5190
  %5321 = vmatpush1.bf16.msra.mxu0 %v5189
  %5322 = vmatprep.subr.bf16.mxu0 %v5206
  %5323 = vmatpush1.bf16.msra.mxu0 %v5205
  %5324 = vmatprep.subr.bf16.mxu0 %v5222
  %5325 = vmatpush1.bf16.msra.mxu0 %v5221
  %5326 = vmatprep.subr.bf16.mxu0 %v5238
  %5327 = vmatpush1.bf16.msra.mxu0 %v5237
  %5328 = vmatprep.subr.bf16.mxu0 0
  %5329 = vmatpush1.bf16.msra.mxu0 0
  %5330 = vmatprep.subr.bf16.mxu0 0
  %5331 = vmatpush1.bf16.msra.mxu0 0
  %5332 = vmatprep.subr.bf16.mxu0 0
  %5333 = vmatpush1.bf16.msra.mxu0 0
  %5334 = vmatprep.subr.bf16.mxu0 0
  %5335 = vmatpush1.bf16.msra.mxu0 0
  %5336 = vmatprep.subr.bf16.mxu0 0
  %5337 = vmatpush1.bf16.msra.mxu0 0
  %5338 = vmatprep.subr.bf16.mxu0 0
  %5339 = vmatpush1.bf16.msra.mxu0 0
  %5340 = vmatprep.subr.bf16.mxu0 0
  %5341 = vmatpush1.bf16.msra.mxu0 0
  %5342 = vmatprep.subr.bf16.mxu0 0
  %5343 = vmatpush1.bf16.msra.mxu0 0
  %5344 = vmatprep.subr.bf16.mxu0 0
  %5345 = vmatpush1.bf16.msra.mxu0 0
  %5346 = vmatprep.subr.bf16.mxu0 0
  %5347 = vmatpush1.bf16.msra.mxu0 0
  %5348 = vmatprep.subr.bf16.mxu0 0
  %5349 = vmatpush1.bf16.msra.mxu0 0
  %5350 = vmatprep.subr.bf16.mxu0 0
  %5351 = vmatpush1.bf16.msra.mxu0 0
  %5352 = vmatprep.mubr.bf16.mxu0 0
  %5353 = vmatmul.mubr.bf16.gmra.mrb[0].mxu0 %v5318
  %v5354 = vpop.f32.mrb[0].mxu0
  %v5355 = vadd.f32 %v4920, %v5354
  %v5356 = vpop.f32.mrb[0].mxu0
  %v5357 = vadd.f32 %v4924, %v5356
  %v5358 = vpop.f32.mrb[0].mxu0
  %v5359 = vpop.f32.mrb[0].mxu0
  %5360 = vdwg.mxu0
  %5361 = vmatprep.subr.bf16.mxu0 %v5192
  %5362 = vmatpush1.bf16.msra.mxu0 %v5191
  %5363 = vmatprep.subr.bf16.mxu0 %v5208
  %5364 = vmatpush1.bf16.msra.mxu0 %v5207
  %5365 = vmatprep.subr.bf16.mxu0 %v5224
  %5366 = vmatpush1.bf16.msra.mxu0 %v5223
  %5367 = vmatprep.subr.bf16.mxu0 %v5240
  %5368 = vmatpush1.bf16.msra.mxu0 %v5239
  %5369 = vmatprep.subr.bf16.mxu0 0
  %5370 = vmatpush1.bf16.msra.mxu0 0
  %5371 = vmatprep.subr.bf16.mxu0 0
  %5372 = vmatpush1.bf16.msra.mxu0 0
  %5373 = vmatprep.subr.bf16.mxu0 0
  %5374 = vmatpush1.bf16.msra.mxu0 0
  %5375 = vmatprep.subr.bf16.mxu0 0
  %5376 = vmatpush1.bf16.msra.mxu0 0
  %5377 = vmatprep.subr.bf16.mxu0 0
  %5378 = vmatpush1.bf16.msra.mxu0 0
  %5379 = vmatprep.subr.bf16.mxu0 0
  %5380 = vmatpush1.bf16.msra.mxu0 0
  %5381 = vmatprep.subr.bf16.mxu0 0
  %5382 = vmatpush1.bf16.msra.mxu0 0
  %5383 = vmatprep.subr.bf16.mxu0 0
  %5384 = vmatpush1.bf16.msra.mxu0 0
  %5385 = vmatprep.subr.bf16.mxu0 0
  %5386 = vmatpush1.bf16.msra.mxu0 0
  %5387 = vmatprep.subr.bf16.mxu0 0
  %5388 = vmatpush1.bf16.msra.mxu0 0
  %5389 = vmatprep.subr.bf16.mxu0 0
  %5390 = vmatpush1.bf16.msra.mxu0 0
  %5391 = vmatprep.subr.bf16.mxu0 0
  %5392 = vmatpush1.bf16.msra.mxu0 0
  %5393 = vmatprep.mubr.bf16.mxu0 0
  %5394 = vmatmul.mubr.bf16.gmra.mrb[0].mxu0 %v5318
  %v5395 = vpop.f32.mrb[0].mxu0
  %v5396 = vadd.f32 %v4928, %v5395
  %v5397 = vpop.f32.mrb[0].mxu0
  %v5398 = vadd.f32 %v4932, %v5397
  %v5399 = vpop.f32.mrb[0].mxu0
  %v5400 = vpop.f32.mrb[0].mxu0
  %5401 = vdwg.mxu0
  %5402 = vmatprep.subr.bf16.mxu0 %v5194
  %5403 = vmatpush1.bf16.msra.mxu0 %v5193
  %5404 = vmatprep.subr.bf16.mxu0 %v5210
  %5405 = vmatpush1.bf16.msra.mxu0 %v5209
  %5406 = vmatprep.subr.bf16.mxu0 %v5226
  %5407 = vmatpush1.bf16.msra.mxu0 %v5225
  %5408 = vmatprep.subr.bf16.mxu0 %v5242
  %5409 = vmatpush1.bf16.msra.mxu0 %v5241
  %5410 = vmatprep.subr.bf16.mxu0 0
  %5411 = vmatpush1.bf16.msra.mxu0 0
  %5412 = vmatprep.subr.bf16.mxu0 0
  %5413 = vmatpush1.bf16.msra.mxu0 0
  %5414 = vmatprep.subr.bf16.mxu0 0
  %5415 = vmatpush1.bf16.msra.mxu0 0
  %5416 = vmatprep.subr.bf16.mxu0 0
  %5417 = vmatpush1.bf16.msra.mxu0 0
  %5418 = vmatprep.subr.bf16.mxu0 0
  %5419 = vmatpush1.bf16.msra.mxu0 0
  %5420 = vmatprep.subr.bf16.mxu0 0
  %5421 = vmatpush1.bf16.msra.mxu0 0
  %5422 = vmatprep.subr.bf16.mxu0 0
  %5423 = vmatpush1.bf16.msra.mxu0 0
  %5424 = vmatprep.subr.bf16.mxu0 0
  %5425 = vmatpush1.bf16.msra.mxu0 0
  %5426 = vmatprep.subr.bf16.mxu0 0
  %5427 = vmatpush1.bf16.msra.mxu0 0
  %5428 = vmatprep.subr.bf16.mxu0 0
  %5429 = vmatpush1.bf16.msra.mxu0 0
  %5430 = vmatprep.subr.bf16.mxu0 0
  %5431 = vmatpush1.bf16.msra.mxu0 0
  %5432 = vmatprep.subr.bf16.mxu0 0
  %5433 = vmatpush1.bf16.msra.mxu0 0
  %5434 = vmatprep.mubr.bf16.mxu0 0
  %5435 = vmatmul.mubr.bf16.gmra.mrb[0].mxu0 %v5318
  %v5436 = vpop.f32.mrb[0].mxu0
  %v5437 = vadd.f32 %v4936, %v5436
  %v5438 = vpop.f32.mrb[0].mxu0
  %v5439 = vadd.f32 %v4940, %v5438
  %v5440 = vpop.f32.mrb[0].mxu0
  %v5441 = vpop.f32.mrb[0].mxu0
  %5442 = vdwg.mxu0
  %5443 = vmatprep.subr.bf16.mxu0 %v5196
  %5444 = vmatpush1.bf16.msra.mxu0 %v5195
  %5445 = vmatprep.subr.bf16.mxu0 %v5212
  %5446 = vmatpush1.bf16.msra.mxu0 %v5211
  %5447 = vmatprep.subr.bf16.mxu0 %v5228
  %5448 = vmatpush1.bf16.msra.mxu0 %v5227
  %5449 = vmatprep.subr.bf16.mxu0 %v5244
  %5450 = vmatpush1.bf16.msra.mxu0 %v5243
  %5451 = vmatprep.subr.bf16.mxu0 0
  %5452 = vmatpush1.bf16.msra.mxu0 0
  %5453 = vmatprep.subr.bf16.mxu0 0
  %5454 = vmatpush1.bf16.msra.mxu0 0
  %5455 = vmatprep.subr.bf16.mxu0 0
  %5456 = vmatpush1.bf16.msra.mxu0 0
  %5457 = vmatprep.subr.bf16.mxu0 0
  %5458 = vmatpush1.bf16.msra.mxu0 0
  %5459 = vmatprep.subr.bf16.mxu0 0
  %5460 = vmatpush1.bf16.msra.mxu0 0
  %5461 = vmatprep.subr.bf16.mxu0 0
  %5462 = vmatpush1.bf16.msra.mxu0 0
  %5463 = vmatprep.subr.bf16.mxu0 0
  %5464 = vmatpush1.bf16.msra.mxu0 0
  %5465 = vmatprep.subr.bf16.mxu0 0
  %5466 = vmatpush1.bf16.msra.mxu0 0
  %5467 = vmatprep.subr.bf16.mxu0 0
  %5468 = vmatpush1.bf16.msra.mxu0 0
  %5469 = vmatprep.subr.bf16.mxu0 0
  %5470 = vmatpush1.bf16.msra.mxu0 0
  %5471 = vmatprep.subr.bf16.mxu0 0
  %5472 = vmatpush1.bf16.msra.mxu0 0
  %5473 = vmatprep.subr.bf16.mxu0 0
  %5474 = vmatpush1.bf16.msra.mxu0 0
  %5475 = vmatprep.mubr.bf16.mxu0 0
  %5476 = vmatmul.mubr.bf16.gmra.mrb[0].mxu0 %v5318
  %v5477 = vpop.f32.mrb[0].mxu0
  %v5478 = vadd.f32 %v4944, %v5477
  %v5479 = vpop.f32.mrb[0].mxu0
  %v5480 = vadd.f32 %v4948, %v5479
  %v5481 = vpop.f32.mrb[0].mxu0
  %v5482 = vpop.f32.mrb[0].mxu0
  %5483 = vdwg.mxu0
  %5484 = vmatprep.subr.bf16.mxu0 %v5198
  %5485 = vmatpush1.bf16.msra.mxu0 %v5197
  %5486 = vmatprep.subr.bf16.mxu0 %v5214
  %5487 = vmatpush1.bf16.msra.mxu0 %v5213
  %5488 = vmatprep.subr.bf16.mxu0 %v5230
  %5489 = vmatpush1.bf16.msra.mxu0 %v5229
  %5490 = vmatprep.subr.bf16.mxu0 %v5246
  %5491 = vmatpush1.bf16.msra.mxu0 %v5245
  %5492 = vmatprep.subr.bf16.mxu0 0
  %5493 = vmatpush1.bf16.msra.mxu0 0
  %5494 = vmatprep.subr.bf16.mxu0 0
  %5495 = vmatpush1.bf16.msra.mxu0 0
  %5496 = vmatprep.subr.bf16.mxu0 0
  %5497 = vmatpush1.bf16.msra.mxu0 0
  %5498 = vmatprep.subr.bf16.mxu0 0
  %5499 = vmatpush1.bf16.msra.mxu0 0
  %5500 = vmatprep.subr.bf16.mxu0 0
  %5501 = vmatpush1.bf16.msra.mxu0 0
  %5502 = vmatprep.subr.bf16.mxu0 0
  %5503 = vmatpush1.bf16.msra.mxu0 0
  %5504 = vmatprep.subr.bf16.mxu0 0
  %5505 = vmatpush1.bf16.msra.mxu0 0
  %5506 = vmatprep.subr.bf16.mxu0 0
  %5507 = vmatpush1.bf16.msra.mxu0 0
  %5508 = vmatprep.subr.bf16.mxu0 0
  %5509 = vmatpush1.bf16.msra.mxu0 0
  %5510 = vmatprep.subr.bf16.mxu0 0
  %5511 = vmatpush1.bf16.msra.mxu0 0
  %5512 = vmatprep.subr.bf16.mxu0 0
  %5513 = vmatpush1.bf16.msra.mxu0 0
  %5514 = vmatprep.subr.bf16.mxu0 0
  %5515 = vmatpush1.bf16.msra.mxu0 0
  %5516 = vmatprep.mubr.bf16.mxu0 0
  %5517 = vmatmul.mubr.bf16.gmra.mrb[0].mxu0 %v5318
  %v5518 = vpop.f32.mrb[0].mxu0
  %v5519 = vadd.f32 %v4952, %v5518
  %v5520 = vpop.f32.mrb[0].mxu0
  %v5521 = vadd.f32 %v4956, %v5520
  %v5522 = vpop.f32.mrb[0].mxu0
  %v5523 = vpop.f32.mrb[0].mxu0
  %5524 = vdwg.mxu0
  %5525 = vmatprep.subr.bf16.mxu0 %v5200
  %5526 = vmatpush1.bf16.msra.mxu0 %v5199
  %5527 = vmatprep.subr.bf16.mxu0 %v5216
  %5528 = vmatpush1.bf16.msra.mxu0 %v5215
  %5529 = vmatprep.subr.bf16.mxu0 %v5232
  %5530 = vmatpush1.bf16.msra.mxu0 %v5231
  %5531 = vmatprep.subr.bf16.mxu0 %v5248
  %5532 = vmatpush1.bf16.msra.mxu0 %v5247
  %5533 = vmatprep.subr.bf16.mxu0 0
  %5534 = vmatpush1.bf16.msra.mxu0 0
  %5535 = vmatprep.subr.bf16.mxu0 0
  %5536 = vmatpush1.bf16.msra.mxu0 0
  %5537 = vmatprep.subr.bf16.mxu0 0
  %5538 = vmatpush1.bf16.msra.mxu0 0
  %5539 = vmatprep.subr.bf16.mxu0 0
  %5540 = vmatpush1.bf16.msra.mxu0 0
  %5541 = vmatprep.subr.bf16.mxu0 0
  %5542 = vmatpush1.bf16.msra.mxu0 0
  %5543 = vmatprep.subr.bf16.mxu0 0
  %5544 = vmatpush1.bf16.msra.mxu0 0
  %5545 = vmatprep.subr.bf16.mxu0 0
  %5546 = vmatpush1.bf16.msra.mxu0 0
  %5547 = vmatprep.subr.bf16.mxu0 0
  %5548 = vmatpush1.bf16.msra.mxu0 0
  %5549 = vmatprep.subr.bf16.mxu0 0
  %5550 = vmatpush1.bf16.msra.mxu0 0
  %5551 = vmatprep.subr.bf16.mxu0 0
  %5552 = vmatpush1.bf16.msra.mxu0 0
  %5553 = vmatprep.subr.bf16.mxu0 0
  %5554 = vmatpush1.bf16.msra.mxu0 0
  %5555 = vmatprep.subr.bf16.mxu0 0
  %5556 = vmatpush1.bf16.msra.mxu0 0
  %5557 = vmatprep.mubr.bf16.mxu0 0
  %5558 = vmatmul.mubr.bf16.gmra.mrb[0].mxu0 %v5318
  %v5559 = vpop.f32.mrb[0].mxu0
  %v5560 = vadd.f32 %v4960, %v5559
  %v5561 = vpop.f32.mrb[0].mxu0
  %v5562 = vadd.f32 %v4964, %v5561
  %v5563 = vpop.f32.mrb[0].mxu0
  %v5564 = vpop.f32.mrb[0].mxu0
  %5565 = vdwg.mxu0
  %5566 = vmatprep.subr.bf16.mxu0 %v5202
  %5567 = vmatpush1.bf16.msra.mxu0 %v5201
  %5568 = vmatprep.subr.bf16.mxu0 %v5218
  %5569 = vmatpush1.bf16.msra.mxu0 %v5217
  %5570 = vmatprep.subr.bf16.mxu0 %v5234
  %5571 = vmatpush1.bf16.msra.mxu0 %v5233
  %5572 = vmatprep.subr.bf16.mxu0 %v5250
  %5573 = vmatpush1.bf16.msra.mxu0 %v5249
  %5574 = vmatprep.subr.bf16.mxu0 0
  %5575 = vmatpush1.bf16.msra.mxu0 0
  %5576 = vmatprep.subr.bf16.mxu0 0
  %5577 = vmatpush1.bf16.msra.mxu0 0
  %5578 = vmatprep.subr.bf16.mxu0 0
  %5579 = vmatpush1.bf16.msra.mxu0 0
  %5580 = vmatprep.subr.bf16.mxu0 0
  %5581 = vmatpush1.bf16.msra.mxu0 0
  %5582 = vmatprep.subr.bf16.mxu0 0
  %5583 = vmatpush1.bf16.msra.mxu0 0
  %5584 = vmatprep.subr.bf16.mxu0 0
  %5585 = vmatpush1.bf16.msra.mxu0 0
  %5586 = vmatprep.subr.bf16.mxu0 0
  %5587 = vmatpush1.bf16.msra.mxu0 0
  %5588 = vmatprep.subr.bf16.mxu0 0
  %5589 = vmatpush1.bf16.msra.mxu0 0
  %5590 = vmatprep.subr.bf16.mxu0 0
  %5591 = vmatpush1.bf16.msra.mxu0 0
  %5592 = vmatprep.subr.bf16.mxu0 0
  %5593 = vmatpush1.bf16.msra.mxu0 0
  %5594 = vmatprep.subr.bf16.mxu0 0
  %5595 = vmatpush1.bf16.msra.mxu0 0
  %5596 = vmatprep.subr.bf16.mxu0 0
  %5597 = vmatpush1.bf16.msra.mxu0 0
  %5598 = vmatprep.mubr.bf16.mxu0 0
  %5599 = vmatmul.mubr.bf16.gmra.mrb[0].mxu0 %v5318
  %v5600 = vpop.f32.mrb[0].mxu0
  %v5601 = vadd.f32 %v4968, %v5600
  %v5602 = vpop.f32.mrb[0].mxu0
  %v5603 = vadd.f32 %v4972, %v5602
  %v5604 = vpop.f32.mrb[0].mxu0
  %v5605 = vpop.f32.mrb[0].mxu0
  %5606 = vdwg.mxu0
  %5607 = vmatprep.subr.bf16.mxu0 %v5204
  %5608 = vmatpush1.bf16.msra.mxu0 %v5203
  %5609 = vmatprep.subr.bf16.mxu0 %v5220
  %5610 = vmatpush1.bf16.msra.mxu0 %v5219
  %5611 = vmatprep.subr.bf16.mxu0 %v5236
  %5612 = vmatpush1.bf16.msra.mxu0 %v5235
  %5613 = vmatprep.subr.bf16.mxu0 %v5252
  %5614 = vmatpush1.bf16.msra.mxu0 %v5251
  %5615 = vmatprep.subr.bf16.mxu0 0
  %5616 = vmatpush1.bf16.msra.mxu0 0
  %5617 = vmatprep.subr.bf16.mxu0 0
  %5618 = vmatpush1.bf16.msra.mxu0 0
  %5619 = vmatprep.subr.bf16.mxu0 0
  %5620 = vmatpush1.bf16.msra.mxu0 0
  %5621 = vmatprep.subr.bf16.mxu0 0
  %5622 = vmatpush1.bf16.msra.mxu0 0
  %5623 = vmatprep.subr.bf16.mxu0 0
  %5624 = vmatpush1.bf16.msra.mxu0 0
  %5625 = vmatprep.subr.bf16.mxu0 0
  %5626 = vmatpush1.bf16.msra.mxu0 0
  %5627 = vmatprep.subr.bf16.mxu0 0
  %5628 = vmatpush1.bf16.msra.mxu0 0
  %5629 = vmatprep.subr.bf16.mxu0 0
  %5630 = vmatpush1.bf16.msra.mxu0 0
  %5631 = vmatprep.subr.bf16.mxu0 0
  %5632 = vmatpush1.bf16.msra.mxu0 0
  %5633 = vmatprep.subr.bf16.mxu0 0
  %5634 = vmatpush1.bf16.msra.mxu0 0
  %5635 = vmatprep.subr.bf16.mxu0 0
  %5636 = vmatpush1.bf16.msra.mxu0 0
  %5637 = vmatprep.subr.bf16.mxu0 0
  %5638 = vmatpush1.bf16.msra.mxu0 0
  %5639 = vmatprep.mubr.bf16.mxu0 0
  %5640 = vmatmul.mubr.bf16.gmra.mrb[0].mxu0 %v5318
  %v5641 = vpop.f32.mrb[0].mxu0
  %v5642 = vadd.f32 %v4976, %v5641
  %v5643 = vpop.f32.mrb[0].mxu0
  %v5644 = vadd.f32 %v4980, %v5643
  %v5645 = vpop.f32.mrb[0].mxu0
  %v5646 = vpop.f32.mrb[0].mxu0
  %5647 = vdwg.mxu0
  %v5648 = vmax.f32 %v5355, 0.0
  %v5649 = vmax.f32 %v5357, 0.0
  %v5650 = vmax.f32 %v5396, 0.0
  %v5651 = vmax.f32 %v5398, 0.0
  %v5652 = vmax.f32 %v5437, 0.0
  %v5653 = vmax.f32 %v5439, 0.0
  %v5654 = vmax.f32 %v5478, 0.0
  %v5655 = vmax.f32 %v5480, 0.0
  %v5656 = vmax.f32 %v5519, 0.0
  %v5657 = vmax.f32 %v5521, 0.0
  %v5658 = vmax.f32 %v5560, 0.0
  %v5659 = vmax.f32 %v5562, 0.0
  %v5660 = vmax.f32 %v5601, 0.0
  %v5661 = vmax.f32 %v5603, 0.0
  %v5662 = vmax.f32 %v5642, 0.0
  %v5663 = vmax.f32 %v5644, 0.0
  %v5664 = vpack.c.bf16 %v5648, %v5648
  %v5665 = vpack.c.bf16 %v5649, %v5649
  %v5666 = vpack.c.bf16 %v5650, %v5650
  %v5667 = vpack.c.bf16 %v5651, %v5651
  %v5668 = vpack.c.bf16 %v5652, %v5652
  %v5669 = vpack.c.bf16 %v5653, %v5653
  %v5670 = vpack.c.bf16 %v5654, %v5654
  %v5671 = vpack.c.bf16 %v5655, %v5655
  %v5672 = vpack.c.bf16 %v5656, %v5656
  %v5673 = vpack.c.bf16 %v5657, %v5657
  %v5674 = vpack.c.bf16 %v5658, %v5658
  %v5675 = vpack.c.bf16 %v5659, %v5659
  %v5676 = vpack.c.bf16 %v5660, %v5660
  %v5677 = vpack.c.bf16 %v5661, %v5661
  %v5678 = vpack.c.bf16 %v5662, %v5662
  %v5679 = vpack.c.bf16 %v5663, %v5663
  %s5680 = scalar_lea.vmem %s6, 2048
  %v5681 = vld [vmem:[%s5680] sm:$0xf]
  %v5682 = vld [vmem:[%s5680 + $0x4] sm:$0xf]
  %v5683 = vld [vmem:[%s5680 + $0x8] sm:$0xf]
  %v5684 = vld [vmem:[%s5680 + $0xc] sm:$0xf]
  %v5685 = vld [vmem:[%s5680 + $0x10] sm:$0xf]
  %v5686 = vld [vmem:[%s5680 + $0x14] sm:$0xf]
  %v5687 = vld [vmem:[%s5680 + $0x18] sm:$0xf]
  %v5688 = vld [vmem:[%s5680 + $0x1c] sm:$0xf]
  %v5689 = vld [vmem:[%s5680 + $0x20] sm:$0xf]
  %v5690 = vld [vmem:[%s5680 + $0x24] sm:$0xf]
  %v5691 = vld [vmem:[%s5680 + $0x28] sm:$0xf]
  %v5692 = vld [vmem:[%s5680 + $0x2c] sm:$0xf]
  %v5693 = vld [vmem:[%s5680 + $0x30] sm:$0xf]
  %v5694 = vld [vmem:[%s5680 + $0x34] sm:$0xf]
  %v5695 = vld [vmem:[%s5680 + $0x38] sm:$0xf]
  %v5696 = vld [vmem:[%s5680 + $0x3c] sm:$0xf]
  %v5697 = vld [vmem:[%s5680 + $0x40] sm:$0xf]
  %v5698 = vld [vmem:[%s5680 + $0x44] sm:$0xf]
  %v5699 = vld [vmem:[%s5680 + $0x48] sm:$0xf]
  %v5700 = vld [vmem:[%s5680 + $0x4c] sm:$0xf]
  %v5701 = vld [vmem:[%s5680 + $0x50] sm:$0xf]
  %v5702 = vld [vmem:[%s5680 + $0x54] sm:$0xf]
  %v5703 = vld [vmem:[%s5680 + $0x58] sm:$0xf]
  %v5704 = vld [vmem:[%s5680 + $0x5c] sm:$0xf]
  %v5705 = vld [vmem:[%s5680 + $0x60] sm:$0xf]
  %v5706 = vld [vmem:[%s5680 + $0x64] sm:$0xf]
  %v5707 = vld [vmem:[%s5680 + $0x68] sm:$0xf]
  %v5708 = vld [vmem:[%s5680 + $0x6c] sm:$0xf]
  %v5709 = vld [vmem:[%s5680 + $0x70] sm:$0xf]
  %v5710 = vld [vmem:[%s5680 + $0x74] sm:$0xf]
  %v5711 = vld [vmem:[%s5680 + $0x78] sm:$0xf]
  %v5712 = vld [vmem:[%s5680 + $0x7c] sm:$0xf]
  %v5713 = vld [vmem:[%s5680 + $0x80] sm:$0xf]
  %v5714 = vld [vmem:[%s5680 + $0x84] sm:$0xf]
  %v5715 = vld [vmem:[%s5680 + $0x88] sm:$0xf]
  %v5716 = vld [vmem:[%s5680 + $0x8c] sm:$0xf]
  %v5717 = vld [vmem:[%s5680 + $0x90] sm:$0xf]
  %v5718 = vld [vmem:[%s5680 + $0x94] sm:$0xf]
  %v5719 = vld [vmem:[%s5680 + $0x98] sm:$0xf]
  %v5720 = vld [vmem:[%s5680 + $0x9c] sm:$0xf]
  %v5721 = vld [vmem:[%s5680 + $0xa0] sm:$0xf]
  %v5722 = vld [vmem:[%s5680 + $0xa4] sm:$0xf]
  %v5723 = vld [vmem:[%s5680 + $0xa8] sm:$0xf]
  %v5724 = vld [vmem:[%s5680 + $0xac] sm:$0xf]
  %v5725 = vld [vmem:[%s5680 + $0xb0] sm:$0xf]
  %v5726 = vld [vmem:[%s5680 + $0xb4] sm:$0xf]
  %v5727 = vld [vmem:[%s5680 + $0xb8] sm:$0xf]
  %v5728 = vld [vmem:[%s5680 + $0xbc] sm:$0xf]
  %v5729 = vld [vmem:[%s5680 + $0xc0] sm:$0xf]
  %v5730 = vld [vmem:[%s5680 + $0xc4] sm:$0xf]
  %v5731 = vld [vmem:[%s5680 + $0xc8] sm:$0xf]
  %v5732 = vld [vmem:[%s5680 + $0xcc] sm:$0xf]
  %v5733 = vld [vmem:[%s5680 + $0xd0] sm:$0xf]
  %v5734 = vld [vmem:[%s5680 + $0xd4] sm:$0xf]
  %v5735 = vld [vmem:[%s5680 + $0xd8] sm:$0xf]
  %v5736 = vld [vmem:[%s5680 + $0xdc] sm:$0xf]
  %v5737 = vld [vmem:[%s5680 + $0xe0] sm:$0xf]
  %v5738 = vld [vmem:[%s5680 + $0xe4] sm:$0xf]
  %v5739 = vld [vmem:[%s5680 + $0xe8] sm:$0xf]
  %v5740 = vld [vmem:[%s5680 + $0xec] sm:$0xf]
  %v5741 = vld [vmem:[%s5680 + $0xf0] sm:$0xf]
  %v5742 = vld [vmem:[%s5680 + $0xf4] sm:$0xf]
  %v5743 = vld [vmem:[%s5680 + $0xf8] sm:$0xf]
  %v5744 = vld [vmem:[%s5680 + $0xfc] sm:$0xf]
  %v5745 = vld [vmem:[%s5680 + $0x100] sm:$0xf]
  %v5746 = vld [vmem:[%s5680 + $0x104] sm:$0xf]
  %v5747 = vld [vmem:[%s5680 + $0x108] sm:$0xf]
  %v5748 = vld [vmem:[%s5680 + $0x10c] sm:$0xf]
  %v5749 = vld [vmem:[%s5680 + $0x110] sm:$0xf]
  %v5750 = vld [vmem:[%s5680 + $0x114] sm:$0xf]
  %v5751 = vld [vmem:[%s5680 + $0x118] sm:$0xf]
  %v5752 = vld [vmem:[%s5680 + $0x11c] sm:$0xf]
  %v5753 = vld [vmem:[%s5680 + $0x120] sm:$0xf]
  %v5754 = vld [vmem:[%s5680 + $0x124] sm:$0xf]
  %v5755 = vld [vmem:[%s5680 + $0x128] sm:$0xf]
  %v5756 = vld [vmem:[%s5680 + $0x12c] sm:$0xf]
  %v5757 = vld [vmem:[%s5680 + $0x130] sm:$0xf]
  %v5758 = vld [vmem:[%s5680 + $0x134] sm:$0xf]
  %v5759 = vld [vmem:[%s5680 + $0x138] sm:$0xf]
  %v5760 = vld [vmem:[%s5680 + $0x13c] sm:$0xf]
  %v5761 = vld [vmem:[%s5680 + $0x140] sm:$0xf]
  %v5762 = vld [vmem:[%s5680 + $0x144] sm:$0xf]
  %v5763 = vld [vmem:[%s5680 + $0x148] sm:$0xf]
  %v5764 = vld [vmem:[%s5680 + $0x14c] sm:$0xf]
  %v5765 = vld [vmem:[%s5680 + $0x150] sm:$0xf]
  %v5766 = vld [vmem:[%s5680 + $0x154] sm:$0xf]
  %v5767 = vld [vmem:[%s5680 + $0x158] sm:$0xf]
  %v5768 = vld [vmem:[%s5680 + $0x15c] sm:$0xf]
  %v5769 = vld [vmem:[%s5680 + $0x160] sm:$0xf]
  %v5770 = vld [vmem:[%s5680 + $0x164] sm:$0xf]
  %v5771 = vld [vmem:[%s5680 + $0x168] sm:$0xf]
  %v5772 = vld [vmem:[%s5680 + $0x16c] sm:$0xf]
  %v5773 = vld [vmem:[%s5680 + $0x170] sm:$0xf]
  %v5774 = vld [vmem:[%s5680 + $0x174] sm:$0xf]
  %v5775 = vld [vmem:[%s5680 + $0x178] sm:$0xf]
  %v5776 = vld [vmem:[%s5680 + $0x17c] sm:$0xf]
  %v5777 = vld [vmem:[%s5680 + $0x180] sm:$0xf]
  %v5778 = vld [vmem:[%s5680 + $0x184] sm:$0xf]
  %v5779 = vld [vmem:[%s5680 + $0x188] sm:$0xf]
  %v5780 = vld [vmem:[%s5680 + $0x18c] sm:$0xf]
  %v5781 = vld [vmem:[%s5680 + $0x190] sm:$0xf]
  %v5782 = vld [vmem:[%s5680 + $0x194] sm:$0xf]
  %v5783 = vld [vmem:[%s5680 + $0x198] sm:$0xf]
  %v5784 = vld [vmem:[%s5680 + $0x19c] sm:$0xf]
  %v5785 = vld [vmem:[%s5680 + $0x1a0] sm:$0xf]
  %v5786 = vld [vmem:[%s5680 + $0x1a4] sm:$0xf]
  %v5787 = vld [vmem:[%s5680 + $0x1a8] sm:$0xf]
  %v5788 = vld [vmem:[%s5680 + $0x1ac] sm:$0xf]
  %v5789 = vld [vmem:[%s5680 + $0x1b0] sm:$0xf]
  %v5790 = vld [vmem:[%s5680 + $0x1b4] sm:$0xf]
  %v5791 = vld [vmem:[%s5680 + $0x1b8] sm:$0xf]
  %v5792 = vld [vmem:[%s5680 + $0x1bc] sm:$0xf]
  %v5793 = vld [vmem:[%s5680 + $0x1c0] sm:$0xf]
  %v5794 = vld [vmem:[%s5680 + $0x1c4] sm:$0xf]
  %v5795 = vld [vmem:[%s5680 + $0x1c8] sm:$0xf]
  %v5796 = vld [vmem:[%s5680 + $0x1cc] sm:$0xf]
  %v5797 = vld [vmem:[%s5680 + $0x1d0] sm:$0xf]
  %v5798 = vld [vmem:[%s5680 + $0x1d4] sm:$0xf]
  %v5799 = vld [vmem:[%s5680 + $0x1d8] sm:$0xf]
  %v5800 = vld [vmem:[%s5680 + $0x1dc] sm:$0xf]
  %v5801 = vld [vmem:[%s5680 + $0x1e0] sm:$0xf]
  %v5802 = vld [vmem:[%s5680 + $0x1e4] sm:$0xf]
  %v5803 = vld [vmem:[%s5680 + $0x1e8] sm:$0xf]
  %v5804 = vld [vmem:[%s5680 + $0x1ec] sm:$0xf]
  %v5805 = vld [vmem:[%s5680 + $0x1f0] sm:$0xf]
  %v5806 = vld [vmem:[%s5680 + $0x1f4] sm:$0xf]
  %v5807 = vld [vmem:[%s5680 + $0x1f8] sm:$0xf]
  %v5808 = vld [vmem:[%s5680 + $0x1fc] sm:$0xf]
  %v5809 = vld [vmem:[%s5680 + $0x200] sm:$0xf]
  %v5810 = vld [vmem:[%s5680 + $0x204] sm:$0xf]
  %v5811 = vld [vmem:[%s5680 + $0x208] sm:$0xf]
  %v5812 = vld [vmem:[%s5680 + $0x20c] sm:$0xf]
  %v5813 = vld [vmem:[%s5680 + $0x210] sm:$0xf]
  %v5814 = vld [vmem:[%s5680 + $0x214] sm:$0xf]
  %v5815 = vld [vmem:[%s5680 + $0x218] sm:$0xf]
  %v5816 = vld [vmem:[%s5680 + $0x21c] sm:$0xf]
  %v5817 = vld [vmem:[%s5680 + $0x220] sm:$0xf]
  %v5818 = vld [vmem:[%s5680 + $0x224] sm:$0xf]
  %v5819 = vld [vmem:[%s5680 + $0x228] sm:$0xf]
  %v5820 = vld [vmem:[%s5680 + $0x22c] sm:$0xf]
  %v5821 = vld [vmem:[%s5680 + $0x230] sm:$0xf]
  %v5822 = vld [vmem:[%s5680 + $0x234] sm:$0xf]
  %v5823 = vld [vmem:[%s5680 + $0x238] sm:$0xf]
  %v5824 = vld [vmem:[%s5680 + $0x23c] sm:$0xf]
  %v5825 = vld [vmem:[%s5680 + $0x240] sm:$0xf]
  %v5826 = vld [vmem:[%s5680 + $0x244] sm:$0xf]
  %v5827 = vld [vmem:[%s5680 + $0x248] sm:$0xf]
  %v5828 = vld [vmem:[%s5680 + $0x24c] sm:$0xf]
  %v5829 = vld [vmem:[%s5680 + $0x250] sm:$0xf]
  %v5830 = vld [vmem:[%s5680 + $0x254] sm:$0xf]
  %v5831 = vld [vmem:[%s5680 + $0x258] sm:$0xf]
  %v5832 = vld [vmem:[%s5680 + $0x25c] sm:$0xf]
  %v5833 = vld [vmem:[%s5680 + $0x260] sm:$0xf]
  %v5834 = vld [vmem:[%s5680 + $0x264] sm:$0xf]
  %v5835 = vld [vmem:[%s5680 + $0x268] sm:$0xf]
  %v5836 = vld [vmem:[%s5680 + $0x26c] sm:$0xf]
  %v5837 = vld [vmem:[%s5680 + $0x270] sm:$0xf]
  %v5838 = vld [vmem:[%s5680 + $0x274] sm:$0xf]
  %v5839 = vld [vmem:[%s5680 + $0x278] sm:$0xf]
  %v5840 = vld [vmem:[%s5680 + $0x27c] sm:$0xf]
  %v5841 = vld [vmem:[%s5680 + $0x280] sm:$0xf]
  %v5842 = vld [vmem:[%s5680 + $0x284] sm:$0xf]
  %v5843 = vld [vmem:[%s5680 + $0x288] sm:$0xf]
  %v5844 = vld [vmem:[%s5680 + $0x28c] sm:$0xf]
  %v5845 = vld [vmem:[%s5680 + $0x290] sm:$0xf]
  %v5846 = vld [vmem:[%s5680 + $0x294] sm:$0xf]
  %v5847 = vld [vmem:[%s5680 + $0x298] sm:$0xf]
  %v5848 = vld [vmem:[%s5680 + $0x29c] sm:$0xf]
  %v5849 = vld [vmem:[%s5680 + $0x2a0] sm:$0xf]
  %v5850 = vld [vmem:[%s5680 + $0x2a4] sm:$0xf]
  %v5851 = vld [vmem:[%s5680 + $0x2a8] sm:$0xf]
  %v5852 = vld [vmem:[%s5680 + $0x2ac] sm:$0xf]
  %v5853 = vld [vmem:[%s5680 + $0x2b0] sm:$0xf]
  %v5854 = vld [vmem:[%s5680 + $0x2b4] sm:$0xf]
  %v5855 = vld [vmem:[%s5680 + $0x2b8] sm:$0xf]
  %v5856 = vld [vmem:[%s5680 + $0x2bc] sm:$0xf]
  %v5857 = vld [vmem:[%s5680 + $0x2c0] sm:$0xf]
  %v5858 = vld [vmem:[%s5680 + $0x2c4] sm:$0xf]
  %v5859 = vld [vmem:[%s5680 + $0x2c8] sm:$0xf]
  %v5860 = vld [vmem:[%s5680 + $0x2cc] sm:$0xf]
  %v5861 = vld [vmem:[%s5680 + $0x2d0] sm:$0xf]
  %v5862 = vld [vmem:[%s5680 + $0x2d4] sm:$0xf]
  %v5863 = vld [vmem:[%s5680 + $0x2d8] sm:$0xf]
  %v5864 = vld [vmem:[%s5680 + $0x2dc] sm:$0xf]
  %v5865 = vld [vmem:[%s5680 + $0x2e0] sm:$0xf]
  %v5866 = vld [vmem:[%s5680 + $0x2e4] sm:$0xf]
  %v5867 = vld [vmem:[%s5680 + $0x2e8] sm:$0xf]
  %v5868 = vld [vmem:[%s5680 + $0x2ec] sm:$0xf]
  %v5869 = vld [vmem:[%s5680 + $0x2f0] sm:$0xf]
  %v5870 = vld [vmem:[%s5680 + $0x2f4] sm:$0xf]
  %v5871 = vld [vmem:[%s5680 + $0x2f8] sm:$0xf]
  %v5872 = vld [vmem:[%s5680 + $0x2fc] sm:$0xf]
  %v5873 = vld [vmem:[%s5680 + $0x300] sm:$0xf]
  %v5874 = vld [vmem:[%s5680 + $0x304] sm:$0xf]
  %v5875 = vld [vmem:[%s5680 + $0x308] sm:$0xf]
  %v5876 = vld [vmem:[%s5680 + $0x30c] sm:$0xf]
  %v5877 = vld [vmem:[%s5680 + $0x310] sm:$0xf]
  %v5878 = vld [vmem:[%s5680 + $0x314] sm:$0xf]
  %v5879 = vld [vmem:[%s5680 + $0x318] sm:$0xf]
  %v5880 = vld [vmem:[%s5680 + $0x31c] sm:$0xf]
  %v5881 = vld [vmem:[%s5680 + $0x320] sm:$0xf]
  %v5882 = vld [vmem:[%s5680 + $0x324] sm:$0xf]
  %v5883 = vld [vmem:[%s5680 + $0x328] sm:$0xf]
  %v5884 = vld [vmem:[%s5680 + $0x32c] sm:$0xf]
  %v5885 = vld [vmem:[%s5680 + $0x330] sm:$0xf]
  %v5886 = vld [vmem:[%s5680 + $0x334] sm:$0xf]
  %v5887 = vld [vmem:[%s5680 + $0x338] sm:$0xf]
  %v5888 = vld [vmem:[%s5680 + $0x33c] sm:$0xf]
  %v5889 = vld [vmem:[%s5680 + $0x340] sm:$0xf]
  %v5890 = vld [vmem:[%s5680 + $0x344] sm:$0xf]
  %v5891 = vld [vmem:[%s5680 + $0x348] sm:$0xf]
  %v5892 = vld [vmem:[%s5680 + $0x34c] sm:$0xf]
  %v5893 = vld [vmem:[%s5680 + $0x350] sm:$0xf]
  %v5894 = vld [vmem:[%s5680 + $0x354] sm:$0xf]
  %v5895 = vld [vmem:[%s5680 + $0x358] sm:$0xf]
  %v5896 = vld [vmem:[%s5680 + $0x35c] sm:$0xf]
  %v5897 = vld [vmem:[%s5680 + $0x360] sm:$0xf]
  %v5898 = vld [vmem:[%s5680 + $0x364] sm:$0xf]
  %v5899 = vld [vmem:[%s5680 + $0x368] sm:$0xf]
  %v5900 = vld [vmem:[%s5680 + $0x36c] sm:$0xf]
  %v5901 = vld [vmem:[%s5680 + $0x370] sm:$0xf]
  %v5902 = vld [vmem:[%s5680 + $0x374] sm:$0xf]
  %v5903 = vld [vmem:[%s5680 + $0x378] sm:$0xf]
  %v5904 = vld [vmem:[%s5680 + $0x37c] sm:$0xf]
  %v5905 = vld [vmem:[%s5680 + $0x380] sm:$0xf]
  %v5906 = vld [vmem:[%s5680 + $0x384] sm:$0xf]
  %v5907 = vld [vmem:[%s5680 + $0x388] sm:$0xf]
  %v5908 = vld [vmem:[%s5680 + $0x38c] sm:$0xf]
  %v5909 = vld [vmem:[%s5680 + $0x390] sm:$0xf]
  %v5910 = vld [vmem:[%s5680 + $0x394] sm:$0xf]
  %v5911 = vld [vmem:[%s5680 + $0x398] sm:$0xf]
  %v5912 = vld [vmem:[%s5680 + $0x39c] sm:$0xf]
  %v5913 = vld [vmem:[%s5680 + $0x3a0] sm:$0xf]
  %v5914 = vld [vmem:[%s5680 + $0x3a4] sm:$0xf]
  %v5915 = vld [vmem:[%s5680 + $0x3a8] sm:$0xf]
  %v5916 = vld [vmem:[%s5680 + $0x3ac] sm:$0xf]
  %v5917 = vld [vmem:[%s5680 + $0x3b0] sm:$0xf]
  %v5918 = vld [vmem:[%s5680 + $0x3b4] sm:$0xf]
  %v5919 = vld [vmem:[%s5680 + $0x3b8] sm:$0xf]
  %v5920 = vld [vmem:[%s5680 + $0x3bc] sm:$0xf]
  %v5921 = vld [vmem:[%s5680 + $0x3c0] sm:$0xf]
  %v5922 = vld [vmem:[%s5680 + $0x3c4] sm:$0xf]
  %v5923 = vld [vmem:[%s5680 + $0x3c8] sm:$0xf]
  %v5924 = vld [vmem:[%s5680 + $0x3cc] sm:$0xf]
  %v5925 = vld [vmem:[%s5680 + $0x3d0] sm:$0xf]
  %v5926 = vld [vmem:[%s5680 + $0x3d4] sm:$0xf]
  %v5927 = vld [vmem:[%s5680 + $0x3d8] sm:$0xf]
  %v5928 = vld [vmem:[%s5680 + $0x3dc] sm:$0xf]
  %v5929 = vld [vmem:[%s5680 + $0x3e0] sm:$0xf]
  %v5930 = vld [vmem:[%s5680 + $0x3e4] sm:$0xf]
  %v5931 = vld [vmem:[%s5680 + $0x3e8] sm:$0xf]
  %v5932 = vld [vmem:[%s5680 + $0x3ec] sm:$0xf]
  %v5933 = vld [vmem:[%s5680 + $0x3f0] sm:$0xf]
  %v5934 = vld [vmem:[%s5680 + $0x3f4] sm:$0xf]
  %v5935 = vld [vmem:[%s5680 + $0x3f8] sm:$0xf]
  %v5936 = vld [vmem:[%s5680 + $0x3fc] sm:$0xf]
  %v5937 = vlaneseq
  %v5938 = vshrl.u32 %v5937, 7
  %v5939 = vsub.s32 3, %v5938
  %v5940 = vrot.slane %v4740, %v5939
  %v6197 = vunpack.c.l.b16 %v5681
  %v6198 = vunpack.c.l.b16 %v5682
  %v6199 = vunpack.c.l.b16 %v5683
  %v6200 = vunpack.c.l.b16 %v5684
  %v6201 = vunpack.c.l.b16 %v5685
  %v6202 = vunpack.c.l.b16 %v5686
  %v6203 = vunpack.c.l.b16 %v5687
  %v6204 = vunpack.c.l.b16 %v5688
  %v6205 = vunpack.c.l.b16 %v5689
  %v6206 = vunpack.c.l.b16 %v5690
  %v6207 = vunpack.c.l.b16 %v5691
  %v6208 = vunpack.c.l.b16 %v5692
  %v6209 = vunpack.c.l.b16 %v5693
  %v6210 = vunpack.c.l.b16 %v5694
  %v6211 = vunpack.c.l.b16 %v5695
  %v6212 = vunpack.c.l.b16 %v5696
  %v6213 = vunpack.c.l.b16 %v5697
  %v6214 = vunpack.c.l.b16 %v5698
  %v6215 = vunpack.c.l.b16 %v5699
  %v6216 = vunpack.c.l.b16 %v5700
  %v6217 = vunpack.c.l.b16 %v5701
  %v6218 = vunpack.c.l.b16 %v5702
  %v6219 = vunpack.c.l.b16 %v5703
  %v6220 = vunpack.c.l.b16 %v5704
  %v6221 = vunpack.c.l.b16 %v5705
  %v6222 = vunpack.c.l.b16 %v5706
  %v6223 = vunpack.c.l.b16 %v5707
  %v6224 = vunpack.c.l.b16 %v5708
  %v6225 = vunpack.c.l.b16 %v5709
  %v6226 = vunpack.c.l.b16 %v5710
  %v6227 = vunpack.c.l.b16 %v5711
  %v6228 = vunpack.c.l.b16 %v5712
  %v6229 = vunpack.c.l.b16 %v5713
  %v6230 = vunpack.c.l.b16 %v5714
  %v6231 = vunpack.c.l.b16 %v5715
  %v6232 = vunpack.c.l.b16 %v5716
  %v6233 = vunpack.c.l.b16 %v5717
  %v6234 = vunpack.c.l.b16 %v5718
  %v6235 = vunpack.c.l.b16 %v5719
  %v6236 = vunpack.c.l.b16 %v5720
  %v6237 = vunpack.c.l.b16 %v5721
  %v6238 = vunpack.c.l.b16 %v5722
  %v6239 = vunpack.c.l.b16 %v5723
  %v6240 = vunpack.c.l.b16 %v5724
  %v6241 = vunpack.c.l.b16 %v5725
  %v6242 = vunpack.c.l.b16 %v5726
  %v6243 = vunpack.c.l.b16 %v5727
  %v6244 = vunpack.c.l.b16 %v5728
  %v6245 = vunpack.c.l.b16 %v5729
  %v6246 = vunpack.c.l.b16 %v5730
  %v6247 = vunpack.c.l.b16 %v5731
  %v6248 = vunpack.c.l.b16 %v5732
  %v6249 = vunpack.c.l.b16 %v5733
  %v6250 = vunpack.c.l.b16 %v5734
  %v6251 = vunpack.c.l.b16 %v5735
  %v6252 = vunpack.c.l.b16 %v5736
  %v6253 = vunpack.c.l.b16 %v5737
  %v6254 = vunpack.c.l.b16 %v5738
  %v6255 = vunpack.c.l.b16 %v5739
  %v6256 = vunpack.c.l.b16 %v5740
  %v6257 = vunpack.c.l.b16 %v5741
  %v6258 = vunpack.c.l.b16 %v5742
  %v6259 = vunpack.c.l.b16 %v5743
  %v6260 = vunpack.c.l.b16 %v5744
  %v6261 = vunpack.c.l.b16 %v5745
  %v6262 = vunpack.c.l.b16 %v5746
  %v6263 = vunpack.c.l.b16 %v5747
  %v6264 = vunpack.c.l.b16 %v5748
  %v6265 = vunpack.c.l.b16 %v5749
  %v6266 = vunpack.c.l.b16 %v5750
  %v6267 = vunpack.c.l.b16 %v5751
  %v6268 = vunpack.c.l.b16 %v5752
  %v6269 = vunpack.c.l.b16 %v5753
  %v6270 = vunpack.c.l.b16 %v5754
  %v6271 = vunpack.c.l.b16 %v5755
  %v6272 = vunpack.c.l.b16 %v5756
  %v6273 = vunpack.c.l.b16 %v5757
  %v6274 = vunpack.c.l.b16 %v5758
  %v6275 = vunpack.c.l.b16 %v5759
  %v6276 = vunpack.c.l.b16 %v5760
  %v6277 = vunpack.c.l.b16 %v5761
  %v6278 = vunpack.c.l.b16 %v5762
  %v6279 = vunpack.c.l.b16 %v5763
  %v6280 = vunpack.c.l.b16 %v5764
  %v6281 = vunpack.c.l.b16 %v5765
  %v6282 = vunpack.c.l.b16 %v5766
  %v6283 = vunpack.c.l.b16 %v5767
  %v6284 = vunpack.c.l.b16 %v5768
  %v6285 = vunpack.c.l.b16 %v5769
  %v6286 = vunpack.c.l.b16 %v5770
  %v6287 = vunpack.c.l.b16 %v5771
  %v6288 = vunpack.c.l.b16 %v5772
  %v6289 = vunpack.c.l.b16 %v5773
  %v6290 = vunpack.c.l.b16 %v5774
  %v6291 = vunpack.c.l.b16 %v5775
  %v6292 = vunpack.c.l.b16 %v5776
  %v6293 = vunpack.c.l.b16 %v5777
  %v6294 = vunpack.c.l.b16 %v5778
  %v6295 = vunpack.c.l.b16 %v5779
  %v6296 = vunpack.c.l.b16 %v5780
  %v6297 = vunpack.c.l.b16 %v5781
  %v6298 = vunpack.c.l.b16 %v5782
  %v6299 = vunpack.c.l.b16 %v5783
  %v6300 = vunpack.c.l.b16 %v5784
  %v6301 = vunpack.c.l.b16 %v5785
  %v6302 = vunpack.c.l.b16 %v5786
  %v6303 = vunpack.c.l.b16 %v5787
  %v6304 = vunpack.c.l.b16 %v5788
  %v6305 = vunpack.c.l.b16 %v5789
  %v6306 = vunpack.c.l.b16 %v5790
  %v6307 = vunpack.c.l.b16 %v5791
  %v6308 = vunpack.c.l.b16 %v5792
  %v6309 = vunpack.c.l.b16 %v5793
  %v6310 = vunpack.c.l.b16 %v5794
  %v6311 = vunpack.c.l.b16 %v5795
  %v6312 = vunpack.c.l.b16 %v5796
  %v6313 = vunpack.c.l.b16 %v5797
  %v6314 = vunpack.c.l.b16 %v5798
  %v6315 = vunpack.c.l.b16 %v5799
  %v6316 = vunpack.c.l.b16 %v5800
  %v6317 = vunpack.c.l.b16 %v5801
  %v6318 = vunpack.c.l.b16 %v5802
  %v6319 = vunpack.c.l.b16 %v5803
  %v6320 = vunpack.c.l.b16 %v5804
  %v6321 = vunpack.c.l.b16 %v5805
  %v6322 = vunpack.c.l.b16 %v5806
  %v6323 = vunpack.c.l.b16 %v5807
  %v6324 = vunpack.c.l.b16 %v5808
  %v6325 = vunpack.c.l.b16 %v5809
  %v6326 = vunpack.c.l.b16 %v5810
  %v6327 = vunpack.c.l.b16 %v5811
  %v6328 = vunpack.c.l.b16 %v5812
  %v6329 = vunpack.c.l.b16 %v5813
  %v6330 = vunpack.c.l.b16 %v5814
  %v6331 = vunpack.c.l.b16 %v5815
  %v6332 = vunpack.c.l.b16 %v5816
  %v6333 = vunpack.c.l.b16 %v5817
  %v6334 = vunpack.c.l.b16 %v5818
  %v6335 = vunpack.c.l.b16 %v5819
  %v6336 = vunpack.c.l.b16 %v5820
  %v6337 = vunpack.c.l.b16 %v5821
  %v6338 = vunpack.c.l.b16 %v5822
  %v6339 = vunpack.c.l.b16 %v5823
  %v6340 = vunpack.c.l.b16 %v5824
  %v6341 = vunpack.c.l.b16 %v5825
  %v6342 = vunpack.c.l.b16 %v5826
  %v6343 = vunpack.c.l.b16 %v5827
  %v6344 = vunpack.c.l.b16 %v5828
  %v6345 = vunpack.c.l.b16 %v5829
  %v6346 = vunpack.c.l.b16 %v5830
  %v6347 = vunpack.c.l.b16 %v5831
  %v6348 = vunpack.c.l.b16 %v5832
  %v6349 = vunpack.c.l.b16 %v5833
  %v6350 = vunpack.c.l.b16 %v5834
  %v6351 = vunpack.c.l.b16 %v5835
  %v6352 = vunpack.c.l.b16 %v5836
  %v6353 = vunpack.c.l.b16 %v5837
  %v6354 = vunpack.c.l.b16 %v5838
  %v6355 = vunpack.c.l.b16 %v5839
  %v6356 = vunpack.c.l.b16 %v5840
  %v6357 = vunpack.c.l.b16 %v5841
  %v6358 = vunpack.c.l.b16 %v5842
  %v6359 = vunpack.c.l.b16 %v5843
  %v6360 = vunpack.c.l.b16 %v5844
  %v6361 = vunpack.c.l.b16 %v5845
  %v6362 = vunpack.c.l.b16 %v5846
  %v6363 = vunpack.c.l.b16 %v5847
  %v6364 = vunpack.c.l.b16 %v5848
  %v6365 = vunpack.c.l.b16 %v5849
  %v6366 = vunpack.c.l.b16 %v5850
  %v6367 = vunpack.c.l.b16 %v5851
  %v6368 = vunpack.c.l.b16 %v5852
  %v6369 = vunpack.c.l.b16 %v5853
  %v6370 = vunpack.c.l.b16 %v5854
  %v6371 = vunpack.c.l.b16 %v5855
  %v6372 = vunpack.c.l.b16 %v5856
  %v6373 = vunpack.c.l.b16 %v5857
  %v6374 = vunpack.c.l.b16 %v5858
  %v6375 = vunpack.c.l.b16 %v5859
  %v6376 = vunpack.c.l.b16 %v5860
  %v6377 = vunpack.c.l.b16 %v5861
  %v6378 = vunpack.c.l.b16 %v5862
  %v6379 = vunpack.c.l.b16 %v5863
  %v6380 = vunpack.c.l.b16 %v5864
  %v6381 = vunpack.c.l.b16 %v5865
  %v6382 = vunpack.c.l.b16 %v5866
  %v6383 = vunpack.c.l.b16 %v5867
  %v6384 = vunpack.c.l.b16 %v5868
  %v6385 = vunpack.c.l.b16 %v5869
  %v6386 = vunpack.c.l.b16 %v5870
  %v6387 = vunpack.c.l.b16 %v5871
  %v6388 = vunpack.c.l.b16 %v5872
  %v6389 = vunpack.c.l.b16 %v5873
  %v6390 = vunpack.c.l.b16 %v5874
  %v6391 = vunpack.c.l.b16 %v5875
  %v6392 = vunpack.c.l.b16 %v5876
  %v6393 = vunpack.c.l.b16 %v5877
  %v6394 = vunpack.c.l.b16 %v5878
  %v6395 = vunpack.c.l.b16 %v5879
  %v6396 = vunpack.c.l.b16 %v5880
  %v6397 = vunpack.c.l.b16 %v5881
  %v6398 = vunpack.c.l.b16 %v5882
  %v6399 = vunpack.c.l.b16 %v5883
  %v6400 = vunpack.c.l.b16 %v5884
  %v6401 = vunpack.c.l.b16 %v5885
  %v6402 = vunpack.c.l.b16 %v5886
  %v6403 = vunpack.c.l.b16 %v5887
  %v6404 = vunpack.c.l.b16 %v5888
  %v6405 = vunpack.c.l.b16 %v5889
  %v6406 = vunpack.c.l.b16 %v5890
  %v6407 = vunpack.c.l.b16 %v5891
  %v6408 = vunpack.c.l.b16 %v5892
  %v6409 = vunpack.c.l.b16 %v5893
  %v6410 = vunpack.c.l.b16 %v5894
  %v6411 = vunpack.c.l.b16 %v5895
  %v6412 = vunpack.c.l.b16 %v5896
  %v6413 = vunpack.c.l.b16 %v5897
  %v6414 = vunpack.c.l.b16 %v5898
  %v6415 = vunpack.c.l.b16 %v5899
  %v6416 = vunpack.c.l.b16 %v5900
  %v6417 = vunpack.c.l.b16 %v5901
  %v6418 = vunpack.c.l.b16 %v5902
  %v6419 = vunpack.c.l.b16 %v5903
  %v6420 = vunpack.c.l.b16 %v5904
  %v6421 = vunpack.c.l.b16 %v5905
  %v6422 = vunpack.c.l.b16 %v5906
  %v6423 = vunpack.c.l.b16 %v5907
  %v6424 = vunpack.c.l.b16 %v5908
  %v6425 = vunpack.c.l.b16 %v5909
  %v6426 = vunpack.c.l.b16 %v5910
  %v6427 = vunpack.c.l.b16 %v5911
  %v6428 = vunpack.c.l.b16 %v5912
  %v6429 = vunpack.c.l.b16 %v5913
  %v6430 = vunpack.c.l.b16 %v5914
  %v6431 = vunpack.c.l.b16 %v5915
  %v6432 = vunpack.c.l.b16 %v5916
  %v6433 = vunpack.c.l.b16 %v5917
  %v6434 = vunpack.c.l.b16 %v5918
  %v6435 = vunpack.c.l.b16 %v5919
  %v6436 = vunpack.c.l.b16 %v5920
  %v6437 = vunpack.c.l.b16 %v5921
  %v6438 = vunpack.c.l.b16 %v5922
  %v6439 = vunpack.c.l.b16 %v5923
  %v6440 = vunpack.c.l.b16 %v5924
  %v6441 = vunpack.c.l.b16 %v5925
  %v6442 = vunpack.c.l.b16 %v5926
  %v6443 = vunpack.c.l.b16 %v5927
  %v6444 = vunpack.c.l.b16 %v5928
  %v6445 = vunpack.c.l.b16 %v5929
  %v6446 = vunpack.c.l.b16 %v5930
  %v6447 = vunpack.c.l.b16 %v5931
  %v6448 = vunpack.c.l.b16 %v5932
  %v6449 = vunpack.c.l.b16 %v5933
  %v6450 = vunpack.c.l.b16 %v5934
  %v6451 = vunpack.c.l.b16 %v5935
  %v6452 = vunpack.c.l.b16 %v5936
  %v6453 = vpack.c.b16 %v6198, %v6197
  %v6454 = vpack.c.b16 %v6200, %v6199
  %v6455 = vpack.c.b16 %v6202, %v6201
  %v6456 = vpack.c.b16 %v6204, %v6203
  %v6457 = vpack.c.b16 %v6206, %v6205
  %v6458 = vpack.c.b16 %v6208, %v6207
  %v6459 = vpack.c.b16 %v6210, %v6209
  %v6460 = vpack.c.b16 %v6212, %v6211
  %v6461 = vpack.c.b16 %v6214, %v6213
  %v6462 = vpack.c.b16 %v6216, %v6215
  %v6463 = vpack.c.b16 %v6218, %v6217
  %v6464 = vpack.c.b16 %v6220, %v6219
  %v6465 = vpack.c.b16 %v6222, %v6221
  %v6466 = vpack.c.b16 %v6224, %v6223
  %v6467 = vpack.c.b16 %v6226, %v6225
  %v6468 = vpack.c.b16 %v6228, %v6227
  %v6469 = vpack.c.b16 %v6230, %v6229
  %v6470 = vpack.c.b16 %v6232, %v6231
  %v6471 = vpack.c.b16 %v6234, %v6233
  %v6472 = vpack.c.b16 %v6236, %v6235
  %v6473 = vpack.c.b16 %v6238, %v6237
  %v6474 = vpack.c.b16 %v6240, %v6239
  %v6475 = vpack.c.b16 %v6242, %v6241
  %v6476 = vpack.c.b16 %v6244, %v6243
  %v6477 = vpack.c.b16 %v6246, %v6245
  %v6478 = vpack.c.b16 %v6248, %v6247
  %v6479 = vpack.c.b16 %v6250, %v6249
  %v6480 = vpack.c.b16 %v6252, %v6251
  %v6481 = vpack.c.b16 %v6254, %v6253
  %v6482 = vpack.c.b16 %v6256, %v6255
  %v6483 = vpack.c.b16 %v6258, %v6257
  %v6484 = vpack.c.b16 %v6260, %v6259
  %v6485 = vpack.c.b16 %v6262, %v6261
  %v6486 = vpack.c.b16 %v6264, %v6263
  %v6487 = vpack.c.b16 %v6266, %v6265
  %v6488 = vpack.c.b16 %v6268, %v6267
  %v6489 = vpack.c.b16 %v6270, %v6269
  %v6490 = vpack.c.b16 %v6272, %v6271
  %v6491 = vpack.c.b16 %v6274, %v6273
  %v6492 = vpack.c.b16 %v6276, %v6275
  %v6493 = vpack.c.b16 %v6278, %v6277
  %v6494 = vpack.c.b16 %v6280, %v6279
  %v6495 = vpack.c.b16 %v6282, %v6281
  %v6496 = vpack.c.b16 %v6284, %v6283
  %v6497 = vpack.c.b16 %v6286, %v6285
  %v6498 = vpack.c.b16 %v6288, %v6287
  %v6499 = vpack.c.b16 %v6290, %v6289
  %v6500 = vpack.c.b16 %v6292, %v6291
  %v6501 = vpack.c.b16 %v6294, %v6293
  %v6502 = vpack.c.b16 %v6296, %v6295
  %v6503 = vpack.c.b16 %v6298, %v6297
  %v6504 = vpack.c.b16 %v6300, %v6299
  %v6505 = vpack.c.b16 %v6302, %v6301
  %v6506 = vpack.c.b16 %v6304, %v6303
  %v6507 = vpack.c.b16 %v6306, %v6305
  %v6508 = vpack.c.b16 %v6308, %v6307
  %v6509 = vpack.c.b16 %v6310, %v6309
  %v6510 = vpack.c.b16 %v6312, %v6311
  %v6511 = vpack.c.b16 %v6314, %v6313
  %v6512 = vpack.c.b16 %v6316, %v6315
  %v6513 = vpack.c.b16 %v6318, %v6317
  %v6514 = vpack.c.b16 %v6320, %v6319
  %v6515 = vpack.c.b16 %v6322, %v6321
  %v6516 = vpack.c.b16 %v6324, %v6323
  %v6517 = vpack.c.b16 %v6326, %v6325
  %v6518 = vpack.c.b16 %v6328, %v6327
  %v6519 = vpack.c.b16 %v6330, %v6329
  %v6520 = vpack.c.b16 %v6332, %v6331
  %v6521 = vpack.c.b16 %v6334, %v6333
  %v6522 = vpack.c.b16 %v6336, %v6335
  %v6523 = vpack.c.b16 %v6338, %v6337
  %v6524 = vpack.c.b16 %v6340, %v6339
  %v6525 = vpack.c.b16 %v6342, %v6341
  %v6526 = vpack.c.b16 %v6344, %v6343
  %v6527 = vpack.c.b16 %v6346, %v6345
  %v6528 = vpack.c.b16 %v6348, %v6347
  %v6529 = vpack.c.b16 %v6350, %v6349
  %v6530 = vpack.c.b16 %v6352, %v6351
  %v6531 = vpack.c.b16 %v6354, %v6353
  %v6532 = vpack.c.b16 %v6356, %v6355
  %v6533 = vpack.c.b16 %v6358, %v6357
  %v6534 = vpack.c.b16 %v6360, %v6359
  %v6535 = vpack.c.b16 %v6362, %v6361
  %v6536 = vpack.c.b16 %v6364, %v6363
  %v6537 = vpack.c.b16 %v6366, %v6365
  %v6538 = vpack.c.b16 %v6368, %v6367
  %v6539 = vpack.c.b16 %v6370, %v6369
  %v6540 = vpack.c.b16 %v6372, %v6371
  %v6541 = vpack.c.b16 %v6374, %v6373
  %v6542 = vpack.c.b16 %v6376, %v6375
  %v6543 = vpack.c.b16 %v6378, %v6377
  %v6544 = vpack.c.b16 %v6380, %v6379
  %v6545 = vpack.c.b16 %v6382, %v6381
  %v6546 = vpack.c.b16 %v6384, %v6383
  %v6547 = vpack.c.b16 %v6386, %v6385
  %v6548 = vpack.c.b16 %v6388, %v6387
  %v6549 = vpack.c.b16 %v6390, %v6389
  %v6550 = vpack.c.b16 %v6392, %v6391
  %v6551 = vpack.c.b16 %v6394, %v6393
  %v6552 = vpack.c.b16 %v6396, %v6395
  %v6553 = vpack.c.b16 %v6398, %v6397
  %v6554 = vpack.c.b16 %v6400, %v6399
  %v6555 = vpack.c.b16 %v6402, %v6401
  %v6556 = vpack.c.b16 %v6404, %v6403
  %v6557 = vpack.c.b16 %v6406, %v6405
  %v6558 = vpack.c.b16 %v6408, %v6407
  %v6559 = vpack.c.b16 %v6410, %v6409
  %v6560 = vpack.c.b16 %v6412, %v6411
  %v6561 = vpack.c.b16 %v6414, %v6413
  %v6562 = vpack.c.b16 %v6416, %v6415
  %v6563 = vpack.c.b16 %v6418, %v6417
  %v6564 = vpack.c.b16 %v6420, %v6419
  %v6565 = vpack.c.b16 %v6422, %v6421
  %v6566 = vpack.c.b16 %v6424, %v6423
  %v6567 = vpack.c.b16 %v6426, %v6425
  %v6568 = vpack.c.b16 %v6428, %v6427
  %v6569 = vpack.c.b16 %v6430, %v6429
  %v6570 = vpack.c.b16 %v6432, %v6431
  %v6571 = vpack.c.b16 %v6434, %v6433
  %v6572 = vpack.c.b16 %v6436, %v6435
  %v6573 = vpack.c.b16 %v6438, %v6437
  %v6574 = vpack.c.b16 %v6440, %v6439
  %v6575 = vpack.c.b16 %v6442, %v6441
  %v6576 = vpack.c.b16 %v6444, %v6443
  %v6577 = vpack.c.b16 %v6446, %v6445
  %v6578 = vpack.c.b16 %v6448, %v6447
  %v6579 = vpack.c.b16 %v6450, %v6449
  %v6580 = vpack.c.b16 %v6452, %v6451
  %6709 = vmatprep.subr.bf16.mxu0 0
  %6710 = vmatpush1.bf16.msra.mxu0 %v6453
  %6711 = vmatprep.subr.bf16.mxu0 0
  %6712 = vmatpush1.bf16.msra.mxu0 %v6454
  %6713 = vmatprep.subr.bf16.mxu0 0
  %6714 = vmatpush1.bf16.msra.mxu0 %v6455
  %6715 = vmatprep.subr.bf16.mxu0 0
  %6716 = vmatpush1.bf16.msra.mxu0 %v6456
  %6717 = vmatprep.subr.bf16.mxu0 0
  %6718 = vmatpush1.bf16.msra.mxu0 %v6457
  %6719 = vmatprep.subr.bf16.mxu0 0
  %6720 = vmatpush1.bf16.msra.mxu0 %v6458
  %6721 = vmatprep.subr.bf16.mxu0 0
  %6722 = vmatpush1.bf16.msra.mxu0 %v6459
  %6723 = vmatprep.subr.bf16.mxu0 0
  %6724 = vmatpush1.bf16.msra.mxu0 %v6460
  %6725 = vmatprep.subr.bf16.mxu0 0
  %6726 = vmatpush1.bf16.msra.mxu0 %v6461
  %6727 = vmatprep.subr.bf16.mxu0 0
  %6728 = vmatpush1.bf16.msra.mxu0 %v6462
  %6729 = vmatprep.subr.bf16.mxu0 0
  %6730 = vmatpush1.bf16.msra.mxu0 %v6463
  %6731 = vmatprep.subr.bf16.mxu0 0
  %6732 = vmatpush1.bf16.msra.mxu0 %v6464
  %6733 = vmatprep.subr.bf16.mxu0 0
  %6734 = vmatpush1.bf16.msra.mxu0 %v6465
  %6735 = vmatprep.subr.bf16.mxu0 0
  %6736 = vmatpush1.bf16.msra.mxu0 %v6466
  %6737 = vmatprep.subr.bf16.mxu0 0
  %6738 = vmatpush1.bf16.msra.mxu0 %v6467
  %6739 = vmatprep.subr.bf16.mxu0 0
  %6740 = vmatpush1.bf16.msra.mxu0 %v6468
  %6741 = vmatprep.mubr.bf16.mxu0 %v5665
  %6742 = vmatmul.mubr.bf16.gmra.mrb[0].mxu0 %v5664
  %v6743 = vpop.f32.mrb[0].mxu0
  %v6744 = vadd.f32 %v5940, %v6743
  %v6745 = vpop.f32.mrb[0].mxu0
  %v6746 = vpop.f32.mrb[0].mxu0
  %v6747 = vpop.f32.mrb[0].mxu0
  %6748 = vdwg.mxu0
  %6749 = vmatprep.subr.bf16.mxu0 0
  %6750 = vmatpush1.bf16.msra.mxu0 %v6469
  %6751 = vmatprep.subr.bf16.mxu0 0
  %6752 = vmatpush1.bf16.msra.mxu0 %v6470
  %6753 = vmatprep.subr.bf16.mxu0 0
  %6754 = vmatpush1.bf16.msra.mxu0 %v6471
  %6755 = vmatprep.subr.bf16.mxu0 0
  %6756 = vmatpush1.bf16.msra.mxu0 %v6472
  %6757 = vmatprep.subr.bf16.mxu0 0
  %6758 = vmatpush1.bf16.msra.mxu0 %v6473
  %6759 = vmatprep.subr.bf16.mxu0 0
  %6760 = vmatpush1.bf16.msra.mxu0 %v6474
  %6761 = vmatprep.subr.bf16.mxu0 0
  %6762 = vmatpush1.bf16.msra.mxu0 %v6475
  %6763 = vmatprep.subr.bf16.mxu0 0
  %6764 = vmatpush1.bf16.msra.mxu0 %v6476
  %6765 = vmatprep.subr.bf16.mxu0 0
  %6766 = vmatpush1.bf16.msra.mxu0 %v6477
  %6767 = vmatprep.subr.bf16.mxu0 0
  %6768 = vmatpush1.bf16.msra.mxu0 %v6478
  %6769 = vmatprep.subr.bf16.mxu0 0
  %6770 = vmatpush1.bf16.msra.mxu0 %v6479
  %6771 = vmatprep.subr.bf16.mxu0 0
  %6772 = vmatpush1.bf16.msra.mxu0 %v6480
  %6773 = vmatprep.subr.bf16.mxu0 0
  %6774 = vmatpush1.bf16.msra.mxu0 %v6481
  %6775 = vmatprep.subr.bf16.mxu0 0
  %6776 = vmatpush1.bf16.msra.mxu0 %v6482
  %6777 = vmatprep.subr.bf16.mxu0 0
  %6778 = vmatpush1.bf16.msra.mxu0 %v6483
  %6779 = vmatprep.subr.bf16.mxu0 0
  %6780 = vmatpush1.bf16.msra.mxu0 %v6484
  %6781 = vmatprep.mubr.bf16.mxu0 %v5667
  %6782 = vmatmul.mubr.bf16.gmra.mrb[0].mxu0 %v5666
  %v6783 = vpop.f32.mrb[0].mxu0
  %v6784 = vadd.f32 %v6744, %v6783
  %v6785 = vpop.f32.mrb[0].mxu0
  %v6786 = vpop.f32.mrb[0].mxu0
  %v6787 = vpop.f32.mrb[0].mxu0
  %6788 = vdwg.mxu0
  %6789 = vmatprep.subr.bf16.mxu0 0
  %6790 = vmatpush1.bf16.msra.mxu0 %v6485
  %6791 = vmatprep.subr.bf16.mxu0 0
  %6792 = vmatpush1.bf16.msra.mxu0 %v6486
  %6793 = vmatprep.subr.bf16.mxu0 0
  %6794 = vmatpush1.bf16.msra.mxu0 %v6487
  %6795 = vmatprep.subr.bf16.mxu0 0
  %6796 = vmatpush1.bf16.msra.mxu0 %v6488
  %6797 = vmatprep.subr.bf16.mxu0 0
  %6798 = vmatpush1.bf16.msra.mxu0 %v6489
  %6799 = vmatprep.subr.bf16.mxu0 0
  %6800 = vmatpush1.bf16.msra.mxu0 %v6490
  %6801 = vmatprep.subr.bf16.mxu0 0
  %6802 = vmatpush1.bf16.msra.mxu0 %v6491
  %6803 = vmatprep.subr.bf16.mxu0 0
  %6804 = vmatpush1.bf16.msra.mxu0 %v6492
  %6805 = vmatprep.subr.bf16.mxu0 0
  %6806 = vmatpush1.bf16.msra.mxu0 %v6493
  %6807 = vmatprep.subr.bf16.mxu0 0
  %6808 = vmatpush1.bf16.msra.mxu0 %v6494
  %6809 = vmatprep.subr.bf16.mxu0 0
  %6810 = vmatpush1.bf16.msra.mxu0 %v6495
  %6811 = vmatprep.subr.bf16.mxu0 0
  %6812 = vmatpush1.bf16.msra.mxu0 %v6496
  %6813 = vmatprep.subr.bf16.mxu0 0
  %6814 = vmatpush1.bf16.msra.mxu0 %v6497
  %6815 = vmatprep.subr.bf16.mxu0 0
  %6816 = vmatpush1.bf16.msra.mxu0 %v6498
  %6817 = vmatprep.subr.bf16.mxu0 0
  %6818 = vmatpush1.bf16.msra.mxu0 %v6499
  %6819 = vmatprep.subr.bf16.mxu0 0
  %6820 = vmatpush1.bf16.msra.mxu0 %v6500
  %6821 = vmatprep.mubr.bf16.mxu0 %v5669
  %6822 = vmatmul.mubr.bf16.gmra.mrb[0].mxu0 %v5668
  %v6823 = vpop.f32.mrb[0].mxu0
  %v6824 = vadd.f32 %v6784, %v6823
  %v6825 = vpop.f32.mrb[0].mxu0
  %v6826 = vpop.f32.mrb[0].mxu0
  %v6827 = vpop.f32.mrb[0].mxu0
  %6828 = vdwg.mxu0
  %6829 = vmatprep.subr.bf16.mxu0 0
  %6830 = vmatpush1.bf16.msra.mxu0 %v6501
  %6831 = vmatprep.subr.bf16.mxu0 0
  %6832 = vmatpush1.bf16.msra.mxu0 %v6502
  %6833 = vmatprep.subr.bf16.mxu0 0
  %6834 = vmatpush1.bf16.msra.mxu0 %v6503
  %6835 = vmatprep.subr.bf16.mxu0 0
  %6836 = vmatpush1.bf16.msra.mxu0 %v6504
  %6837 = vmatprep.subr.bf16.mxu0 0
  %6838 = vmatpush1.bf16.msra.mxu0 %v6505
  %6839 = vmatprep.subr.bf16.mxu0 0
  %6840 = vmatpush1.bf16.msra.mxu0 %v6506
  %6841 = vmatprep.subr.bf16.mxu0 0
  %6842 = vmatpush1.bf16.msra.mxu0 %v6507
  %6843 = vmatprep.subr.bf16.mxu0 0
  %6844 = vmatpush1.bf16.msra.mxu0 %v6508
  %6845 = vmatprep.subr.bf16.mxu0 0
  %6846 = vmatpush1.bf16.msra.mxu0 %v6509
  %6847 = vmatprep.subr.bf16.mxu0 0
  %6848 = vmatpush1.bf16.msra.mxu0 %v6510
  %6849 = vmatprep.subr.bf16.mxu0 0
  %6850 = vmatpush1.bf16.msra.mxu0 %v6511
  %6851 = vmatprep.subr.bf16.mxu0 0
  %6852 = vmatpush1.bf16.msra.mxu0 %v6512
  %6853 = vmatprep.subr.bf16.mxu0 0
  %6854 = vmatpush1.bf16.msra.mxu0 %v6513
  %6855 = vmatprep.subr.bf16.mxu0 0
  %6856 = vmatpush1.bf16.msra.mxu0 %v6514
  %6857 = vmatprep.subr.bf16.mxu0 0
  %6858 = vmatpush1.bf16.msra.mxu0 %v6515
  %6859 = vmatprep.subr.bf16.mxu0 0
  %6860 = vmatpush1.bf16.msra.mxu0 %v6516
  %6861 = vmatprep.mubr.bf16.mxu0 %v5671
  %6862 = vmatmul.mubr.bf16.gmra.mrb[0].mxu0 %v5670
  %v6863 = vpop.f32.mrb[0].mxu0
  %v6864 = vadd.f32 %v6824, %v6863
  %v6865 = vpop.f32.mrb[0].mxu0
  %v6866 = vpop.f32.mrb[0].mxu0
  %v6867 = vpop.f32.mrb[0].mxu0
  %6868 = vdwg.mxu0
  %6869 = vmatprep.subr.bf16.mxu0 0
  %6870 = vmatpush1.bf16.msra.mxu0 %v6517
  %6871 = vmatprep.subr.bf16.mxu0 0
  %6872 = vmatpush1.bf16.msra.mxu0 %v6518
  %6873 = vmatprep.subr.bf16.mxu0 0
  %6874 = vmatpush1.bf16.msra.mxu0 %v6519
  %6875 = vmatprep.subr.bf16.mxu0 0
  %6876 = vmatpush1.bf16.msra.mxu0 %v6520
  %6877 = vmatprep.subr.bf16.mxu0 0
  %6878 = vmatpush1.bf16.msra.mxu0 %v6521
  %6879 = vmatprep.subr.bf16.mxu0 0
  %6880 = vmatpush1.bf16.msra.mxu0 %v6522
  %6881 = vmatprep.subr.bf16.mxu0 0
  %6882 = vmatpush1.bf16.msra.mxu0 %v6523
  %6883 = vmatprep.subr.bf16.mxu0 0
  %6884 = vmatpush1.bf16.msra.mxu0 %v6524
  %6885 = vmatprep.subr.bf16.mxu0 0
  %6886 = vmatpush1.bf16.msra.mxu0 %v6525
  %6887 = vmatprep.subr.bf16.mxu0 0
  %6888 = vmatpush1.bf16.msra.mxu0 %v6526
  %6889 = vmatprep.subr.bf16.mxu0 0
  %6890 = vmatpush1.bf16.msra.mxu0 %v6527
  %6891 = vmatprep.subr.bf16.mxu0 0
  %6892 = vmatpush1.bf16.msra.mxu0 %v6528
  %6893 = vmatprep.subr.bf16.mxu0 0
  %6894 = vmatpush1.bf16.msra.mxu0 %v6529
  %6895 = vmatprep.subr.bf16.mxu0 0
  %6896 = vmatpush1.bf16.msra.mxu0 %v6530
  %6897 = vmatprep.subr.bf16.mxu0 0
  %6898 = vmatpush1.bf16.msra.mxu0 %v6531
  %6899 = vmatprep.subr.bf16.mxu0 0
  %6900 = vmatpush1.bf16.msra.mxu0 %v6532
  %6901 = vmatprep.mubr.bf16.mxu0 %v5673
  %6902 = vmatmul.mubr.bf16.gmra.mrb[0].mxu0 %v5672
  %v6903 = vpop.f32.mrb[0].mxu0
  %v6904 = vadd.f32 %v6864, %v6903
  %v6905 = vpop.f32.mrb[0].mxu0
  %v6906 = vpop.f32.mrb[0].mxu0
  %v6907 = vpop.f32.mrb[0].mxu0
  %6908 = vdwg.mxu0
  %6909 = vmatprep.subr.bf16.mxu0 0
  %6910 = vmatpush1.bf16.msra.mxu0 %v6533
  %6911 = vmatprep.subr.bf16.mxu0 0
  %6912 = vmatpush1.bf16.msra.mxu0 %v6534
  %6913 = vmatprep.subr.bf16.mxu0 0
  %6914 = vmatpush1.bf16.msra.mxu0 %v6535
  %6915 = vmatprep.subr.bf16.mxu0 0
  %6916 = vmatpush1.bf16.msra.mxu0 %v6536
  %6917 = vmatprep.subr.bf16.mxu0 0
  %6918 = vmatpush1.bf16.msra.mxu0 %v6537
  %6919 = vmatprep.subr.bf16.mxu0 0
  %6920 = vmatpush1.bf16.msra.mxu0 %v6538
  %6921 = vmatprep.subr.bf16.mxu0 0
  %6922 = vmatpush1.bf16.msra.mxu0 %v6539
  %6923 = vmatprep.subr.bf16.mxu0 0
  %6924 = vmatpush1.bf16.msra.mxu0 %v6540
  %6925 = vmatprep.subr.bf16.mxu0 0
  %6926 = vmatpush1.bf16.msra.mxu0 %v6541
  %6927 = vmatprep.subr.bf16.mxu0 0
  %6928 = vmatpush1.bf16.msra.mxu0 %v6542
  %6929 = vmatprep.subr.bf16.mxu0 0
  %6930 = vmatpush1.bf16.msra.mxu0 %v6543
  %6931 = vmatprep.subr.bf16.mxu0 0
  %6932 = vmatpush1.bf16.msra.mxu0 %v6544
  %6933 = vmatprep.subr.bf16.mxu0 0
  %6934 = vmatpush1.bf16.msra.mxu0 %v6545
  %6935 = vmatprep.subr.bf16.mxu0 0
  %6936 = vmatpush1.bf16.msra.mxu0 %v6546
  %6937 = vmatprep.subr.bf16.mxu0 0
  %6938 = vmatpush1.bf16.msra.mxu0 %v6547
  %6939 = vmatprep.subr.bf16.mxu0 0
  %6940 = vmatpush1.bf16.msra.mxu0 %v6548
  %6941 = vmatprep.mubr.bf16.mxu0 %v5675
  %6942 = vmatmul.mubr.bf16.gmra.mrb[0].mxu0 %v5674
  %v6943 = vpop.f32.mrb[0].mxu0
  %v6944 = vadd.f32 %v6904, %v6943
  %v6945 = vpop.f32.mrb[0].mxu0
  %v6946 = vpop.f32.mrb[0].mxu0
  %v6947 = vpop.f32.mrb[0].mxu0
  %6948 = vdwg.mxu0
  %6949 = vmatprep.subr.bf16.mxu0 0
  %6950 = vmatpush1.bf16.msra.mxu0 %v6549
  %6951 = vmatprep.subr.bf16.mxu0 0
  %6952 = vmatpush1.bf16.msra.mxu0 %v6550
  %6953 = vmatprep.subr.bf16.mxu0 0
  %6954 = vmatpush1.bf16.msra.mxu0 %v6551
  %6955 = vmatprep.subr.bf16.mxu0 0
  %6956 = vmatpush1.bf16.msra.mxu0 %v6552
  %6957 = vmatprep.subr.bf16.mxu0 0
  %6958 = vmatpush1.bf16.msra.mxu0 %v6553
  %6959 = vmatprep.subr.bf16.mxu0 0
  %6960 = vmatpush1.bf16.msra.mxu0 %v6554
  %6961 = vmatprep.subr.bf16.mxu0 0
  %6962 = vmatpush1.bf16.msra.mxu0 %v6555
  %6963 = vmatprep.subr.bf16.mxu0 0
  %6964 = vmatpush1.bf16.msra.mxu0 %v6556
  %6965 = vmatprep.subr.bf16.mxu0 0
  %6966 = vmatpush1.bf16.msra.mxu0 %v6557
  %6967 = vmatprep.subr.bf16.mxu0 0
  %6968 = vmatpush1.bf16.msra.mxu0 %v6558
  %6969 = vmatprep.subr.bf16.mxu0 0
  %6970 = vmatpush1.bf16.msra.mxu0 %v6559
  %6971 = vmatprep.subr.bf16.mxu0 0
  %6972 = vmatpush1.bf16.msra.mxu0 %v6560
  %6973 = vmatprep.subr.bf16.mxu0 0
  %6974 = vmatpush1.bf16.msra.mxu0 %v6561
  %6975 = vmatprep.subr.bf16.mxu0 0
  %6976 = vmatpush1.bf16.msra.mxu0 %v6562
  %6977 = vmatprep.subr.bf16.mxu0 0
  %6978 = vmatpush1.bf16.msra.mxu0 %v6563
  %6979 = vmatprep.subr.bf16.mxu0 0
  %6980 = vmatpush1.bf16.msra.mxu0 %v6564
  %6981 = vmatprep.mubr.bf16.mxu0 %v5677
  %6982 = vmatmul.mubr.bf16.gmra.mrb[0].mxu0 %v5676
  %v6983 = vpop.f32.mrb[0].mxu0
  %v6984 = vadd.f32 %v6944, %v6983
  %v6985 = vpop.f32.mrb[0].mxu0
  %v6986 = vpop.f32.mrb[0].mxu0
  %v6987 = vpop.f32.mrb[0].mxu0
  %6988 = vdwg.mxu0
  %6989 = vmatprep.subr.bf16.mxu0 0
  %6990 = vmatpush1.bf16.msra.mxu0 %v6565
  %6991 = vmatprep.subr.bf16.mxu0 0
  %6992 = vmatpush1.bf16.msra.mxu0 %v6566
  %6993 = vmatprep.subr.bf16.mxu0 0
  %6994 = vmatpush1.bf16.msra.mxu0 %v6567
  %6995 = vmatprep.subr.bf16.mxu0 0
  %6996 = vmatpush1.bf16.msra.mxu0 %v6568
  %6997 = vmatprep.subr.bf16.mxu0 0
  %6998 = vmatpush1.bf16.msra.mxu0 %v6569
  %6999 = vmatprep.subr.bf16.mxu0 0
  %7000 = vmatpush1.bf16.msra.mxu0 %v6570
  %7001 = vmatprep.subr.bf16.mxu0 0
  %7002 = vmatpush1.bf16.msra.mxu0 %v6571
  %7003 = vmatprep.subr.bf16.mxu0 0
  %7004 = vmatpush1.bf16.msra.mxu0 %v6572
  %7005 = vmatprep.subr.bf16.mxu0 0
  %7006 = vmatpush1.bf16.msra.mxu0 %v6573
  %7007 = vmatprep.subr.bf16.mxu0 0
  %7008 = vmatpush1.bf16.msra.mxu0 %v6574
  %7009 = vmatprep.subr.bf16.mxu0 0
  %7010 = vmatpush1.bf16.msra.mxu0 %v6575
  %7011 = vmatprep.subr.bf16.mxu0 0
  %7012 = vmatpush1.bf16.msra.mxu0 %v6576
  %7013 = vmatprep.subr.bf16.mxu0 0
  %7014 = vmatpush1.bf16.msra.mxu0 %v6577
  %7015 = vmatprep.subr.bf16.mxu0 0
  %7016 = vmatpush1.bf16.msra.mxu0 %v6578
  %7017 = vmatprep.subr.bf16.mxu0 0
  %7018 = vmatpush1.bf16.msra.mxu0 %v6579
  %7019 = vmatprep.subr.bf16.mxu0 0
  %7020 = vmatpush1.bf16.msra.mxu0 %v6580
  %7021 = vmatprep.mubr.bf16.mxu0 %v5679
  %7022 = vmatmul.mubr.bf16.gmra.mrb[0].mxu0 %v5678
  %v7023 = vpop.f32.mrb[0].mxu0
  %v7024 = vadd.f32 %v6984, %v7023
  %v7025 = vpop.f32.mrb[0].mxu0
  %v7026 = vpop.f32.mrb[0].mxu0
  %v7027 = vpop.f32.mrb[0].mxu0
  %7028 = vdwg.mxu0
  %v7029 = vadd.f32 %v4845, %v7024
  %v7030 = vsel %vm196, %v7029, 0.0
  %7031 = vadd.xlane.f32.xlu0 %v7030
  %v7032 = vpop.xlane.xlu0 %7031
  %v7033 = vmul.f32 %v7032, %v200
  %v7034 = vsub.f32 %v7029, %v7033
  %v7035 = vmul.f32 %v7034, %v7034
  %v7036 = vsel %vm196, %v7035, 0.0
  %7037 = vadd.xlane.f32.xlu0 %v7036
  %v7038 = vpop.xlane.xlu0 %7037
  %v7039 = vmul.f32 %v7038, %v200
  %v7040 = vadd.f32 %v7039, 1e-05
  %v7041 = vrsqrt.pop %v7040
  %v7042 = vmul.f32 %v7034, %v7041
  %v7043 = vlaneseq
  %v7044 = vshrl.u32 %v7043, 7
  %v7045 = vsub.s32 4, %v7044
  %v7046 = vrot.slane %v4740, %v7045
  %v7047 = vmul.f32 %v7042, %v7046
  %v7048 = vlaneseq
  %v7049 = vshrl.u32 %v7048, 7
  %v7050 = vsub.s32 5, %v7049
  %v7051 = vrot.slane %v4740, %v7050
  %v7052 = vadd.f32 %v7047, %v7051
  %s7053 = scalar_lea.vmem %s7, 24
  %v7054 = vld [vmem:[%s7053] sm:$0x3f]
  %v7055 = vpack.c.bf16 %v7052, %v7052
  %s7056 = scalar_lea.vmem %s3, 96
  %v7057 = vld [vmem:[%s7056] sm:$0xf]
  %v7058 = vld [vmem:[%s7056 + $0x4] sm:$0xf]
  %v7059 = vld [vmem:[%s7056 + $0x8] sm:$0xf]
  %v7060 = vld [vmem:[%s7056 + $0xc] sm:$0xf]
  %v7061 = vld [vmem:[%s7056 + $0x10] sm:$0xf]
  %v7062 = vld [vmem:[%s7056 + $0x14] sm:$0xf]
  %v7063 = vld [vmem:[%s7056 + $0x18] sm:$0xf]
  %v7064 = vld [vmem:[%s7056 + $0x1c] sm:$0xf]
  %v7065 = vlaneseq
  %v7066 = vshrl.u32 %v7065, 7
  %v7067 = vsub.s32 0, %v7066
  %v7068 = vrot.slane %v7054, %v7067
  %v7077 = vunpack.c.l.b16 %v7057
  %v7078 = vunpack.c.l.b16 %v7058
  %v7079 = vunpack.c.l.b16 %v7059
  %v7080 = vunpack.c.l.b16 %v7060
  %v7081 = vunpack.c.l.b16 %v7061
  %v7082 = vunpack.c.l.b16 %v7062
  %v7083 = vunpack.c.l.b16 %v7063
  %v7084 = vunpack.c.l.b16 %v7064
  %v7085 = vpack.c.b16 %v7078, %v7077
  %v7086 = vpack.c.b16 %v7080, %v7079
  %v7087 = vpack.c.b16 %v7082, %v7081
  %v7088 = vpack.c.b16 %v7084, %v7083
  %v7094 = vsel %vm151, %v7055, 0
  %7096 = vmatprep.subr.bf16.mxu0 0
  %7097 = vmatpush1.bf16.msra.mxu0 %v7085
  %7098 = vmatprep.subr.bf16.mxu0 0
  %7099 = vmatpush1.bf16.msra.mxu0 %v7086
  %7100 = vmatprep.subr.bf16.mxu0 0
  %7101 = vmatpush1.bf16.msra.mxu0 %v7087
  %7102 = vmatprep.subr.bf16.mxu0 0
  %7103 = vmatpush1.bf16.msra.mxu0 %v7088
  %7104 = vmatprep.subr.bf16.mxu0 0
  %7105 = vmatpush1.bf16.msra.mxu0 0
  %7106 = vmatprep.subr.bf16.mxu0 0
  %7107 = vmatpush1.bf16.msra.mxu0 0
  %7108 = vmatprep.subr.bf16.mxu0 0
  %7109 = vmatpush1.bf16.msra.mxu0 0
  %7110 = vmatprep.subr.bf16.mxu0 0
  %7111 = vmatpush1.bf16.msra.mxu0 0
  %7112 = vmatprep.subr.bf16.mxu0 0
  %7113 = vmatpush1.bf16.msra.mxu0 0
  %7114 = vmatprep.subr.bf16.mxu0 0
  %7115 = vmatpush1.bf16.msra.mxu0 0
  %7116 = vmatprep.subr.bf16.mxu0 0
  %7117 = vmatpush1.bf16.msra.mxu0 0
  %7118 = vmatprep.subr.bf16.mxu0 0
  %7119 = vmatpush1.bf16.msra.mxu0 0
  %7120 = vmatprep.subr.bf16.mxu0 0
  %7121 = vmatpush1.bf16.msra.mxu0 0
  %7122 = vmatprep.subr.bf16.mxu0 0
  %7123 = vmatpush1.bf16.msra.mxu0 0
  %7124 = vmatprep.subr.bf16.mxu0 0
  %7125 = vmatpush1.bf16.msra.mxu0 0
  %7126 = vmatprep.subr.bf16.mxu0 0
  %7127 = vmatpush1.bf16.msra.mxu0 0
  %7128 = vmatprep.mubr.bf16.mxu0 0
  %7129 = vmatmul.mubr.bf16.gmra.mrb[0].mxu0 %v7094
  %v7130 = vpop.f32.mrb[0].mxu0
  %v7131 = vadd.f32 %v7068, %v7130
  %v7132 = vpop.f32.mrb[0].mxu0
  %v7133 = vpop.f32.mrb[0].mxu0
  %v7134 = vpop.f32.mrb[0].mxu0
  %7135 = vdwg.mxu0
  %v7136 = vadd.f32 %v7052, %v7131
  %v7137 = vsel %vm196, %v7136, 0.0
  %7138 = vadd.xlane.f32.xlu0 %v7137
  %v7139 = vpop.xlane.xlu0 %7138
  %v7140 = vmul.f32 %v7139, %v200
  %v7141 = vsub.f32 %v7136, %v7140
  %v7142 = vmul.f32 %v7141, %v7141
  %v7143 = vsel %vm196, %v7142, 0.0
  %7144 = vadd.xlane.f32.xlu0 %v7143
  %v7145 = vpop.xlane.xlu0 %7144
  %v7146 = vmul.f32 %v7145, %v200
  %v7147 = vadd.f32 %v7146, 1e-05
  %v7148 = vrsqrt.pop %v7147
  %v7149 = vmul.f32 %v7141, %v7148
  %v7150 = vlaneseq
  %v7151 = vshrl.u32 %v7150, 7
  %v7152 = vsub.s32 1, %v7151
  %v7153 = vrot.slane %v7054, %v7152
  %v7154 = vmul.f32 %v7149, %v7153
  %v7155 = vlaneseq
  %v7156 = vshrl.u32 %v7155, 7
  %v7157 = vsub.s32 2, %v7156
  %v7158 = vrot.slane %v7054, %v7157
  %v7159 = vadd.f32 %v7154, %v7158
  %v7160 = vpack.c.bf16 %v7159, %v7159
  %s7161 = scalar_lea.vmem %s4, 1536
  %v7162 = vld [vmem:[%s7161] sm:$0xff]
  %v7163 = vld [vmem:[%s7161 + $0x8] sm:$0xff]
  %v7164 = vld [vmem:[%s7161 + $0x10] sm:$0xff]
  %v7165 = vld [vmem:[%s7161 + $0x18] sm:$0xff]
  %v7166 = vld [vmem:[%s7161 + $0x20] sm:$0xff]
  %v7167 = vld [vmem:[%s7161 + $0x28] sm:$0xff]
  %v7168 = vld [vmem:[%s7161 + $0x30] sm:$0xff]
  %v7169 = vld [vmem:[%s7161 + $0x38] sm:$0xff]
  %v7170 = vld [vmem:[%s7161 + $0x40] sm:$0xff]
  %v7171 = vld [vmem:[%s7161 + $0x48] sm:$0xff]
  %v7172 = vld [vmem:[%s7161 + $0x50] sm:$0xff]
  %v7173 = vld [vmem:[%s7161 + $0x58] sm:$0xff]
  %v7174 = vld [vmem:[%s7161 + $0x60] sm:$0xff]
  %v7175 = vld [vmem:[%s7161 + $0x68] sm:$0xff]
  %v7176 = vld [vmem:[%s7161 + $0x70] sm:$0xff]
  %v7177 = vld [vmem:[%s7161 + $0x78] sm:$0xff]
  %v7178 = vld [vmem:[%s7161 + $0x80] sm:$0xff]
  %v7179 = vld [vmem:[%s7161 + $0x88] sm:$0xff]
  %v7180 = vld [vmem:[%s7161 + $0x90] sm:$0xff]
  %v7181 = vld [vmem:[%s7161 + $0x98] sm:$0xff]
  %v7182 = vld [vmem:[%s7161 + $0xa0] sm:$0xff]
  %v7183 = vld [vmem:[%s7161 + $0xa8] sm:$0xff]
  %v7184 = vld [vmem:[%s7161 + $0xb0] sm:$0xff]
  %v7185 = vld [vmem:[%s7161 + $0xb8] sm:$0xff]
  %v7186 = vld [vmem:[%s7161 + $0xc0] sm:$0xff]
  %v7187 = vld [vmem:[%s7161 + $0xc8] sm:$0xff]
  %v7188 = vld [vmem:[%s7161 + $0xd0] sm:$0xff]
  %v7189 = vld [vmem:[%s7161 + $0xd8] sm:$0xff]
  %v7190 = vld [vmem:[%s7161 + $0xe0] sm:$0xff]
  %v7191 = vld [vmem:[%s7161 + $0xe8] sm:$0xff]
  %v7192 = vld [vmem:[%s7161 + $0xf0] sm:$0xff]
  %v7193 = vld [vmem:[%s7161 + $0xf8] sm:$0xff]
  %v7194 = vld [vmem:[%s7161 + $0x100] sm:$0xff]
  %v7195 = vld [vmem:[%s7161 + $0x108] sm:$0xff]
  %v7196 = vld [vmem:[%s7161 + $0x110] sm:$0xff]
  %v7197 = vld [vmem:[%s7161 + $0x118] sm:$0xff]
  %v7198 = vld [vmem:[%s7161 + $0x120] sm:$0xff]
  %v7199 = vld [vmem:[%s7161 + $0x128] sm:$0xff]
  %v7200 = vld [vmem:[%s7161 + $0x130] sm:$0xff]
  %v7201 = vld [vmem:[%s7161 + $0x138] sm:$0xff]
  %v7202 = vld [vmem:[%s7161 + $0x140] sm:$0xff]
  %v7203 = vld [vmem:[%s7161 + $0x148] sm:$0xff]
  %v7204 = vld [vmem:[%s7161 + $0x150] sm:$0xff]
  %v7205 = vld [vmem:[%s7161 + $0x158] sm:$0xff]
  %v7206 = vld [vmem:[%s7161 + $0x160] sm:$0xff]
  %v7207 = vld [vmem:[%s7161 + $0x168] sm:$0xff]
  %v7208 = vld [vmem:[%s7161 + $0x170] sm:$0xff]
  %v7209 = vld [vmem:[%s7161 + $0x178] sm:$0xff]
  %v7210 = vld [vmem:[%s7161 + $0x180] sm:$0xff]
  %v7211 = vld [vmem:[%s7161 + $0x188] sm:$0xff]
  %v7212 = vld [vmem:[%s7161 + $0x190] sm:$0xff]
  %v7213 = vld [vmem:[%s7161 + $0x198] sm:$0xff]
  %v7214 = vld [vmem:[%s7161 + $0x1a0] sm:$0xff]
  %v7215 = vld [vmem:[%s7161 + $0x1a8] sm:$0xff]
  %v7216 = vld [vmem:[%s7161 + $0x1b0] sm:$0xff]
  %v7217 = vld [vmem:[%s7161 + $0x1b8] sm:$0xff]
  %v7218 = vld [vmem:[%s7161 + $0x1c0] sm:$0xff]
  %v7219 = vld [vmem:[%s7161 + $0x1c8] sm:$0xff]
  %v7220 = vld [vmem:[%s7161 + $0x1d0] sm:$0xff]
  %v7221 = vld [vmem:[%s7161 + $0x1d8] sm:$0xff]
  %v7222 = vld [vmem:[%s7161 + $0x1e0] sm:$0xff]
  %v7223 = vld [vmem:[%s7161 + $0x1e8] sm:$0xff]
  %v7224 = vld [vmem:[%s7161 + $0x1f0] sm:$0xff]
  %v7225 = vld [vmem:[%s7161 + $0x1f8] sm:$0xff]
  %s7226 = scalar_lea.vmem %s5, 48
  %v7227 = vld [vmem:[%s7226] sm:$0xff]
  %v7228 = vld [vmem:[%s7226 + $0x8] sm:$0xff]
  %v7231 = vlaneseq
  %v7232 = vshrl.u32 %v7231, 7
  %v7233 = vsub.s32 0, %v7232
  %v7234 = vrot.slane %v7227, %v7233
  %v7235 = vlaneseq
  %v7236 = vshrl.u32 %v7235, 7
  %v7237 = vsub.s32 1, %v7236
  %v7238 = vrot.slane %v7227, %v7237
  %v7239 = vlaneseq
  %v7240 = vshrl.u32 %v7239, 7
  %v7241 = vsub.s32 2, %v7240
  %v7242 = vrot.slane %v7227, %v7241
  %v7243 = vlaneseq
  %v7244 = vshrl.u32 %v7243, 7
  %v7245 = vsub.s32 3, %v7244
  %v7246 = vrot.slane %v7227, %v7245
  %v7247 = vlaneseq
  %v7248 = vshrl.u32 %v7247, 7
  %v7249 = vsub.s32 4, %v7248
  %v7250 = vrot.slane %v7227, %v7249
  %v7251 = vlaneseq
  %v7252 = vshrl.u32 %v7251, 7
  %v7253 = vsub.s32 5, %v7252
  %v7254 = vrot.slane %v7227, %v7253
  %v7255 = vlaneseq
  %v7256 = vshrl.u32 %v7255, 7
  %v7257 = vsub.s32 6, %v7256
  %v7258 = vrot.slane %v7227, %v7257
  %v7259 = vlaneseq
  %v7260 = vshrl.u32 %v7259, 7
  %v7261 = vsub.s32 7, %v7260
  %v7262 = vrot.slane %v7227, %v7261
  %v7263 = vlaneseq
  %v7264 = vshrl.u32 %v7263, 7
  %v7265 = vsub.s32 0, %v7264
  %v7266 = vrot.slane %v7228, %v7265
  %v7267 = vlaneseq
  %v7268 = vshrl.u32 %v7267, 7
  %v7269 = vsub.s32 1, %v7268
  %v7270 = vrot.slane %v7228, %v7269
  %v7271 = vlaneseq
  %v7272 = vshrl.u32 %v7271, 7
  %v7273 = vsub.s32 2, %v7272
  %v7274 = vrot.slane %v7228, %v7273
  %v7275 = vlaneseq
  %v7276 = vshrl.u32 %v7275, 7
  %v7277 = vsub.s32 3, %v7276
  %v7278 = vrot.slane %v7228, %v7277
  %v7279 = vlaneseq
  %v7280 = vshrl.u32 %v7279, 7
  %v7281 = vsub.s32 4, %v7280
  %v7282 = vrot.slane %v7228, %v7281
  %v7283 = vlaneseq
  %v7284 = vshrl.u32 %v7283, 7
  %v7285 = vsub.s32 5, %v7284
  %v7286 = vrot.slane %v7228, %v7285
  %v7287 = vlaneseq
  %v7288 = vshrl.u32 %v7287, 7
  %v7289 = vsub.s32 6, %v7288
  %v7290 = vrot.slane %v7228, %v7289
  %v7291 = vlaneseq
  %v7292 = vshrl.u32 %v7291, 7
  %v7293 = vsub.s32 7, %v7292
  %v7294 = vrot.slane %v7228, %v7293
  %v7375 = vunpack.c.l.b16 %v7162
  %v7376 = vunpack.c.h.b16 %v7162
  %v7377 = vunpack.c.l.b16 %v7163
  %v7378 = vunpack.c.h.b16 %v7163
  %v7379 = vunpack.c.l.b16 %v7164
  %v7380 = vunpack.c.h.b16 %v7164
  %v7381 = vunpack.c.l.b16 %v7165
  %v7382 = vunpack.c.h.b16 %v7165
  %v7383 = vunpack.c.l.b16 %v7166
  %v7384 = vunpack.c.h.b16 %v7166
  %v7385 = vunpack.c.l.b16 %v7167
  %v7386 = vunpack.c.h.b16 %v7167
  %v7387 = vunpack.c.l.b16 %v7168
  %v7388 = vunpack.c.h.b16 %v7168
  %v7389 = vunpack.c.l.b16 %v7169
  %v7390 = vunpack.c.h.b16 %v7169
  %v7391 = vunpack.c.l.b16 %v7170
  %v7392 = vunpack.c.h.b16 %v7170
  %v7393 = vunpack.c.l.b16 %v7171
  %v7394 = vunpack.c.h.b16 %v7171
  %v7395 = vunpack.c.l.b16 %v7172
  %v7396 = vunpack.c.h.b16 %v7172
  %v7397 = vunpack.c.l.b16 %v7173
  %v7398 = vunpack.c.h.b16 %v7173
  %v7399 = vunpack.c.l.b16 %v7174
  %v7400 = vunpack.c.h.b16 %v7174
  %v7401 = vunpack.c.l.b16 %v7175
  %v7402 = vunpack.c.h.b16 %v7175
  %v7403 = vunpack.c.l.b16 %v7176
  %v7404 = vunpack.c.h.b16 %v7176
  %v7405 = vunpack.c.l.b16 %v7177
  %v7406 = vunpack.c.h.b16 %v7177
  %v7407 = vunpack.c.l.b16 %v7178
  %v7408 = vunpack.c.h.b16 %v7178
  %v7409 = vunpack.c.l.b16 %v7179
  %v7410 = vunpack.c.h.b16 %v7179
  %v7411 = vunpack.c.l.b16 %v7180
  %v7412 = vunpack.c.h.b16 %v7180
  %v7413 = vunpack.c.l.b16 %v7181
  %v7414 = vunpack.c.h.b16 %v7181
  %v7415 = vunpack.c.l.b16 %v7182
  %v7416 = vunpack.c.h.b16 %v7182
  %v7417 = vunpack.c.l.b16 %v7183
  %v7418 = vunpack.c.h.b16 %v7183
  %v7419 = vunpack.c.l.b16 %v7184
  %v7420 = vunpack.c.h.b16 %v7184
  %v7421 = vunpack.c.l.b16 %v7185
  %v7422 = vunpack.c.h.b16 %v7185
  %v7423 = vunpack.c.l.b16 %v7186
  %v7424 = vunpack.c.h.b16 %v7186
  %v7425 = vunpack.c.l.b16 %v7187
  %v7426 = vunpack.c.h.b16 %v7187
  %v7427 = vunpack.c.l.b16 %v7188
  %v7428 = vunpack.c.h.b16 %v7188
  %v7429 = vunpack.c.l.b16 %v7189
  %v7430 = vunpack.c.h.b16 %v7189
  %v7431 = vunpack.c.l.b16 %v7190
  %v7432 = vunpack.c.h.b16 %v7190
  %v7433 = vunpack.c.l.b16 %v7191
  %v7434 = vunpack.c.h.b16 %v7191
  %v7435 = vunpack.c.l.b16 %v7192
  %v7436 = vunpack.c.h.b16 %v7192
  %v7437 = vunpack.c.l.b16 %v7193
  %v7438 = vunpack.c.h.b16 %v7193
  %v7439 = vunpack.c.l.b16 %v7194
  %v7440 = vunpack.c.h.b16 %v7194
  %v7441 = vunpack.c.l.b16 %v7195
  %v7442 = vunpack.c.h.b16 %v7195
  %v7443 = vunpack.c.l.b16 %v7196
  %v7444 = vunpack.c.h.b16 %v7196
  %v7445 = vunpack.c.l.b16 %v7197
  %v7446 = vunpack.c.h.b16 %v7197
  %v7447 = vunpack.c.l.b16 %v7198
  %v7448 = vunpack.c.h.b16 %v7198
  %v7449 = vunpack.c.l.b16 %v7199
  %v7450 = vunpack.c.h.b16 %v7199
  %v7451 = vunpack.c.l.b16 %v7200
  %v7452 = vunpack.c.h.b16 %v7200
  %v7453 = vunpack.c.l.b16 %v7201
  %v7454 = vunpack.c.h.b16 %v7201
  %v7455 = vunpack.c.l.b16 %v7202
  %v7456 = vunpack.c.h.b16 %v7202
  %v7457 = vunpack.c.l.b16 %v7203
  %v7458 = vunpack.c.h.b16 %v7203
  %v7459 = vunpack.c.l.b16 %v7204
  %v7460 = vunpack.c.h.b16 %v7204
  %v7461 = vunpack.c.l.b16 %v7205
  %v7462 = vunpack.c.h.b16 %v7205
  %v7463 = vunpack.c.l.b16 %v7206
  %v7464 = vunpack.c.h.b16 %v7206
  %v7465 = vunpack.c.l.b16 %v7207
  %v7466 = vunpack.c.h.b16 %v7207
  %v7467 = vunpack.c.l.b16 %v7208
  %v7468 = vunpack.c.h.b16 %v7208
  %v7469 = vunpack.c.l.b16 %v7209
  %v7470 = vunpack.c.h.b16 %v7209
  %v7471 = vunpack.c.l.b16 %v7210
  %v7472 = vunpack.c.h.b16 %v7210
  %v7473 = vunpack.c.l.b16 %v7211
  %v7474 = vunpack.c.h.b16 %v7211
  %v7475 = vunpack.c.l.b16 %v7212
  %v7476 = vunpack.c.h.b16 %v7212
  %v7477 = vunpack.c.l.b16 %v7213
  %v7478 = vunpack.c.h.b16 %v7213
  %v7479 = vunpack.c.l.b16 %v7214
  %v7480 = vunpack.c.h.b16 %v7214
  %v7481 = vunpack.c.l.b16 %v7215
  %v7482 = vunpack.c.h.b16 %v7215
  %v7483 = vunpack.c.l.b16 %v7216
  %v7484 = vunpack.c.h.b16 %v7216
  %v7485 = vunpack.c.l.b16 %v7217
  %v7486 = vunpack.c.h.b16 %v7217
  %v7487 = vunpack.c.l.b16 %v7218
  %v7488 = vunpack.c.h.b16 %v7218
  %v7489 = vunpack.c.l.b16 %v7219
  %v7490 = vunpack.c.h.b16 %v7219
  %v7491 = vunpack.c.l.b16 %v7220
  %v7492 = vunpack.c.h.b16 %v7220
  %v7493 = vunpack.c.l.b16 %v7221
  %v7494 = vunpack.c.h.b16 %v7221
  %v7495 = vunpack.c.l.b16 %v7222
  %v7496 = vunpack.c.h.b16 %v7222
  %v7497 = vunpack.c.l.b16 %v7223
  %v7498 = vunpack.c.h.b16 %v7223
  %v7499 = vunpack.c.l.b16 %v7224
  %v7500 = vunpack.c.h.b16 %v7224
  %v7501 = vunpack.c.l.b16 %v7225
  %v7502 = vunpack.c.h.b16 %v7225
  %v7503 = vpack.c.b16 %v7391, %v7375
  %v7504 = vpack.c.b16 %v7392, %v7376
  %v7505 = vpack.c.b16 %v7393, %v7377
  %v7506 = vpack.c.b16 %v7394, %v7378
  %v7507 = vpack.c.b16 %v7395, %v7379
  %v7508 = vpack.c.b16 %v7396, %v7380
  %v7509 = vpack.c.b16 %v7397, %v7381
  %v7510 = vpack.c.b16 %v7398, %v7382
  %v7511 = vpack.c.b16 %v7399, %v7383
  %v7512 = vpack.c.b16 %v7400, %v7384
  %v7513 = vpack.c.b16 %v7401, %v7385
  %v7514 = vpack.c.b16 %v7402, %v7386
  %v7515 = vpack.c.b16 %v7403, %v7387
  %v7516 = vpack.c.b16 %v7404, %v7388
  %v7517 = vpack.c.b16 %v7405, %v7389
  %v7518 = vpack.c.b16 %v7406, %v7390
  %v7519 = vpack.c.b16 %v7423, %v7407
  %v7520 = vpack.c.b16 %v7424, %v7408
  %v7521 = vpack.c.b16 %v7425, %v7409
  %v7522 = vpack.c.b16 %v7426, %v7410
  %v7523 = vpack.c.b16 %v7427, %v7411
  %v7524 = vpack.c.b16 %v7428, %v7412
  %v7525 = vpack.c.b16 %v7429, %v7413
  %v7526 = vpack.c.b16 %v7430, %v7414
  %v7527 = vpack.c.b16 %v7431, %v7415
  %v7528 = vpack.c.b16 %v7432, %v7416
  %v7529 = vpack.c.b16 %v7433, %v7417
  %v7530 = vpack.c.b16 %v7434, %v7418
  %v7531 = vpack.c.b16 %v7435, %v7419
  %v7532 = vpack.c.b16 %v7436, %v7420
  %v7533 = vpack.c.b16 %v7437, %v7421
  %v7534 = vpack.c.b16 %v7438, %v7422
  %v7535 = vpack.c.b16 %v7455, %v7439
  %v7536 = vpack.c.b16 %v7456, %v7440
  %v7537 = vpack.c.b16 %v7457, %v7441
  %v7538 = vpack.c.b16 %v7458, %v7442
  %v7539 = vpack.c.b16 %v7459, %v7443
  %v7540 = vpack.c.b16 %v7460, %v7444
  %v7541 = vpack.c.b16 %v7461, %v7445
  %v7542 = vpack.c.b16 %v7462, %v7446
  %v7543 = vpack.c.b16 %v7463, %v7447
  %v7544 = vpack.c.b16 %v7464, %v7448
  %v7545 = vpack.c.b16 %v7465, %v7449
  %v7546 = vpack.c.b16 %v7466, %v7450
  %v7547 = vpack.c.b16 %v7467, %v7451
  %v7548 = vpack.c.b16 %v7468, %v7452
  %v7549 = vpack.c.b16 %v7469, %v7453
  %v7550 = vpack.c.b16 %v7470, %v7454
  %v7551 = vpack.c.b16 %v7487, %v7471
  %v7552 = vpack.c.b16 %v7488, %v7472
  %v7553 = vpack.c.b16 %v7489, %v7473
  %v7554 = vpack.c.b16 %v7490, %v7474
  %v7555 = vpack.c.b16 %v7491, %v7475
  %v7556 = vpack.c.b16 %v7492, %v7476
  %v7557 = vpack.c.b16 %v7493, %v7477
  %v7558 = vpack.c.b16 %v7494, %v7478
  %v7559 = vpack.c.b16 %v7495, %v7479
  %v7560 = vpack.c.b16 %v7496, %v7480
  %v7561 = vpack.c.b16 %v7497, %v7481
  %v7562 = vpack.c.b16 %v7498, %v7482
  %v7563 = vpack.c.b16 %v7499, %v7483
  %v7564 = vpack.c.b16 %v7500, %v7484
  %v7565 = vpack.c.b16 %v7501, %v7485
  %v7566 = vpack.c.b16 %v7502, %v7486
  %v7632 = vsel %vm151, %v7160, 0
  %7634 = vmatprep.subr.bf16.mxu0 %v7504
  %7635 = vmatpush1.bf16.msra.mxu0 %v7503
  %7636 = vmatprep.subr.bf16.mxu0 %v7520
  %7637 = vmatpush1.bf16.msra.mxu0 %v7519
  %7638 = vmatprep.subr.bf16.mxu0 %v7536
  %7639 = vmatpush1.bf16.msra.mxu0 %v7535
  %7640 = vmatprep.subr.bf16.mxu0 %v7552
  %7641 = vmatpush1.bf16.msra.mxu0 %v7551
  %7642 = vmatprep.subr.bf16.mxu0 0
  %7643 = vmatpush1.bf16.msra.mxu0 0
  %7644 = vmatprep.subr.bf16.mxu0 0
  %7645 = vmatpush1.bf16.msra.mxu0 0
  %7646 = vmatprep.subr.bf16.mxu0 0
  %7647 = vmatpush1.bf16.msra.mxu0 0
  %7648 = vmatprep.subr.bf16.mxu0 0
  %7649 = vmatpush1.bf16.msra.mxu0 0
  %7650 = vmatprep.subr.bf16.mxu0 0
  %7651 = vmatpush1.bf16.msra.mxu0 0
  %7652 = vmatprep.subr.bf16.mxu0 0
  %7653 = vmatpush1.bf16.msra.mxu0 0
  %7654 = vmatprep.subr.bf16.mxu0 0
  %7655 = vmatpush1.bf16.msra.mxu0 0
  %7656 = vmatprep.subr.bf16.mxu0 0
  %7657 = vmatpush1.bf16.msra.mxu0 0
  %7658 = vmatprep.subr.bf16.mxu0 0
  %7659 = vmatpush1.bf16.msra.mxu0 0
  %7660 = vmatprep.subr.bf16.mxu0 0
  %7661 = vmatpush1.bf16.msra.mxu0 0
  %7662 = vmatprep.subr.bf16.mxu0 0
  %7663 = vmatpush1.bf16.msra.mxu0 0
  %7664 = vmatprep.subr.bf16.mxu0 0
  %7665 = vmatpush1.bf16.msra.mxu0 0
  %7666 = vmatprep.mubr.bf16.mxu0 0
  %7667 = vmatmul.mubr.bf16.gmra.mrb[0].mxu0 %v7632
  %v7668 = vpop.f32.mrb[0].mxu0
  %v7669 = vadd.f32 %v7234, %v7668
  %v7670 = vpop.f32.mrb[0].mxu0
  %v7671 = vadd.f32 %v7238, %v7670
  %v7672 = vpop.f32.mrb[0].mxu0
  %v7673 = vpop.f32.mrb[0].mxu0
  %7674 = vdwg.mxu0
  %7675 = vmatprep.subr.bf16.mxu0 %v7506
  %7676 = vmatpush1.bf16.msra.mxu0 %v7505
  %7677 = vmatprep.subr.bf16.mxu0 %v7522
  %7678 = vmatpush1.bf16.msra.mxu0 %v7521
  %7679 = vmatprep.subr.bf16.mxu0 %v7538
  %7680 = vmatpush1.bf16.msra.mxu0 %v7537
  %7681 = vmatprep.subr.bf16.mxu0 %v7554
  %7682 = vmatpush1.bf16.msra.mxu0 %v7553
  %7683 = vmatprep.subr.bf16.mxu0 0
  %7684 = vmatpush1.bf16.msra.mxu0 0
  %7685 = vmatprep.subr.bf16.mxu0 0
  %7686 = vmatpush1.bf16.msra.mxu0 0
  %7687 = vmatprep.subr.bf16.mxu0 0
  %7688 = vmatpush1.bf16.msra.mxu0 0
  %7689 = vmatprep.subr.bf16.mxu0 0
  %7690 = vmatpush1.bf16.msra.mxu0 0
  %7691 = vmatprep.subr.bf16.mxu0 0
  %7692 = vmatpush1.bf16.msra.mxu0 0
  %7693 = vmatprep.subr.bf16.mxu0 0
  %7694 = vmatpush1.bf16.msra.mxu0 0
  %7695 = vmatprep.subr.bf16.mxu0 0
  %7696 = vmatpush1.bf16.msra.mxu0 0
  %7697 = vmatprep.subr.bf16.mxu0 0
  %7698 = vmatpush1.bf16.msra.mxu0 0
  %7699 = vmatprep.subr.bf16.mxu0 0
  %7700 = vmatpush1.bf16.msra.mxu0 0
  %7701 = vmatprep.subr.bf16.mxu0 0
  %7702 = vmatpush1.bf16.msra.mxu0 0
  %7703 = vmatprep.subr.bf16.mxu0 0
  %7704 = vmatpush1.bf16.msra.mxu0 0
  %7705 = vmatprep.subr.bf16.mxu0 0
  %7706 = vmatpush1.bf16.msra.mxu0 0
  %7707 = vmatprep.mubr.bf16.mxu0 0
  %7708 = vmatmul.mubr.bf16.gmra.mrb[0].mxu0 %v7632
  %v7709 = vpop.f32.mrb[0].mxu0
  %v7710 = vadd.f32 %v7242, %v7709
  %v7711 = vpop.f32.mrb[0].mxu0
  %v7712 = vadd.f32 %v7246, %v7711
  %v7713 = vpop.f32.mrb[0].mxu0
  %v7714 = vpop.f32.mrb[0].mxu0
  %7715 = vdwg.mxu0
  %7716 = vmatprep.subr.bf16.mxu0 %v7508
  %7717 = vmatpush1.bf16.msra.mxu0 %v7507
  %7718 = vmatprep.subr.bf16.mxu0 %v7524
  %7719 = vmatpush1.bf16.msra.mxu0 %v7523
  %7720 = vmatprep.subr.bf16.mxu0 %v7540
  %7721 = vmatpush1.bf16.msra.mxu0 %v7539
  %7722 = vmatprep.subr.bf16.mxu0 %v7556
  %7723 = vmatpush1.bf16.msra.mxu0 %v7555
  %7724 = vmatprep.subr.bf16.mxu0 0
  %7725 = vmatpush1.bf16.msra.mxu0 0
  %7726 = vmatprep.subr.bf16.mxu0 0
  %7727 = vmatpush1.bf16.msra.mxu0 0
  %7728 = vmatprep.subr.bf16.mxu0 0
  %7729 = vmatpush1.bf16.msra.mxu0 0
  %7730 = vmatprep.subr.bf16.mxu0 0
  %7731 = vmatpush1.bf16.msra.mxu0 0
  %7732 = vmatprep.subr.bf16.mxu0 0
  %7733 = vmatpush1.bf16.msra.mxu0 0
  %7734 = vmatprep.subr.bf16.mxu0 0
  %7735 = vmatpush1.bf16.msra.mxu0 0
  %7736 = vmatprep.subr.bf16.mxu0 0
  %7737 = vmatpush1.bf16.msra.mxu0 0
  %7738 = vmatprep.subr.bf16.mxu0 0
  %7739 = vmatpush1.bf16.msra.mxu0 0
  %7740 = vmatprep.subr.bf16.mxu0 0
  %7741 = vmatpush1.bf16.msra.mxu0 0
  %7742 = vmatprep.subr.bf16.mxu0 0
  %7743 = vmatpush1.bf16.msra.mxu0 0
  %7744 = vmatprep.subr.bf16.mxu0 0
  %7745 = vmatpush1.bf16.msra.mxu0 0
  %7746 = vmatprep.subr.bf16.mxu0 0
  %7747 = vmatpush1.bf16.msra.mxu0 0
  %7748 = vmatprep.mubr.bf16.mxu0 0
  %7749 = vmatmul.mubr.bf16.gmra.mrb[0].mxu0 %v7632
  %v7750 = vpop.f32.mrb[0].mxu0
  %v7751 = vadd.f32 %v7250, %v7750
  %v7752 = vpop.f32.mrb[0].mxu0
  %v7753 = vadd.f32 %v7254, %v7752
  %v7754 = vpop.f32.mrb[0].mxu0
  %v7755 = vpop.f32.mrb[0].mxu0
  %7756 = vdwg.mxu0
  %7757 = vmatprep.subr.bf16.mxu0 %v7510
  %7758 = vmatpush1.bf16.msra.mxu0 %v7509
  %7759 = vmatprep.subr.bf16.mxu0 %v7526
  %7760 = vmatpush1.bf16.msra.mxu0 %v7525
  %7761 = vmatprep.subr.bf16.mxu0 %v7542
  %7762 = vmatpush1.bf16.msra.mxu0 %v7541
  %7763 = vmatprep.subr.bf16.mxu0 %v7558
  %7764 = vmatpush1.bf16.msra.mxu0 %v7557
  %7765 = vmatprep.subr.bf16.mxu0 0
  %7766 = vmatpush1.bf16.msra.mxu0 0
  %7767 = vmatprep.subr.bf16.mxu0 0
  %7768 = vmatpush1.bf16.msra.mxu0 0
  %7769 = vmatprep.subr.bf16.mxu0 0
  %7770 = vmatpush1.bf16.msra.mxu0 0
  %7771 = vmatprep.subr.bf16.mxu0 0
  %7772 = vmatpush1.bf16.msra.mxu0 0
  %7773 = vmatprep.subr.bf16.mxu0 0
  %7774 = vmatpush1.bf16.msra.mxu0 0
  %7775 = vmatprep.subr.bf16.mxu0 0
  %7776 = vmatpush1.bf16.msra.mxu0 0
  %7777 = vmatprep.subr.bf16.mxu0 0
  %7778 = vmatpush1.bf16.msra.mxu0 0
  %7779 = vmatprep.subr.bf16.mxu0 0
  %7780 = vmatpush1.bf16.msra.mxu0 0
  %7781 = vmatprep.subr.bf16.mxu0 0
  %7782 = vmatpush1.bf16.msra.mxu0 0
  %7783 = vmatprep.subr.bf16.mxu0 0
  %7784 = vmatpush1.bf16.msra.mxu0 0
  %7785 = vmatprep.subr.bf16.mxu0 0
  %7786 = vmatpush1.bf16.msra.mxu0 0
  %7787 = vmatprep.subr.bf16.mxu0 0
  %7788 = vmatpush1.bf16.msra.mxu0 0
  %7789 = vmatprep.mubr.bf16.mxu0 0
  %7790 = vmatmul.mubr.bf16.gmra.mrb[0].mxu0 %v7632
  %v7791 = vpop.f32.mrb[0].mxu0
  %v7792 = vadd.f32 %v7258, %v7791
  %v7793 = vpop.f32.mrb[0].mxu0
  %v7794 = vadd.f32 %v7262, %v7793
  %v7795 = vpop.f32.mrb[0].mxu0
  %v7796 = vpop.f32.mrb[0].mxu0
  %7797 = vdwg.mxu0
  %7798 = vmatprep.subr.bf16.mxu0 %v7512
  %7799 = vmatpush1.bf16.msra.mxu0 %v7511
  %7800 = vmatprep.subr.bf16.mxu0 %v7528
  %7801 = vmatpush1.bf16.msra.mxu0 %v7527
  %7802 = vmatprep.subr.bf16.mxu0 %v7544
  %7803 = vmatpush1.bf16.msra.mxu0 %v7543
  %7804 = vmatprep.subr.bf16.mxu0 %v7560
  %7805 = vmatpush1.bf16.msra.mxu0 %v7559
  %7806 = vmatprep.subr.bf16.mxu0 0
  %7807 = vmatpush1.bf16.msra.mxu0 0
  %7808 = vmatprep.subr.bf16.mxu0 0
  %7809 = vmatpush1.bf16.msra.mxu0 0
  %7810 = vmatprep.subr.bf16.mxu0 0
  %7811 = vmatpush1.bf16.msra.mxu0 0
  %7812 = vmatprep.subr.bf16.mxu0 0
  %7813 = vmatpush1.bf16.msra.mxu0 0
  %7814 = vmatprep.subr.bf16.mxu0 0
  %7815 = vmatpush1.bf16.msra.mxu0 0
  %7816 = vmatprep.subr.bf16.mxu0 0
  %7817 = vmatpush1.bf16.msra.mxu0 0
  %7818 = vmatprep.subr.bf16.mxu0 0
  %7819 = vmatpush1.bf16.msra.mxu0 0
  %7820 = vmatprep.subr.bf16.mxu0 0
  %7821 = vmatpush1.bf16.msra.mxu0 0
  %7822 = vmatprep.subr.bf16.mxu0 0
  %7823 = vmatpush1.bf16.msra.mxu0 0
  %7824 = vmatprep.subr.bf16.mxu0 0
  %7825 = vmatpush1.bf16.msra.mxu0 0
  %7826 = vmatprep.subr.bf16.mxu0 0
  %7827 = vmatpush1.bf16.msra.mxu0 0
  %7828 = vmatprep.subr.bf16.mxu0 0
  %7829 = vmatpush1.bf16.msra.mxu0 0
  %7830 = vmatprep.mubr.bf16.mxu0 0
  %7831 = vmatmul.mubr.bf16.gmra.mrb[0].mxu0 %v7632
  %v7832 = vpop.f32.mrb[0].mxu0
  %v7833 = vadd.f32 %v7266, %v7832
  %v7834 = vpop.f32.mrb[0].mxu0
  %v7835 = vadd.f32 %v7270, %v7834
  %v7836 = vpop.f32.mrb[0].mxu0
  %v7837 = vpop.f32.mrb[0].mxu0
  %7838 = vdwg.mxu0
  %7839 = vmatprep.subr.bf16.mxu0 %v7514
  %7840 = vmatpush1.bf16.msra.mxu0 %v7513
  %7841 = vmatprep.subr.bf16.mxu0 %v7530
  %7842 = vmatpush1.bf16.msra.mxu0 %v7529
  %7843 = vmatprep.subr.bf16.mxu0 %v7546
  %7844 = vmatpush1.bf16.msra.mxu0 %v7545
  %7845 = vmatprep.subr.bf16.mxu0 %v7562
  %7846 = vmatpush1.bf16.msra.mxu0 %v7561
  %7847 = vmatprep.subr.bf16.mxu0 0
  %7848 = vmatpush1.bf16.msra.mxu0 0
  %7849 = vmatprep.subr.bf16.mxu0 0
  %7850 = vmatpush1.bf16.msra.mxu0 0
  %7851 = vmatprep.subr.bf16.mxu0 0
  %7852 = vmatpush1.bf16.msra.mxu0 0
  %7853 = vmatprep.subr.bf16.mxu0 0
  %7854 = vmatpush1.bf16.msra.mxu0 0
  %7855 = vmatprep.subr.bf16.mxu0 0
  %7856 = vmatpush1.bf16.msra.mxu0 0
  %7857 = vmatprep.subr.bf16.mxu0 0
  %7858 = vmatpush1.bf16.msra.mxu0 0
  %7859 = vmatprep.subr.bf16.mxu0 0
  %7860 = vmatpush1.bf16.msra.mxu0 0
  %7861 = vmatprep.subr.bf16.mxu0 0
  %7862 = vmatpush1.bf16.msra.mxu0 0
  %7863 = vmatprep.subr.bf16.mxu0 0
  %7864 = vmatpush1.bf16.msra.mxu0 0
  %7865 = vmatprep.subr.bf16.mxu0 0
  %7866 = vmatpush1.bf16.msra.mxu0 0
  %7867 = vmatprep.subr.bf16.mxu0 0
  %7868 = vmatpush1.bf16.msra.mxu0 0
  %7869 = vmatprep.subr.bf16.mxu0 0
  %7870 = vmatpush1.bf16.msra.mxu0 0
  %7871 = vmatprep.mubr.bf16.mxu0 0
  %7872 = vmatmul.mubr.bf16.gmra.mrb[0].mxu0 %v7632
  %v7873 = vpop.f32.mrb[0].mxu0
  %v7874 = vadd.f32 %v7274, %v7873
  %v7875 = vpop.f32.mrb[0].mxu0
  %v7876 = vadd.f32 %v7278, %v7875
  %v7877 = vpop.f32.mrb[0].mxu0
  %v7878 = vpop.f32.mrb[0].mxu0
  %7879 = vdwg.mxu0
  %7880 = vmatprep.subr.bf16.mxu0 %v7516
  %7881 = vmatpush1.bf16.msra.mxu0 %v7515
  %7882 = vmatprep.subr.bf16.mxu0 %v7532
  %7883 = vmatpush1.bf16.msra.mxu0 %v7531
  %7884 = vmatprep.subr.bf16.mxu0 %v7548
  %7885 = vmatpush1.bf16.msra.mxu0 %v7547
  %7886 = vmatprep.subr.bf16.mxu0 %v7564
  %7887 = vmatpush1.bf16.msra.mxu0 %v7563
  %7888 = vmatprep.subr.bf16.mxu0 0
  %7889 = vmatpush1.bf16.msra.mxu0 0
  %7890 = vmatprep.subr.bf16.mxu0 0
  %7891 = vmatpush1.bf16.msra.mxu0 0
  %7892 = vmatprep.subr.bf16.mxu0 0
  %7893 = vmatpush1.bf16.msra.mxu0 0
  %7894 = vmatprep.subr.bf16.mxu0 0
  %7895 = vmatpush1.bf16.msra.mxu0 0
  %7896 = vmatprep.subr.bf16.mxu0 0
  %7897 = vmatpush1.bf16.msra.mxu0 0
  %7898 = vmatprep.subr.bf16.mxu0 0
  %7899 = vmatpush1.bf16.msra.mxu0 0
  %7900 = vmatprep.subr.bf16.mxu0 0
  %7901 = vmatpush1.bf16.msra.mxu0 0
  %7902 = vmatprep.subr.bf16.mxu0 0
  %7903 = vmatpush1.bf16.msra.mxu0 0
  %7904 = vmatprep.subr.bf16.mxu0 0
  %7905 = vmatpush1.bf16.msra.mxu0 0
  %7906 = vmatprep.subr.bf16.mxu0 0
  %7907 = vmatpush1.bf16.msra.mxu0 0
  %7908 = vmatprep.subr.bf16.mxu0 0
  %7909 = vmatpush1.bf16.msra.mxu0 0
  %7910 = vmatprep.subr.bf16.mxu0 0
  %7911 = vmatpush1.bf16.msra.mxu0 0
  %7912 = vmatprep.mubr.bf16.mxu0 0
  %7913 = vmatmul.mubr.bf16.gmra.mrb[0].mxu0 %v7632
  %v7914 = vpop.f32.mrb[0].mxu0
  %v7915 = vadd.f32 %v7282, %v7914
  %v7916 = vpop.f32.mrb[0].mxu0
  %v7917 = vadd.f32 %v7286, %v7916
  %v7918 = vpop.f32.mrb[0].mxu0
  %v7919 = vpop.f32.mrb[0].mxu0
  %7920 = vdwg.mxu0
  %7921 = vmatprep.subr.bf16.mxu0 %v7518
  %7922 = vmatpush1.bf16.msra.mxu0 %v7517
  %7923 = vmatprep.subr.bf16.mxu0 %v7534
  %7924 = vmatpush1.bf16.msra.mxu0 %v7533
  %7925 = vmatprep.subr.bf16.mxu0 %v7550
  %7926 = vmatpush1.bf16.msra.mxu0 %v7549
  %7927 = vmatprep.subr.bf16.mxu0 %v7566
  %7928 = vmatpush1.bf16.msra.mxu0 %v7565
  %7929 = vmatprep.subr.bf16.mxu0 0
  %7930 = vmatpush1.bf16.msra.mxu0 0
  %7931 = vmatprep.subr.bf16.mxu0 0
  %7932 = vmatpush1.bf16.msra.mxu0 0
  %7933 = vmatprep.subr.bf16.mxu0 0
  %7934 = vmatpush1.bf16.msra.mxu0 0
  %7935 = vmatprep.subr.bf16.mxu0 0
  %7936 = vmatpush1.bf16.msra.mxu0 0
  %7937 = vmatprep.subr.bf16.mxu0 0
  %7938 = vmatpush1.bf16.msra.mxu0 0
  %7939 = vmatprep.subr.bf16.mxu0 0
  %7940 = vmatpush1.bf16.msra.mxu0 0
  %7941 = vmatprep.subr.bf16.mxu0 0
  %7942 = vmatpush1.bf16.msra.mxu0 0
  %7943 = vmatprep.subr.bf16.mxu0 0
  %7944 = vmatpush1.bf16.msra.mxu0 0
  %7945 = vmatprep.subr.bf16.mxu0 0
  %7946 = vmatpush1.bf16.msra.mxu0 0
  %7947 = vmatprep.subr.bf16.mxu0 0
  %7948 = vmatpush1.bf16.msra.mxu0 0
  %7949 = vmatprep.subr.bf16.mxu0 0
  %7950 = vmatpush1.bf16.msra.mxu0 0
  %7951 = vmatprep.subr.bf16.mxu0 0
  %7952 = vmatpush1.bf16.msra.mxu0 0
  %7953 = vmatprep.mubr.bf16.mxu0 0
  %7954 = vmatmul.mubr.bf16.gmra.mrb[0].mxu0 %v7632
  %v7955 = vpop.f32.mrb[0].mxu0
  %v7956 = vadd.f32 %v7290, %v7955
  %v7957 = vpop.f32.mrb[0].mxu0
  %v7958 = vadd.f32 %v7294, %v7957
  %v7959 = vpop.f32.mrb[0].mxu0
  %v7960 = vpop.f32.mrb[0].mxu0
  %7961 = vdwg.mxu0
  %v7962 = vmax.f32 %v7669, 0.0
  %v7963 = vmax.f32 %v7671, 0.0
  %v7964 = vmax.f32 %v7710, 0.0
  %v7965 = vmax.f32 %v7712, 0.0
  %v7966 = vmax.f32 %v7751, 0.0
  %v7967 = vmax.f32 %v7753, 0.0
  %v7968 = vmax.f32 %v7792, 0.0
  %v7969 = vmax.f32 %v7794, 0.0
  %v7970 = vmax.f32 %v7833, 0.0
  %v7971 = vmax.f32 %v7835, 0.0
  %v7972 = vmax.f32 %v7874, 0.0
  %v7973 = vmax.f32 %v7876, 0.0
  %v7974 = vmax.f32 %v7915, 0.0
  %v7975 = vmax.f32 %v7917, 0.0
  %v7976 = vmax.f32 %v7956, 0.0
  %v7977 = vmax.f32 %v7958, 0.0
  %v7978 = vpack.c.bf16 %v7962, %v7962
  %v7979 = vpack.c.bf16 %v7963, %v7963
  %v7980 = vpack.c.bf16 %v7964, %v7964
  %v7981 = vpack.c.bf16 %v7965, %v7965
  %v7982 = vpack.c.bf16 %v7966, %v7966
  %v7983 = vpack.c.bf16 %v7967, %v7967
  %v7984 = vpack.c.bf16 %v7968, %v7968
  %v7985 = vpack.c.bf16 %v7969, %v7969
  %v7986 = vpack.c.bf16 %v7970, %v7970
  %v7987 = vpack.c.bf16 %v7971, %v7971
  %v7988 = vpack.c.bf16 %v7972, %v7972
  %v7989 = vpack.c.bf16 %v7973, %v7973
  %v7990 = vpack.c.bf16 %v7974, %v7974
  %v7991 = vpack.c.bf16 %v7975, %v7975
  %v7992 = vpack.c.bf16 %v7976, %v7976
  %v7993 = vpack.c.bf16 %v7977, %v7977
  %s7994 = scalar_lea.vmem %s6, 3072
  %v7995 = vld [vmem:[%s7994] sm:$0xf]
  %v7996 = vld [vmem:[%s7994 + $0x4] sm:$0xf]
  %v7997 = vld [vmem:[%s7994 + $0x8] sm:$0xf]
  %v7998 = vld [vmem:[%s7994 + $0xc] sm:$0xf]
  %v7999 = vld [vmem:[%s7994 + $0x10] sm:$0xf]
  %v8000 = vld [vmem:[%s7994 + $0x14] sm:$0xf]
  %v8001 = vld [vmem:[%s7994 + $0x18] sm:$0xf]
  %v8002 = vld [vmem:[%s7994 + $0x1c] sm:$0xf]
  %v8003 = vld [vmem:[%s7994 + $0x20] sm:$0xf]
  %v8004 = vld [vmem:[%s7994 + $0x24] sm:$0xf]
  %v8005 = vld [vmem:[%s7994 + $0x28] sm:$0xf]
  %v8006 = vld [vmem:[%s7994 + $0x2c] sm:$0xf]
  %v8007 = vld [vmem:[%s7994 + $0x30] sm:$0xf]
  %v8008 = vld [vmem:[%s7994 + $0x34] sm:$0xf]
  %v8009 = vld [vmem:[%s7994 + $0x38] sm:$0xf]
  %v8010 = vld [vmem:[%s7994 + $0x3c] sm:$0xf]
  %v8011 = vld [vmem:[%s7994 + $0x40] sm:$0xf]
  %v8012 = vld [vmem:[%s7994 + $0x44] sm:$0xf]
  %v8013 = vld [vmem:[%s7994 + $0x48] sm:$0xf]
  %v8014 = vld [vmem:[%s7994 + $0x4c] sm:$0xf]
  %v8015 = vld [vmem:[%s7994 + $0x50] sm:$0xf]
  %v8016 = vld [vmem:[%s7994 + $0x54] sm:$0xf]
  %v8017 = vld [vmem:[%s7994 + $0x58] sm:$0xf]
  %v8018 = vld [vmem:[%s7994 + $0x5c] sm:$0xf]
  %v8019 = vld [vmem:[%s7994 + $0x60] sm:$0xf]
  %v8020 = vld [vmem:[%s7994 + $0x64] sm:$0xf]
  %v8021 = vld [vmem:[%s7994 + $0x68] sm:$0xf]
  %v8022 = vld [vmem:[%s7994 + $0x6c] sm:$0xf]
  %v8023 = vld [vmem:[%s7994 + $0x70] sm:$0xf]
  %v8024 = vld [vmem:[%s7994 + $0x74] sm:$0xf]
  %v8025 = vld [vmem:[%s7994 + $0x78] sm:$0xf]
  %v8026 = vld [vmem:[%s7994 + $0x7c] sm:$0xf]
  %v8027 = vld [vmem:[%s7994 + $0x80] sm:$0xf]
  %v8028 = vld [vmem:[%s7994 + $0x84] sm:$0xf]
  %v8029 = vld [vmem:[%s7994 + $0x88] sm:$0xf]
  %v8030 = vld [vmem:[%s7994 + $0x8c] sm:$0xf]
  %v8031 = vld [vmem:[%s7994 + $0x90] sm:$0xf]
  %v8032 = vld [vmem:[%s7994 + $0x94] sm:$0xf]
  %v8033 = vld [vmem:[%s7994 + $0x98] sm:$0xf]
  %v8034 = vld [vmem:[%s7994 + $0x9c] sm:$0xf]
  %v8035 = vld [vmem:[%s7994 + $0xa0] sm:$0xf]
  %v8036 = vld [vmem:[%s7994 + $0xa4] sm:$0xf]
  %v8037 = vld [vmem:[%s7994 + $0xa8] sm:$0xf]
  %v8038 = vld [vmem:[%s7994 + $0xac] sm:$0xf]
  %v8039 = vld [vmem:[%s7994 + $0xb0] sm:$0xf]
  %v8040 = vld [vmem:[%s7994 + $0xb4] sm:$0xf]
  %v8041 = vld [vmem:[%s7994 + $0xb8] sm:$0xf]
  %v8042 = vld [vmem:[%s7994 + $0xbc] sm:$0xf]
  %v8043 = vld [vmem:[%s7994 + $0xc0] sm:$0xf]
  %v8044 = vld [vmem:[%s7994 + $0xc4] sm:$0xf]
  %v8045 = vld [vmem:[%s7994 + $0xc8] sm:$0xf]
  %v8046 = vld [vmem:[%s7994 + $0xcc] sm:$0xf]
  %v8047 = vld [vmem:[%s7994 + $0xd0] sm:$0xf]
  %v8048 = vld [vmem:[%s7994 + $0xd4] sm:$0xf]
  %v8049 = vld [vmem:[%s7994 + $0xd8] sm:$0xf]
  %v8050 = vld [vmem:[%s7994 + $0xdc] sm:$0xf]
  %v8051 = vld [vmem:[%s7994 + $0xe0] sm:$0xf]
  %v8052 = vld [vmem:[%s7994 + $0xe4] sm:$0xf]
  %v8053 = vld [vmem:[%s7994 + $0xe8] sm:$0xf]
  %v8054 = vld [vmem:[%s7994 + $0xec] sm:$0xf]
  %v8055 = vld [vmem:[%s7994 + $0xf0] sm:$0xf]
  %v8056 = vld [vmem:[%s7994 + $0xf4] sm:$0xf]
  %v8057 = vld [vmem:[%s7994 + $0xf8] sm:$0xf]
  %v8058 = vld [vmem:[%s7994 + $0xfc] sm:$0xf]
  %v8059 = vld [vmem:[%s7994 + $0x100] sm:$0xf]
  %v8060 = vld [vmem:[%s7994 + $0x104] sm:$0xf]
  %v8061 = vld [vmem:[%s7994 + $0x108] sm:$0xf]
  %v8062 = vld [vmem:[%s7994 + $0x10c] sm:$0xf]
  %v8063 = vld [vmem:[%s7994 + $0x110] sm:$0xf]
  %v8064 = vld [vmem:[%s7994 + $0x114] sm:$0xf]
  %v8065 = vld [vmem:[%s7994 + $0x118] sm:$0xf]
  %v8066 = vld [vmem:[%s7994 + $0x11c] sm:$0xf]
  %v8067 = vld [vmem:[%s7994 + $0x120] sm:$0xf]
  %v8068 = vld [vmem:[%s7994 + $0x124] sm:$0xf]
  %v8069 = vld [vmem:[%s7994 + $0x128] sm:$0xf]
  %v8070 = vld [vmem:[%s7994 + $0x12c] sm:$0xf]
  %v8071 = vld [vmem:[%s7994 + $0x130] sm:$0xf]
  %v8072 = vld [vmem:[%s7994 + $0x134] sm:$0xf]
  %v8073 = vld [vmem:[%s7994 + $0x138] sm:$0xf]
  %v8074 = vld [vmem:[%s7994 + $0x13c] sm:$0xf]
  %v8075 = vld [vmem:[%s7994 + $0x140] sm:$0xf]
  %v8076 = vld [vmem:[%s7994 + $0x144] sm:$0xf]
  %v8077 = vld [vmem:[%s7994 + $0x148] sm:$0xf]
  %v8078 = vld [vmem:[%s7994 + $0x14c] sm:$0xf]
  %v8079 = vld [vmem:[%s7994 + $0x150] sm:$0xf]
  %v8080 = vld [vmem:[%s7994 + $0x154] sm:$0xf]
  %v8081 = vld [vmem:[%s7994 + $0x158] sm:$0xf]
  %v8082 = vld [vmem:[%s7994 + $0x15c] sm:$0xf]
  %v8083 = vld [vmem:[%s7994 + $0x160] sm:$0xf]
  %v8084 = vld [vmem:[%s7994 + $0x164] sm:$0xf]
  %v8085 = vld [vmem:[%s7994 + $0x168] sm:$0xf]
  %v8086 = vld [vmem:[%s7994 + $0x16c] sm:$0xf]
  %v8087 = vld [vmem:[%s7994 + $0x170] sm:$0xf]
  %v8088 = vld [vmem:[%s7994 + $0x174] sm:$0xf]
  %v8089 = vld [vmem:[%s7994 + $0x178] sm:$0xf]
  %v8090 = vld [vmem:[%s7994 + $0x17c] sm:$0xf]
  %v8091 = vld [vmem:[%s7994 + $0x180] sm:$0xf]
  %v8092 = vld [vmem:[%s7994 + $0x184] sm:$0xf]
  %v8093 = vld [vmem:[%s7994 + $0x188] sm:$0xf]
  %v8094 = vld [vmem:[%s7994 + $0x18c] sm:$0xf]
  %v8095 = vld [vmem:[%s7994 + $0x190] sm:$0xf]
  %v8096 = vld [vmem:[%s7994 + $0x194] sm:$0xf]
  %v8097 = vld [vmem:[%s7994 + $0x198] sm:$0xf]
  %v8098 = vld [vmem:[%s7994 + $0x19c] sm:$0xf]
  %v8099 = vld [vmem:[%s7994 + $0x1a0] sm:$0xf]
  %v8100 = vld [vmem:[%s7994 + $0x1a4] sm:$0xf]
  %v8101 = vld [vmem:[%s7994 + $0x1a8] sm:$0xf]
  %v8102 = vld [vmem:[%s7994 + $0x1ac] sm:$0xf]
  %v8103 = vld [vmem:[%s7994 + $0x1b0] sm:$0xf]
  %v8104 = vld [vmem:[%s7994 + $0x1b4] sm:$0xf]
  %v8105 = vld [vmem:[%s7994 + $0x1b8] sm:$0xf]
  %v8106 = vld [vmem:[%s7994 + $0x1bc] sm:$0xf]
  %v8107 = vld [vmem:[%s7994 + $0x1c0] sm:$0xf]
  %v8108 = vld [vmem:[%s7994 + $0x1c4] sm:$0xf]
  %v8109 = vld [vmem:[%s7994 + $0x1c8] sm:$0xf]
  %v8110 = vld [vmem:[%s7994 + $0x1cc] sm:$0xf]
  %v8111 = vld [vmem:[%s7994 + $0x1d0] sm:$0xf]
  %v8112 = vld [vmem:[%s7994 + $0x1d4] sm:$0xf]
  %v8113 = vld [vmem:[%s7994 + $0x1d8] sm:$0xf]
  %v8114 = vld [vmem:[%s7994 + $0x1dc] sm:$0xf]
  %v8115 = vld [vmem:[%s7994 + $0x1e0] sm:$0xf]
  %v8116 = vld [vmem:[%s7994 + $0x1e4] sm:$0xf]
  %v8117 = vld [vmem:[%s7994 + $0x1e8] sm:$0xf]
  %v8118 = vld [vmem:[%s7994 + $0x1ec] sm:$0xf]
  %v8119 = vld [vmem:[%s7994 + $0x1f0] sm:$0xf]
  %v8120 = vld [vmem:[%s7994 + $0x1f4] sm:$0xf]
  %v8121 = vld [vmem:[%s7994 + $0x1f8] sm:$0xf]
  %v8122 = vld [vmem:[%s7994 + $0x1fc] sm:$0xf]
  %v8123 = vld [vmem:[%s7994 + $0x200] sm:$0xf]
  %v8124 = vld [vmem:[%s7994 + $0x204] sm:$0xf]
  %v8125 = vld [vmem:[%s7994 + $0x208] sm:$0xf]
  %v8126 = vld [vmem:[%s7994 + $0x20c] sm:$0xf]
  %v8127 = vld [vmem:[%s7994 + $0x210] sm:$0xf]
  %v8128 = vld [vmem:[%s7994 + $0x214] sm:$0xf]
  %v8129 = vld [vmem:[%s7994 + $0x218] sm:$0xf]
  %v8130 = vld [vmem:[%s7994 + $0x21c] sm:$0xf]
  %v8131 = vld [vmem:[%s7994 + $0x220] sm:$0xf]
  %v8132 = vld [vmem:[%s7994 + $0x224] sm:$0xf]
  %v8133 = vld [vmem:[%s7994 + $0x228] sm:$0xf]
  %v8134 = vld [vmem:[%s7994 + $0x22c] sm:$0xf]
  %v8135 = vld [vmem:[%s7994 + $0x230] sm:$0xf]
  %v8136 = vld [vmem:[%s7994 + $0x234] sm:$0xf]
  %v8137 = vld [vmem:[%s7994 + $0x238] sm:$0xf]
  %v8138 = vld [vmem:[%s7994 + $0x23c] sm:$0xf]
  %v8139 = vld [vmem:[%s7994 + $0x240] sm:$0xf]
  %v8140 = vld [vmem:[%s7994 + $0x244] sm:$0xf]
  %v8141 = vld [vmem:[%s7994 + $0x248] sm:$0xf]
  %v8142 = vld [vmem:[%s7994 + $0x24c] sm:$0xf]
  %v8143 = vld [vmem:[%s7994 + $0x250] sm:$0xf]
  %v8144 = vld [vmem:[%s7994 + $0x254] sm:$0xf]
  %v8145 = vld [vmem:[%s7994 + $0x258] sm:$0xf]
  %v8146 = vld [vmem:[%s7994 + $0x25c] sm:$0xf]
  %v8147 = vld [vmem:[%s7994 + $0x260] sm:$0xf]
  %v8148 = vld [vmem:[%s7994 + $0x264] sm:$0xf]
  %v8149 = vld [vmem:[%s7994 + $0x268] sm:$0xf]
  %v8150 = vld [vmem:[%s7994 + $0x26c] sm:$0xf]
  %v8151 = vld [vmem:[%s7994 + $0x270] sm:$0xf]
  %v8152 = vld [vmem:[%s7994 + $0x274] sm:$0xf]
  %v8153 = vld [vmem:[%s7994 + $0x278] sm:$0xf]
  %v8154 = vld [vmem:[%s7994 + $0x27c] sm:$0xf]
  %v8155 = vld [vmem:[%s7994 + $0x280] sm:$0xf]
  %v8156 = vld [vmem:[%s7994 + $0x284] sm:$0xf]
  %v8157 = vld [vmem:[%s7994 + $0x288] sm:$0xf]
  %v8158 = vld [vmem:[%s7994 + $0x28c] sm:$0xf]
  %v8159 = vld [vmem:[%s7994 + $0x290] sm:$0xf]
  %v8160 = vld [vmem:[%s7994 + $0x294] sm:$0xf]
  %v8161 = vld [vmem:[%s7994 + $0x298] sm:$0xf]
  %v8162 = vld [vmem:[%s7994 + $0x29c] sm:$0xf]
  %v8163 = vld [vmem:[%s7994 + $0x2a0] sm:$0xf]
  %v8164 = vld [vmem:[%s7994 + $0x2a4] sm:$0xf]
  %v8165 = vld [vmem:[%s7994 + $0x2a8] sm:$0xf]
  %v8166 = vld [vmem:[%s7994 + $0x2ac] sm:$0xf]
  %v8167 = vld [vmem:[%s7994 + $0x2b0] sm:$0xf]
  %v8168 = vld [vmem:[%s7994 + $0x2b4] sm:$0xf]
  %v8169 = vld [vmem:[%s7994 + $0x2b8] sm:$0xf]
  %v8170 = vld [vmem:[%s7994 + $0x2bc] sm:$0xf]
  %v8171 = vld [vmem:[%s7994 + $0x2c0] sm:$0xf]
  %v8172 = vld [vmem:[%s7994 + $0x2c4] sm:$0xf]
  %v8173 = vld [vmem:[%s7994 + $0x2c8] sm:$0xf]
  %v8174 = vld [vmem:[%s7994 + $0x2cc] sm:$0xf]
  %v8175 = vld [vmem:[%s7994 + $0x2d0] sm:$0xf]
  %v8176 = vld [vmem:[%s7994 + $0x2d4] sm:$0xf]
  %v8177 = vld [vmem:[%s7994 + $0x2d8] sm:$0xf]
  %v8178 = vld [vmem:[%s7994 + $0x2dc] sm:$0xf]
  %v8179 = vld [vmem:[%s7994 + $0x2e0] sm:$0xf]
  %v8180 = vld [vmem:[%s7994 + $0x2e4] sm:$0xf]
  %v8181 = vld [vmem:[%s7994 + $0x2e8] sm:$0xf]
  %v8182 = vld [vmem:[%s7994 + $0x2ec] sm:$0xf]
  %v8183 = vld [vmem:[%s7994 + $0x2f0] sm:$0xf]
  %v8184 = vld [vmem:[%s7994 + $0x2f4] sm:$0xf]
  %v8185 = vld [vmem:[%s7994 + $0x2f8] sm:$0xf]
  %v8186 = vld [vmem:[%s7994 + $0x2fc] sm:$0xf]
  %v8187 = vld [vmem:[%s7994 + $0x300] sm:$0xf]
  %v8188 = vld [vmem:[%s7994 + $0x304] sm:$0xf]
  %v8189 = vld [vmem:[%s7994 + $0x308] sm:$0xf]
  %v8190 = vld [vmem:[%s7994 + $0x30c] sm:$0xf]
  %v8191 = vld [vmem:[%s7994 + $0x310] sm:$0xf]
  %v8192 = vld [vmem:[%s7994 + $0x314] sm:$0xf]
  %v8193 = vld [vmem:[%s7994 + $0x318] sm:$0xf]
  %v8194 = vld [vmem:[%s7994 + $0x31c] sm:$0xf]
  %v8195 = vld [vmem:[%s7994 + $0x320] sm:$0xf]
  %v8196 = vld [vmem:[%s7994 + $0x324] sm:$0xf]
  %v8197 = vld [vmem:[%s7994 + $0x328] sm:$0xf]
  %v8198 = vld [vmem:[%s7994 + $0x32c] sm:$0xf]
  %v8199 = vld [vmem:[%s7994 + $0x330] sm:$0xf]
  %v8200 = vld [vmem:[%s7994 + $0x334] sm:$0xf]
  %v8201 = vld [vmem:[%s7994 + $0x338] sm:$0xf]
  %v8202 = vld [vmem:[%s7994 + $0x33c] sm:$0xf]
  %v8203 = vld [vmem:[%s7994 + $0x340] sm:$0xf]
  %v8204 = vld [vmem:[%s7994 + $0x344] sm:$0xf]
  %v8205 = vld [vmem:[%s7994 + $0x348] sm:$0xf]
  %v8206 = vld [vmem:[%s7994 + $0x34c] sm:$0xf]
  %v8207 = vld [vmem:[%s7994 + $0x350] sm:$0xf]
  %v8208 = vld [vmem:[%s7994 + $0x354] sm:$0xf]
  %v8209 = vld [vmem:[%s7994 + $0x358] sm:$0xf]
  %v8210 = vld [vmem:[%s7994 + $0x35c] sm:$0xf]
  %v8211 = vld [vmem:[%s7994 + $0x360] sm:$0xf]
  %v8212 = vld [vmem:[%s7994 + $0x364] sm:$0xf]
  %v8213 = vld [vmem:[%s7994 + $0x368] sm:$0xf]
  %v8214 = vld [vmem:[%s7994 + $0x36c] sm:$0xf]
  %v8215 = vld [vmem:[%s7994 + $0x370] sm:$0xf]
  %v8216 = vld [vmem:[%s7994 + $0x374] sm:$0xf]
  %v8217 = vld [vmem:[%s7994 + $0x378] sm:$0xf]
  %v8218 = vld [vmem:[%s7994 + $0x37c] sm:$0xf]
  %v8219 = vld [vmem:[%s7994 + $0x380] sm:$0xf]
  %v8220 = vld [vmem:[%s7994 + $0x384] sm:$0xf]
  %v8221 = vld [vmem:[%s7994 + $0x388] sm:$0xf]
  %v8222 = vld [vmem:[%s7994 + $0x38c] sm:$0xf]
  %v8223 = vld [vmem:[%s7994 + $0x390] sm:$0xf]
  %v8224 = vld [vmem:[%s7994 + $0x394] sm:$0xf]
  %v8225 = vld [vmem:[%s7994 + $0x398] sm:$0xf]
  %v8226 = vld [vmem:[%s7994 + $0x39c] sm:$0xf]
  %v8227 = vld [vmem:[%s7994 + $0x3a0] sm:$0xf]
  %v8228 = vld [vmem:[%s7994 + $0x3a4] sm:$0xf]
  %v8229 = vld [vmem:[%s7994 + $0x3a8] sm:$0xf]
  %v8230 = vld [vmem:[%s7994 + $0x3ac] sm:$0xf]
  %v8231 = vld [vmem:[%s7994 + $0x3b0] sm:$0xf]
  %v8232 = vld [vmem:[%s7994 + $0x3b4] sm:$0xf]
  %v8233 = vld [vmem:[%s7994 + $0x3b8] sm:$0xf]
  %v8234 = vld [vmem:[%s7994 + $0x3bc] sm:$0xf]
  %v8235 = vld [vmem:[%s7994 + $0x3c0] sm:$0xf]
  %v8236 = vld [vmem:[%s7994 + $0x3c4] sm:$0xf]
  %v8237 = vld [vmem:[%s7994 + $0x3c8] sm:$0xf]
  %v8238 = vld [vmem:[%s7994 + $0x3cc] sm:$0xf]
  %v8239 = vld [vmem:[%s7994 + $0x3d0] sm:$0xf]
  %v8240 = vld [vmem:[%s7994 + $0x3d4] sm:$0xf]
  %v8241 = vld [vmem:[%s7994 + $0x3d8] sm:$0xf]
  %v8242 = vld [vmem:[%s7994 + $0x3dc] sm:$0xf]
  %v8243 = vld [vmem:[%s7994 + $0x3e0] sm:$0xf]
  %v8244 = vld [vmem:[%s7994 + $0x3e4] sm:$0xf]
  %v8245 = vld [vmem:[%s7994 + $0x3e8] sm:$0xf]
  %v8246 = vld [vmem:[%s7994 + $0x3ec] sm:$0xf]
  %v8247 = vld [vmem:[%s7994 + $0x3f0] sm:$0xf]
  %v8248 = vld [vmem:[%s7994 + $0x3f4] sm:$0xf]
  %v8249 = vld [vmem:[%s7994 + $0x3f8] sm:$0xf]
  %v8250 = vld [vmem:[%s7994 + $0x3fc] sm:$0xf]
  %v8251 = vlaneseq
  %v8252 = vshrl.u32 %v8251, 7
  %v8253 = vsub.s32 3, %v8252
  %v8254 = vrot.slane %v7054, %v8253
  %v8511 = vunpack.c.l.b16 %v7995
  %v8512 = vunpack.c.l.b16 %v7996
  %v8513 = vunpack.c.l.b16 %v7997
  %v8514 = vunpack.c.l.b16 %v7998
  %v8515 = vunpack.c.l.b16 %v7999
  %v8516 = vunpack.c.l.b16 %v8000
  %v8517 = vunpack.c.l.b16 %v8001
  %v8518 = vunpack.c.l.b16 %v8002
  %v8519 = vunpack.c.l.b16 %v8003
  %v8520 = vunpack.c.l.b16 %v8004
  %v8521 = vunpack.c.l.b16 %v8005
  %v8522 = vunpack.c.l.b16 %v8006
  %v8523 = vunpack.c.l.b16 %v8007
  %v8524 = vunpack.c.l.b16 %v8008
  %v8525 = vunpack.c.l.b16 %v8009
  %v8526 = vunpack.c.l.b16 %v8010
  %v8527 = vunpack.c.l.b16 %v8011
  %v8528 = vunpack.c.l.b16 %v8012
  %v8529 = vunpack.c.l.b16 %v8013
  %v8530 = vunpack.c.l.b16 %v8014
  %v8531 = vunpack.c.l.b16 %v8015
  %v8532 = vunpack.c.l.b16 %v8016
  %v8533 = vunpack.c.l.b16 %v8017
  %v8534 = vunpack.c.l.b16 %v8018
  %v8535 = vunpack.c.l.b16 %v8019
  %v8536 = vunpack.c.l.b16 %v8020
  %v8537 = vunpack.c.l.b16 %v8021
  %v8538 = vunpack.c.l.b16 %v8022
  %v8539 = vunpack.c.l.b16 %v8023
  %v8540 = vunpack.c.l.b16 %v8024
  %v8541 = vunpack.c.l.b16 %v8025
  %v8542 = vunpack.c.l.b16 %v8026
  %v8543 = vunpack.c.l.b16 %v8027
  %v8544 = vunpack.c.l.b16 %v8028
  %v8545 = vunpack.c.l.b16 %v8029
  %v8546 = vunpack.c.l.b16 %v8030
  %v8547 = vunpack.c.l.b16 %v8031
  %v8548 = vunpack.c.l.b16 %v8032
  %v8549 = vunpack.c.l.b16 %v8033
  %v8550 = vunpack.c.l.b16 %v8034
  %v8551 = vunpack.c.l.b16 %v8035
  %v8552 = vunpack.c.l.b16 %v8036
  %v8553 = vunpack.c.l.b16 %v8037
  %v8554 = vunpack.c.l.b16 %v8038
  %v8555 = vunpack.c.l.b16 %v8039
  %v8556 = vunpack.c.l.b16 %v8040
  %v8557 = vunpack.c.l.b16 %v8041
  %v8558 = vunpack.c.l.b16 %v8042
  %v8559 = vunpack.c.l.b16 %v8043
  %v8560 = vunpack.c.l.b16 %v8044
  %v8561 = vunpack.c.l.b16 %v8045
  %v8562 = vunpack.c.l.b16 %v8046
  %v8563 = vunpack.c.l.b16 %v8047
  %v8564 = vunpack.c.l.b16 %v8048
  %v8565 = vunpack.c.l.b16 %v8049
  %v8566 = vunpack.c.l.b16 %v8050
  %v8567 = vunpack.c.l.b16 %v8051
  %v8568 = vunpack.c.l.b16 %v8052
  %v8569 = vunpack.c.l.b16 %v8053
  %v8570 = vunpack.c.l.b16 %v8054
  %v8571 = vunpack.c.l.b16 %v8055
  %v8572 = vunpack.c.l.b16 %v8056
  %v8573 = vunpack.c.l.b16 %v8057
  %v8574 = vunpack.c.l.b16 %v8058
  %v8575 = vunpack.c.l.b16 %v8059
  %v8576 = vunpack.c.l.b16 %v8060
  %v8577 = vunpack.c.l.b16 %v8061
  %v8578 = vunpack.c.l.b16 %v8062
  %v8579 = vunpack.c.l.b16 %v8063
  %v8580 = vunpack.c.l.b16 %v8064
  %v8581 = vunpack.c.l.b16 %v8065
  %v8582 = vunpack.c.l.b16 %v8066
  %v8583 = vunpack.c.l.b16 %v8067
  %v8584 = vunpack.c.l.b16 %v8068
  %v8585 = vunpack.c.l.b16 %v8069
  %v8586 = vunpack.c.l.b16 %v8070
  %v8587 = vunpack.c.l.b16 %v8071
  %v8588 = vunpack.c.l.b16 %v8072
  %v8589 = vunpack.c.l.b16 %v8073
  %v8590 = vunpack.c.l.b16 %v8074
  %v8591 = vunpack.c.l.b16 %v8075
  %v8592 = vunpack.c.l.b16 %v8076
  %v8593 = vunpack.c.l.b16 %v8077
  %v8594 = vunpack.c.l.b16 %v8078
  %v8595 = vunpack.c.l.b16 %v8079
  %v8596 = vunpack.c.l.b16 %v8080
  %v8597 = vunpack.c.l.b16 %v8081
  %v8598 = vunpack.c.l.b16 %v8082
  %v8599 = vunpack.c.l.b16 %v8083
  %v8600 = vunpack.c.l.b16 %v8084
  %v8601 = vunpack.c.l.b16 %v8085
  %v8602 = vunpack.c.l.b16 %v8086
  %v8603 = vunpack.c.l.b16 %v8087
  %v8604 = vunpack.c.l.b16 %v8088
  %v8605 = vunpack.c.l.b16 %v8089
  %v8606 = vunpack.c.l.b16 %v8090
  %v8607 = vunpack.c.l.b16 %v8091
  %v8608 = vunpack.c.l.b16 %v8092
  %v8609 = vunpack.c.l.b16 %v8093
  %v8610 = vunpack.c.l.b16 %v8094
  %v8611 = vunpack.c.l.b16 %v8095
  %v8612 = vunpack.c.l.b16 %v8096
  %v8613 = vunpack.c.l.b16 %v8097
  %v8614 = vunpack.c.l.b16 %v8098
  %v8615 = vunpack.c.l.b16 %v8099
  %v8616 = vunpack.c.l.b16 %v8100
  %v8617 = vunpack.c.l.b16 %v8101
  %v8618 = vunpack.c.l.b16 %v8102
  %v8619 = vunpack.c.l.b16 %v8103
  %v8620 = vunpack.c.l.b16 %v8104
  %v8621 = vunpack.c.l.b16 %v8105
  %v8622 = vunpack.c.l.b16 %v8106
  %v8623 = vunpack.c.l.b16 %v8107
  %v8624 = vunpack.c.l.b16 %v8108
  %v8625 = vunpack.c.l.b16 %v8109
  %v8626 = vunpack.c.l.b16 %v8110
  %v8627 = vunpack.c.l.b16 %v8111
  %v8628 = vunpack.c.l.b16 %v8112
  %v8629 = vunpack.c.l.b16 %v8113
  %v8630 = vunpack.c.l.b16 %v8114
  %v8631 = vunpack.c.l.b16 %v8115
  %v8632 = vunpack.c.l.b16 %v8116
  %v8633 = vunpack.c.l.b16 %v8117
  %v8634 = vunpack.c.l.b16 %v8118
  %v8635 = vunpack.c.l.b16 %v8119
  %v8636 = vunpack.c.l.b16 %v8120
  %v8637 = vunpack.c.l.b16 %v8121
  %v8638 = vunpack.c.l.b16 %v8122
  %v8639 = vunpack.c.l.b16 %v8123
  %v8640 = vunpack.c.l.b16 %v8124
  %v8641 = vunpack.c.l.b16 %v8125
  %v8642 = vunpack.c.l.b16 %v8126
  %v8643 = vunpack.c.l.b16 %v8127
  %v8644 = vunpack.c.l.b16 %v8128
  %v8645 = vunpack.c.l.b16 %v8129
  %v8646 = vunpack.c.l.b16 %v8130
  %v8647 = vunpack.c.l.b16 %v8131
  %v8648 = vunpack.c.l.b16 %v8132
  %v8649 = vunpack.c.l.b16 %v8133
  %v8650 = vunpack.c.l.b16 %v8134
  %v8651 = vunpack.c.l.b16 %v8135
  %v8652 = vunpack.c.l.b16 %v8136
  %v8653 = vunpack.c.l.b16 %v8137
  %v8654 = vunpack.c.l.b16 %v8138
  %v8655 = vunpack.c.l.b16 %v8139
  %v8656 = vunpack.c.l.b16 %v8140
  %v8657 = vunpack.c.l.b16 %v8141
  %v8658 = vunpack.c.l.b16 %v8142
  %v8659 = vunpack.c.l.b16 %v8143
  %v8660 = vunpack.c.l.b16 %v8144
  %v8661 = vunpack.c.l.b16 %v8145
  %v8662 = vunpack.c.l.b16 %v8146
  %v8663 = vunpack.c.l.b16 %v8147
  %v8664 = vunpack.c.l.b16 %v8148
  %v8665 = vunpack.c.l.b16 %v8149
  %v8666 = vunpack.c.l.b16 %v8150
  %v8667 = vunpack.c.l.b16 %v8151
  %v8668 = vunpack.c.l.b16 %v8152
  %v8669 = vunpack.c.l.b16 %v8153
  %v8670 = vunpack.c.l.b16 %v8154
  %v8671 = vunpack.c.l.b16 %v8155
  %v8672 = vunpack.c.l.b16 %v8156
  %v8673 = vunpack.c.l.b16 %v8157
  %v8674 = vunpack.c.l.b16 %v8158
  %v8675 = vunpack.c.l.b16 %v8159
  %v8676 = vunpack.c.l.b16 %v8160
  %v8677 = vunpack.c.l.b16 %v8161
  %v8678 = vunpack.c.l.b16 %v8162
  %v8679 = vunpack.c.l.b16 %v8163
  %v8680 = vunpack.c.l.b16 %v8164
  %v8681 = vunpack.c.l.b16 %v8165
  %v8682 = vunpack.c.l.b16 %v8166
  %v8683 = vunpack.c.l.b16 %v8167
  %v8684 = vunpack.c.l.b16 %v8168
  %v8685 = vunpack.c.l.b16 %v8169
  %v8686 = vunpack.c.l.b16 %v8170
  %v8687 = vunpack.c.l.b16 %v8171
  %v8688 = vunpack.c.l.b16 %v8172
  %v8689 = vunpack.c.l.b16 %v8173
  %v8690 = vunpack.c.l.b16 %v8174
  %v8691 = vunpack.c.l.b16 %v8175
  %v8692 = vunpack.c.l.b16 %v8176
  %v8693 = vunpack.c.l.b16 %v8177
  %v8694 = vunpack.c.l.b16 %v8178
  %v8695 = vunpack.c.l.b16 %v8179
  %v8696 = vunpack.c.l.b16 %v8180
  %v8697 = vunpack.c.l.b16 %v8181
  %v8698 = vunpack.c.l.b16 %v8182
  %v8699 = vunpack.c.l.b16 %v8183
  %v8700 = vunpack.c.l.b16 %v8184
  %v8701 = vunpack.c.l.b16 %v8185
  %v8702 = vunpack.c.l.b16 %v8186
  %v8703 = vunpack.c.l.b16 %v8187
  %v8704 = vunpack.c.l.b16 %v8188
  %v8705 = vunpack.c.l.b16 %v8189
  %v8706 = vunpack.c.l.b16 %v8190
  %v8707 = vunpack.c.l.b16 %v8191
  %v8708 = vunpack.c.l.b16 %v8192
  %v8709 = vunpack.c.l.b16 %v8193
  %v8710 = vunpack.c.l.b16 %v8194
  %v8711 = vunpack.c.l.b16 %v8195
  %v8712 = vunpack.c.l.b16 %v8196
  %v8713 = vunpack.c.l.b16 %v8197
  %v8714 = vunpack.c.l.b16 %v8198
  %v8715 = vunpack.c.l.b16 %v8199
  %v8716 = vunpack.c.l.b16 %v8200
  %v8717 = vunpack.c.l.b16 %v8201
  %v8718 = vunpack.c.l.b16 %v8202
  %v8719 = vunpack.c.l.b16 %v8203
  %v8720 = vunpack.c.l.b16 %v8204
  %v8721 = vunpack.c.l.b16 %v8205
  %v8722 = vunpack.c.l.b16 %v8206
  %v8723 = vunpack.c.l.b16 %v8207
  %v8724 = vunpack.c.l.b16 %v8208
  %v8725 = vunpack.c.l.b16 %v8209
  %v8726 = vunpack.c.l.b16 %v8210
  %v8727 = vunpack.c.l.b16 %v8211
  %v8728 = vunpack.c.l.b16 %v8212
  %v8729 = vunpack.c.l.b16 %v8213
  %v8730 = vunpack.c.l.b16 %v8214
  %v8731 = vunpack.c.l.b16 %v8215
  %v8732 = vunpack.c.l.b16 %v8216
  %v8733 = vunpack.c.l.b16 %v8217
  %v8734 = vunpack.c.l.b16 %v8218
  %v8735 = vunpack.c.l.b16 %v8219
  %v8736 = vunpack.c.l.b16 %v8220
  %v8737 = vunpack.c.l.b16 %v8221
  %v8738 = vunpack.c.l.b16 %v8222
  %v8739 = vunpack.c.l.b16 %v8223
  %v8740 = vunpack.c.l.b16 %v8224
  %v8741 = vunpack.c.l.b16 %v8225
  %v8742 = vunpack.c.l.b16 %v8226
  %v8743 = vunpack.c.l.b16 %v8227
  %v8744 = vunpack.c.l.b16 %v8228
  %v8745 = vunpack.c.l.b16 %v8229
  %v8746 = vunpack.c.l.b16 %v8230
  %v8747 = vunpack.c.l.b16 %v8231
  %v8748 = vunpack.c.l.b16 %v8232
  %v8749 = vunpack.c.l.b16 %v8233
  %v8750 = vunpack.c.l.b16 %v8234
  %v8751 = vunpack.c.l.b16 %v8235
  %v8752 = vunpack.c.l.b16 %v8236
  %v8753 = vunpack.c.l.b16 %v8237
  %v8754 = vunpack.c.l.b16 %v8238
  %v8755 = vunpack.c.l.b16 %v8239
  %v8756 = vunpack.c.l.b16 %v8240
  %v8757 = vunpack.c.l.b16 %v8241
  %v8758 = vunpack.c.l.b16 %v8242
  %v8759 = vunpack.c.l.b16 %v8243
  %v8760 = vunpack.c.l.b16 %v8244
  %v8761 = vunpack.c.l.b16 %v8245
  %v8762 = vunpack.c.l.b16 %v8246
  %v8763 = vunpack.c.l.b16 %v8247
  %v8764 = vunpack.c.l.b16 %v8248
  %v8765 = vunpack.c.l.b16 %v8249
  %v8766 = vunpack.c.l.b16 %v8250
  %v8767 = vpack.c.b16 %v8512, %v8511
  %v8768 = vpack.c.b16 %v8514, %v8513
  %v8769 = vpack.c.b16 %v8516, %v8515
  %v8770 = vpack.c.b16 %v8518, %v8517
  %v8771 = vpack.c.b16 %v8520, %v8519
  %v8772 = vpack.c.b16 %v8522, %v8521
  %v8773 = vpack.c.b16 %v8524, %v8523
  %v8774 = vpack.c.b16 %v8526, %v8525
  %v8775 = vpack.c.b16 %v8528, %v8527
  %v8776 = vpack.c.b16 %v8530, %v8529
  %v8777 = vpack.c.b16 %v8532, %v8531
  %v8778 = vpack.c.b16 %v8534, %v8533
  %v8779 = vpack.c.b16 %v8536, %v8535
  %v8780 = vpack.c.b16 %v8538, %v8537
  %v8781 = vpack.c.b16 %v8540, %v8539
  %v8782 = vpack.c.b16 %v8542, %v8541
  %v8783 = vpack.c.b16 %v8544, %v8543
  %v8784 = vpack.c.b16 %v8546, %v8545
  %v8785 = vpack.c.b16 %v8548, %v8547
  %v8786 = vpack.c.b16 %v8550, %v8549
  %v8787 = vpack.c.b16 %v8552, %v8551
  %v8788 = vpack.c.b16 %v8554, %v8553
  %v8789 = vpack.c.b16 %v8556, %v8555
  %v8790 = vpack.c.b16 %v8558, %v8557
  %v8791 = vpack.c.b16 %v8560, %v8559
  %v8792 = vpack.c.b16 %v8562, %v8561
  %v8793 = vpack.c.b16 %v8564, %v8563
  %v8794 = vpack.c.b16 %v8566, %v8565
  %v8795 = vpack.c.b16 %v8568, %v8567
  %v8796 = vpack.c.b16 %v8570, %v8569
  %v8797 = vpack.c.b16 %v8572, %v8571
  %v8798 = vpack.c.b16 %v8574, %v8573
  %v8799 = vpack.c.b16 %v8576, %v8575
  %v8800 = vpack.c.b16 %v8578, %v8577
  %v8801 = vpack.c.b16 %v8580, %v8579
  %v8802 = vpack.c.b16 %v8582, %v8581
  %v8803 = vpack.c.b16 %v8584, %v8583
  %v8804 = vpack.c.b16 %v8586, %v8585
  %v8805 = vpack.c.b16 %v8588, %v8587
  %v8806 = vpack.c.b16 %v8590, %v8589
  %v8807 = vpack.c.b16 %v8592, %v8591
  %v8808 = vpack.c.b16 %v8594, %v8593
  %v8809 = vpack.c.b16 %v8596, %v8595
  %v8810 = vpack.c.b16 %v8598, %v8597
  %v8811 = vpack.c.b16 %v8600, %v8599
  %v8812 = vpack.c.b16 %v8602, %v8601
  %v8813 = vpack.c.b16 %v8604, %v8603
  %v8814 = vpack.c.b16 %v8606, %v8605
  %v8815 = vpack.c.b16 %v8608, %v8607
  %v8816 = vpack.c.b16 %v8610, %v8609
  %v8817 = vpack.c.b16 %v8612, %v8611
  %v8818 = vpack.c.b16 %v8614, %v8613
  %v8819 = vpack.c.b16 %v8616, %v8615
  %v8820 = vpack.c.b16 %v8618, %v8617
  %v8821 = vpack.c.b16 %v8620, %v8619
  %v8822 = vpack.c.b16 %v8622, %v8621
  %v8823 = vpack.c.b16 %v8624, %v8623
  %v8824 = vpack.c.b16 %v8626, %v8625
  %v8825 = vpack.c.b16 %v8628, %v8627
  %v8826 = vpack.c.b16 %v8630, %v8629
  %v8827 = vpack.c.b16 %v8632, %v8631
  %v8828 = vpack.c.b16 %v8634, %v8633
  %v8829 = vpack.c.b16 %v8636, %v8635
  %v8830 = vpack.c.b16 %v8638, %v8637
  %v8831 = vpack.c.b16 %v8640, %v8639
  %v8832 = vpack.c.b16 %v8642, %v8641
  %v8833 = vpack.c.b16 %v8644, %v8643
  %v8834 = vpack.c.b16 %v8646, %v8645
  %v8835 = vpack.c.b16 %v8648, %v8647
  %v8836 = vpack.c.b16 %v8650, %v8649
  %v8837 = vpack.c.b16 %v8652, %v8651
  %v8838 = vpack.c.b16 %v8654, %v8653
  %v8839 = vpack.c.b16 %v8656, %v8655
  %v8840 = vpack.c.b16 %v8658, %v8657
  %v8841 = vpack.c.b16 %v8660, %v8659
  %v8842 = vpack.c.b16 %v8662, %v8661
  %v8843 = vpack.c.b16 %v8664, %v8663
  %v8844 = vpack.c.b16 %v8666, %v8665
  %v8845 = vpack.c.b16 %v8668, %v8667
  %v8846 = vpack.c.b16 %v8670, %v8669
  %v8847 = vpack.c.b16 %v8672, %v8671
  %v8848 = vpack.c.b16 %v8674, %v8673
  %v8849 = vpack.c.b16 %v8676, %v8675
  %v8850 = vpack.c.b16 %v8678, %v8677
  %v8851 = vpack.c.b16 %v8680, %v8679
  %v8852 = vpack.c.b16 %v8682, %v8681
  %v8853 = vpack.c.b16 %v8684, %v8683
  %v8854 = vpack.c.b16 %v8686, %v8685
  %v8855 = vpack.c.b16 %v8688, %v8687
  %v8856 = vpack.c.b16 %v8690, %v8689
  %v8857 = vpack.c.b16 %v8692, %v8691
  %v8858 = vpack.c.b16 %v8694, %v8693
  %v8859 = vpack.c.b16 %v8696, %v8695
  %v8860 = vpack.c.b16 %v8698, %v8697
  %v8861 = vpack.c.b16 %v8700, %v8699
  %v8862 = vpack.c.b16 %v8702, %v8701
  %v8863 = vpack.c.b16 %v8704, %v8703
  %v8864 = vpack.c.b16 %v8706, %v8705
  %v8865 = vpack.c.b16 %v8708, %v8707
  %v8866 = vpack.c.b16 %v8710, %v8709
  %v8867 = vpack.c.b16 %v8712, %v8711
  %v8868 = vpack.c.b16 %v8714, %v8713
  %v8869 = vpack.c.b16 %v8716, %v8715
  %v8870 = vpack.c.b16 %v8718, %v8717
  %v8871 = vpack.c.b16 %v8720, %v8719
  %v8872 = vpack.c.b16 %v8722, %v8721
  %v8873 = vpack.c.b16 %v8724, %v8723
  %v8874 = vpack.c.b16 %v8726, %v8725
  %v8875 = vpack.c.b16 %v8728, %v8727
  %v8876 = vpack.c.b16 %v8730, %v8729
  %v8877 = vpack.c.b16 %v8732, %v8731
  %v8878 = vpack.c.b16 %v8734, %v8733
  %v8879 = vpack.c.b16 %v8736, %v8735
  %v8880 = vpack.c.b16 %v8738, %v8737
  %v8881 = vpack.c.b16 %v8740, %v8739
  %v8882 = vpack.c.b16 %v8742, %v8741
  %v8883 = vpack.c.b16 %v8744, %v8743
  %v8884 = vpack.c.b16 %v8746, %v8745
  %v8885 = vpack.c.b16 %v8748, %v8747
  %v8886 = vpack.c.b16 %v8750, %v8749
  %v8887 = vpack.c.b16 %v8752, %v8751
  %v8888 = vpack.c.b16 %v8754, %v8753
  %v8889 = vpack.c.b16 %v8756, %v8755
  %v8890 = vpack.c.b16 %v8758, %v8757
  %v8891 = vpack.c.b16 %v8760, %v8759
  %v8892 = vpack.c.b16 %v8762, %v8761
  %v8893 = vpack.c.b16 %v8764, %v8763
  %v8894 = vpack.c.b16 %v8766, %v8765
  %9023 = vmatprep.subr.bf16.mxu0 0
  %9024 = vmatpush1.bf16.msra.mxu0 %v8767
  %9025 = vmatprep.subr.bf16.mxu0 0
  %9026 = vmatpush1.bf16.msra.mxu0 %v8768
  %9027 = vmatprep.subr.bf16.mxu0 0
  %9028 = vmatpush1.bf16.msra.mxu0 %v8769
  %9029 = vmatprep.subr.bf16.mxu0 0
  %9030 = vmatpush1.bf16.msra.mxu0 %v8770
  %9031 = vmatprep.subr.bf16.mxu0 0
  %9032 = vmatpush1.bf16.msra.mxu0 %v8771
  %9033 = vmatprep.subr.bf16.mxu0 0
  %9034 = vmatpush1.bf16.msra.mxu0 %v8772
  %9035 = vmatprep.subr.bf16.mxu0 0
  %9036 = vmatpush1.bf16.msra.mxu0 %v8773
  %9037 = vmatprep.subr.bf16.mxu0 0
  %9038 = vmatpush1.bf16.msra.mxu0 %v8774
  %9039 = vmatprep.subr.bf16.mxu0 0
  %9040 = vmatpush1.bf16.msra.mxu0 %v8775
  %9041 = vmatprep.subr.bf16.mxu0 0
  %9042 = vmatpush1.bf16.msra.mxu0 %v8776
  %9043 = vmatprep.subr.bf16.mxu0 0
  %9044 = vmatpush1.bf16.msra.mxu0 %v8777
  %9045 = vmatprep.subr.bf16.mxu0 0
  %9046 = vmatpush1.bf16.msra.mxu0 %v8778
  %9047 = vmatprep.subr.bf16.mxu0 0
  %9048 = vmatpush1.bf16.msra.mxu0 %v8779
  %9049 = vmatprep.subr.bf16.mxu0 0
  %9050 = vmatpush1.bf16.msra.mxu0 %v8780
  %9051 = vmatprep.subr.bf16.mxu0 0
  %9052 = vmatpush1.bf16.msra.mxu0 %v8781
  %9053 = vmatprep.subr.bf16.mxu0 0
  %9054 = vmatpush1.bf16.msra.mxu0 %v8782
  %9055 = vmatprep.mubr.bf16.mxu0 %v7979
  %9056 = vmatmul.mubr.bf16.gmra.mrb[0].mxu0 %v7978
  %v9057 = vpop.f32.mrb[0].mxu0
  %v9058 = vadd.f32 %v8254, %v9057
  %v9059 = vpop.f32.mrb[0].mxu0
  %v9060 = vpop.f32.mrb[0].mxu0
  %v9061 = vpop.f32.mrb[0].mxu0
  %9062 = vdwg.mxu0
  %9063 = vmatprep.subr.bf16.mxu0 0
  %9064 = vmatpush1.bf16.msra.mxu0 %v8783
  %9065 = vmatprep.subr.bf16.mxu0 0
  %9066 = vmatpush1.bf16.msra.mxu0 %v8784
  %9067 = vmatprep.subr.bf16.mxu0 0
  %9068 = vmatpush1.bf16.msra.mxu0 %v8785
  %9069 = vmatprep.subr.bf16.mxu0 0
  %9070 = vmatpush1.bf16.msra.mxu0 %v8786
  %9071 = vmatprep.subr.bf16.mxu0 0
  %9072 = vmatpush1.bf16.msra.mxu0 %v8787
  %9073 = vmatprep.subr.bf16.mxu0 0
  %9074 = vmatpush1.bf16.msra.mxu0 %v8788
  %9075 = vmatprep.subr.bf16.mxu0 0
  %9076 = vmatpush1.bf16.msra.mxu0 %v8789
  %9077 = vmatprep.subr.bf16.mxu0 0
  %9078 = vmatpush1.bf16.msra.mxu0 %v8790
  %9079 = vmatprep.subr.bf16.mxu0 0
  %9080 = vmatpush1.bf16.msra.mxu0 %v8791
  %9081 = vmatprep.subr.bf16.mxu0 0
  %9082 = vmatpush1.bf16.msra.mxu0 %v8792
  %9083 = vmatprep.subr.bf16.mxu0 0
  %9084 = vmatpush1.bf16.msra.mxu0 %v8793
  %9085 = vmatprep.subr.bf16.mxu0 0
  %9086 = vmatpush1.bf16.msra.mxu0 %v8794
  %9087 = vmatprep.subr.bf16.mxu0 0
  %9088 = vmatpush1.bf16.msra.mxu0 %v8795
  %9089 = vmatprep.subr.bf16.mxu0 0
  %9090 = vmatpush1.bf16.msra.mxu0 %v8796
  %9091 = vmatprep.subr.bf16.mxu0 0
  %9092 = vmatpush1.bf16.msra.mxu0 %v8797
  %9093 = vmatprep.subr.bf16.mxu0 0
  %9094 = vmatpush1.bf16.msra.mxu0 %v8798
  %9095 = vmatprep.mubr.bf16.mxu0 %v7981
  %9096 = vmatmul.mubr.bf16.gmra.mrb[0].mxu0 %v7980
  %v9097 = vpop.f32.mrb[0].mxu0
  %v9098 = vadd.f32 %v9058, %v9097
  %v9099 = vpop.f32.mrb[0].mxu0
  %v9100 = vpop.f32.mrb[0].mxu0
  %v9101 = vpop.f32.mrb[0].mxu0
  %9102 = vdwg.mxu0
  %9103 = vmatprep.subr.bf16.mxu0 0
  %9104 = vmatpush1.bf16.msra.mxu0 %v8799
  %9105 = vmatprep.subr.bf16.mxu0 0
  %9106 = vmatpush1.bf16.msra.mxu0 %v8800
  %9107 = vmatprep.subr.bf16.mxu0 0
  %9108 = vmatpush1.bf16.msra.mxu0 %v8801
  %9109 = vmatprep.subr.bf16.mxu0 0
  %9110 = vmatpush1.bf16.msra.mxu0 %v8802
  %9111 = vmatprep.subr.bf16.mxu0 0
  %9112 = vmatpush1.bf16.msra.mxu0 %v8803
  %9113 = vmatprep.subr.bf16.mxu0 0
  %9114 = vmatpush1.bf16.msra.mxu0 %v8804
  %9115 = vmatprep.subr.bf16.mxu0 0
  %9116 = vmatpush1.bf16.msra.mxu0 %v8805
  %9117 = vmatprep.subr.bf16.mxu0 0
  %9118 = vmatpush1.bf16.msra.mxu0 %v8806
  %9119 = vmatprep.subr.bf16.mxu0 0
  %9120 = vmatpush1.bf16.msra.mxu0 %v8807
  %9121 = vmatprep.subr.bf16.mxu0 0
  %9122 = vmatpush1.bf16.msra.mxu0 %v8808
  %9123 = vmatprep.subr.bf16.mxu0 0
  %9124 = vmatpush1.bf16.msra.mxu0 %v8809
  %9125 = vmatprep.subr.bf16.mxu0 0
  %9126 = vmatpush1.bf16.msra.mxu0 %v8810
  %9127 = vmatprep.subr.bf16.mxu0 0
  %9128 = vmatpush1.bf16.msra.mxu0 %v8811
  %9129 = vmatprep.subr.bf16.mxu0 0
  %9130 = vmatpush1.bf16.msra.mxu0 %v8812
  %9131 = vmatprep.subr.bf16.mxu0 0
  %9132 = vmatpush1.bf16.msra.mxu0 %v8813
  %9133 = vmatprep.subr.bf16.mxu0 0
  %9134 = vmatpush1.bf16.msra.mxu0 %v8814
  %9135 = vmatprep.mubr.bf16.mxu0 %v7983
  %9136 = vmatmul.mubr.bf16.gmra.mrb[0].mxu0 %v7982
  %v9137 = vpop.f32.mrb[0].mxu0
  %v9138 = vadd.f32 %v9098, %v9137
  %v9139 = vpop.f32.mrb[0].mxu0
  %v9140 = vpop.f32.mrb[0].mxu0
  %v9141 = vpop.f32.mrb[0].mxu0
  %9142 = vdwg.mxu0
  %9143 = vmatprep.subr.bf16.mxu0 0
  %9144 = vmatpush1.bf16.msra.mxu0 %v8815
  %9145 = vmatprep.subr.bf16.mxu0 0
  %9146 = vmatpush1.bf16.msra.mxu0 %v8816
  %9147 = vmatprep.subr.bf16.mxu0 0
  %9148 = vmatpush1.bf16.msra.mxu0 %v8817
  %9149 = vmatprep.subr.bf16.mxu0 0
  %9150 = vmatpush1.bf16.msra.mxu0 %v8818
  %9151 = vmatprep.subr.bf16.mxu0 0
  %9152 = vmatpush1.bf16.msra.mxu0 %v8819
  %9153 = vmatprep.subr.bf16.mxu0 0
  %9154 = vmatpush1.bf16.msra.mxu0 %v8820
  %9155 = vmatprep.subr.bf16.mxu0 0
  %9156 = vmatpush1.bf16.msra.mxu0 %v8821
  %9157 = vmatprep.subr.bf16.mxu0 0
  %9158 = vmatpush1.bf16.msra.mxu0 %v8822
  %9159 = vmatprep.subr.bf16.mxu0 0
  %9160 = vmatpush1.bf16.msra.mxu0 %v8823
  %9161 = vmatprep.subr.bf16.mxu0 0
  %9162 = vmatpush1.bf16.msra.mxu0 %v8824
  %9163 = vmatprep.subr.bf16.mxu0 0
  %9164 = vmatpush1.bf16.msra.mxu0 %v8825
  %9165 = vmatprep.subr.bf16.mxu0 0
  %9166 = vmatpush1.bf16.msra.mxu0 %v8826
  %9167 = vmatprep.subr.bf16.mxu0 0
  %9168 = vmatpush1.bf16.msra.mxu0 %v8827
  %9169 = vmatprep.subr.bf16.mxu0 0
  %9170 = vmatpush1.bf16.msra.mxu0 %v8828
  %9171 = vmatprep.subr.bf16.mxu0 0
  %9172 = vmatpush1.bf16.msra.mxu0 %v8829
  %9173 = vmatprep.subr.bf16.mxu0 0
  %9174 = vmatpush1.bf16.msra.mxu0 %v8830
  %9175 = vmatprep.mubr.bf16.mxu0 %v7985
  %9176 = vmatmul.mubr.bf16.gmra.mrb[0].mxu0 %v7984
  %v9177 = vpop.f32.mrb[0].mxu0
  %v9178 = vadd.f32 %v9138, %v9177
  %v9179 = vpop.f32.mrb[0].mxu0
  %v9180 = vpop.f32.mrb[0].mxu0
  %v9181 = vpop.f32.mrb[0].mxu0
  %9182 = vdwg.mxu0
  %9183 = vmatprep.subr.bf16.mxu0 0
  %9184 = vmatpush1.bf16.msra.mxu0 %v8831
  %9185 = vmatprep.subr.bf16.mxu0 0
  %9186 = vmatpush1.bf16.msra.mxu0 %v8832
  %9187 = vmatprep.subr.bf16.mxu0 0
  %9188 = vmatpush1.bf16.msra.mxu0 %v8833
  %9189 = vmatprep.subr.bf16.mxu0 0
  %9190 = vmatpush1.bf16.msra.mxu0 %v8834
  %9191 = vmatprep.subr.bf16.mxu0 0
  %9192 = vmatpush1.bf16.msra.mxu0 %v8835
  %9193 = vmatprep.subr.bf16.mxu0 0
  %9194 = vmatpush1.bf16.msra.mxu0 %v8836
  %9195 = vmatprep.subr.bf16.mxu0 0
  %9196 = vmatpush1.bf16.msra.mxu0 %v8837
  %9197 = vmatprep.subr.bf16.mxu0 0
  %9198 = vmatpush1.bf16.msra.mxu0 %v8838
  %9199 = vmatprep.subr.bf16.mxu0 0
  %9200 = vmatpush1.bf16.msra.mxu0 %v8839
  %9201 = vmatprep.subr.bf16.mxu0 0
  %9202 = vmatpush1.bf16.msra.mxu0 %v8840
  %9203 = vmatprep.subr.bf16.mxu0 0
  %9204 = vmatpush1.bf16.msra.mxu0 %v8841
  %9205 = vmatprep.subr.bf16.mxu0 0
  %9206 = vmatpush1.bf16.msra.mxu0 %v8842
  %9207 = vmatprep.subr.bf16.mxu0 0
  %9208 = vmatpush1.bf16.msra.mxu0 %v8843
  %9209 = vmatprep.subr.bf16.mxu0 0
  %9210 = vmatpush1.bf16.msra.mxu0 %v8844
  %9211 = vmatprep.subr.bf16.mxu0 0
  %9212 = vmatpush1.bf16.msra.mxu0 %v8845
  %9213 = vmatprep.subr.bf16.mxu0 0
  %9214 = vmatpush1.bf16.msra.mxu0 %v8846
  %9215 = vmatprep.mubr.bf16.mxu0 %v7987
  %9216 = vmatmul.mubr.bf16.gmra.mrb[0].mxu0 %v7986
  %v9217 = vpop.f32.mrb[0].mxu0
  %v9218 = vadd.f32 %v9178, %v9217
  %v9219 = vpop.f32.mrb[0].mxu0
  %v9220 = vpop.f32.mrb[0].mxu0
  %v9221 = vpop.f32.mrb[0].mxu0
  %9222 = vdwg.mxu0
  %9223 = vmatprep.subr.bf16.mxu0 0
  %9224 = vmatpush1.bf16.msra.mxu0 %v8847
  %9225 = vmatprep.subr.bf16.mxu0 0
  %9226 = vmatpush1.bf16.msra.mxu0 %v8848
  %9227 = vmatprep.subr.bf16.mxu0 0
  %9228 = vmatpush1.bf16.msra.mxu0 %v8849
  %9229 = vmatprep.subr.bf16.mxu0 0
  %9230 = vmatpush1.bf16.msra.mxu0 %v8850
  %9231 = vmatprep.subr.bf16.mxu0 0
  %9232 = vmatpush1.bf16.msra.mxu0 %v8851
  %9233 = vmatprep.subr.bf16.mxu0 0
  %9234 = vmatpush1.bf16.msra.mxu0 %v8852
  %9235 = vmatprep.subr.bf16.mxu0 0
  %9236 = vmatpush1.bf16.msra.mxu0 %v8853
  %9237 = vmatprep.subr.bf16.mxu0 0
  %9238 = vmatpush1.bf16.msra.mxu0 %v8854
  %9239 = vmatprep.subr.bf16.mxu0 0
  %9240 = vmatpush1.bf16.msra.mxu0 %v8855
  %9241 = vmatprep.subr.bf16.mxu0 0
  %9242 = vmatpush1.bf16.msra.mxu0 %v8856
  %9243 = vmatprep.subr.bf16.mxu0 0
  %9244 = vmatpush1.bf16.msra.mxu0 %v8857
  %9245 = vmatprep.subr.bf16.mxu0 0
  %9246 = vmatpush1.bf16.msra.mxu0 %v8858
  %9247 = vmatprep.subr.bf16.mxu0 0
  %9248 = vmatpush1.bf16.msra.mxu0 %v8859
  %9249 = vmatprep.subr.bf16.mxu0 0
  %9250 = vmatpush1.bf16.msra.mxu0 %v8860
  %9251 = vmatprep.subr.bf16.mxu0 0
  %9252 = vmatpush1.bf16.msra.mxu0 %v8861
  %9253 = vmatprep.subr.bf16.mxu0 0
  %9254 = vmatpush1.bf16.msra.mxu0 %v8862
  %9255 = vmatprep.mubr.bf16.mxu0 %v7989
  %9256 = vmatmul.mubr.bf16.gmra.mrb[0].mxu0 %v7988
  %v9257 = vpop.f32.mrb[0].mxu0
  %v9258 = vadd.f32 %v9218, %v9257
  %v9259 = vpop.f32.mrb[0].mxu0
  %v9260 = vpop.f32.mrb[0].mxu0
  %v9261 = vpop.f32.mrb[0].mxu0
  %9262 = vdwg.mxu0
  %9263 = vmatprep.subr.bf16.mxu0 0
  %9264 = vmatpush1.bf16.msra.mxu0 %v8863
  %9265 = vmatprep.subr.bf16.mxu0 0
  %9266 = vmatpush1.bf16.msra.mxu0 %v8864
  %9267 = vmatprep.subr.bf16.mxu0 0
  %9268 = vmatpush1.bf16.msra.mxu0 %v8865
  %9269 = vmatprep.subr.bf16.mxu0 0
  %9270 = vmatpush1.bf16.msra.mxu0 %v8866
  %9271 = vmatprep.subr.bf16.mxu0 0
  %9272 = vmatpush1.bf16.msra.mxu0 %v8867
  %9273 = vmatprep.subr.bf16.mxu0 0
  %9274 = vmatpush1.bf16.msra.mxu0 %v8868
  %9275 = vmatprep.subr.bf16.mxu0 0
  %9276 = vmatpush1.bf16.msra.mxu0 %v8869
  %9277 = vmatprep.subr.bf16.mxu0 0
  %9278 = vmatpush1.bf16.msra.mxu0 %v8870
  %9279 = vmatprep.subr.bf16.mxu0 0
  %9280 = vmatpush1.bf16.msra.mxu0 %v8871
  %9281 = vmatprep.subr.bf16.mxu0 0
  %9282 = vmatpush1.bf16.msra.mxu0 %v8872
  %9283 = vmatprep.subr.bf16.mxu0 0
  %9284 = vmatpush1.bf16.msra.mxu0 %v8873
  %9285 = vmatprep.subr.bf16.mxu0 0
  %9286 = vmatpush1.bf16.msra.mxu0 %v8874
  %9287 = vmatprep.subr.bf16.mxu0 0
  %9288 = vmatpush1.bf16.msra.mxu0 %v8875
  %9289 = vmatprep.subr.bf16.mxu0 0
  %9290 = vmatpush1.bf16.msra.mxu0 %v8876
  %9291 = vmatprep.subr.bf16.mxu0 0
  %9292 = vmatpush1.bf16.msra.mxu0 %v8877
  %9293 = vmatprep.subr.bf16.mxu0 0
  %9294 = vmatpush1.bf16.msra.mxu0 %v8878
  %9295 = vmatprep.mubr.bf16.mxu0 %v7991
  %9296 = vmatmul.mubr.bf16.gmra.mrb[0].mxu0 %v7990
  %v9297 = vpop.f32.mrb[0].mxu0
  %v9298 = vadd.f32 %v9258, %v9297
  %v9299 = vpop.f32.mrb[0].mxu0
  %v9300 = vpop.f32.mrb[0].mxu0
  %v9301 = vpop.f32.mrb[0].mxu0
  %9302 = vdwg.mxu0
  %9303 = vmatprep.subr.bf16.mxu0 0
  %9304 = vmatpush1.bf16.msra.mxu0 %v8879
  %9305 = vmatprep.subr.bf16.mxu0 0
  %9306 = vmatpush1.bf16.msra.mxu0 %v8880
  %9307 = vmatprep.subr.bf16.mxu0 0
  %9308 = vmatpush1.bf16.msra.mxu0 %v8881
  %9309 = vmatprep.subr.bf16.mxu0 0
  %9310 = vmatpush1.bf16.msra.mxu0 %v8882
  %9311 = vmatprep.subr.bf16.mxu0 0
  %9312 = vmatpush1.bf16.msra.mxu0 %v8883
  %9313 = vmatprep.subr.bf16.mxu0 0
  %9314 = vmatpush1.bf16.msra.mxu0 %v8884
  %9315 = vmatprep.subr.bf16.mxu0 0
  %9316 = vmatpush1.bf16.msra.mxu0 %v8885
  %9317 = vmatprep.subr.bf16.mxu0 0
  %9318 = vmatpush1.bf16.msra.mxu0 %v8886
  %9319 = vmatprep.subr.bf16.mxu0 0
  %9320 = vmatpush1.bf16.msra.mxu0 %v8887
  %9321 = vmatprep.subr.bf16.mxu0 0
  %9322 = vmatpush1.bf16.msra.mxu0 %v8888
  %9323 = vmatprep.subr.bf16.mxu0 0
  %9324 = vmatpush1.bf16.msra.mxu0 %v8889
  %9325 = vmatprep.subr.bf16.mxu0 0
  %9326 = vmatpush1.bf16.msra.mxu0 %v8890
  %9327 = vmatprep.subr.bf16.mxu0 0
  %9328 = vmatpush1.bf16.msra.mxu0 %v8891
  %9329 = vmatprep.subr.bf16.mxu0 0
  %9330 = vmatpush1.bf16.msra.mxu0 %v8892
  %9331 = vmatprep.subr.bf16.mxu0 0
  %9332 = vmatpush1.bf16.msra.mxu0 %v8893
  %9333 = vmatprep.subr.bf16.mxu0 0
  %9334 = vmatpush1.bf16.msra.mxu0 %v8894
  %9335 = vmatprep.mubr.bf16.mxu0 %v7993
  %9336 = vmatmul.mubr.bf16.gmra.mrb[0].mxu0 %v7992
  %v9337 = vpop.f32.mrb[0].mxu0
  %v9338 = vadd.f32 %v9298, %v9337
  %v9339 = vpop.f32.mrb[0].mxu0
  %v9340 = vpop.f32.mrb[0].mxu0
  %v9341 = vpop.f32.mrb[0].mxu0
  %9342 = vdwg.mxu0
  %v9343 = vadd.f32 %v7159, %v9338
  %v9344 = vsel %vm196, %v9343, 0.0
  %9345 = vadd.xlane.f32.xlu0 %v9344
  %v9346 = vpop.xlane.xlu0 %9345
  %v9347 = vmul.f32 %v9346, %v200
  %v9348 = vsub.f32 %v9343, %v9347
  %v9349 = vmul.f32 %v9348, %v9348
  %v9350 = vsel %vm196, %v9349, 0.0
  %9351 = vadd.xlane.f32.xlu0 %v9350
  %v9352 = vpop.xlane.xlu0 %9351
  %v9353 = vmul.f32 %v9352, %v200
  %v9354 = vadd.f32 %v9353, 1e-05
  %v9355 = vrsqrt.pop %v9354
  %v9356 = vmul.f32 %v9348, %v9355
  %v9357 = vlaneseq
  %v9358 = vshrl.u32 %v9357, 7
  %v9359 = vsub.s32 4, %v9358
  %v9360 = vrot.slane %v7054, %v9359
  %v9361 = vmul.f32 %v9356, %v9360
  %v9362 = vlaneseq
  %v9363 = vshrl.u32 %v9362, 7
  %v9364 = vsub.s32 5, %v9363
  %v9365 = vrot.slane %v7054, %v9364
  %v9366 = vadd.f32 %v9361, %v9365
  %v9367 = vpack.c.bf16 %v9366, %v9366
  %v9368 = vld [vmem:[%s8] sm:$0xf]
  %v9369 = vld [vmem:[%s8 + $0x4] sm:$0xf]
  %v9370 = vld [vmem:[%s8 + $0x8] sm:$0xf]
  %v9371 = vld [vmem:[%s8 + $0xc] sm:$0xf]
  %v9372 = vld [vmem:[%s8 + $0x10] sm:$0xf]
  %v9373 = vld [vmem:[%s8 + $0x14] sm:$0xf]
  %v9374 = vld [vmem:[%s8 + $0x18] sm:$0xf]
  %v9375 = vld [vmem:[%s8 + $0x1c] sm:$0xf]
  %v9376 = vld [vmem:[%s9] sm:$0x1]
  %v9378 = vlaneseq
  %v9379 = vshrl.u32 %v9378, 7
  %v9380 = vsub.s32 0, %v9379
  %v9381 = vrot.slane %v9376, %v9380
  %v9391 = vunpack.c.l.b16 %v9368
  %v9392 = vunpack.c.l.b16 %v9369
  %v9393 = vunpack.c.l.b16 %v9370
  %v9394 = vunpack.c.l.b16 %v9371
  %v9395 = vunpack.c.l.b16 %v9372
  %v9396 = vunpack.c.l.b16 %v9373
  %v9397 = vunpack.c.l.b16 %v9374
  %v9398 = vunpack.c.l.b16 %v9375
  %v9399 = vpack.c.b16 %v9392, %v9391
  %v9400 = vpack.c.b16 %v9394, %v9393
  %v9401 = vpack.c.b16 %v9396, %v9395
  %v9402 = vpack.c.b16 %v9398, %v9397
  %v9408 = vsel %vm151, %v9367, 0
  %9410 = vmatprep.subr.bf16.mxu0 0
  %9411 = vmatpush1.bf16.msra.mxu0 %v9399
  %9412 = vmatprep.subr.bf16.mxu0 0
  %9413 = vmatpush1.bf16.msra.mxu0 %v9400
  %9414 = vmatprep.subr.bf16.mxu0 0
  %9415 = vmatpush1.bf16.msra.mxu0 %v9401
  %9416 = vmatprep.subr.bf16.mxu0 0
  %9417 = vmatpush1.bf16.msra.mxu0 %v9402
  %9418 = vmatprep.subr.bf16.mxu0 0
  %9419 = vmatpush1.bf16.msra.mxu0 0
  %9420 = vmatprep.subr.bf16.mxu0 0
  %9421 = vmatpush1.bf16.msra.mxu0 0
  %9422 = vmatprep.subr.bf16.mxu0 0
  %9423 = vmatpush1.bf16.msra.mxu0 0
  %9424 = vmatprep.subr.bf16.mxu0 0
  %9425 = vmatpush1.bf16.msra.mxu0 0
  %9426 = vmatprep.subr.bf16.mxu0 0
  %9427 = vmatpush1.bf16.msra.mxu0 0
  %9428 = vmatprep.subr.bf16.mxu0 0
  %9429 = vmatpush1.bf16.msra.mxu0 0
  %9430 = vmatprep.subr.bf16.mxu0 0
  %9431 = vmatpush1.bf16.msra.mxu0 0
  %9432 = vmatprep.subr.bf16.mxu0 0
  %9433 = vmatpush1.bf16.msra.mxu0 0
  %9434 = vmatprep.subr.bf16.mxu0 0
  %9435 = vmatpush1.bf16.msra.mxu0 0
  %9436 = vmatprep.subr.bf16.mxu0 0
  %9437 = vmatpush1.bf16.msra.mxu0 0
  %9438 = vmatprep.subr.bf16.mxu0 0
  %9439 = vmatpush1.bf16.msra.mxu0 0
  %9440 = vmatprep.subr.bf16.mxu0 0
  %9441 = vmatpush1.bf16.msra.mxu0 0
  %9442 = vmatprep.mubr.bf16.mxu0 0
  %9443 = vmatmul.mubr.bf16.gmra.mrb[0].mxu0 %v9408
  %v9444 = vpop.f32.mrb[0].mxu0
  %v9445 = vadd.f32 %v9381, %v9444
  %v9446 = vpop.f32.mrb[0].mxu0
  %v9447 = vpop.f32.mrb[0].mxu0
  %v9448 = vpop.f32.mrb[0].mxu0
  %9449 = vdwg.mxu0
  %v9450 = vmax.f32 %v9445, 0.0
  %v9451 = vpack.c.bf16 %v9450, %v9450
  %v9452 = vld [vmem:[%s10] sm:$0xf]
  %v9453 = vld [vmem:[%s10 + $0x4] sm:$0xf]
  %v9454 = vld [vmem:[%s10 + $0x8] sm:$0xf]
  %v9455 = vld [vmem:[%s10 + $0xc] sm:$0xf]
  %v9456 = vld [vmem:[#allocation2] sm:$0x1]
  %v9458 = vlaneseq
  %v9459 = vshrl.u32 %v9458, 7
  %v9460 = vsub.s32 0, %v9459
  %v9461 = vrot.slane %v9456, %v9460
  %v9467 = vunpack.c.l.b16 %v9452
  %v9468 = vunpack.c.l.b16 %v9453
  %v9469 = vunpack.c.l.b16 %v9454
  %v9470 = vunpack.c.l.b16 %v9455
  %v9471 = vpack.c.b16 %v9468, %v9467
  %v9472 = vpack.c.b16 %v9470, %v9469
  %v9476 = vsel %vm69, %v9451, 0
  %9478 = vmatprep.subr.bf16.mxu0 0
  %9479 = vmatpush1.bf16.msra.mxu0 %v9471
  %9480 = vmatprep.subr.bf16.mxu0 0
  %9481 = vmatpush1.bf16.msra.mxu0 %v9472
  %9482 = vmatprep.subr.bf16.mxu0 0
  %9483 = vmatpush1.bf16.msra.mxu0 0
  %9484 = vmatprep.subr.bf16.mxu0 0
  %9485 = vmatpush1.bf16.msra.mxu0 0
  %9486 = vmatprep.subr.bf16.mxu0 0
  %9487 = vmatpush1.bf16.msra.mxu0 0
  %9488 = vmatprep.subr.bf16.mxu0 0
  %9489 = vmatpush1.bf16.msra.mxu0 0
  %9490 = vmatprep.subr.bf16.mxu0 0
  %9491 = vmatpush1.bf16.msra.mxu0 0
  %9492 = vmatprep.subr.bf16.mxu0 0
  %9493 = vmatpush1.bf16.msra.mxu0 0
  %9494 = vmatprep.subr.bf16.mxu0 0
  %9495 = vmatpush1.bf16.msra.mxu0 0
  %9496 = vmatprep.subr.bf16.mxu0 0
  %9497 = vmatpush1.bf16.msra.mxu0 0
  %9498 = vmatprep.subr.bf16.mxu0 0
  %9499 = vmatpush1.bf16.msra.mxu0 0
  %9500 = vmatprep.subr.bf16.mxu0 0
  %9501 = vmatpush1.bf16.msra.mxu0 0
  %9502 = vmatprep.subr.bf16.mxu0 0
  %9503 = vmatpush1.bf16.msra.mxu0 0
  %9504 = vmatprep.subr.bf16.mxu0 0
  %9505 = vmatpush1.bf16.msra.mxu0 0
  %9506 = vmatprep.subr.bf16.mxu0 0
  %9507 = vmatpush1.bf16.msra.mxu0 0
  %9508 = vmatprep.subr.bf16.mxu0 0
  %9509 = vmatpush1.bf16.msra.mxu0 0
  %9510 = vmatprep.mubr.bf16.mxu0 0
  %9511 = vmatmul.mubr.bf16.gmra.mrb[0].mxu0 %v9476
  %v9512 = vpop.f32.mrb[0].mxu0
  %v9513 = vadd.f32 %v9461, %v9512
  %v9514 = vpop.f32.mrb[0].mxu0
  %v9515 = vpop.f32.mrb[0].mxu0
  %v9516 = vpop.f32.mrb[0].mxu0
  %9517 = vdwg.mxu0
  %vm9518 = vcmask 1024
  %9519 = vst.msk [vmem:[%s12] sm:$0x3] %vm9518, %v9513
  // Predicated region
  $region50: #{multimodal_transformer.1} parent=0 // pred_check
    _
  $region51: #{multimodal_transformer.1} parent=0 // pred_check_branch
    %9521 = sbr.rel (0) target = $region53
  $region52: #{multimodal_transformer.1} parent=0 // pred_region
    _
  $region53: #{multimodal_transformer.1} parent=0 // pred_fallthru
    _
  // Predicated region
  $region54: #{multimodal_transformer.1} parent=0 // pred_check
    _
  $region55: #{multimodal_transformer.1} parent=0 // pred_check_branch
    %9523 = sbr.rel (0) target = $region57
  $region56: #{multimodal_transformer.1} parent=0 // pred_region
    _
  $region57: #{multimodal_transformer.1} parent=0 // pred_fallthru
    _

</llo_original>
